<compile_context>
chip_gen: v6e
topology: v6e:2x2x1
jax: 0.10.0
libtpu: 0.0.40
codegen_flags: <defaults>
</compile_context>

<pallas_src>
import math
import numpy as np
import jax
import jax.numpy as jnp
from jax.experimental import pallas as pl
from jax.experimental.pallas import tpu as pltpu

# ----------------------------------------------------------------------------------
# Config mirroring ConvNetwork(networkDesc, dict_params)
# (the original module looks all three hyper-parameters up under key 'v')
# ----------------------------------------------------------------------------------
dict_params = {
    "out_channels": {"v": 8},
    "kernel_size": {"v": 5},
    "stride": {"v": 1},
}
networkDesc = [("out_channels", "v"), ("kernel_size", "v"), ("stride", "v")]

OUT_CHANNELS = dict_params[networkDesc[0][0]][networkDesc[0][1]]
KERNEL_SIZE = dict_params[networkDesc[1][0]][networkDesc[1][1]]
STRIDE = dict_params[networkDesc[2][0]][networkDesc[2][1]]
IN_CHANNELS = 3
IMG = 32
N_CLASSES = 10
TAILLE = int(math.ceil((IMG - KERNEL_SIZE + 1) / STRIDE) / 2)        # 14
FC_IN = OUT_CHANNELS * TAILLE * TAILLE                               # 1568
H_CONV = (IMG - KERNEL_SIZE) // STRIDE + 1                           # 28

# The fused kernel is specialized to the module's stride-1 configuration.
assert STRIDE == 1 and 2 * TAILLE <= H_CONV
# TODO(synk): generalize the flat-shift conv / pooling indexing to STRIDE != 1.

# Flat-spatial layout constants
P_FLAT = IMG * IMG                                   # 1024 flat positions / sample
CI_PAD = 4                                           # input channels padded 3 -> 4
K_TAPS = KERNEL_SIZE * KERNEL_SIZE                   # 25 conv taps
K_IM2COL = K_TAPS * CI_PAD                           # 100 = K of the single conv dot
S_MAX = (KERNEL_SIZE - 1) * IMG + (KERNEL_SIZE - 1)  # 132 largest tap shift
NPAD = 16                                            # FC out columns (10 + zero pad)
BT_MAX = 16                                          # samples per grid step


# ----------------------------------------------------------------------------------
# Fused kernel factory (BT / widths are trace-time constants)
# ----------------------------------------------------------------------------------
def _make_kernel(BT, W_TOT, W_M1, W_ACC):
    # x_ref:     [1, 4, WBLK]        bf16  BT images, flat (b*1024 + p), zero tail pad
    # wconv_ref: [8, 100]            bf16  w[co, (kh*5+kw)*4 + ci]  (ci==3 column = 0)
    # bconv_ref: [8, 1]              f32
    # wfc_ref:   [8, 1024, 16]       bf16  fc weights scattered to pooled anchors
    # bfc_ref:   [1, 16]             f32
    # out_ref:   [BT, 16]            f32
    # slab_ref:  [100, W_ACC]        bf16  VMEM im2col scratch (persistent)
    def kernel(x_ref, wconv_ref, bconv_ref, wfc_ref, bfc_ref, out_ref, slab_ref):
        x3 = x_ref[0]                                        # [4, WBLK] bf16

        # ---- in-VMEM im2col: 25 shifted [4, W_ACC] slices into the slab scratch ----
        for si in range(K_TAPS):
            kh, kw = divmod(si, KERNEL_SIZE)
            s = kh * IMG + kw
            slab_ref[si * CI_PAD:(si + 1) * CI_PAD, :] = x3[:, s:s + W_ACC]

        # ---- conv: ONE K=100 MXU dot covering the whole batch tile ----
        acc = jnp.dot(wconv_ref[...], slab_ref[...],
                      preferred_element_type=jnp.float32)    # [8, W_ACC] f32

        # ---- bias + ReLU (f32, stays in VMEM) ----
        h = jnp.maximum(acc + bconv_ref[...], 0.0)

        # ---- 2x2 max-pool via shifted-slice maxima (widths are 128-multiples) ----
        m1 = jnp.maximum(h[:, :W_M1], h[:, 1:W_M1 + 1])              # horizontal pair
        m2 = jnp.maximum(m1[:, :W_TOT], m1[:, IMG:IMG + W_TOT])      # vertical pair

        # ---- FC: per-channel [BT, 1024] @ [1024, 16] dots (M = BT), f32 accumulate.
        #      FC weights were pre-scattered to pooled-anchor rows (q = 64*ip + 2*jp);
        #      every non-anchor flat position carries exactly zero weight. ----
        m2b = m2.astype(jnp.bfloat16)
        fc = jnp.zeros((BT, NPAD), jnp.float32)
        for co in range(OUT_CHANNELS):
            rows = [m2b[co:co + 1, b * P_FLAT:(b + 1) * P_FLAT] for b in range(BT)]
            lhs = jnp.concatenate(rows, axis=0)                      # [BT, 1024] bf16
            fc = fc + jnp.dot(lhs, wfc_ref[co],
                              preferred_element_type=jnp.float32)
        out_ref[...] = fc + bfc_ref[...]                             # [BT, 16]

    return kernel


# ----------------------------------------------------------------------------------
# Wrapper: layout/weight preprocessing (tiny, XLA-side) + pallas_call
# ----------------------------------------------------------------------------------
def forward(x, w_conv, b_conv, w_fc, b_fc):
    B = x.shape[0]
    BT = min(BT_MAX, B)                      # samples per grid step
    NBLK = -(-B // BT)                       # grid length
    Bp = NBLK * BT

    W_TOT = BT * P_FLAT                      # pooled-map width of one batch tile
    W_M1 = W_TOT + 128                       # horizontal-pool width
    W_ACC = W_TOT + 256                      # conv-accumulator width
    WBLK = W_TOT + 512                       # padded per-block image width (>= W_ACC+S_MAX)
    assert W_ACC + S_MAX <= WBLK

    # ---- images: [B,3,32,32] -> per-block [NBLK, 4, BT*1024 (+zero tail)] bf16 ----
    xf = x.reshape(B, IN_CHANNELS, P_FLAT)
    xf = jnp.pad(xf, ((0, Bp - B), (0, CI_PAD - IN_CHANNELS), (0, 0)))
    xb = (xf.reshape(NBLK, BT, CI_PAD, P_FLAT)
            .transpose(0, 2, 1, 3)
            .reshape(NBLK, CI_PAD, W_TOT))
    xb = jnp.pad(xb, ((0, 0), (0, 0), (0, WBLK - W_TOT))).astype(jnp.bfloat16)

    # ---- conv weights: [co, ci, kh, kw] -> [co, (kh*5+kw)*4 + ci], ci padded to 4 ----
    w4 = jnp.pad(w_conv, ((0, 0), (0, CI_PAD - IN_CHANNELS), (0, 0), (0, 0)))
    wconv2 = jnp.transpose(w4, (0, 2, 3, 1)).reshape(OUT_CHANNELS, K_IM2COL)
    wconv2 = wconv2.astype(jnp.bfloat16)
    bc2 = b_conv.reshape(OUT_CHANNELS, 1).astype(jnp.float32)

    # ---- FC weights scattered to pooled-anchor flat positions q = 2*ip*IMG + 2*jp ----
    ip = jnp.arange(TAILLE)
    q = (2 * IMG * ip[:, None] + 2 * ip[None, :]).reshape(-1)          # [196]
    wfc_r = w_fc.reshape(OUT_CHANNELS, TAILLE * TAILLE, N_CLASSES)
    wfc3 = jnp.zeros((OUT_CHANNELS, P_FLAT, NPAD), jnp.float32)
    wfc3 = wfc3.at[:, q, :N_CLASSES].set(wfc_r).astype(jnp.bfloat16)
    bfc2 = jnp.pad(b_fc, (0, NPAD - N_CLASSES)).reshape(1, NPAD).astype(jnp.float32)

    kernel = _make_kernel(BT, W_TOT, W_M1, W_ACC)

    out = pl.pallas_call(
        kernel,
        out_shape=jax.ShapeDtypeStruct((Bp, NPAD), jnp.float32),
        grid=(NBLK,),
        in_specs=[
            pl.BlockSpec((1, CI_PAD, WBLK), lambda b: (b, 0, 0)),
            pl.BlockSpec((OUT_CHANNELS, K_IM2COL), lambda b: (0, 0)),
            pl.BlockSpec((OUT_CHANNELS, 1), lambda b: (0, 0)),
            pl.BlockSpec((OUT_CHANNELS, P_FLAT, NPAD), lambda b: (0, 0, 0)),
            pl.BlockSpec((1, NPAD), lambda b: (0, 0)),
        ],
        out_specs=pl.BlockSpec((BT, NPAD), lambda b: (b, 0)),
        scratch_shapes=[pltpu.VMEM((K_IM2COL, W_ACC), jnp.bfloat16)],
        compiler_params=pltpu.CompilerParams(
            dimension_semantics=("parallel",),          # megacore on v7x when NBLK >= 2
            vmem_limit_bytes=32 * 1024 * 1024,          # explicit, portable across gens
        ),
    )(xb, wconv2, bc2, wfc3, bfc2)

    return out[:B, :N_CLASSES]


# ----------------------------------------------------------------------------------
# Pure-JAX f32 reference for the sanity check
# ----------------------------------------------------------------------------------
def reference(x, w_conv, b_conv, w_fc, b_fc):
    y = jax.lax.conv_general_dilated(
        x, w_conv, (STRIDE, STRIDE), "VALID",
        dimension_numbers=("NCHW", "OIHW", "NCHW"),
        precision=jax.lax.Precision.HIGHEST)
    y = jax.nn.relu(y + b_conv[None, :, None, None])
    y = jax.lax.reduce_window(y, -jnp.inf, jax.lax.max,
                              (1, 1, 2, 2), (1, 1, 2, 2), "VALID")
    y = y.reshape(y.shape[0], -1)
    return jnp.dot(y, w_fc, precision=jax.lax.Precision.HIGHEST) + b_fc


# ----------------------------------------------------------------------------------
if __name__ == "__main__":
    key = jax.random.PRNGKey(0)
    k1, k2, k3, k4, k5 = jax.random.split(key, 5)

    fan_in_conv = IN_CHANNELS * KERNEL_SIZE * KERNEL_SIZE
    bc = 1.0 / math.sqrt(fan_in_conv)
    w_conv = jax.random.uniform(
        k1, (OUT_CHANNELS, IN_CHANNELS, KERNEL_SIZE, KERNEL_SIZE),
        jnp.float32, -bc, bc)
    b_conv = jax.random.uniform(k2, (OUT_CHANNELS,), jnp.float32, -bc, bc)

    bl = 1.0 / math.sqrt(FC_IN)
    w_fc = jax.random.uniform(k3, (FC_IN, N_CLASSES), jnp.float32, -bl, bl)  # [in, out]
    b_fc = jax.random.uniform(k4, (N_CLASSES,), jnp.float32, -bl, bl)

    x = jax.random.normal(k5, (2, IN_CHANNELS, IMG, IMG), jnp.float32)

    out = jax.jit(forward)(x, w_conv, b_conv, w_fc, b_fc)
    out = jax.block_until_ready(out)

    ref = reference(x, w_conv, b_conv, w_fc, b_fc)
    np.testing.assert_allclose(np.asarray(out), np.asarray(ref), rtol=2e-2, atol=2e-2)
    assert out.shape == (2, N_CLASSES)

    print("KERNEL_OK")
</pallas_src>

<mosaic_0001>
module attributes {stable_mosaic.version = 11 : i64} {
  func.func @kernel(%arg0: i32, %arg1: memref<1x4x2560xbf16, #tpu.memory_space<vmem>>, %arg2: memref<8x100xbf16, #tpu.memory_space<vmem>>, %arg3: memref<8x1xf32, #tpu.memory_space<vmem>>, %arg4: memref<8x1024x16xbf16, #tpu.memory_space<vmem>>, %arg5: memref<1x16xf32, #tpu.memory_space<vmem>>, %arg6: memref<2x16xf32, #tpu.memory_space<vmem>>, %arg7: memref<100x2304xbf16, #tpu.memory_space<vmem>>) attributes {dimension_semantics = [#tpu.dimension_semantics<parallel>], iteration_bounds = array<i64: 1>, scalar_prefetch = 0 : i64, scratch_operands = 1 : i64, tpu.core_type = #tpu.core_type<tc>, window_params = [{transform_indices = @transform_0, window_bounds = array<i64: 1, 4, 2560>}, {pipeline_mode = #tpu.pipeline_mode<synchronous>, transform_indices = @transform_1, window_bounds = array<i64: 8, 100>}, {pipeline_mode = #tpu.pipeline_mode<synchronous>, transform_indices = @transform_2, window_bounds = array<i64: 8, 1>}, {pipeline_mode = #tpu.pipeline_mode<synchronous>, transform_indices = @transform_3, window_bounds = array<i64: 8, 1024, 16>}, {pipeline_mode = #tpu.pipeline_mode<synchronous>, transform_indices = @transform_4, window_bounds = array<i64: 1, 16>}, {transform_indices = @transform_5, window_bounds = array<i64: 2, 16>}]} {
    %c0 = arith.constant 0 : index
    %c0_0 = arith.constant 0 : index
    %c0_1 = arith.constant 0 : index
    %0 = vector.load %arg1[%c0, %c0_0, %c0_1] : memref<1x4x2560xbf16, #tpu.memory_space<vmem>>, vector<1x4x2560xbf16>
    %1 = vector.shape_cast %0 : vector<1x4x2560xbf16> to vector<4x2560xbf16>
    %2 = vector.extract_strided_slice %1 {offsets = [0, 0], sizes = [4, 2304], strides = [1, 1]} : vector<4x2560xbf16> to vector<4x2304xbf16>
    %c0_2 = arith.constant 0 : index
    %c0_3 = arith.constant 0 : index
    %3 = vector.load %arg7[%c0_2, %c0_3] : memref<100x2304xbf16, #tpu.memory_space<vmem>>, vector<4x2304xbf16>
    tpu.vector_store %arg7[%c0_2, %c0_3], %2 {strides = array<i32>} : memref<100x2304xbf16, #tpu.memory_space<vmem>>, vector<4x2304xbf16>,
    %4 = vector.extract_strided_slice %1 {offsets = [0, 1], sizes = [4, 2304], strides = [1, 1]} : vector<4x2560xbf16> to vector<4x2304xbf16>
    %c4 = arith.constant 4 : index
    %c0_4 = arith.constant 0 : index
    %5 = vector.load %arg7[%c4, %c0_4] : memref<100x2304xbf16, #tpu.memory_space<vmem>>, vector<4x2304xbf16>
    tpu.vector_store %arg7[%c4, %c0_4], %4 {strides = array<i32>} : memref<100x2304xbf16, #tpu.memory_space<vmem>>, vector<4x2304xbf16>,
    %6 = vector.extract_strided_slice %1 {offsets = [0, 2], sizes = [4, 2304], strides = [1, 1]} : vector<4x2560xbf16> to vector<4x2304xbf16>
    %c8 = arith.constant 8 : index
    %c0_5 = arith.constant 0 : index
    %7 = vector.load %arg7[%c8, %c0_5] : memref<100x2304xbf16, #tpu.memory_space<vmem>>, vector<4x2304xbf16>
    tpu.vector_store %arg7[%c8, %c0_5], %6 {strides = array<i32>} : memref<100x2304xbf16, #tpu.memory_space<vmem>>, vector<4x2304xbf16>,
    %8 = vector.extract_strided_slice %1 {offsets = [0, 3], sizes = [4, 2304], strides = [1, 1]} : vector<4x2560xbf16> to vector<4x2304xbf16>
    %c12 = arith.constant 12 : index
    %c0_6 = arith.constant 0 : index
    %9 = vector.load %arg7[%c12, %c0_6] : memref<100x2304xbf16, #tpu.memory_space<vmem>>, vector<4x2304xbf16>
    tpu.vector_store %arg7[%c12, %c0_6], %8 {strides = array<i32>} : memref<100x2304xbf16, #tpu.memory_space<vmem>>, vector<4x2304xbf16>,
    %10 = vector.extract_strided_slice %1 {offsets = [0, 4], sizes = [4, 2304], strides = [1, 1]} : vector<4x2560xbf16> to vector<4x2304xbf16>
    %c16 = arith.constant 16 : index
    %c0_7 = arith.constant 0 : index
    %11 = vector.load %arg7[%c16, %c0_7] : memref<100x2304xbf16, #tpu.memory_space<vmem>>, vector<4x2304xbf16>
    tpu.vector_store %arg7[%c16, %c0_7], %10 {strides = array<i32>} : memref<100x2304xbf16, #tpu.memory_space<vmem>>, vector<4x2304xbf16>,
    %12 = vector.extract_strided_slice %1 {offsets = [0, 32], sizes = [4, 2304], strides = [1, 1]} : vector<4x2560xbf16> to vector<4x2304xbf16>
    %c20 = arith.constant 20 : index
    %c0_8 = arith.constant 0 : index
    %13 = vector.load %arg7[%c20, %c0_8] : memref<100x2304xbf16, #tpu.memory_space<vmem>>, vector<4x2304xbf16>
    tpu.vector_store %arg7[%c20, %c0_8], %12 {strides = array<i32>} : memref<100x2304xbf16, #tpu.memory_space<vmem>>, vector<4x2304xbf16>,
    %14 = vector.extract_strided_slice %1 {offsets = [0, 33], sizes = [4, 2304], strides = [1, 1]} : vector<4x2560xbf16> to vector<4x2304xbf16>
    %c24 = arith.constant 24 : index
    %c0_9 = arith.constant 0 : index
    %15 = vector.load %arg7[%c24, %c0_9] : memref<100x2304xbf16, #tpu.memory_space<vmem>>, vector<4x2304xbf16>
    tpu.vector_store %arg7[%c24, %c0_9], %14 {strides = array<i32>} : memref<100x2304xbf16, #tpu.memory_space<vmem>>, vector<4x2304xbf16>,
    %16 = vector.extract_strided_slice %1 {offsets = [0, 34], sizes = [4, 2304], strides = [1, 1]} : vector<4x2560xbf16> to vector<4x2304xbf16>
    %c28 = arith.constant 28 : index
    %c0_10 = arith.constant 0 : index
    %17 = vector.load %arg7[%c28, %c0_10] : memref<100x2304xbf16, #tpu.memory_space<vmem>>, vector<4x2304xbf16>
    tpu.vector_store %arg7[%c28, %c0_10], %16 {strides = array<i32>} : memref<100x2304xbf16, #tpu.memory_space<vmem>>, vector<4x2304xbf16>,
    %18 = vector.extract_strided_slice %1 {offsets = [0, 35], sizes = [4, 2304], strides = [1, 1]} : vector<4x2560xbf16> to vector<4x2304xbf16>
    %c32 = arith.constant 32 : index
    %c0_11 = arith.constant 0 : index
    %19 = vector.load %arg7[%c32, %c0_11] : memref<100x2304xbf16, #tpu.memory_space<vmem>>, vector<4x2304xbf16>
    tpu.vector_store %arg7[%c32, %c0_11], %18 {strides = array<i32>} : memref<100x2304xbf16, #tpu.memory_space<vmem>>, vector<4x2304xbf16>,
    %20 = vector.extract_strided_slice %1 {offsets = [0, 36], sizes = [4, 2304], strides = [1, 1]} : vector<4x2560xbf16> to vector<4x2304xbf16>
    %c36 = arith.constant 36 : index
    %c0_12 = arith.constant 0 : index
    %21 = vector.load %arg7[%c36, %c0_12] : memref<100x2304xbf16, #tpu.memory_space<vmem>>, vector<4x2304xbf16>
    tpu.vector_store %arg7[%c36, %c0_12], %20 {strides = array<i32>} : memref<100x2304xbf16, #tpu.memory_space<vmem>>, vector<4x2304xbf16>,
    %22 = vector.extract_strided_slice %1 {offsets = [0, 64], sizes = [4, 2304], strides = [1, 1]} : vector<4x2560xbf16> to vector<4x2304xbf16>
    %c40 = arith.constant 40 : index
    %c0_13 = arith.constant 0 : index
    %23 = vector.load %arg7[%c40, %c0_13] : memref<100x2304xbf16, #tpu.memory_space<vmem>>, vector<4x2304xbf16>
    tpu.vector_store %arg7[%c40, %c0_13], %22 {strides = array<i32>} : memref<100x2304xbf16, #tpu.memory_space<vmem>>, vector<4x2304xbf16>,
    %24 = vector.extract_strided_slice %1 {offsets = [0, 65], sizes = [4, 2304], strides = [1, 1]} : vector<4x2560xbf16> to vector<4x2304xbf16>
    %c44 = arith.constant 44 : index
    %c0_14 = arith.constant 0 : index
    %25 = vector.load %arg7[%c44, %c0_14] : memref<100x2304xbf16, #tpu.memory_space<vmem>>, vector<4x2304xbf16>
    tpu.vector_store %arg7[%c44, %c0_14], %24 {strides = array<i32>} : memref<100x2304xbf16, #tpu.memory_space<vmem>>, vector<4x2304xbf16>,
    %26 = vector.extract_strided_slice %1 {offsets = [0, 66], sizes = [4, 2304], strides = [1, 1]} : vector<4x2560xbf16> to vector<4x2304xbf16>
    %c48 = arith.constant 48 : index
    %c0_15 = arith.constant 0 : index
    %27 = vector.load %arg7[%c48, %c0_15] : memref<100x2304xbf16, #tpu.memory_space<vmem>>, vector<4x2304xbf16>
    tpu.vector_store %arg7[%c48, %c0_15], %26 {strides = array<i32>} : memref<100x2304xbf16, #tpu.memory_space<vmem>>, vector<4x2304xbf16>,
    %28 = vector.extract_strided_slice %1 {offsets = [0, 67], sizes = [4, 2304], strides = [1, 1]} : vector<4x2560xbf16> to vector<4x2304xbf16>
    %c52 = arith.constant 52 : index
    %c0_16 = arith.constant 0 : index
    %29 = vector.load %arg7[%c52, %c0_16] : memref<100x2304xbf16, #tpu.memory_space<vmem>>, vector<4x2304xbf16>
    tpu.vector_store %arg7[%c52, %c0_16], %28 {strides = array<i32>} : memref<100x2304xbf16, #tpu.memory_space<vmem>>, vector<4x2304xbf16>,
    %30 = vector.extract_strided_slice %1 {offsets = [0, 68], sizes = [4, 2304], strides = [1, 1]} : vector<4x2560xbf16> to vector<4x2304xbf16>
    %c56 = arith.constant 56 : index
    %c0_17 = arith.constant 0 : index
    %31 = vector.load %arg7[%c56, %c0_17] : memref<100x2304xbf16, #tpu.memory_space<vmem>>, vector<4x2304xbf16>
    tpu.vector_store %arg7[%c56, %c0_17], %30 {strides = array<i32>} : memref<100x2304xbf16, #tpu.memory_space<vmem>>, vector<4x2304xbf16>,
    %32 = vector.extract_strided_slice %1 {offsets = [0, 96], sizes = [4, 2304], strides = [1, 1]} : vector<4x2560xbf16> to vector<4x2304xbf16>
    %c60 = arith.constant 60 : index
    %c0_18 = arith.constant 0 : index
    %33 = vector.load %arg7[%c60, %c0_18] : memref<100x2304xbf16, #tpu.memory_space<vmem>>, vector<4x2304xbf16>
    tpu.vector_store %arg7[%c60, %c0_18], %32 {strides = array<i32>} : memref<100x2304xbf16, #tpu.memory_space<vmem>>, vector<4x2304xbf16>,
    %34 = vector.extract_strided_slice %1 {offsets = [0, 97], sizes = [4, 2304], strides = [1, 1]} : vector<4x2560xbf16> to vector<4x2304xbf16>
    %c64 = arith.constant 64 : index
    %c0_19 = arith.constant 0 : index
    %35 = vector.load %arg7[%c64, %c0_19] : memref<100x2304xbf16, #tpu.memory_space<vmem>>, vector<4x2304xbf16>
    tpu.vector_store %arg7[%c64, %c0_19], %34 {strides = array<i32>} : memref<100x2304xbf16, #tpu.memory_space<vmem>>, vector<4x2304xbf16>,
    %36 = vector.extract_strided_slice %1 {offsets = [0, 98], sizes = [4, 2304], strides = [1, 1]} : vector<4x2560xbf16> to vector<4x2304xbf16>
    %c68 = arith.constant 68 : index
    %c0_20 = arith.constant 0 : index
    %37 = vector.load %arg7[%c68, %c0_20] : memref<100x2304xbf16, #tpu.memory_space<vmem>>, vector<4x2304xbf16>
    tpu.vector_store %arg7[%c68, %c0_20], %36 {strides = array<i32>} : memref<100x2304xbf16, #tpu.memory_space<vmem>>, vector<4x2304xbf16>,
    %38 = vector.extract_strided_slice %1 {offsets = [0, 99], sizes = [4, 2304], strides = [1, 1]} : vector<4x2560xbf16> to vector<4x2304xbf16>
    %c72 = arith.constant 72 : index
    %c0_21 = arith.constant 0 : index
    %39 = vector.load %arg7[%c72, %c0_21] : memref<100x2304xbf16, #tpu.memory_space<vmem>>, vector<4x2304xbf16>
    tpu.vector_store %arg7[%c72, %c0_21], %38 {strides = array<i32>} : memref<100x2304xbf16, #tpu.memory_space<vmem>>, vector<4x2304xbf16>,
    %40 = vector.extract_strided_slice %1 {offsets = [0, 100], sizes = [4, 2304], strides = [1, 1]} : vector<4x2560xbf16> to vector<4x2304xbf16>
    %c76 = arith.constant 76 : index
    %c0_22 = arith.constant 0 : index
    %41 = vector.load %arg7[%c76, %c0_22] : memref<100x2304xbf16, #tpu.memory_space<vmem>>, vector<4x2304xbf16>
    tpu.vector_store %arg7[%c76, %c0_22], %40 {strides = array<i32>} : memref<100x2304xbf16, #tpu.memory_space<vmem>>, vector<4x2304xbf16>,
    %42 = vector.extract_strided_slice %1 {offsets = [0, 128], sizes = [4, 2304], strides = [1, 1]} : vector<4x2560xbf16> to vector<4x2304xbf16>
    %c80 = arith.constant 80 : index
    %c0_23 = arith.constant 0 : index
    %43 = vector.load %arg7[%c80, %c0_23] : memref<100x2304xbf16, #tpu.memory_space<vmem>>, vector<4x2304xbf16>
    tpu.vector_store %arg7[%c80, %c0_23], %42 {strides = array<i32>} : memref<100x2304xbf16, #tpu.memory_space<vmem>>, vector<4x2304xbf16>,
    %44 = vector.extract_strided_slice %1 {offsets = [0, 129], sizes = [4, 2304], strides = [1, 1]} : vector<4x2560xbf16> to vector<4x2304xbf16>
    %c84 = arith.constant 84 : index
    %c0_24 = arith.constant 0 : index
    %45 = vector.load %arg7[%c84, %c0_24] : memref<100x2304xbf16, #tpu.memory_space<vmem>>, vector<4x2304xbf16>
    tpu.vector_store %arg7[%c84, %c0_24], %44 {strides = array<i32>} : memref<100x2304xbf16, #tpu.memory_space<vmem>>, vector<4x2304xbf16>,
    %46 = vector.extract_strided_slice %1 {offsets = [0, 130], sizes = [4, 2304], strides = [1, 1]} : vector<4x2560xbf16> to vector<4x2304xbf16>
    %c88 = arith.constant 88 : index
    %c0_25 = arith.constant 0 : index
    %47 = vector.load %arg7[%c88, %c0_25] : memref<100x2304xbf16, #tpu.memory_space<vmem>>, vector<4x2304xbf16>
    tpu.vector_store %arg7[%c88, %c0_25], %46 {strides = array<i32>} : memref<100x2304xbf16, #tpu.memory_space<vmem>>, vector<4x2304xbf16>,
    %48 = vector.extract_strided_slice %1 {offsets = [0, 131], sizes = [4, 2304], strides = [1, 1]} : vector<4x2560xbf16> to vector<4x2304xbf16>
    %c92 = arith.constant 92 : index
    %c0_26 = arith.constant 0 : index
    %49 = vector.load %arg7[%c92, %c0_26] : memref<100x2304xbf16, #tpu.memory_space<vmem>>, vector<4x2304xbf16>
    tpu.vector_store %arg7[%c92, %c0_26], %48 {strides = array<i32>} : memref<100x2304xbf16, #tpu.memory_space<vmem>>, vector<4x2304xbf16>,
    %50 = vector.extract_strided_slice %1 {offsets = [0, 132], sizes = [4, 2304], strides = [1, 1]} : vector<4x2560xbf16> to vector<4x2304xbf16>
    %c96 = arith.constant 96 : index
    %c0_27 = arith.constant 0 : index
    %51 = vector.load %arg7[%c96, %c0_27] : memref<100x2304xbf16, #tpu.memory_space<vmem>>, vector<4x2304xbf16>
    tpu.vector_store %arg7[%c96, %c0_27], %50 {strides = array<i32>} : memref<100x2304xbf16, #tpu.memory_space<vmem>>, vector<4x2304xbf16>,
    %c0_28 = arith.constant 0 : index
    %c0_29 = arith.constant 0 : index
    %52 = vector.load %arg2[%c0_28, %c0_29] : memref<8x100xbf16, #tpu.memory_space<vmem>>, vector<8x100xbf16>
    %c0_30 = arith.constant 0 : index
    %c0_31 = arith.constant 0 : index
    %53 = vector.load %arg7[%c0_30, %c0_31] : memref<100x2304xbf16, #tpu.memory_space<vmem>>, vector<100x2304xbf16>
    %cst = arith.constant dense<0.000000e+00> : vector<8x2304xf32>
    %54 = tpu.matmul %52, %53, %cst {dimension_numbers = #tpu.dot_dimension_numbers<[1], [0], [0], [1], [0, 0, 1, 1], [], []>} : vector<8x100xbf16>, vector<100x2304xbf16>, vector<8x2304xf32> -> vector<8x2304xf32>
    %c0_32 = arith.constant 0 : index
    %c0_33 = arith.constant 0 : index
    %55 = vector.load %arg3[%c0_32, %c0_33] : memref<8x1xf32, #tpu.memory_space<vmem>>, vector<8x1xf32>
    %56 = vector.broadcast %55 : vector<8x1xf32> to vector<8x2304xf32>
    %57 = arith.addf %54, %56 : vector<8x2304xf32>
    %cst_34 = arith.constant 0.000000e+00 : f32
    %58 = vector.broadcast %cst_34 : f32 to vector<8x2304xf32>
    %59 = arith.maximumf %57, %58 : vector<8x2304xf32>
    %60 = vector.extract_strided_slice %59 {offsets = [0, 0], sizes = [8, 2176], strides = [1, 1]} : vector<8x2304xf32> to vector<8x2176xf32>
    %61 = vector.extract_strided_slice %59 {offsets = [0, 1], sizes = [8, 2176], strides = [1, 1]} : vector<8x2304xf32> to vector<8x2176xf32>
    %62 = arith.maximumf %60, %61 : vector<8x2176xf32>
    %63 = vector.extract_strided_slice %62 {offsets = [0, 0], sizes = [8, 2048], strides = [1, 1]} : vector<8x2176xf32> to vector<8x2048xf32>
    %64 = vector.extract_strided_slice %62 {offsets = [0, 32], sizes = [8, 2048], strides = [1, 1]} : vector<8x2176xf32> to vector<8x2048xf32>
    %65 = arith.maximumf %63, %64 : vector<8x2048xf32>
    %66 = arith.truncf %65 : vector<8x2048xf32> to vector<8x2048xbf16>
    %cst_35 = arith.constant 0.000000e+00 : f32
    %67 = vector.broadcast %cst_35 : f32 to vector<2x16xf32>
    %68 = vector.extract_strided_slice %66 {offsets = [0, 0], sizes = [1, 1024], strides = [1, 1]} : vector<8x2048xbf16> to vector<1x1024xbf16>
    %69 = vector.extract_strided_slice %66 {offsets = [0, 1024], sizes = [1, 1024], strides = [1, 1]} : vector<8x2048xbf16> to vector<1x1024xbf16>
    %70 = tpu.concatenate %68, %69 in 0 : vector<1x1024xbf16>, vector<1x1024xbf16> -> vector<2x1024xbf16>
    %c0_36 = arith.constant 0 : index
    %c0_37 = arith.constant 0 : index
    %c0_38 = arith.constant 0 : index
    %71 = vector.load %arg4[%c0_36, %c0_37, %c0_38] : memref<8x1024x16xbf16, #tpu.memory_space<vmem>>, vector<1x1024x16xbf16>
    %72 = vector.shape_cast %71 : vector<1x1024x16xbf16> to vector<1024x16xbf16>
    %cst_39 = arith.constant dense<0.000000e+00> : vector<2x16xf32>
    %73 = tpu.matmul %70, %72, %cst_39 {dimension_numbers = #tpu.dot_dimension_numbers<[1], [0], [0], [1], [0, 0, 1, 1], [], []>} : vector<2x1024xbf16>, vector<1024x16xbf16>, vector<2x16xf32> -> vector<2x16xf32>
    %74 = arith.addf %67, %73 : vector<2x16xf32>
    %75 = vector.extract_strided_slice %66 {offsets = [1, 0], sizes = [1, 1024], strides = [1, 1]} : vector<8x2048xbf16> to vector<1x1024xbf16>
    %76 = vector.extract_strided_slice %66 {offsets = [1, 1024], sizes = [1, 1024], strides = [1, 1]} : vector<8x2048xbf16> to vector<1x1024xbf16>
    %77 = tpu.concatenate %75, %76 in 0 : vector<1x1024xbf16>, vector<1x1024xbf16> -> vector<2x1024xbf16>
    %c1 = arith.constant 1 : index
    %c0_40 = arith.constant 0 : index
    %c0_41 = arith.constant 0 : index
    %78 = vector.load %arg4[%c1, %c0_40, %c0_41] : memref<8x1024x16xbf16, #tpu.memory_space<vmem>>, vector<1x1024x16xbf16>
    %79 = vector.shape_cast %78 : vector<1x1024x16xbf16> to vector<1024x16xbf16>
    %cst_42 = arith.constant dense<0.000000e+00> : vector<2x16xf32>
    %80 = tpu.matmul %77, %79, %cst_42 {dimension_numbers = #tpu.dot_dimension_numbers<[1], [0], [0], [1], [0, 0, 1, 1], [], []>} : vector<2x1024xbf16>, vector<1024x16xbf16>, vector<2x16xf32> -> vector<2x16xf32>
    %81 = arith.addf %74, %80 : vector<2x16xf32>
    %82 = vector.extract_strided_slice %66 {offsets = [2, 0], sizes = [1, 1024], strides = [1, 1]} : vector<8x2048xbf16> to vector<1x1024xbf16>
    %83 = vector.extract_strided_slice %66 {offsets = [2, 1024], sizes = [1, 1024], strides = [1, 1]} : vector<8x2048xbf16> to vector<1x1024xbf16>
    %84 = tpu.concatenate %82, %83 in 0 : vector<1x1024xbf16>, vector<1x1024xbf16> -> vector<2x1024xbf16>
    %c2 = arith.constant 2 : index
    %c0_43 = arith.constant 0 : index
    %c0_44 = arith.constant 0 : index
    %85 = vector.load %arg4[%c2, %c0_43, %c0_44] : memref<8x1024x16xbf16, #tpu.memory_space<vmem>>, vector<1x1024x16xbf16>
    %86 = vector.shape_cast %85 : vector<1x1024x16xbf16> to vector<1024x16xbf16>
    %cst_45 = arith.constant dense<0.000000e+00> : vector<2x16xf32>
    %87 = tpu.matmul %84, %86, %cst_45 {dimension_numbers = #tpu.dot_dimension_numbers<[1], [0], [0], [1], [0, 0, 1, 1], [], []>} : vector<2x1024xbf16>, vector<1024x16xbf16>, vector<2x16xf32> -> vector<2x16xf32>
    %88 = arith.addf %81, %87 : vector<2x16xf32>
    %89 = vector.extract_strided_slice %66 {offsets = [3, 0], sizes = [1, 1024], strides = [1, 1]} : vector<8x2048xbf16> to vector<1x1024xbf16>
    %90 = vector.extract_strided_slice %66 {offsets = [3, 1024], sizes = [1, 1024], strides = [1, 1]} : vector<8x2048xbf16> to vector<1x1024xbf16>
    %91 = tpu.concatenate %89, %90 in 0 : vector<1x1024xbf16>, vector<1x1024xbf16> -> vector<2x1024xbf16>
    %c3 = arith.constant 3 : index
    %c0_46 = arith.constant 0 : index
    %c0_47 = arith.constant 0 : index
    %92 = vector.load %arg4[%c3, %c0_46, %c0_47] : memref<8x1024x16xbf16, #tpu.memory_space<vmem>>, vector<1x1024x16xbf16>
    %93 = vector.shape_cast %92 : vector<1x1024x16xbf16> to vector<1024x16xbf16>
    %cst_48 = arith.constant dense<0.000000e+00> : vector<2x16xf32>
    %94 = tpu.matmul %91, %93, %cst_48 {dimension_numbers = #tpu.dot_dimension_numbers<[1], [0], [0], [1], [0, 0, 1, 1], [], []>} : vector<2x1024xbf16>, vector<1024x16xbf16>, vector<2x16xf32> -> vector<2x16xf32>
    %95 = arith.addf %88, %94 : vector<2x16xf32>
    %96 = vector.extract_strided_slice %66 {offsets = [4, 0], sizes = [1, 1024], strides = [1, 1]} : vector<8x2048xbf16> to vector<1x1024xbf16>
    %97 = vector.extract_strided_slice %66 {offsets = [4, 1024], sizes = [1, 1024], strides = [1, 1]} : vector<8x2048xbf16> to vector<1x1024xbf16>
    %98 = tpu.concatenate %96, %97 in 0 : vector<1x1024xbf16>, vector<1x1024xbf16> -> vector<2x1024xbf16>
    %c4_49 = arith.constant 4 : index
    %c0_50 = arith.constant 0 : index
    %c0_51 = arith.constant 0 : index
    %99 = vector.load %arg4[%c4_49, %c0_50, %c0_51] : memref<8x1024x16xbf16, #tpu.memory_space<vmem>>, vector<1x1024x16xbf16>
    %100 = vector.shape_cast %99 : vector<1x1024x16xbf16> to vector<1024x16xbf16>
    %cst_52 = arith.constant dense<0.000000e+00> : vector<2x16xf32>
    %101 = tpu.matmul %98, %100, %cst_52 {dimension_numbers = #tpu.dot_dimension_numbers<[1], [0], [0], [1], [0, 0, 1, 1], [], []>} : vector<2x1024xbf16>, vector<1024x16xbf16>, vector<2x16xf32> -> vector<2x16xf32>
    %102 = arith.addf %95, %101 : vector<2x16xf32>
    %103 = vector.extract_strided_slice %66 {offsets = [5, 0], sizes = [1, 1024], strides = [1, 1]} : vector<8x2048xbf16> to vector<1x1024xbf16>
    %104 = vector.extract_strided_slice %66 {offsets = [5, 1024], sizes = [1, 1024], strides = [1, 1]} : vector<8x2048xbf16> to vector<1x1024xbf16>
    %105 = tpu.concatenate %103, %104 in 0 : vector<1x1024xbf16>, vector<1x1024xbf16> -> vector<2x1024xbf16>
    %c5 = arith.constant 5 : index
    %c0_53 = arith.constant 0 : index
    %c0_54 = arith.constant 0 : index
    %106 = vector.load %arg4[%c5, %c0_53, %c0_54] : memref<8x1024x16xbf16, #tpu.memory_space<vmem>>, vector<1x1024x16xbf16>
    %107 = vector.shape_cast %106 : vector<1x1024x16xbf16> to vector<1024x16xbf16>
    %cst_55 = arith.constant dense<0.000000e+00> : vector<2x16xf32>
    %108 = tpu.matmul %105, %107, %cst_55 {dimension_numbers = #tpu.dot_dimension_numbers<[1], [0], [0], [1], [0, 0, 1, 1], [], []>} : vector<2x1024xbf16>, vector<1024x16xbf16>, vector<2x16xf32> -> vector<2x16xf32>
    %109 = arith.addf %102, %108 : vector<2x16xf32>
    %110 = vector.extract_strided_slice %66 {offsets = [6, 0], sizes = [1, 1024], strides = [1, 1]} : vector<8x2048xbf16> to vector<1x1024xbf16>
    %111 = vector.extract_strided_slice %66 {offsets = [6, 1024], sizes = [1, 1024], strides = [1, 1]} : vector<8x2048xbf16> to vector<1x1024xbf16>
    %112 = tpu.concatenate %110, %111 in 0 : vector<1x1024xbf16>, vector<1x1024xbf16> -> vector<2x1024xbf16>
    %c6 = arith.constant 6 : index
    %c0_56 = arith.constant 0 : index
    %c0_57 = arith.constant 0 : index
    %113 = vector.load %arg4[%c6, %c0_56, %c0_57] : memref<8x1024x16xbf16, #tpu.memory_space<vmem>>, vector<1x1024x16xbf16>
    %114 = vector.shape_cast %113 : vector<1x1024x16xbf16> to vector<1024x16xbf16>
    %cst_58 = arith.constant dense<0.000000e+00> : vector<2x16xf32>
    %115 = tpu.matmul %112, %114, %cst_58 {dimension_numbers = #tpu.dot_dimension_numbers<[1], [0], [0], [1], [0, 0, 1, 1], [], []>} : vector<2x1024xbf16>, vector<1024x16xbf16>, vector<2x16xf32> -> vector<2x16xf32>
    %116 = arith.addf %109, %115 : vector<2x16xf32>
    %117 = vector.extract_strided_slice %66 {offsets = [7, 0], sizes = [1, 1024], strides = [1, 1]} : vector<8x2048xbf16> to vector<1x1024xbf16>
    %118 = vector.extract_strided_slice %66 {offsets = [7, 1024], sizes = [1, 1024], strides = [1, 1]} : vector<8x2048xbf16> to vector<1x1024xbf16>
    %119 = tpu.concatenate %117, %118 in 0 : vector<1x1024xbf16>, vector<1x1024xbf16> -> vector<2x1024xbf16>
    %c7 = arith.constant 7 : index
    %c0_59 = arith.constant 0 : index
    %c0_60 = arith.constant 0 : index
    %120 = vector.load %arg4[%c7, %c0_59, %c0_60] : memref<8x1024x16xbf16, #tpu.memory_space<vmem>>, vector<1x1024x16xbf16>
    %121 = vector.shape_cast %120 : vector<1x1024x16xbf16> to vector<1024x16xbf16>
    %cst_61 = arith.constant dense<0.000000e+00> : vector<2x16xf32>
    %122 = tpu.matmul %119, %121, %cst_61 {dimension_numbers = #tpu.dot_dimension_numbers<[1], [0], [0], [1], [0, 0, 1, 1], [], []>} : vector<2x1024xbf16>, vector<1024x16xbf16>, vector<2x16xf32> -> vector<2x16xf32>
    %123 = arith.addf %116, %122 : vector<2x16xf32>
    %c0_62 = arith.constant 0 : index
    %c0_63 = arith.constant 0 : index
    %124 = vector.load %arg5[%c0_62, %c0_63] : memref<1x16xf32, #tpu.memory_space<vmem>>, vector<1x16xf32>
    %125 = vector.broadcast %124 : vector<1x16xf32> to vector<2x16xf32>
    %126 = arith.addf %123, %125 : vector<2x16xf32>
    %c0_64 = arith.constant 0 : index
    %c0_65 = arith.constant 0 : index
    %127 = vector.load %arg6[%c0_64, %c0_65] : memref<2x16xf32, #tpu.memory_space<vmem>>, vector<2x16xf32>
    tpu.vector_store %arg6[%c0_64, %c0_65], %126 {strides = array<i32>} : memref<2x16xf32, #tpu.memory_space<vmem>>, vector<2x16xf32>,
    return
  }
  func.func @transform_0(%arg0: i32) -> (i32, i32, i32) {
    %c0_i32 = arith.constant 0 : i32
    %c0_i32_0 = arith.constant 0 : i32
    %c0_i32_1 = arith.constant 0 : i32
    return %arg0, %c0_i32, %c0_i32_0 : i32, i32, i32
  }
  func.func @transform_1(%arg0: i32) -> (i32, i32) {
    %c0_i32 = arith.constant 0 : i32
    %c0_i32_0 = arith.constant 0 : i32
    %c0_i32_1 = arith.constant 0 : i32
    return %c0_i32, %c0_i32_0 : i32, i32
  }
  func.func @transform_2(%arg0: i32) -> (i32, i32) {
    %c0_i32 = arith.constant 0 : i32
    %c0_i32_0 = arith.constant 0 : i32
    %c0_i32_1 = arith.constant 0 : i32
    return %c0_i32, %c0_i32_0 : i32, i32
  }
  func.func @transform_3(%arg0: i32) -> (i32, i32, i32) {
    %c0_i32 = arith.constant 0 : i32
    %c0_i32_0 = arith.constant 0 : i32
    %c0_i32_1 = arith.constant 0 : i32
    %c0_i32_2 = arith.constant 0 : i32
    return %c0_i32, %c0_i32_0, %c0_i32_1 : i32, i32, i32
  }
  func.func @transform_4(%arg0: i32) -> (i32, i32) {
    %c0_i32 = arith.constant 0 : i32
    %c0_i32_0 = arith.constant 0 : i32
    %c0_i32_1 = arith.constant 0 : i32
    return %c0_i32, %c0_i32_0 : i32, i32
  }
  func.func @transform_5(%arg0: i32) -> (i32, i32) {
    %c0_i32 = arith.constant 0 : i32
    %c0_i32_0 = arith.constant 0 : i32
    return %arg0, %c0_i32 : i32, i32
  }
}

</mosaic_0001>

<llo_original>
// kernel: forward.1
$region0: #{forward.1}
  #allocation0 [shape = 'u32[]', space=smem, size = 0x4, offset = 0x4, fixed_abs, tag = 'smem constant byte address 0x4 - core index']
  #allocation1 [shape = 'u32[144,128]{1,0:T(1,128)}', space=vmem, size = 0x12000, scoped, tag = 'internal scratch']
  #allocation2 [shape = 'bf16[100,2304]{1,0:T(8,128)(2,1)}', space=vmem, size = 0x75000, scoped, tag = 'scratch operand']
  %s0 = inlined_call_operand.vmem [shape: bf16[1,4,2560], index: 0, kind: input, shape index: {}]
  %s1 = inlined_call_operand.vmem [shape: bf16[8,100], index: 1, kind: input, shape index: {}]
  %s2 = inlined_call_operand.vmem [shape: f32[8,1], index: 2, kind: input, shape index: {}]
  %s3 = inlined_call_operand.vmem [shape: bf16[8,1024,16], index: 3, kind: input, shape index: {}]
  %s4 = inlined_call_operand.vmem [shape: f32[1,16], index: 4, kind: input, shape index: {}]
  %s5 = inlined_call_operand.hbm [shape: f32[2,16], index: 5, kind: output, shape index: {}]
  %s6 = sld [smem:[#allocation0]]
  $region30: #{forward.1} parent=0
    _
  %s8 = ssub.s32 1, %s6
  %s9 = scalar_select 0, %s8, %s6
  $region1: #{forward.1} parent=0
    #allocation3 [shape = 'u8[1024]{0}', space=vmem, size = 0x400, scoped, tag = 'output window, operand 0, single buffered']
    #allocation4 [shape = 's32[1]{0}', space=sflag, size = 0x4, scoped, tag = 'scoped memory for forward.1']
    %10 = vsyncpa [#allocation4], 0
    // Predicated region
    $region2: #{forward.1} parent=1 // pred_check
      _
    $region3: #{forward.1} parent=1 // pred_check_branch
      %12 = sbr.rel (0) target = $region5
    $region4: #{forward.1} parent=1 // pred_region
      _
    $region5: #{forward.1} parent=1 // pred_fallthru
      _
    // Predicated region
    $region6: #{forward.1} parent=1 // pred_check
      _
    $region7: #{forward.1} parent=1 // pred_check_branch
      %14 = sbr.rel (0) target = $region9
    $region8: #{forward.1} parent=1 // pred_region
      _
    $region9: #{forward.1} parent=1 // pred_fallthru
      _
    // Predicated region
    $region10: #{forward.1} parent=1 // pred_check
      _
    $region11: #{forward.1} parent=1 // pred_check_branch
      %16 = sbr.rel (0) target = $region13
    $region12: #{forward.1} parent=1 // pred_region
      _
    $region13: #{forward.1} parent=1 // pred_fallthru
      _
    // Predicated region
    $region14: #{forward.1} parent=1 // pred_check
      _
    $region15: #{forward.1} parent=1 // pred_check_branch
      %18 = sbr.rel (0) target = $region17
    $region16: #{forward.1} parent=1 // pred_region
      _
    $region17: #{forward.1} parent=1 // pred_fallthru
      _
    // Predicated region
    $region18: #{forward.1} parent=1 // pred_check
      _
    $region19: #{forward.1} parent=1 // pred_check_branch
      %20 = sbr.rel (0) target = $region21
    $region20: #{forward.1} parent=1 // pred_region
      _
    $region21: #{forward.1} parent=1 // pred_fallthru
      _
    %v22 = vld [vmem:[%s0] sm:$0xff]
    %v23 = vld [vmem:[%s0 + $0x8] sm:$0xff]
    %v24 = vld [vmem:[%s0 + $0x10] sm:$0xff]
    %v25 = vld [vmem:[%s0 + $0x18] sm:$0xff]
    %v26 = vld [vmem:[%s0 + $0x20] sm:$0xff]
    %v32 = vcombine.high %v22, %v22
    %v34 = vunpack.c.l.s4 1983009808
    %v35 = vunpack.c.0.s8 %v34
    %v36 = vlaneseq
    %v37 = vshrl.u32 %v36, 7
    %v38 = vsub.s32 %v35, %v37
    %v39 = vrot.slane %v22, %v38
    %v41 = vunpack.c.l.s4 1983009808
    %v42 = vunpack.c.0.s8 %v41
    %v43 = vlaneseq
    %v44 = vshrl.u32 %v43, 7
    %v45 = vsub.s32 %v42, %v44
    %v46 = vrot.slane %v32, %v45
    %v47 = vcombine.high %v23, %v23
    %v49 = vunpack.c.l.s4 1983009808
    %v50 = vunpack.c.0.s8 %v49
    %v51 = vlaneseq
    %v52 = vshrl.u32 %v51, 7
    %v53 = vsub.s32 %v50, %v52
    %v54 = vrot.slane %v23, %v53
    %v56 = vunpack.c.l.s4 1983009808
    %v57 = vunpack.c.0.s8 %v56
    %v58 = vlaneseq
    %v59 = vshrl.u32 %v58, 7
    %v60 = vsub.s32 %v57, %v59
    %v61 = vrot.slane %v47, %v60
    %v62 = vcombine.high %v24, %v24
    %v64 = vunpack.c.l.s4 1983009808
    %v65 = vunpack.c.0.s8 %v64
    %v66 = vlaneseq
    %v67 = vshrl.u32 %v66, 7
    %v68 = vsub.s32 %v65, %v67
    %v69 = vrot.slane %v24, %v68
    %v71 = vunpack.c.l.s4 1983009808
    %v72 = vunpack.c.0.s8 %v71
    %v73 = vlaneseq
    %v74 = vshrl.u32 %v73, 7
    %v75 = vsub.s32 %v72, %v74
    %v76 = vrot.slane %v62, %v75
    %v77 = vcombine.high %v25, %v25
    %v79 = vunpack.c.l.s4 1983009808
    %v80 = vunpack.c.0.s8 %v79
    %v81 = vlaneseq
    %v82 = vshrl.u32 %v81, 7
    %v83 = vsub.s32 %v80, %v82
    %v84 = vrot.slane %v25, %v83
    %v86 = vunpack.c.l.s4 1983009808
    %v87 = vunpack.c.0.s8 %v86
    %v88 = vlaneseq
    %v89 = vshrl.u32 %v88, 7
    %v90 = vsub.s32 %v87, %v89
    %v91 = vrot.slane %v77, %v90
    %v93 = vunpack.c.l.s4 1983009808
    %v94 = vunpack.c.0.s8 %v93
    %v95 = vlaneseq
    %v96 = vshrl.u32 %v95, 7
    %v97 = vsub.s32 %v94, %v96
    %v98 = vrot.slane %v26, %v97
    %108 = vst [vmem:[#allocation2] sm:$0x33] %v39
    %109 = vst [vmem:[#allocation2 + $0x8] sm:$0x33] %v46
    %110 = vst [vmem:[#allocation2 + $0x10] sm:$0x33] %v54
    %111 = vst [vmem:[#allocation2 + $0x18] sm:$0x33] %v61
    %112 = vst [vmem:[#allocation2 + $0x20] sm:$0x33] %v69
    %113 = vst [vmem:[#allocation2 + $0x28] sm:$0x33] %v76
    %114 = vst [vmem:[#allocation2 + $0x30] sm:$0x33] %v84
    %115 = vst [vmem:[#allocation2 + $0x38] sm:$0x33] %v91
    %116 = vst [vmem:[#allocation2 + $0x40] sm:$0x33] %v98
    %v117 = vcombine.low %v22, %v22
    %v119 = vunpack.c.l.s4 1983009808
    %v120 = vunpack.c.0.s8 %v119
    %v121 = vlaneseq
    %v122 = vshrl.u32 %v121, 7
    %v123 = vsub.s32 %v120, %v122
    %v124 = vrot.slane %v117, %v123
    %v125 = vcombine.low %v23, %v23
    %v127 = vunpack.c.l.s4 1983009808
    %v128 = vunpack.c.0.s8 %v127
    %v129 = vlaneseq
    %v130 = vshrl.u32 %v129, 7
    %v131 = vsub.s32 %v128, %v130
    %v132 = vrot.slane %v125, %v131
    %v133 = vcombine.low %v24, %v24
    %v135 = vunpack.c.l.s4 1983009808
    %v136 = vunpack.c.0.s8 %v135
    %v137 = vlaneseq
    %v138 = vshrl.u32 %v137, 7
    %v139 = vsub.s32 %v136, %v138
    %v140 = vrot.slane %v133, %v139
    %v141 = vcombine.low %v25, %v25
    %v143 = vunpack.c.l.s4 1983009808
    %v144 = vunpack.c.0.s8 %v143
    %v145 = vlaneseq
    %v146 = vshrl.u32 %v145, 7
    %v147 = vsub.s32 %v144, %v146
    %v148 = vrot.slane %v141, %v147
    %v149 = vcombine.low %v26, %v26
    %v151 = vunpack.c.l.s4 1983009808
    %v152 = vunpack.c.0.s8 %v151
    %v153 = vlaneseq
    %v154 = vshrl.u32 %v153, 7
    %v155 = vsub.s32 %v152, %v154
    %v156 = vrot.slane %v149, %v155
    %157 = vrot.lane.b32.xlu0 %v124, 127
    %v158 = vpop.permute.xlu0 %157
    %159 = vrot.lane.b32.xlu0 %v39, 127
    %v160 = vpop.permute.xlu0 %159
    %161 = vrot.lane.b32.xlu0 %v132, 127
    %v162 = vpop.permute.xlu0 %161
    %163 = vrot.lane.b32.xlu0 %v54, 127
    %v164 = vpop.permute.xlu0 %163
    %165 = vrot.lane.b32.xlu0 %v140, 127
    %v166 = vpop.permute.xlu0 %165
    %167 = vrot.lane.b32.xlu0 %v69, 127
    %v168 = vpop.permute.xlu0 %167
    %169 = vrot.lane.b32.xlu0 %v148, 127
    %v170 = vpop.permute.xlu0 %169
    %171 = vrot.lane.b32.xlu0 %v84, 127
    %v172 = vpop.permute.xlu0 %171
    %173 = vrot.lane.b32.xlu0 %v156, 127
    %v174 = vpop.permute.xlu0 %173
    %175 = vrot.lane.b32.xlu0 %v98, 127
    %v176 = vpop.permute.xlu0 %175
    %v177 = vrot.slane %v158, 4
    %v178 = vrot.slane %v160, 4
    %v179 = vrot.slane %v162, 4
    %v180 = vrot.slane %v164, 4
    %v181 = vrot.slane %v166, 4
    %v182 = vrot.slane %v168, 4
    %v183 = vrot.slane %v170, 4
    %v184 = vrot.slane %v172, 4
    %v185 = vrot.slane %v174, 4
    %v186 = vrot.slane %v176, 4
    %vm187 = vcmask 1043456
    %v188 = vsel %vm187, %v177, %v178
    %vm189 = vcmask 1039360
    %v190 = vsel %vm189, %v158, %v188
    %v191 = vsel %vm187, %v178, %v179
    %v192 = vsel %vm189, %v160, %v191
    %v193 = vsel %vm187, %v179, %v180
    %v194 = vsel %vm189, %v162, %v193
    %v195 = vsel %vm187, %v180, %v181
    %v196 = vsel %vm189, %v164, %v195
    %v197 = vsel %vm187, %v181, %v182
    %v198 = vsel %vm189, %v166, %v197
    %v199 = vsel %vm187, %v182, %v183
    %v200 = vsel %vm189, %v168, %v199
    %v201 = vsel %vm187, %v183, %v184
    %v202 = vsel %vm189, %v170, %v201
    %v203 = vsel %vm187, %v184, %v185
    %v204 = vsel %vm189, %v172, %v203
    %v205 = vsel %vm187, %v185, %v186
    %v206 = vsel %vm189, %v174, %v205
    %216 = vst [vmem:[#allocation2] sm:$0xcc] %v190
    %217 = vst [vmem:[#allocation2 + $0x8] sm:$0xcc] %v192
    %218 = vst [vmem:[#allocation2 + $0x10] sm:$0xcc] %v194
    %219 = vst [vmem:[#allocation2 + $0x18] sm:$0xcc] %v196
    %220 = vst [vmem:[#allocation2 + $0x20] sm:$0xcc] %v198
    %221 = vst [vmem:[#allocation2 + $0x28] sm:$0xcc] %v200
    %222 = vst [vmem:[#allocation2 + $0x30] sm:$0xcc] %v202
    %223 = vst [vmem:[#allocation2 + $0x38] sm:$0xcc] %v204
    %224 = vst [vmem:[#allocation2 + $0x40] sm:$0xcc] %v206
    %v225 = vcombine.high %v26, %v26
    %v227 = vunpack.c.l.s4 1983009808
    %v228 = vunpack.c.0.s8 %v227
    %v229 = vlaneseq
    %v230 = vshrl.u32 %v229, 7
    %v231 = vsub.s32 %v228, %v230
    %v232 = vrot.slane %v225, %v231
    %233 = vrot.lane.b32.xlu0 %v39, 126
    %v234 = vpop.permute.xlu0 %233
    %235 = vrot.lane.b32.xlu0 %v46, 126
    %v236 = vpop.permute.xlu0 %235
    %237 = vrot.lane.b32.xlu0 %v54, 126
    %v238 = vpop.permute.xlu0 %237
    %239 = vrot.lane.b32.xlu0 %v61, 126
    %v240 = vpop.permute.xlu0 %239
    %241 = vrot.lane.b32.xlu0 %v69, 126
    %v242 = vpop.permute.xlu0 %241
    %243 = vrot.lane.b32.xlu0 %v76, 126
    %v244 = vpop.permute.xlu0 %243
    %245 = vrot.lane.b32.xlu0 %v84, 126
    %v246 = vpop.permute.xlu0 %245
    %247 = vrot.lane.b32.xlu0 %v91, 126
    %v248 = vpop.permute.xlu0 %247
    %249 = vrot.lane.b32.xlu0 %v98, 126
    %v250 = vpop.permute.xlu0 %249
    %251 = vrot.lane.b32.xlu0 %v232, 126
    %v252 = vpop.permute.xlu0 %251
    %v253 = vrot.slane %v234, 4
    %v254 = vrot.slane %v236, 4
    %v255 = vrot.slane %v238, 4
    %v256 = vrot.slane %v240, 4
    %v257 = vrot.slane %v242, 4
    %v258 = vrot.slane %v244, 4
    %v259 = vrot.slane %v246, 4
    %v260 = vrot.slane %v248, 4
    %v261 = vrot.slane %v250, 4
    %v262 = vrot.slane %v252, 4
    %v263 = vsel %vm187, %v253, %v254
    %vm264 = vcmask 1031168
    %v265 = vsel %vm264, %v234, %v263
    %v266 = vsel %vm187, %v254, %v255
    %v267 = vsel %vm264, %v236, %v266
    %v268 = vsel %vm187, %v255, %v256
    %v269 = vsel %vm264, %v238, %v268
    %v270 = vsel %vm187, %v256, %v257
    %v271 = vsel %vm264, %v240, %v270
    %v272 = vsel %vm187, %v257, %v258
    %v273 = vsel %vm264, %v242, %v272
    %v274 = vsel %vm187, %v258, %v259
    %v275 = vsel %vm264, %v244, %v274
    %v276 = vsel %vm187, %v259, %v260
    %v277 = vsel %vm264, %v246, %v276
    %v278 = vsel %vm187, %v260, %v261
    %v279 = vsel %vm264, %v248, %v278
    %v280 = vsel %vm187, %v261, %v262
    %v281 = vsel %vm264, %v250, %v280
    %291 = vst [vmem:[#allocation2 + $0x48] sm:$0x33] %v265
    %292 = vst [vmem:[#allocation2 + $0x50] sm:$0x33] %v267
    %293 = vst [vmem:[#allocation2 + $0x58] sm:$0x33] %v269
    %294 = vst [vmem:[#allocation2 + $0x60] sm:$0x33] %v271
    %295 = vst [vmem:[#allocation2 + $0x68] sm:$0x33] %v273
    %296 = vst [vmem:[#allocation2 + $0x70] sm:$0x33] %v275
    %297 = vst [vmem:[#allocation2 + $0x78] sm:$0x33] %v277
    %298 = vst [vmem:[#allocation2 + $0x80] sm:$0x33] %v279
    %299 = vst [vmem:[#allocation2 + $0x88] sm:$0x33] %v281
    %300 = vrot.lane.b32.xlu0 %v124, 125
    %v301 = vpop.permute.xlu0 %300
    %302 = vrot.lane.b32.xlu0 %v39, 125
    %v303 = vpop.permute.xlu0 %302
    %304 = vrot.lane.b32.xlu0 %v132, 125
    %v305 = vpop.permute.xlu0 %304
    %306 = vrot.lane.b32.xlu0 %v54, 125
    %v307 = vpop.permute.xlu0 %306
    %308 = vrot.lane.b32.xlu0 %v140, 125
    %v309 = vpop.permute.xlu0 %308
    %310 = vrot.lane.b32.xlu0 %v69, 125
    %v311 = vpop.permute.xlu0 %310
    %312 = vrot.lane.b32.xlu0 %v148, 125
    %v313 = vpop.permute.xlu0 %312
    %314 = vrot.lane.b32.xlu0 %v84, 125
    %v315 = vpop.permute.xlu0 %314
    %316 = vrot.lane.b32.xlu0 %v156, 125
    %v317 = vpop.permute.xlu0 %316
    %318 = vrot.lane.b32.xlu0 %v98, 125
    %v319 = vpop.permute.xlu0 %318
    %v320 = vrot.slane %v301, 4
    %v321 = vrot.slane %v303, 4
    %v322 = vrot.slane %v305, 4
    %v323 = vrot.slane %v307, 4
    %v324 = vrot.slane %v309, 4
    %v325 = vrot.slane %v311, 4
    %v326 = vrot.slane %v313, 4
    %v327 = vrot.slane %v315, 4
    %v328 = vrot.slane %v317, 4
    %v329 = vrot.slane %v319, 4
    %v330 = vsel %vm187, %v320, %v321
    %vm331 = vcmask 1022976
    %v332 = vsel %vm331, %v301, %v330
    %v333 = vsel %vm187, %v321, %v322
    %v334 = vsel %vm331, %v303, %v333
    %v335 = vsel %vm187, %v322, %v323
    %v336 = vsel %vm331, %v305, %v335
    %v337 = vsel %vm187, %v323, %v324
    %v338 = vsel %vm331, %v307, %v337
    %v339 = vsel %vm187, %v324, %v325
    %v340 = vsel %vm331, %v309, %v339
    %v341 = vsel %vm187, %v325, %v326
    %v342 = vsel %vm331, %v311, %v341
    %v343 = vsel %vm187, %v326, %v327
    %v344 = vsel %vm331, %v313, %v343
    %v345 = vsel %vm187, %v327, %v328
    %v346 = vsel %vm331, %v315, %v345
    %v347 = vsel %vm187, %v328, %v329
    %v348 = vsel %vm331, %v317, %v347
    %358 = vst [vmem:[#allocation2 + $0x48] sm:$0xcc] %v332
    %359 = vst [vmem:[#allocation2 + $0x50] sm:$0xcc] %v334
    %360 = vst [vmem:[#allocation2 + $0x58] sm:$0xcc] %v336
    %361 = vst [vmem:[#allocation2 + $0x60] sm:$0xcc] %v338
    %362 = vst [vmem:[#allocation2 + $0x68] sm:$0xcc] %v340
    %363 = vst [vmem:[#allocation2 + $0x70] sm:$0xcc] %v342
    %364 = vst [vmem:[#allocation2 + $0x78] sm:$0xcc] %v344
    %365 = vst [vmem:[#allocation2 + $0x80] sm:$0xcc] %v346
    %366 = vst [vmem:[#allocation2 + $0x88] sm:$0xcc] %v348
    %367 = vrot.lane.b32.xlu0 %v39, 124
    %v368 = vpop.permute.xlu0 %367
    %369 = vrot.lane.b32.xlu0 %v46, 124
    %v370 = vpop.permute.xlu0 %369
    %371 = vrot.lane.b32.xlu0 %v54, 124
    %v372 = vpop.permute.xlu0 %371
    %373 = vrot.lane.b32.xlu0 %v61, 124
    %v374 = vpop.permute.xlu0 %373
    %375 = vrot.lane.b32.xlu0 %v69, 124
    %v376 = vpop.permute.xlu0 %375
    %377 = vrot.lane.b32.xlu0 %v76, 124
    %v378 = vpop.permute.xlu0 %377
    %379 = vrot.lane.b32.xlu0 %v84, 124
    %v380 = vpop.permute.xlu0 %379
    %381 = vrot.lane.b32.xlu0 %v91, 124
    %v382 = vpop.permute.xlu0 %381
    %383 = vrot.lane.b32.xlu0 %v98, 124
    %v384 = vpop.permute.xlu0 %383
    %385 = vrot.lane.b32.xlu0 %v232, 124
    %v386 = vpop.permute.xlu0 %385
    %v387 = vrot.slane %v368, 4
    %v388 = vrot.slane %v370, 4
    %v389 = vrot.slane %v372, 4
    %v390 = vrot.slane %v374, 4
    %v391 = vrot.slane %v376, 4
    %v392 = vrot.slane %v378, 4
    %v393 = vrot.slane %v380, 4
    %v394 = vrot.slane %v382, 4
    %v395 = vrot.slane %v384, 4
    %v396 = vrot.slane %v386, 4
    %v397 = vsel %vm187, %v387, %v388
    %vm398 = vcmask 1014784
    %v399 = vsel %vm398, %v368, %v397
    %v400 = vsel %vm187, %v388, %v389
    %v401 = vsel %vm398, %v370, %v400
    %v402 = vsel %vm187, %v389, %v390
    %v403 = vsel %vm398, %v372, %v402
    %v404 = vsel %vm187, %v390, %v391
    %v405 = vsel %vm398, %v374, %v404
    %v406 = vsel %vm187, %v391, %v392
    %v407 = vsel %vm398, %v376, %v406
    %v408 = vsel %vm187, %v392, %v393
    %v409 = vsel %vm398, %v378, %v408
    %v410 = vsel %vm187, %v393, %v394
    %v411 = vsel %vm398, %v380, %v410
    %v412 = vsel %vm187, %v394, %v395
    %v413 = vsel %vm398, %v382, %v412
    %v414 = vsel %vm187, %v395, %v396
    %v415 = vsel %vm398, %v384, %v414
    %425 = vst [vmem:[#allocation2 + $0x90] sm:$0x33] %v399
    %426 = vst [vmem:[#allocation2 + $0x98] sm:$0x33] %v401
    %427 = vst [vmem:[#allocation2 + $0xa0] sm:$0x33] %v403
    %428 = vst [vmem:[#allocation2 + $0xa8] sm:$0x33] %v405
    %429 = vst [vmem:[#allocation2 + $0xb0] sm:$0x33] %v407
    %430 = vst [vmem:[#allocation2 + $0xb8] sm:$0x33] %v409
    %431 = vst [vmem:[#allocation2 + $0xc0] sm:$0x33] %v411
    %432 = vst [vmem:[#allocation2 + $0xc8] sm:$0x33] %v413
    %433 = vst [vmem:[#allocation2 + $0xd0] sm:$0x33] %v415
    %434 = vrot.lane.b32.xlu0 %v124, 96
    %v435 = vpop.permute.xlu0 %434
    %436 = vrot.lane.b32.xlu0 %v39, 96
    %v437 = vpop.permute.xlu0 %436
    %438 = vrot.lane.b32.xlu0 %v132, 96
    %v439 = vpop.permute.xlu0 %438
    %440 = vrot.lane.b32.xlu0 %v54, 96
    %v441 = vpop.permute.xlu0 %440
    %442 = vrot.lane.b32.xlu0 %v140, 96
    %v443 = vpop.permute.xlu0 %442
    %444 = vrot.lane.b32.xlu0 %v69, 96
    %v445 = vpop.permute.xlu0 %444
    %446 = vrot.lane.b32.xlu0 %v148, 96
    %v447 = vpop.permute.xlu0 %446
    %448 = vrot.lane.b32.xlu0 %v84, 96
    %v449 = vpop.permute.xlu0 %448
    %450 = vrot.lane.b32.xlu0 %v156, 96
    %v451 = vpop.permute.xlu0 %450
    %452 = vrot.lane.b32.xlu0 %v98, 96
    %v453 = vpop.permute.xlu0 %452
    %v454 = vrot.slane %v435, 4
    %v455 = vrot.slane %v437, 4
    %v456 = vrot.slane %v439, 4
    %v457 = vrot.slane %v441, 4
    %v458 = vrot.slane %v443, 4
    %v459 = vrot.slane %v445, 4
    %v460 = vrot.slane %v447, 4
    %v461 = vrot.slane %v449, 4
    %v462 = vrot.slane %v451, 4
    %v463 = vrot.slane %v453, 4
    %v464 = vsel %vm187, %v454, %v455
    %vm465 = vcmask 785408
    %v466 = vsel %vm465, %v435, %v464
    %v467 = vsel %vm187, %v455, %v456
    %v468 = vsel %vm465, %v437, %v467
    %v469 = vsel %vm187, %v456, %v457
    %v470 = vsel %vm465, %v439, %v469
    %v471 = vsel %vm187, %v457, %v458
    %v472 = vsel %vm465, %v441, %v471
    %v473 = vsel %vm187, %v458, %v459
    %v474 = vsel %vm465, %v443, %v473
    %v475 = vsel %vm187, %v459, %v460
    %v476 = vsel %vm465, %v445, %v475
    %v477 = vsel %vm187, %v460, %v461
    %v478 = vsel %vm465, %v447, %v477
    %v479 = vsel %vm187, %v461, %v462
    %v480 = vsel %vm465, %v449, %v479
    %v481 = vsel %vm187, %v462, %v463
    %v482 = vsel %vm465, %v451, %v481
    %492 = vst [vmem:[#allocation2 + $0x90] sm:$0xcc] %v466
    %493 = vst [vmem:[#allocation2 + $0x98] sm:$0xcc] %v468
    %494 = vst [vmem:[#allocation2 + $0xa0] sm:$0xcc] %v470
    %495 = vst [vmem:[#allocation2 + $0xa8] sm:$0xcc] %v472
    %496 = vst [vmem:[#allocation2 + $0xb0] sm:$0xcc] %v474
    %497 = vst [vmem:[#allocation2 + $0xb8] sm:$0xcc] %v476
    %498 = vst [vmem:[#allocation2 + $0xc0] sm:$0xcc] %v478
    %499 = vst [vmem:[#allocation2 + $0xc8] sm:$0xcc] %v480
    %500 = vst [vmem:[#allocation2 + $0xd0] sm:$0xcc] %v482
    %501 = vrot.lane.b32.xlu0 %v39, 95
    %v502 = vpop.permute.xlu0 %501
    %503 = vrot.lane.b32.xlu0 %v46, 95
    %v504 = vpop.permute.xlu0 %503
    %505 = vrot.lane.b32.xlu0 %v54, 95
    %v506 = vpop.permute.xlu0 %505
    %507 = vrot.lane.b32.xlu0 %v61, 95
    %v508 = vpop.permute.xlu0 %507
    %509 = vrot.lane.b32.xlu0 %v69, 95
    %v510 = vpop.permute.xlu0 %509
    %511 = vrot.lane.b32.xlu0 %v76, 95
    %v512 = vpop.permute.xlu0 %511
    %513 = vrot.lane.b32.xlu0 %v84, 95
    %v514 = vpop.permute.xlu0 %513
    %515 = vrot.lane.b32.xlu0 %v91, 95
    %v516 = vpop.permute.xlu0 %515
    %517 = vrot.lane.b32.xlu0 %v98, 95
    %v518 = vpop.permute.xlu0 %517
    %519 = vrot.lane.b32.xlu0 %v232, 95
    %v520 = vpop.permute.xlu0 %519
    %v521 = vrot.slane %v502, 4
    %v522 = vrot.slane %v504, 4
    %v523 = vrot.slane %v506, 4
    %v524 = vrot.slane %v508, 4
    %v525 = vrot.slane %v510, 4
    %v526 = vrot.slane %v512, 4
    %v527 = vrot.slane %v514, 4
    %v528 = vrot.slane %v516, 4
    %v529 = vrot.slane %v518, 4
    %v530 = vrot.slane %v520, 4
    %v531 = vsel %vm187, %v521, %v522
    %vm532 = vcmask 777216
    %v533 = vsel %vm532, %v502, %v531
    %v534 = vsel %vm187, %v522, %v523
    %v535 = vsel %vm532, %v504, %v534
    %v536 = vsel %vm187, %v523, %v524
    %v537 = vsel %vm532, %v506, %v536
    %v538 = vsel %vm187, %v524, %v525
    %v539 = vsel %vm532, %v508, %v538
    %v540 = vsel %vm187, %v525, %v526
    %v541 = vsel %vm532, %v510, %v540
    %v542 = vsel %vm187, %v526, %v527
    %v543 = vsel %vm532, %v512, %v542
    %v544 = vsel %vm187, %v527, %v528
    %v545 = vsel %vm532, %v514, %v544
    %v546 = vsel %vm187, %v528, %v529
    %v547 = vsel %vm532, %v516, %v546
    %v548 = vsel %vm187, %v529, %v530
    %v549 = vsel %vm532, %v518, %v548
    %559 = vst [vmem:[#allocation2 + $0xd8] sm:$0x33] %v533
    %560 = vst [vmem:[#allocation2 + $0xe0] sm:$0x33] %v535
    %561 = vst [vmem:[#allocation2 + $0xe8] sm:$0x33] %v537
    %562 = vst [vmem:[#allocation2 + $0xf0] sm:$0x33] %v539
    %563 = vst [vmem:[#allocation2 + $0xf8] sm:$0x33] %v541
    %564 = vst [vmem:[#allocation2 + $0x100] sm:$0x33] %v543
    %565 = vst [vmem:[#allocation2 + $0x108] sm:$0x33] %v545
    %566 = vst [vmem:[#allocation2 + $0x110] sm:$0x33] %v547
    %567 = vst [vmem:[#allocation2 + $0x118] sm:$0x33] %v549
    %568 = vrot.lane.b32.xlu0 %v124, 94
    %v569 = vpop.permute.xlu0 %568
    %570 = vrot.lane.b32.xlu0 %v39, 94
    %v571 = vpop.permute.xlu0 %570
    %572 = vrot.lane.b32.xlu0 %v132, 94
    %v573 = vpop.permute.xlu0 %572
    %574 = vrot.lane.b32.xlu0 %v54, 94
    %v575 = vpop.permute.xlu0 %574
    %576 = vrot.lane.b32.xlu0 %v140, 94
    %v577 = vpop.permute.xlu0 %576
    %578 = vrot.lane.b32.xlu0 %v69, 94
    %v579 = vpop.permute.xlu0 %578
    %580 = vrot.lane.b32.xlu0 %v148, 94
    %v581 = vpop.permute.xlu0 %580
    %582 = vrot.lane.b32.xlu0 %v84, 94
    %v583 = vpop.permute.xlu0 %582
    %584 = vrot.lane.b32.xlu0 %v156, 94
    %v585 = vpop.permute.xlu0 %584
    %586 = vrot.lane.b32.xlu0 %v98, 94
    %v587 = vpop.permute.xlu0 %586
    %v588 = vrot.slane %v569, 4
    %v589 = vrot.slane %v571, 4
    %v590 = vrot.slane %v573, 4
    %v591 = vrot.slane %v575, 4
    %v592 = vrot.slane %v577, 4
    %v593 = vrot.slane %v579, 4
    %v594 = vrot.slane %v581, 4
    %v595 = vrot.slane %v583, 4
    %v596 = vrot.slane %v585, 4
    %v597 = vrot.slane %v587, 4
    %v598 = vsel %vm187, %v588, %v589
    %vm599 = vcmask 769024
    %v600 = vsel %vm599, %v569, %v598
    %v601 = vsel %vm187, %v589, %v590
    %v602 = vsel %vm599, %v571, %v601
    %v603 = vsel %vm187, %v590, %v591
    %v604 = vsel %vm599, %v573, %v603
    %v605 = vsel %vm187, %v591, %v592
    %v606 = vsel %vm599, %v575, %v605
    %v607 = vsel %vm187, %v592, %v593
    %v608 = vsel %vm599, %v577, %v607
    %v609 = vsel %vm187, %v593, %v594
    %v610 = vsel %vm599, %v579, %v609
    %v611 = vsel %vm187, %v594, %v595
    %v612 = vsel %vm599, %v581, %v611
    %v613 = vsel %vm187, %v595, %v596
    %v614 = vsel %vm599, %v583, %v613
    %v615 = vsel %vm187, %v596, %v597
    %v616 = vsel %vm599, %v585, %v615
    %626 = vst [vmem:[#allocation2 + $0xd8] sm:$0xcc] %v600
    %627 = vst [vmem:[#allocation2 + $0xe0] sm:$0xcc] %v602
    %628 = vst [vmem:[#allocation2 + $0xe8] sm:$0xcc] %v604
    %629 = vst [vmem:[#allocation2 + $0xf0] sm:$0xcc] %v606
    %630 = vst [vmem:[#allocation2 + $0xf8] sm:$0xcc] %v608
    %631 = vst [vmem:[#allocation2 + $0x100] sm:$0xcc] %v610
    %632 = vst [vmem:[#allocation2 + $0x108] sm:$0xcc] %v612
    %633 = vst [vmem:[#allocation2 + $0x110] sm:$0xcc] %v614
    %634 = vst [vmem:[#allocation2 + $0x118] sm:$0xcc] %v616
    %635 = vrot.lane.b32.xlu0 %v39, 93
    %v636 = vpop.permute.xlu0 %635
    %637 = vrot.lane.b32.xlu0 %v46, 93
    %v638 = vpop.permute.xlu0 %637
    %639 = vrot.lane.b32.xlu0 %v54, 93
    %v640 = vpop.permute.xlu0 %639
    %641 = vrot.lane.b32.xlu0 %v61, 93
    %v642 = vpop.permute.xlu0 %641
    %643 = vrot.lane.b32.xlu0 %v69, 93
    %v644 = vpop.permute.xlu0 %643
    %645 = vrot.lane.b32.xlu0 %v76, 93
    %v646 = vpop.permute.xlu0 %645
    %647 = vrot.lane.b32.xlu0 %v84, 93
    %v648 = vpop.permute.xlu0 %647
    %649 = vrot.lane.b32.xlu0 %v91, 93
    %v650 = vpop.permute.xlu0 %649
    %651 = vrot.lane.b32.xlu0 %v98, 93
    %v652 = vpop.permute.xlu0 %651
    %653 = vrot.lane.b32.xlu0 %v232, 93
    %v654 = vpop.permute.xlu0 %653
    %v655 = vrot.slane %v636, 4
    %v656 = vrot.slane %v638, 4
    %v657 = vrot.slane %v640, 4
    %v658 = vrot.slane %v642, 4
    %v659 = vrot.slane %v644, 4
    %v660 = vrot.slane %v646, 4
    %v661 = vrot.slane %v648, 4
    %v662 = vrot.slane %v650, 4
    %v663 = vrot.slane %v652, 4
    %v664 = vrot.slane %v654, 4
    %v665 = vsel %vm187, %v655, %v656
    %vm666 = vcmask 760832
    %v667 = vsel %vm666, %v636, %v665
    %v668 = vsel %vm187, %v656, %v657
    %v669 = vsel %vm666, %v638, %v668
    %v670 = vsel %vm187, %v657, %v658
    %v671 = vsel %vm666, %v640, %v670
    %v672 = vsel %vm187, %v658, %v659
    %v673 = vsel %vm666, %v642, %v672
    %v674 = vsel %vm187, %v659, %v660
    %v675 = vsel %vm666, %v644, %v674
    %v676 = vsel %vm187, %v660, %v661
    %v677 = vsel %vm666, %v646, %v676
    %v678 = vsel %vm187, %v661, %v662
    %v679 = vsel %vm666, %v648, %v678
    %v680 = vsel %vm187, %v662, %v663
    %v681 = vsel %vm666, %v650, %v680
    %v682 = vsel %vm187, %v663, %v664
    %v683 = vsel %vm666, %v652, %v682
    %693 = vst [vmem:[#allocation2 + $0x120] sm:$0x33] %v667
    %694 = vst [vmem:[#allocation2 + $0x128] sm:$0x33] %v669
    %695 = vst [vmem:[#allocation2 + $0x130] sm:$0x33] %v671
    %696 = vst [vmem:[#allocation2 + $0x138] sm:$0x33] %v673
    %697 = vst [vmem:[#allocation2 + $0x140] sm:$0x33] %v675
    %698 = vst [vmem:[#allocation2 + $0x148] sm:$0x33] %v677
    %699 = vst [vmem:[#allocation2 + $0x150] sm:$0x33] %v679
    %700 = vst [vmem:[#allocation2 + $0x158] sm:$0x33] %v681
    %701 = vst [vmem:[#allocation2 + $0x160] sm:$0x33] %v683
    %702 = vrot.lane.b32.xlu0 %v124, 92
    %v703 = vpop.permute.xlu0 %702
    %704 = vrot.lane.b32.xlu0 %v39, 92
    %v705 = vpop.permute.xlu0 %704
    %706 = vrot.lane.b32.xlu0 %v132, 92
    %v707 = vpop.permute.xlu0 %706
    %708 = vrot.lane.b32.xlu0 %v54, 92
    %v709 = vpop.permute.xlu0 %708
    %710 = vrot.lane.b32.xlu0 %v140, 92
    %v711 = vpop.permute.xlu0 %710
    %712 = vrot.lane.b32.xlu0 %v69, 92
    %v713 = vpop.permute.xlu0 %712
    %714 = vrot.lane.b32.xlu0 %v148, 92
    %v715 = vpop.permute.xlu0 %714
    %716 = vrot.lane.b32.xlu0 %v84, 92
    %v717 = vpop.permute.xlu0 %716
    %718 = vrot.lane.b32.xlu0 %v156, 92
    %v719 = vpop.permute.xlu0 %718
    %720 = vrot.lane.b32.xlu0 %v98, 92
    %v721 = vpop.permute.xlu0 %720
    %v722 = vrot.slane %v703, 4
    %v723 = vrot.slane %v705, 4
    %v724 = vrot.slane %v707, 4
    %v725 = vrot.slane %v709, 4
    %v726 = vrot.slane %v711, 4
    %v727 = vrot.slane %v713, 4
    %v728 = vrot.slane %v715, 4
    %v729 = vrot.slane %v717, 4
    %v730 = vrot.slane %v719, 4
    %v731 = vrot.slane %v721, 4
    %v732 = vsel %vm187, %v722, %v723
    %vm733 = vcmask 752640
    %v734 = vsel %vm733, %v703, %v732
    %v735 = vsel %vm187, %v723, %v724
    %v736 = vsel %vm733, %v705, %v735
    %v737 = vsel %vm187, %v724, %v725
    %v738 = vsel %vm733, %v707, %v737
    %v739 = vsel %vm187, %v725, %v726
    %v740 = vsel %vm733, %v709, %v739
    %v741 = vsel %vm187, %v726, %v727
    %v742 = vsel %vm733, %v711, %v741
    %v743 = vsel %vm187, %v727, %v728
    %v744 = vsel %vm733, %v713, %v743
    %v745 = vsel %vm187, %v728, %v729
    %v746 = vsel %vm733, %v715, %v745
    %v747 = vsel %vm187, %v729, %v730
    %v748 = vsel %vm733, %v717, %v747
    %v749 = vsel %vm187, %v730, %v731
    %v750 = vsel %vm733, %v719, %v749
    %760 = vst [vmem:[#allocation2 + $0x120] sm:$0xcc] %v734
    %761 = vst [vmem:[#allocation2 + $0x128] sm:$0xcc] %v736
    %762 = vst [vmem:[#allocation2 + $0x130] sm:$0xcc] %v738
    %763 = vst [vmem:[#allocation2 + $0x138] sm:$0xcc] %v740
    %764 = vst [vmem:[#allocation2 + $0x140] sm:$0xcc] %v742
    %765 = vst [vmem:[#allocation2 + $0x148] sm:$0xcc] %v744
    %766 = vst [vmem:[#allocation2 + $0x150] sm:$0xcc] %v746
    %767 = vst [vmem:[#allocation2 + $0x158] sm:$0xcc] %v748
    %768 = vst [vmem:[#allocation2 + $0x160] sm:$0xcc] %v750
    %769 = vrot.lane.b32.xlu0 %v39, 64
    %v770 = vpop.permute.xlu0 %769
    %771 = vrot.lane.b32.xlu0 %v46, 64
    %v772 = vpop.permute.xlu0 %771
    %773 = vrot.lane.b32.xlu0 %v54, 64
    %v774 = vpop.permute.xlu0 %773
    %775 = vrot.lane.b32.xlu0 %v61, 64
    %v776 = vpop.permute.xlu0 %775
    %777 = vrot.lane.b32.xlu0 %v69, 64
    %v778 = vpop.permute.xlu0 %777
    %779 = vrot.lane.b32.xlu0 %v76, 64
    %v780 = vpop.permute.xlu0 %779
    %781 = vrot.lane.b32.xlu0 %v84, 64
    %v782 = vpop.permute.xlu0 %781
    %783 = vrot.lane.b32.xlu0 %v91, 64
    %v784 = vpop.permute.xlu0 %783
    %785 = vrot.lane.b32.xlu0 %v98, 64
    %v786 = vpop.permute.xlu0 %785
    %787 = vrot.lane.b32.xlu0 %v232, 64
    %v788 = vpop.permute.xlu0 %787
    %v789 = vrot.slane %v770, 4
    %v790 = vrot.slane %v772, 4
    %v791 = vrot.slane %v774, 4
    %v792 = vrot.slane %v776, 4
    %v793 = vrot.slane %v778, 4
    %v794 = vrot.slane %v780, 4
    %v795 = vrot.slane %v782, 4
    %v796 = vrot.slane %v784, 4
    %v797 = vrot.slane %v786, 4
    %v798 = vrot.slane %v788, 4
    %v799 = vsel %vm187, %v789, %v790
    %vm800 = vcmask 523264
    %v801 = vsel %vm800, %v770, %v799
    %v802 = vsel %vm187, %v790, %v791
    %v803 = vsel %vm800, %v772, %v802
    %v804 = vsel %vm187, %v791, %v792
    %v805 = vsel %vm800, %v774, %v804
    %v806 = vsel %vm187, %v792, %v793
    %v807 = vsel %vm800, %v776, %v806
    %v808 = vsel %vm187, %v793, %v794
    %v809 = vsel %vm800, %v778, %v808
    %v810 = vsel %vm187, %v794, %v795
    %v811 = vsel %vm800, %v780, %v810
    %v812 = vsel %vm187, %v795, %v796
    %v813 = vsel %vm800, %v782, %v812
    %v814 = vsel %vm187, %v796, %v797
    %v815 = vsel %vm800, %v784, %v814
    %v816 = vsel %vm187, %v797, %v798
    %v817 = vsel %vm800, %v786, %v816
    %827 = vst [vmem:[#allocation2 + $0x168] sm:$0x33] %v801
    %828 = vst [vmem:[#allocation2 + $0x170] sm:$0x33] %v803
    %829 = vst [vmem:[#allocation2 + $0x178] sm:$0x33] %v805
    %830 = vst [vmem:[#allocation2 + $0x180] sm:$0x33] %v807
    %831 = vst [vmem:[#allocation2 + $0x188] sm:$0x33] %v809
    %832 = vst [vmem:[#allocation2 + $0x190] sm:$0x33] %v811
    %833 = vst [vmem:[#allocation2 + $0x198] sm:$0x33] %v813
    %834 = vst [vmem:[#allocation2 + $0x1a0] sm:$0x33] %v815
    %835 = vst [vmem:[#allocation2 + $0x1a8] sm:$0x33] %v817
    %836 = vrot.lane.b32.xlu0 %v124, 63
    %v837 = vpop.permute.xlu0 %836
    %838 = vrot.lane.b32.xlu0 %v39, 63
    %v839 = vpop.permute.xlu0 %838
    %840 = vrot.lane.b32.xlu0 %v132, 63
    %v841 = vpop.permute.xlu0 %840
    %842 = vrot.lane.b32.xlu0 %v54, 63
    %v843 = vpop.permute.xlu0 %842
    %844 = vrot.lane.b32.xlu0 %v140, 63
    %v845 = vpop.permute.xlu0 %844
    %846 = vrot.lane.b32.xlu0 %v69, 63
    %v847 = vpop.permute.xlu0 %846
    %848 = vrot.lane.b32.xlu0 %v148, 63
    %v849 = vpop.permute.xlu0 %848
    %850 = vrot.lane.b32.xlu0 %v84, 63
    %v851 = vpop.permute.xlu0 %850
    %852 = vrot.lane.b32.xlu0 %v156, 63
    %v853 = vpop.permute.xlu0 %852
    %854 = vrot.lane.b32.xlu0 %v98, 63
    %v855 = vpop.permute.xlu0 %854
    %v856 = vrot.slane %v837, 4
    %v857 = vrot.slane %v839, 4
    %v858 = vrot.slane %v841, 4
    %v859 = vrot.slane %v843, 4
    %v860 = vrot.slane %v845, 4
    %v861 = vrot.slane %v847, 4
    %v862 = vrot.slane %v849, 4
    %v863 = vrot.slane %v851, 4
    %v864 = vrot.slane %v853, 4
    %v865 = vrot.slane %v855, 4
    %v866 = vsel %vm187, %v856, %v857
    %vm867 = vcmask 515072
    %v868 = vsel %vm867, %v837, %v866
    %v869 = vsel %vm187, %v857, %v858
    %v870 = vsel %vm867, %v839, %v869
    %v871 = vsel %vm187, %v858, %v859
    %v872 = vsel %vm867, %v841, %v871
    %v873 = vsel %vm187, %v859, %v860
    %v874 = vsel %vm867, %v843, %v873
    %v875 = vsel %vm187, %v860, %v861
    %v876 = vsel %vm867, %v845, %v875
    %v877 = vsel %vm187, %v861, %v862
    %v878 = vsel %vm867, %v847, %v877
    %v879 = vsel %vm187, %v862, %v863
    %v880 = vsel %vm867, %v849, %v879
    %v881 = vsel %vm187, %v863, %v864
    %v882 = vsel %vm867, %v851, %v881
    %v883 = vsel %vm187, %v864, %v865
    %v884 = vsel %vm867, %v853, %v883
    %894 = vst [vmem:[#allocation2 + $0x168] sm:$0xcc] %v868
    %895 = vst [vmem:[#allocation2 + $0x170] sm:$0xcc] %v870
    %896 = vst [vmem:[#allocation2 + $0x178] sm:$0xcc] %v872
    %897 = vst [vmem:[#allocation2 + $0x180] sm:$0xcc] %v874
    %898 = vst [vmem:[#allocation2 + $0x188] sm:$0xcc] %v876
    %899 = vst [vmem:[#allocation2 + $0x190] sm:$0xcc] %v878
    %900 = vst [vmem:[#allocation2 + $0x198] sm:$0xcc] %v880
    %901 = vst [vmem:[#allocation2 + $0x1a0] sm:$0xcc] %v882
    %902 = vst [vmem:[#allocation2 + $0x1a8] sm:$0xcc] %v884
    %903 = vrot.lane.b32.xlu0 %v39, 62
    %v904 = vpop.permute.xlu0 %903
    %905 = vrot.lane.b32.xlu0 %v46, 62
    %v906 = vpop.permute.xlu0 %905
    %907 = vrot.lane.b32.xlu0 %v54, 62
    %v908 = vpop.permute.xlu0 %907
    %909 = vrot.lane.b32.xlu0 %v61, 62
    %v910 = vpop.permute.xlu0 %909
    %911 = vrot.lane.b32.xlu0 %v69, 62
    %v912 = vpop.permute.xlu0 %911
    %913 = vrot.lane.b32.xlu0 %v76, 62
    %v914 = vpop.permute.xlu0 %913
    %915 = vrot.lane.b32.xlu0 %v84, 62
    %v916 = vpop.permute.xlu0 %915
    %917 = vrot.lane.b32.xlu0 %v91, 62
    %v918 = vpop.permute.xlu0 %917
    %919 = vrot.lane.b32.xlu0 %v98, 62
    %v920 = vpop.permute.xlu0 %919
    %921 = vrot.lane.b32.xlu0 %v232, 62
    %v922 = vpop.permute.xlu0 %921
    %v923 = vrot.slane %v904, 4
    %v924 = vrot.slane %v906, 4
    %v925 = vrot.slane %v908, 4
    %v926 = vrot.slane %v910, 4
    %v927 = vrot.slane %v912, 4
    %v928 = vrot.slane %v914, 4
    %v929 = vrot.slane %v916, 4
    %v930 = vrot.slane %v918, 4
    %v931 = vrot.slane %v920, 4
    %v932 = vrot.slane %v922, 4
    %v933 = vsel %vm187, %v923, %v924
    %vm934 = vcmask 506880
    %v935 = vsel %vm934, %v904, %v933
    %v936 = vsel %vm187, %v924, %v925
    %v937 = vsel %vm934, %v906, %v936
    %v938 = vsel %vm187, %v925, %v926
    %v939 = vsel %vm934, %v908, %v938
    %v940 = vsel %vm187, %v926, %v927
    %v941 = vsel %vm934, %v910, %v940
    %v942 = vsel %vm187, %v927, %v928
    %v943 = vsel %vm934, %v912, %v942
    %v944 = vsel %vm187, %v928, %v929
    %v945 = vsel %vm934, %v914, %v944
    %v946 = vsel %vm187, %v929, %v930
    %v947 = vsel %vm934, %v916, %v946
    %v948 = vsel %vm187, %v930, %v931
    %v949 = vsel %vm934, %v918, %v948
    %v950 = vsel %vm187, %v931, %v932
    %v951 = vsel %vm934, %v920, %v950
    %961 = vst [vmem:[#allocation2 + $0x1b0] sm:$0x33] %v935
    %962 = vst [vmem:[#allocation2 + $0x1b8] sm:$0x33] %v937
    %963 = vst [vmem:[#allocation2 + $0x1c0] sm:$0x33] %v939
    %964 = vst [vmem:[#allocation2 + $0x1c8] sm:$0x33] %v941
    %965 = vst [vmem:[#allocation2 + $0x1d0] sm:$0x33] %v943
    %966 = vst [vmem:[#allocation2 + $0x1d8] sm:$0x33] %v945
    %967 = vst [vmem:[#allocation2 + $0x1e0] sm:$0x33] %v947
    %968 = vst [vmem:[#allocation2 + $0x1e8] sm:$0x33] %v949
    %969 = vst [vmem:[#allocation2 + $0x1f0] sm:$0x33] %v951
    %970 = vrot.lane.b32.xlu0 %v124, 61
    %v971 = vpop.permute.xlu0 %970
    %972 = vrot.lane.b32.xlu0 %v39, 61
    %v973 = vpop.permute.xlu0 %972
    %974 = vrot.lane.b32.xlu0 %v132, 61
    %v975 = vpop.permute.xlu0 %974
    %976 = vrot.lane.b32.xlu0 %v54, 61
    %v977 = vpop.permute.xlu0 %976
    %978 = vrot.lane.b32.xlu0 %v140, 61
    %v979 = vpop.permute.xlu0 %978
    %980 = vrot.lane.b32.xlu0 %v69, 61
    %v981 = vpop.permute.xlu0 %980
    %982 = vrot.lane.b32.xlu0 %v148, 61
    %v983 = vpop.permute.xlu0 %982
    %984 = vrot.lane.b32.xlu0 %v84, 61
    %v985 = vpop.permute.xlu0 %984
    %986 = vrot.lane.b32.xlu0 %v156, 61
    %v987 = vpop.permute.xlu0 %986
    %988 = vrot.lane.b32.xlu0 %v98, 61
    %v989 = vpop.permute.xlu0 %988
    %v990 = vrot.slane %v971, 4
    %v991 = vrot.slane %v973, 4
    %v992 = vrot.slane %v975, 4
    %v993 = vrot.slane %v977, 4
    %v994 = vrot.slane %v979, 4
    %v995 = vrot.slane %v981, 4
    %v996 = vrot.slane %v983, 4
    %v997 = vrot.slane %v985, 4
    %v998 = vrot.slane %v987, 4
    %v999 = vrot.slane %v989, 4
    %v1000 = vsel %vm187, %v990, %v991
    %vm1001 = vcmask 498688
    %v1002 = vsel %vm1001, %v971, %v1000
    %v1003 = vsel %vm187, %v991, %v992
    %v1004 = vsel %vm1001, %v973, %v1003
    %v1005 = vsel %vm187, %v992, %v993
    %v1006 = vsel %vm1001, %v975, %v1005
    %v1007 = vsel %vm187, %v993, %v994
    %v1008 = vsel %vm1001, %v977, %v1007
    %v1009 = vsel %vm187, %v994, %v995
    %v1010 = vsel %vm1001, %v979, %v1009
    %v1011 = vsel %vm187, %v995, %v996
    %v1012 = vsel %vm1001, %v981, %v1011
    %v1013 = vsel %vm187, %v996, %v997
    %v1014 = vsel %vm1001, %v983, %v1013
    %v1015 = vsel %vm187, %v997, %v998
    %v1016 = vsel %vm1001, %v985, %v1015
    %v1017 = vsel %vm187, %v998, %v999
    %v1018 = vsel %vm1001, %v987, %v1017
    %1028 = vst [vmem:[#allocation2 + $0x1b0] sm:$0xcc] %v1002
    %1029 = vst [vmem:[#allocation2 + $0x1b8] sm:$0xcc] %v1004
    %1030 = vst [vmem:[#allocation2 + $0x1c0] sm:$0xcc] %v1006
    %1031 = vst [vmem:[#allocation2 + $0x1c8] sm:$0xcc] %v1008
    %1032 = vst [vmem:[#allocation2 + $0x1d0] sm:$0xcc] %v1010
    %1033 = vst [vmem:[#allocation2 + $0x1d8] sm:$0xcc] %v1012
    %1034 = vst [vmem:[#allocation2 + $0x1e0] sm:$0xcc] %v1014
    %1035 = vst [vmem:[#allocation2 + $0x1e8] sm:$0xcc] %v1016
    %1036 = vst [vmem:[#allocation2 + $0x1f0] sm:$0xcc] %v1018
    %1037 = vrot.lane.b32.xlu0 %v39, 60
    %v1038 = vpop.permute.xlu0 %1037
    %1039 = vrot.lane.b32.xlu0 %v46, 60
    %v1040 = vpop.permute.xlu0 %1039
    %1041 = vrot.lane.b32.xlu0 %v54, 60
    %v1042 = vpop.permute.xlu0 %1041
    %1043 = vrot.lane.b32.xlu0 %v61, 60
    %v1044 = vpop.permute.xlu0 %1043
    %1045 = vrot.lane.b32.xlu0 %v69, 60
    %v1046 = vpop.permute.xlu0 %1045
    %1047 = vrot.lane.b32.xlu0 %v76, 60
    %v1048 = vpop.permute.xlu0 %1047
    %1049 = vrot.lane.b32.xlu0 %v84, 60
    %v1050 = vpop.permute.xlu0 %1049
    %1051 = vrot.lane.b32.xlu0 %v91, 60
    %v1052 = vpop.permute.xlu0 %1051
    %1053 = vrot.lane.b32.xlu0 %v98, 60
    %v1054 = vpop.permute.xlu0 %1053
    %1055 = vrot.lane.b32.xlu0 %v232, 60
    %v1056 = vpop.permute.xlu0 %1055
    %v1057 = vrot.slane %v1038, 4
    %v1058 = vrot.slane %v1040, 4
    %v1059 = vrot.slane %v1042, 4
    %v1060 = vrot.slane %v1044, 4
    %v1061 = vrot.slane %v1046, 4
    %v1062 = vrot.slane %v1048, 4
    %v1063 = vrot.slane %v1050, 4
    %v1064 = vrot.slane %v1052, 4
    %v1065 = vrot.slane %v1054, 4
    %v1066 = vrot.slane %v1056, 4
    %v1067 = vsel %vm187, %v1057, %v1058
    %vm1068 = vcmask 490496
    %v1069 = vsel %vm1068, %v1038, %v1067
    %v1070 = vsel %vm187, %v1058, %v1059
    %v1071 = vsel %vm1068, %v1040, %v1070
    %v1072 = vsel %vm187, %v1059, %v1060
    %v1073 = vsel %vm1068, %v1042, %v1072
    %v1074 = vsel %vm187, %v1060, %v1061
    %v1075 = vsel %vm1068, %v1044, %v1074
    %v1076 = vsel %vm187, %v1061, %v1062
    %v1077 = vsel %vm1068, %v1046, %v1076
    %v1078 = vsel %vm187, %v1062, %v1063
    %v1079 = vsel %vm1068, %v1048, %v1078
    %v1080 = vsel %vm187, %v1063, %v1064
    %v1081 = vsel %vm1068, %v1050, %v1080
    %v1082 = vsel %vm187, %v1064, %v1065
    %v1083 = vsel %vm1068, %v1052, %v1082
    %v1084 = vsel %vm187, %v1065, %v1066
    %v1085 = vsel %vm1068, %v1054, %v1084
    %1095 = vst [vmem:[#allocation2 + $0x1f8] sm:$0x33] %v1069
    %1096 = vst [vmem:[#allocation2 + $0x200] sm:$0x33] %v1071
    %1097 = vst [vmem:[#allocation2 + $0x208] sm:$0x33] %v1073
    %1098 = vst [vmem:[#allocation2 + $0x210] sm:$0x33] %v1075
    %1099 = vst [vmem:[#allocation2 + $0x218] sm:$0x33] %v1077
    %1100 = vst [vmem:[#allocation2 + $0x220] sm:$0x33] %v1079
    %1101 = vst [vmem:[#allocation2 + $0x228] sm:$0x33] %v1081
    %1102 = vst [vmem:[#allocation2 + $0x230] sm:$0x33] %v1083
    %1103 = vst [vmem:[#allocation2 + $0x238] sm:$0x33] %v1085
    %1104 = vrot.lane.b32.xlu0 %v124, 32
    %v1105 = vpop.permute.xlu0 %1104
    %1106 = vrot.lane.b32.xlu0 %v39, 32
    %v1107 = vpop.permute.xlu0 %1106
    %1108 = vrot.lane.b32.xlu0 %v132, 32
    %v1109 = vpop.permute.xlu0 %1108
    %1110 = vrot.lane.b32.xlu0 %v54, 32
    %v1111 = vpop.permute.xlu0 %1110
    %1112 = vrot.lane.b32.xlu0 %v140, 32
    %v1113 = vpop.permute.xlu0 %1112
    %1114 = vrot.lane.b32.xlu0 %v69, 32
    %v1115 = vpop.permute.xlu0 %1114
    %1116 = vrot.lane.b32.xlu0 %v148, 32
    %v1117 = vpop.permute.xlu0 %1116
    %1118 = vrot.lane.b32.xlu0 %v84, 32
    %v1119 = vpop.permute.xlu0 %1118
    %1120 = vrot.lane.b32.xlu0 %v156, 32
    %v1121 = vpop.permute.xlu0 %1120
    %1122 = vrot.lane.b32.xlu0 %v98, 32
    %v1123 = vpop.permute.xlu0 %1122
    %v1124 = vrot.slane %v1105, 4
    %v1125 = vrot.slane %v1107, 4
    %v1126 = vrot.slane %v1109, 4
    %v1127 = vrot.slane %v1111, 4
    %v1128 = vrot.slane %v1113, 4
    %v1129 = vrot.slane %v1115, 4
    %v1130 = vrot.slane %v1117, 4
    %v1131 = vrot.slane %v1119, 4
    %v1132 = vrot.slane %v1121, 4
    %v1133 = vrot.slane %v1123, 4
    %v1134 = vsel %vm187, %v1124, %v1125
    %vm1135 = vcmask 261120
    %v1136 = vsel %vm1135, %v1105, %v1134
    %v1137 = vsel %vm187, %v1125, %v1126
    %v1138 = vsel %vm1135, %v1107, %v1137
    %v1139 = vsel %vm187, %v1126, %v1127
    %v1140 = vsel %vm1135, %v1109, %v1139
    %v1141 = vsel %vm187, %v1127, %v1128
    %v1142 = vsel %vm1135, %v1111, %v1141
    %v1143 = vsel %vm187, %v1128, %v1129
    %v1144 = vsel %vm1135, %v1113, %v1143
    %v1145 = vsel %vm187, %v1129, %v1130
    %v1146 = vsel %vm1135, %v1115, %v1145
    %v1147 = vsel %vm187, %v1130, %v1131
    %v1148 = vsel %vm1135, %v1117, %v1147
    %v1149 = vsel %vm187, %v1131, %v1132
    %v1150 = vsel %vm1135, %v1119, %v1149
    %v1151 = vsel %vm187, %v1132, %v1133
    %v1152 = vsel %vm1135, %v1121, %v1151
    %1162 = vst [vmem:[#allocation2 + $0x1f8] sm:$0xcc] %v1136
    %1163 = vst [vmem:[#allocation2 + $0x200] sm:$0xcc] %v1138
    %1164 = vst [vmem:[#allocation2 + $0x208] sm:$0xcc] %v1140
    %1165 = vst [vmem:[#allocation2 + $0x210] sm:$0xcc] %v1142
    %1166 = vst [vmem:[#allocation2 + $0x218] sm:$0xcc] %v1144
    %1167 = vst [vmem:[#allocation2 + $0x220] sm:$0xcc] %v1146
    %1168 = vst [vmem:[#allocation2 + $0x228] sm:$0xcc] %v1148
    %1169 = vst [vmem:[#allocation2 + $0x230] sm:$0xcc] %v1150
    %1170 = vst [vmem:[#allocation2 + $0x238] sm:$0xcc] %v1152
    %1171 = vrot.lane.b32.xlu0 %v39, 31
    %v1172 = vpop.permute.xlu0 %1171
    %1173 = vrot.lane.b32.xlu0 %v46, 31
    %v1174 = vpop.permute.xlu0 %1173
    %1175 = vrot.lane.b32.xlu0 %v54, 31
    %v1176 = vpop.permute.xlu0 %1175
    %1177 = vrot.lane.b32.xlu0 %v61, 31
    %v1178 = vpop.permute.xlu0 %1177
    %1179 = vrot.lane.b32.xlu0 %v69, 31
    %v1180 = vpop.permute.xlu0 %1179
    %1181 = vrot.lane.b32.xlu0 %v76, 31
    %v1182 = vpop.permute.xlu0 %1181
    %1183 = vrot.lane.b32.xlu0 %v84, 31
    %v1184 = vpop.permute.xlu0 %1183
    %1185 = vrot.lane.b32.xlu0 %v91, 31
    %v1186 = vpop.permute.xlu0 %1185
    %1187 = vrot.lane.b32.xlu0 %v98, 31
    %v1188 = vpop.permute.xlu0 %1187
    %1189 = vrot.lane.b32.xlu0 %v232, 31
    %v1190 = vpop.permute.xlu0 %1189
    %v1191 = vrot.slane %v1172, 4
    %v1192 = vrot.slane %v1174, 4
    %v1193 = vrot.slane %v1176, 4
    %v1194 = vrot.slane %v1178, 4
    %v1195 = vrot.slane %v1180, 4
    %v1196 = vrot.slane %v1182, 4
    %v1197 = vrot.slane %v1184, 4
    %v1198 = vrot.slane %v1186, 4
    %v1199 = vrot.slane %v1188, 4
    %v1200 = vrot.slane %v1190, 4
    %v1201 = vsel %vm187, %v1191, %v1192
    %vm1202 = vcmask 252928
    %v1203 = vsel %vm1202, %v1172, %v1201
    %v1204 = vsel %vm187, %v1192, %v1193
    %v1205 = vsel %vm1202, %v1174, %v1204
    %v1206 = vsel %vm187, %v1193, %v1194
    %v1207 = vsel %vm1202, %v1176, %v1206
    %v1208 = vsel %vm187, %v1194, %v1195
    %v1209 = vsel %vm1202, %v1178, %v1208
    %v1210 = vsel %vm187, %v1195, %v1196
    %v1211 = vsel %vm1202, %v1180, %v1210
    %v1212 = vsel %vm187, %v1196, %v1197
    %v1213 = vsel %vm1202, %v1182, %v1212
    %v1214 = vsel %vm187, %v1197, %v1198
    %v1215 = vsel %vm1202, %v1184, %v1214
    %v1216 = vsel %vm187, %v1198, %v1199
    %v1217 = vsel %vm1202, %v1186, %v1216
    %v1218 = vsel %vm187, %v1199, %v1200
    %v1219 = vsel %vm1202, %v1188, %v1218
    %1229 = vst [vmem:[#allocation2 + $0x240] sm:$0x33] %v1203
    %1230 = vst [vmem:[#allocation2 + $0x248] sm:$0x33] %v1205
    %1231 = vst [vmem:[#allocation2 + $0x250] sm:$0x33] %v1207
    %1232 = vst [vmem:[#allocation2 + $0x258] sm:$0x33] %v1209
    %1233 = vst [vmem:[#allocation2 + $0x260] sm:$0x33] %v1211
    %1234 = vst [vmem:[#allocation2 + $0x268] sm:$0x33] %v1213
    %1235 = vst [vmem:[#allocation2 + $0x270] sm:$0x33] %v1215
    %1236 = vst [vmem:[#allocation2 + $0x278] sm:$0x33] %v1217
    %1237 = vst [vmem:[#allocation2 + $0x280] sm:$0x33] %v1219
    %1238 = vrot.lane.b32.xlu0 %v124, 30
    %v1239 = vpop.permute.xlu0 %1238
    %1240 = vrot.lane.b32.xlu0 %v39, 30
    %v1241 = vpop.permute.xlu0 %1240
    %1242 = vrot.lane.b32.xlu0 %v132, 30
    %v1243 = vpop.permute.xlu0 %1242
    %1244 = vrot.lane.b32.xlu0 %v54, 30
    %v1245 = vpop.permute.xlu0 %1244
    %1246 = vrot.lane.b32.xlu0 %v140, 30
    %v1247 = vpop.permute.xlu0 %1246
    %1248 = vrot.lane.b32.xlu0 %v69, 30
    %v1249 = vpop.permute.xlu0 %1248
    %1250 = vrot.lane.b32.xlu0 %v148, 30
    %v1251 = vpop.permute.xlu0 %1250
    %1252 = vrot.lane.b32.xlu0 %v84, 30
    %v1253 = vpop.permute.xlu0 %1252
    %1254 = vrot.lane.b32.xlu0 %v156, 30
    %v1255 = vpop.permute.xlu0 %1254
    %1256 = vrot.lane.b32.xlu0 %v98, 30
    %v1257 = vpop.permute.xlu0 %1256
    %v1258 = vrot.slane %v1239, 4
    %v1259 = vrot.slane %v1241, 4
    %v1260 = vrot.slane %v1243, 4
    %v1261 = vrot.slane %v1245, 4
    %v1262 = vrot.slane %v1247, 4
    %v1263 = vrot.slane %v1249, 4
    %v1264 = vrot.slane %v1251, 4
    %v1265 = vrot.slane %v1253, 4
    %v1266 = vrot.slane %v1255, 4
    %v1267 = vrot.slane %v1257, 4
    %v1268 = vsel %vm187, %v1258, %v1259
    %vm1269 = vcmask 244736
    %v1270 = vsel %vm1269, %v1239, %v1268
    %v1271 = vsel %vm187, %v1259, %v1260
    %v1272 = vsel %vm1269, %v1241, %v1271
    %v1273 = vsel %vm187, %v1260, %v1261
    %v1274 = vsel %vm1269, %v1243, %v1273
    %v1275 = vsel %vm187, %v1261, %v1262
    %v1276 = vsel %vm1269, %v1245, %v1275
    %v1277 = vsel %vm187, %v1262, %v1263
    %v1278 = vsel %vm1269, %v1247, %v1277
    %v1279 = vsel %vm187, %v1263, %v1264
    %v1280 = vsel %vm1269, %v1249, %v1279
    %v1281 = vsel %vm187, %v1264, %v1265
    %v1282 = vsel %vm1269, %v1251, %v1281
    %v1283 = vsel %vm187, %v1265, %v1266
    %v1284 = vsel %vm1269, %v1253, %v1283
    %v1285 = vsel %vm187, %v1266, %v1267
    %v1286 = vsel %vm1269, %v1255, %v1285
    %1296 = vst [vmem:[#allocation2 + $0x240] sm:$0xcc] %v1270
    %1297 = vst [vmem:[#allocation2 + $0x248] sm:$0xcc] %v1272
    %1298 = vst [vmem:[#allocation2 + $0x250] sm:$0xcc] %v1274
    %1299 = vst [vmem:[#allocation2 + $0x258] sm:$0xcc] %v1276
    %1300 = vst [vmem:[#allocation2 + $0x260] sm:$0xcc] %v1278
    %1301 = vst [vmem:[#allocation2 + $0x268] sm:$0xcc] %v1280
    %1302 = vst [vmem:[#allocation2 + $0x270] sm:$0xcc] %v1282
    %1303 = vst [vmem:[#allocation2 + $0x278] sm:$0xcc] %v1284
    %1304 = vst [vmem:[#allocation2 + $0x280] sm:$0xcc] %v1286
    %1305 = vrot.lane.b32.xlu0 %v39, 29
    %v1306 = vpop.permute.xlu0 %1305
    %1307 = vrot.lane.b32.xlu0 %v46, 29
    %v1308 = vpop.permute.xlu0 %1307
    %1309 = vrot.lane.b32.xlu0 %v54, 29
    %v1310 = vpop.permute.xlu0 %1309
    %1311 = vrot.lane.b32.xlu0 %v61, 29
    %v1312 = vpop.permute.xlu0 %1311
    %1313 = vrot.lane.b32.xlu0 %v69, 29
    %v1314 = vpop.permute.xlu0 %1313
    %1315 = vrot.lane.b32.xlu0 %v76, 29
    %v1316 = vpop.permute.xlu0 %1315
    %1317 = vrot.lane.b32.xlu0 %v84, 29
    %v1318 = vpop.permute.xlu0 %1317
    %1319 = vrot.lane.b32.xlu0 %v91, 29
    %v1320 = vpop.permute.xlu0 %1319
    %1321 = vrot.lane.b32.xlu0 %v98, 29
    %v1322 = vpop.permute.xlu0 %1321
    %1323 = vrot.lane.b32.xlu0 %v232, 29
    %v1324 = vpop.permute.xlu0 %1323
    %v1325 = vrot.slane %v1306, 4
    %v1326 = vrot.slane %v1308, 4
    %v1327 = vrot.slane %v1310, 4
    %v1328 = vrot.slane %v1312, 4
    %v1329 = vrot.slane %v1314, 4
    %v1330 = vrot.slane %v1316, 4
    %v1331 = vrot.slane %v1318, 4
    %v1332 = vrot.slane %v1320, 4
    %v1333 = vrot.slane %v1322, 4
    %v1334 = vrot.slane %v1324, 4
    %v1335 = vsel %vm187, %v1325, %v1326
    %vm1336 = vcmask 236544
    %v1337 = vsel %vm1336, %v1306, %v1335
    %v1338 = vsel %vm187, %v1326, %v1327
    %v1339 = vsel %vm1336, %v1308, %v1338
    %v1340 = vsel %vm187, %v1327, %v1328
    %v1341 = vsel %vm1336, %v1310, %v1340
    %v1342 = vsel %vm187, %v1328, %v1329
    %v1343 = vsel %vm1336, %v1312, %v1342
    %v1344 = vsel %vm187, %v1329, %v1330
    %v1345 = vsel %vm1336, %v1314, %v1344
    %v1346 = vsel %vm187, %v1330, %v1331
    %v1347 = vsel %vm1336, %v1316, %v1346
    %v1348 = vsel %vm187, %v1331, %v1332
    %v1349 = vsel %vm1336, %v1318, %v1348
    %v1350 = vsel %vm187, %v1332, %v1333
    %v1351 = vsel %vm1336, %v1320, %v1350
    %v1352 = vsel %vm187, %v1333, %v1334
    %v1353 = vsel %vm1336, %v1322, %v1352
    %1363 = vst [vmem:[#allocation2 + $0x288] sm:$0x33] %v1337
    %1364 = vst [vmem:[#allocation2 + $0x290] sm:$0x33] %v1339
    %1365 = vst [vmem:[#allocation2 + $0x298] sm:$0x33] %v1341
    %1366 = vst [vmem:[#allocation2 + $0x2a0] sm:$0x33] %v1343
    %1367 = vst [vmem:[#allocation2 + $0x2a8] sm:$0x33] %v1345
    %1368 = vst [vmem:[#allocation2 + $0x2b0] sm:$0x33] %v1347
    %1369 = vst [vmem:[#allocation2 + $0x2b8] sm:$0x33] %v1349
    %1370 = vst [vmem:[#allocation2 + $0x2c0] sm:$0x33] %v1351
    %1371 = vst [vmem:[#allocation2 + $0x2c8] sm:$0x33] %v1353
    %1372 = vrot.lane.b32.xlu0 %v124, 28
    %v1373 = vpop.permute.xlu0 %1372
    %1374 = vrot.lane.b32.xlu0 %v39, 28
    %v1375 = vpop.permute.xlu0 %1374
    %1376 = vrot.lane.b32.xlu0 %v132, 28
    %v1377 = vpop.permute.xlu0 %1376
    %1378 = vrot.lane.b32.xlu0 %v54, 28
    %v1379 = vpop.permute.xlu0 %1378
    %1380 = vrot.lane.b32.xlu0 %v140, 28
    %v1381 = vpop.permute.xlu0 %1380
    %1382 = vrot.lane.b32.xlu0 %v69, 28
    %v1383 = vpop.permute.xlu0 %1382
    %1384 = vrot.lane.b32.xlu0 %v148, 28
    %v1385 = vpop.permute.xlu0 %1384
    %1386 = vrot.lane.b32.xlu0 %v84, 28
    %v1387 = vpop.permute.xlu0 %1386
    %1388 = vrot.lane.b32.xlu0 %v156, 28
    %v1389 = vpop.permute.xlu0 %1388
    %1390 = vrot.lane.b32.xlu0 %v98, 28
    %v1391 = vpop.permute.xlu0 %1390
    %v1392 = vrot.slane %v1373, 4
    %v1393 = vrot.slane %v1375, 4
    %v1394 = vrot.slane %v1377, 4
    %v1395 = vrot.slane %v1379, 4
    %v1396 = vrot.slane %v1381, 4
    %v1397 = vrot.slane %v1383, 4
    %v1398 = vrot.slane %v1385, 4
    %v1399 = vrot.slane %v1387, 4
    %v1400 = vrot.slane %v1389, 4
    %v1401 = vrot.slane %v1391, 4
    %v1402 = vsel %vm187, %v1392, %v1393
    %vm1403 = vcmask 228352
    %v1404 = vsel %vm1403, %v1373, %v1402
    %v1405 = vsel %vm187, %v1393, %v1394
    %v1406 = vsel %vm1403, %v1375, %v1405
    %v1407 = vsel %vm187, %v1394, %v1395
    %v1408 = vsel %vm1403, %v1377, %v1407
    %v1409 = vsel %vm187, %v1395, %v1396
    %v1410 = vsel %vm1403, %v1379, %v1409
    %v1411 = vsel %vm187, %v1396, %v1397
    %v1412 = vsel %vm1403, %v1381, %v1411
    %v1413 = vsel %vm187, %v1397, %v1398
    %v1414 = vsel %vm1403, %v1383, %v1413
    %v1415 = vsel %vm187, %v1398, %v1399
    %v1416 = vsel %vm1403, %v1385, %v1415
    %v1417 = vsel %vm187, %v1399, %v1400
    %v1418 = vsel %vm1403, %v1387, %v1417
    %v1419 = vsel %vm187, %v1400, %v1401
    %v1420 = vsel %vm1403, %v1389, %v1419
    %1430 = vst [vmem:[#allocation2 + $0x288] sm:$0xcc] %v1404
    %1431 = vst [vmem:[#allocation2 + $0x290] sm:$0xcc] %v1406
    %1432 = vst [vmem:[#allocation2 + $0x298] sm:$0xcc] %v1408
    %1433 = vst [vmem:[#allocation2 + $0x2a0] sm:$0xcc] %v1410
    %1434 = vst [vmem:[#allocation2 + $0x2a8] sm:$0xcc] %v1412
    %1435 = vst [vmem:[#allocation2 + $0x2b0] sm:$0xcc] %v1414
    %1436 = vst [vmem:[#allocation2 + $0x2b8] sm:$0xcc] %v1416
    %1437 = vst [vmem:[#allocation2 + $0x2c0] sm:$0xcc] %v1418
    %1438 = vst [vmem:[#allocation2 + $0x2c8] sm:$0xcc] %v1420
    %v1439 = vrot.slane %v39, 4
    %v1440 = vrot.slane %v46, 4
    %v1441 = vrot.slane %v54, 4
    %v1442 = vrot.slane %v61, 4
    %v1443 = vrot.slane %v69, 4
    %v1444 = vrot.slane %v76, 4
    %v1445 = vrot.slane %v84, 4
    %v1446 = vrot.slane %v91, 4
    %v1447 = vrot.slane %v98, 4
    %v1448 = vrot.slane %v232, 4
    %v1449 = vsel %vm187, %v1439, %v1440
    %v1450 = vsel %vm187, %v1440, %v1441
    %v1451 = vsel %vm187, %v1441, %v1442
    %v1452 = vsel %vm187, %v1442, %v1443
    %v1453 = vsel %vm187, %v1443, %v1444
    %v1454 = vsel %vm187, %v1444, %v1445
    %v1455 = vsel %vm187, %v1445, %v1446
    %v1456 = vsel %vm187, %v1446, %v1447
    %v1457 = vsel %vm187, %v1447, %v1448
    %1467 = vst [vmem:[#allocation2 + $0x2d0] sm:$0x33] %v1449
    %1468 = vst [vmem:[#allocation2 + $0x2d8] sm:$0x33] %v1450
    %1469 = vst [vmem:[#allocation2 + $0x2e0] sm:$0x33] %v1451
    %1470 = vst [vmem:[#allocation2 + $0x2e8] sm:$0x33] %v1452
    %1471 = vst [vmem:[#allocation2 + $0x2f0] sm:$0x33] %v1453
    %1472 = vst [vmem:[#allocation2 + $0x2f8] sm:$0x33] %v1454
    %1473 = vst [vmem:[#allocation2 + $0x300] sm:$0x33] %v1455
    %1474 = vst [vmem:[#allocation2 + $0x308] sm:$0x33] %v1456
    %1475 = vst [vmem:[#allocation2 + $0x310] sm:$0x33] %v1457
    %v1476 = vsel %vm189, %v188, %v160
    %v1477 = vsel %vm189, %v191, %v162
    %v1478 = vsel %vm189, %v193, %v164
    %v1479 = vsel %vm189, %v195, %v166
    %v1480 = vsel %vm189, %v197, %v168
    %v1481 = vsel %vm189, %v199, %v170
    %v1482 = vsel %vm189, %v201, %v172
    %v1483 = vsel %vm189, %v203, %v174
    %v1484 = vsel %vm189, %v205, %v176
    %1494 = vst [vmem:[#allocation2 + $0x2d0] sm:$0xcc] %v1476
    %1495 = vst [vmem:[#allocation2 + $0x2d8] sm:$0xcc] %v1477
    %1496 = vst [vmem:[#allocation2 + $0x2e0] sm:$0xcc] %v1478
    %1497 = vst [vmem:[#allocation2 + $0x2e8] sm:$0xcc] %v1479
    %1498 = vst [vmem:[#allocation2 + $0x2f0] sm:$0xcc] %v1480
    %1499 = vst [vmem:[#allocation2 + $0x2f8] sm:$0xcc] %v1481
    %1500 = vst [vmem:[#allocation2 + $0x300] sm:$0xcc] %v1482
    %1501 = vst [vmem:[#allocation2 + $0x308] sm:$0xcc] %v1483
    %1502 = vst [vmem:[#allocation2 + $0x310] sm:$0xcc] %v1484
    %v1503 = vsel %vm264, %v263, %v236
    %v1504 = vsel %vm264, %v266, %v238
    %v1505 = vsel %vm264, %v268, %v240
    %v1506 = vsel %vm264, %v270, %v242
    %v1507 = vsel %vm264, %v272, %v244
    %v1508 = vsel %vm264, %v274, %v246
    %v1509 = vsel %vm264, %v276, %v248
    %v1510 = vsel %vm264, %v278, %v250
    %v1511 = vsel %vm264, %v280, %v252
    %1521 = vst [vmem:[#allocation2 + $0x318] sm:$0x33] %v1503
    %1522 = vst [vmem:[#allocation2 + $0x320] sm:$0x33] %v1504
    %1523 = vst [vmem:[#allocation2 + $0x328] sm:$0x33] %v1505
    %1524 = vst [vmem:[#allocation2 + $0x330] sm:$0x33] %v1506
    %1525 = vst [vmem:[#allocation2 + $0x338] sm:$0x33] %v1507
    %1526 = vst [vmem:[#allocation2 + $0x340] sm:$0x33] %v1508
    %1527 = vst [vmem:[#allocation2 + $0x348] sm:$0x33] %v1509
    %1528 = vst [vmem:[#allocation2 + $0x350] sm:$0x33] %v1510
    %1529 = vst [vmem:[#allocation2 + $0x358] sm:$0x33] %v1511
    %v1530 = vsel %vm331, %v330, %v303
    %v1531 = vsel %vm331, %v333, %v305
    %v1532 = vsel %vm331, %v335, %v307
    %v1533 = vsel %vm331, %v337, %v309
    %v1534 = vsel %vm331, %v339, %v311
    %v1535 = vsel %vm331, %v341, %v313
    %v1536 = vsel %vm331, %v343, %v315
    %v1537 = vsel %vm331, %v345, %v317
    %v1538 = vsel %vm331, %v347, %v319
    %1548 = vst [vmem:[#allocation2 + $0x318] sm:$0xcc] %v1530
    %1549 = vst [vmem:[#allocation2 + $0x320] sm:$0xcc] %v1531
    %1550 = vst [vmem:[#allocation2 + $0x328] sm:$0xcc] %v1532
    %1551 = vst [vmem:[#allocation2 + $0x330] sm:$0xcc] %v1533
    %1552 = vst [vmem:[#allocation2 + $0x338] sm:$0xcc] %v1534
    %1553 = vst [vmem:[#allocation2 + $0x340] sm:$0xcc] %v1535
    %1554 = vst [vmem:[#allocation2 + $0x348] sm:$0xcc] %v1536
    %1555 = vst [vmem:[#allocation2 + $0x350] sm:$0xcc] %v1537
    %1556 = vst [vmem:[#allocation2 + $0x358] sm:$0xcc] %v1538
    %v1557 = vsel %vm398, %v397, %v370
    %v1558 = vsel %vm398, %v400, %v372
    %v1559 = vsel %vm398, %v402, %v374
    %v1560 = vsel %vm398, %v404, %v376
    %v1561 = vsel %vm398, %v406, %v378
    %v1562 = vsel %vm398, %v408, %v380
    %v1563 = vsel %vm398, %v410, %v382
    %v1564 = vsel %vm398, %v412, %v384
    %v1565 = vsel %vm398, %v414, %v386
    %1575 = vst [vmem:[#allocation2 + $0x360] sm:$0x33] %v1557
    %1576 = vst [vmem:[#allocation2 + $0x368] sm:$0x33] %v1558
    %1577 = vst [vmem:[#allocation2 + $0x370] sm:$0x33] %v1559
    %1578 = vst [vmem:[#allocation2 + $0x378] sm:$0x33] %v1560
    %1579 = vst [vmem:[#allocation2 + $0x380] sm:$0x33] %v1561
    %1580 = vst [vmem:[#allocation2 + $0x388] sm:$0x33] %v1562
    %1581 = vst [vmem:[#allocation2 + $0x390] sm:$0x33] %v1563
    %1582 = vst [vmem:[#allocation2 + $0x398] sm:$0x33] %v1564
    %1583 = vst [vmem:[#allocation2 + $0x3a0] sm:$0x33] %v1565
    %v1584 = vld [vmem:[%s1] sm:$0xf]
    %v1585 = vld [vmem:[#allocation2] sm:$0xff]
    %v1586 = vld [vmem:[#allocation2 + $0x8] sm:$0xff]
    %v1587 = vld [vmem:[#allocation2 + $0x10] sm:$0xff]
    %v1588 = vld [vmem:[#allocation2 + $0x18] sm:$0xff]
    %v1589 = vld [vmem:[#allocation2 + $0x20] sm:$0xff]
    %v1590 = vld [vmem:[#allocation2 + $0x28] sm:$0xff]
    %v1591 = vld [vmem:[#allocation2 + $0x30] sm:$0xff]
    %v1592 = vld [vmem:[#allocation2 + $0x38] sm:$0xff]
    %v1593 = vld [vmem:[#allocation2 + $0x40] sm:$0xff]
    %v1594 = vld [vmem:[#allocation2 + $0x48] sm:$0xff]
    %v1595 = vld [vmem:[#allocation2 + $0x50] sm:$0xff]
    %v1596 = vld [vmem:[#allocation2 + $0x58] sm:$0xff]
    %v1597 = vld [vmem:[#allocation2 + $0x60] sm:$0xff]
    %v1598 = vld [vmem:[#allocation2 + $0x68] sm:$0xff]
    %v1599 = vld [vmem:[#allocation2 + $0x70] sm:$0xff]
    %v1600 = vld [vmem:[#allocation2 + $0x78] sm:$0xff]
    %v1601 = vld [vmem:[#allocation2 + $0x80] sm:$0xff]
    %v1602 = vld [vmem:[#allocation2 + $0x88] sm:$0xff]
    %v1603 = vld [vmem:[#allocation2 + $0x90] sm:$0xff]
    %v1604 = vld [vmem:[#allocation2 + $0x98] sm:$0xff]
    %v1605 = vld [vmem:[#allocation2 + $0xa0] sm:$0xff]
    %v1606 = vld [vmem:[#allocation2 + $0xa8] sm:$0xff]
    %v1607 = vld [vmem:[#allocation2 + $0xb0] sm:$0xff]
    %v1608 = vld [vmem:[#allocation2 + $0xb8] sm:$0xff]
    %v1609 = vld [vmem:[#allocation2 + $0xc0] sm:$0xff]
    %v1610 = vld [vmem:[#allocation2 + $0xc8] sm:$0xff]
    %v1611 = vld [vmem:[#allocation2 + $0xd0] sm:$0xff]
    %v1612 = vld [vmem:[#allocation2 + $0xd8] sm:$0xff]
    %v1613 = vld [vmem:[#allocation2 + $0xe0] sm:$0xff]
    %v1614 = vld [vmem:[#allocation2 + $0xe8] sm:$0xff]
    %v1615 = vld [vmem:[#allocation2 + $0xf0] sm:$0xff]
    %v1616 = vld [vmem:[#allocation2 + $0xf8] sm:$0xff]
    %v1617 = vld [vmem:[#allocation2 + $0x100] sm:$0xff]
    %v1618 = vld [vmem:[#allocation2 + $0x108] sm:$0xff]
    %v1619 = vld [vmem:[#allocation2 + $0x110] sm:$0xff]
    %v1620 = vld [vmem:[#allocation2 + $0x118] sm:$0xff]
    %v1621 = vld [vmem:[#allocation2 + $0x120] sm:$0xff]
    %v1622 = vld [vmem:[#allocation2 + $0x128] sm:$0xff]
    %v1623 = vld [vmem:[#allocation2 + $0x130] sm:$0xff]
    %v1624 = vld [vmem:[#allocation2 + $0x138] sm:$0xff]
    %v1625 = vld [vmem:[#allocation2 + $0x140] sm:$0xff]
    %v1626 = vld [vmem:[#allocation2 + $0x148] sm:$0xff]
    %v1627 = vld [vmem:[#allocation2 + $0x150] sm:$0xff]
    %v1628 = vld [vmem:[#allocation2 + $0x158] sm:$0xff]
    %v1629 = vld [vmem:[#allocation2 + $0x160] sm:$0xff]
    %v1630 = vld [vmem:[#allocation2 + $0x168] sm:$0xff]
    %v1631 = vld [vmem:[#allocation2 + $0x170] sm:$0xff]
    %v1632 = vld [vmem:[#allocation2 + $0x178] sm:$0xff]
    %v1633 = vld [vmem:[#allocation2 + $0x180] sm:$0xff]
    %v1634 = vld [vmem:[#allocation2 + $0x188] sm:$0xff]
    %v1635 = vld [vmem:[#allocation2 + $0x190] sm:$0xff]
    %v1636 = vld [vmem:[#allocation2 + $0x198] sm:$0xff]
    %v1637 = vld [vmem:[#allocation2 + $0x1a0] sm:$0xff]
    %v1638 = vld [vmem:[#allocation2 + $0x1a8] sm:$0xff]
    %v1639 = vld [vmem:[#allocation2 + $0x1b0] sm:$0xff]
    %v1640 = vld [vmem:[#allocation2 + $0x1b8] sm:$0xff]
    %v1641 = vld [vmem:[#allocation2 + $0x1c0] sm:$0xff]
    %v1642 = vld [vmem:[#allocation2 + $0x1c8] sm:$0xff]
    %v1643 = vld [vmem:[#allocation2 + $0x1d0] sm:$0xff]
    %v1644 = vld [vmem:[#allocation2 + $0x1d8] sm:$0xff]
    %v1645 = vld [vmem:[#allocation2 + $0x1e0] sm:$0xff]
    %v1646 = vld [vmem:[#allocation2 + $0x1e8] sm:$0xff]
    %v1647 = vld [vmem:[#allocation2 + $0x1f0] sm:$0xff]
    %v1648 = vld [vmem:[#allocation2 + $0x1f8] sm:$0xff]
    %v1649 = vld [vmem:[#allocation2 + $0x200] sm:$0xff]
    %v1650 = vld [vmem:[#allocation2 + $0x208] sm:$0xff]
    %v1651 = vld [vmem:[#allocation2 + $0x210] sm:$0xff]
    %v1652 = vld [vmem:[#allocation2 + $0x218] sm:$0xff]
    %v1653 = vld [vmem:[#allocation2 + $0x220] sm:$0xff]
    %v1654 = vld [vmem:[#allocation2 + $0x228] sm:$0xff]
    %v1655 = vld [vmem:[#allocation2 + $0x230] sm:$0xff]
    %v1656 = vld [vmem:[#allocation2 + $0x238] sm:$0xff]
    %v1657 = vld [vmem:[#allocation2 + $0x240] sm:$0xff]
    %v1658 = vld [vmem:[#allocation2 + $0x248] sm:$0xff]
    %v1659 = vld [vmem:[#allocation2 + $0x250] sm:$0xff]
    %v1660 = vld [vmem:[#allocation2 + $0x258] sm:$0xff]
    %v1661 = vld [vmem:[#allocation2 + $0x260] sm:$0xff]
    %v1662 = vld [vmem:[#allocation2 + $0x268] sm:$0xff]
    %v1663 = vld [vmem:[#allocation2 + $0x270] sm:$0xff]
    %v1664 = vld [vmem:[#allocation2 + $0x278] sm:$0xff]
    %v1665 = vld [vmem:[#allocation2 + $0x280] sm:$0xff]
    %v1666 = vld [vmem:[#allocation2 + $0x288] sm:$0xff]
    %v1667 = vld [vmem:[#allocation2 + $0x290] sm:$0xff]
    %v1668 = vld [vmem:[#allocation2 + $0x298] sm:$0xff]
    %v1669 = vld [vmem:[#allocation2 + $0x2a0] sm:$0xff]
    %v1670 = vld [vmem:[#allocation2 + $0x2a8] sm:$0xff]
    %v1671 = vld [vmem:[#allocation2 + $0x2b0] sm:$0xff]
    %v1672 = vld [vmem:[#allocation2 + $0x2b8] sm:$0xff]
    %v1673 = vld [vmem:[#allocation2 + $0x2c0] sm:$0xff]
    %v1674 = vld [vmem:[#allocation2 + $0x2c8] sm:$0xff]
    %v1675 = vld [vmem:[#allocation2 + $0x2d0] sm:$0xff]
    %v1676 = vld [vmem:[#allocation2 + $0x2d8] sm:$0xff]
    %v1677 = vld [vmem:[#allocation2 + $0x2e0] sm:$0xff]
    %v1678 = vld [vmem:[#allocation2 + $0x2e8] sm:$0xff]
    %v1679 = vld [vmem:[#allocation2 + $0x2f0] sm:$0xff]
    %v1680 = vld [vmem:[#allocation2 + $0x2f8] sm:$0xff]
    %v1681 = vld [vmem:[#allocation2 + $0x300] sm:$0xff]
    %v1682 = vld [vmem:[#allocation2 + $0x308] sm:$0xff]
    %v1683 = vld [vmem:[#allocation2 + $0x310] sm:$0xff]
    %v1684 = vld [vmem:[#allocation2 + $0x318] sm:$0xff]
    %v1685 = vld [vmem:[#allocation2 + $0x320] sm:$0xff]
    %v1686 = vld [vmem:[#allocation2 + $0x328] sm:$0xff]
    %v1687 = vld [vmem:[#allocation2 + $0x330] sm:$0xff]
    %v1688 = vld [vmem:[#allocation2 + $0x338] sm:$0xff]
    %v1689 = vld [vmem:[#allocation2 + $0x340] sm:$0xff]
    %v1690 = vld [vmem:[#allocation2 + $0x348] sm:$0xff]
    %v1691 = vld [vmem:[#allocation2 + $0x350] sm:$0xff]
    %v1692 = vld [vmem:[#allocation2 + $0x358] sm:$0xff]
    %v1693 = vld [vmem:[#allocation2 + $0x360] sm:$0x33]
    %v1694 = vld [vmem:[#allocation2 + $0x368] sm:$0x33]
    %v1695 = vld [vmem:[#allocation2 + $0x370] sm:$0x33]
    %v1696 = vld [vmem:[#allocation2 + $0x378] sm:$0x33]
    %v1697 = vld [vmem:[#allocation2 + $0x380] sm:$0x33]
    %v1698 = vld [vmem:[#allocation2 + $0x388] sm:$0x33]
    %v1699 = vld [vmem:[#allocation2 + $0x390] sm:$0x33]
    %v1700 = vld [vmem:[#allocation2 + $0x398] sm:$0x33]
    %v1701 = vld [vmem:[#allocation2 + $0x3a0] sm:$0x33]
    %v1702 = vld [vmem:[%s2] sm:$0xff]
    %1704 = vset.pattern.permute.xlu0 0
    %1705 = vperm.xlu0 %1704, %v1702
    %v1706 = vpop.permute.xlu0 %1705
    %v1825 = vunpack.c.l.b16 %v1585
    %v1826 = vunpack.c.h.b16 %v1585
    %v1827 = vunpack.c.l.b16 %v1586
    %v1828 = vunpack.c.h.b16 %v1586
    %v1829 = vunpack.c.l.b16 %v1587
    %v1830 = vunpack.c.h.b16 %v1587
    %v1831 = vunpack.c.l.b16 %v1588
    %v1832 = vunpack.c.h.b16 %v1588
    %v1833 = vunpack.c.l.b16 %v1589
    %v1834 = vunpack.c.h.b16 %v1589
    %v1835 = vunpack.c.l.b16 %v1590
    %v1836 = vunpack.c.h.b16 %v1590
    %v1837 = vunpack.c.l.b16 %v1591
    %v1838 = vunpack.c.h.b16 %v1591
    %v1839 = vunpack.c.l.b16 %v1592
    %v1840 = vunpack.c.h.b16 %v1592
    %v1841 = vunpack.c.l.b16 %v1593
    %v1842 = vunpack.c.h.b16 %v1593
    %v1843 = vunpack.c.l.b16 %v1594
    %v1844 = vunpack.c.h.b16 %v1594
    %v1845 = vunpack.c.l.b16 %v1595
    %v1846 = vunpack.c.h.b16 %v1595
    %v1847 = vunpack.c.l.b16 %v1596
    %v1848 = vunpack.c.h.b16 %v1596
    %v1849 = vunpack.c.l.b16 %v1597
    %v1850 = vunpack.c.h.b16 %v1597
    %v1851 = vunpack.c.l.b16 %v1598
    %v1852 = vunpack.c.h.b16 %v1598
    %v1853 = vunpack.c.l.b16 %v1599
    %v1854 = vunpack.c.h.b16 %v1599
    %v1855 = vunpack.c.l.b16 %v1600
    %v1856 = vunpack.c.h.b16 %v1600
    %v1857 = vunpack.c.l.b16 %v1601
    %v1858 = vunpack.c.h.b16 %v1601
    %v1859 = vunpack.c.l.b16 %v1602
    %v1860 = vunpack.c.h.b16 %v1602
    %v1861 = vunpack.c.l.b16 %v1603
    %v1862 = vunpack.c.h.b16 %v1603
    %v1863 = vunpack.c.l.b16 %v1604
    %v1864 = vunpack.c.h.b16 %v1604
    %v1865 = vunpack.c.l.b16 %v1605
    %v1866 = vunpack.c.h.b16 %v1605
    %v1867 = vunpack.c.l.b16 %v1606
    %v1868 = vunpack.c.h.b16 %v1606
    %v1869 = vunpack.c.l.b16 %v1607
    %v1870 = vunpack.c.h.b16 %v1607
    %v1871 = vunpack.c.l.b16 %v1608
    %v1872 = vunpack.c.h.b16 %v1608
    %v1873 = vunpack.c.l.b16 %v1609
    %v1874 = vunpack.c.h.b16 %v1609
    %v1875 = vunpack.c.l.b16 %v1610
    %v1876 = vunpack.c.h.b16 %v1610
    %v1877 = vunpack.c.l.b16 %v1611
    %v1878 = vunpack.c.h.b16 %v1611
    %v1879 = vunpack.c.l.b16 %v1612
    %v1880 = vunpack.c.h.b16 %v1612
    %v1881 = vunpack.c.l.b16 %v1613
    %v1882 = vunpack.c.h.b16 %v1613
    %v1883 = vunpack.c.l.b16 %v1614
    %v1884 = vunpack.c.h.b16 %v1614
    %v1885 = vunpack.c.l.b16 %v1615
    %v1886 = vunpack.c.h.b16 %v1615
    %v1887 = vunpack.c.l.b16 %v1616
    %v1888 = vunpack.c.h.b16 %v1616
    %v1889 = vunpack.c.l.b16 %v1617
    %v1890 = vunpack.c.h.b16 %v1617
    %v1891 = vunpack.c.l.b16 %v1618
    %v1892 = vunpack.c.h.b16 %v1618
    %v1893 = vunpack.c.l.b16 %v1619
    %v1894 = vunpack.c.h.b16 %v1619
    %v1895 = vunpack.c.l.b16 %v1620
    %v1896 = vunpack.c.h.b16 %v1620
    %v1897 = vunpack.c.l.b16 %v1621
    %v1898 = vunpack.c.h.b16 %v1621
    %v1899 = vunpack.c.l.b16 %v1622
    %v1900 = vunpack.c.h.b16 %v1622
    %v1901 = vunpack.c.l.b16 %v1623
    %v1902 = vunpack.c.h.b16 %v1623
    %v1903 = vunpack.c.l.b16 %v1624
    %v1904 = vunpack.c.h.b16 %v1624
    %v1905 = vunpack.c.l.b16 %v1625
    %v1906 = vunpack.c.h.b16 %v1625
    %v1907 = vunpack.c.l.b16 %v1626
    %v1908 = vunpack.c.h.b16 %v1626
    %v1909 = vunpack.c.l.b16 %v1627
    %v1910 = vunpack.c.h.b16 %v1627
    %v1911 = vunpack.c.l.b16 %v1628
    %v1912 = vunpack.c.h.b16 %v1628
    %v1913 = vunpack.c.l.b16 %v1629
    %v1914 = vunpack.c.h.b16 %v1629
    %v1915 = vunpack.c.l.b16 %v1630
    %v1916 = vunpack.c.h.b16 %v1630
    %v1917 = vunpack.c.l.b16 %v1631
    %v1918 = vunpack.c.h.b16 %v1631
    %v1919 = vunpack.c.l.b16 %v1632
    %v1920 = vunpack.c.h.b16 %v1632
    %v1921 = vunpack.c.l.b16 %v1633
    %v1922 = vunpack.c.h.b16 %v1633
    %v1923 = vunpack.c.l.b16 %v1634
    %v1924 = vunpack.c.h.b16 %v1634
    %v1925 = vunpack.c.l.b16 %v1635
    %v1926 = vunpack.c.h.b16 %v1635
    %v1927 = vunpack.c.l.b16 %v1636
    %v1928 = vunpack.c.h.b16 %v1636
    %v1929 = vunpack.c.l.b16 %v1637
    %v1930 = vunpack.c.h.b16 %v1637
    %v1931 = vunpack.c.l.b16 %v1638
    %v1932 = vunpack.c.h.b16 %v1638
    %v1933 = vunpack.c.l.b16 %v1639
    %v1934 = vunpack.c.h.b16 %v1639
    %v1935 = vunpack.c.l.b16 %v1640
    %v1936 = vunpack.c.h.b16 %v1640
    %v1937 = vunpack.c.l.b16 %v1641
    %v1938 = vunpack.c.h.b16 %v1641
    %v1939 = vunpack.c.l.b16 %v1642
    %v1940 = vunpack.c.h.b16 %v1642
    %v1941 = vunpack.c.l.b16 %v1643
    %v1942 = vunpack.c.h.b16 %v1643
    %v1943 = vunpack.c.l.b16 %v1644
    %v1944 = vunpack.c.h.b16 %v1644
    %v1945 = vunpack.c.l.b16 %v1645
    %v1946 = vunpack.c.h.b16 %v1645
    %v1947 = vunpack.c.l.b16 %v1646
    %v1948 = vunpack.c.h.b16 %v1646
    %v1949 = vunpack.c.l.b16 %v1647
    %v1950 = vunpack.c.h.b16 %v1647
    %v1951 = vunpack.c.l.b16 %v1648
    %v1952 = vunpack.c.h.b16 %v1648
    %v1953 = vunpack.c.l.b16 %v1649
    %v1954 = vunpack.c.h.b16 %v1649
    %v1955 = vunpack.c.l.b16 %v1650
    %v1956 = vunpack.c.h.b16 %v1650
    %v1957 = vunpack.c.l.b16 %v1651
    %v1958 = vunpack.c.h.b16 %v1651
    %v1959 = vunpack.c.l.b16 %v1652
    %v1960 = vunpack.c.h.b16 %v1652
    %v1961 = vunpack.c.l.b16 %v1653
    %v1962 = vunpack.c.h.b16 %v1653
    %v1963 = vunpack.c.l.b16 %v1654
    %v1964 = vunpack.c.h.b16 %v1654
    %v1965 = vunpack.c.l.b16 %v1655
    %v1966 = vunpack.c.h.b16 %v1655
    %v1967 = vunpack.c.l.b16 %v1656
    %v1968 = vunpack.c.h.b16 %v1656
    %v1969 = vunpack.c.l.b16 %v1657
    %v1970 = vunpack.c.h.b16 %v1657
    %v1971 = vunpack.c.l.b16 %v1658
    %v1972 = vunpack.c.h.b16 %v1658
    %v1973 = vunpack.c.l.b16 %v1659
    %v1974 = vunpack.c.h.b16 %v1659
    %v1975 = vunpack.c.l.b16 %v1660
    %v1976 = vunpack.c.h.b16 %v1660
    %v1977 = vunpack.c.l.b16 %v1661
    %v1978 = vunpack.c.h.b16 %v1661
    %v1979 = vunpack.c.l.b16 %v1662
    %v1980 = vunpack.c.h.b16 %v1662
    %v1981 = vunpack.c.l.b16 %v1663
    %v1982 = vunpack.c.h.b16 %v1663
    %v1983 = vunpack.c.l.b16 %v1664
    %v1984 = vunpack.c.h.b16 %v1664
    %v1985 = vunpack.c.l.b16 %v1665
    %v1986 = vunpack.c.h.b16 %v1665
    %v1987 = vunpack.c.l.b16 %v1666
    %v1988 = vunpack.c.h.b16 %v1666
    %v1989 = vunpack.c.l.b16 %v1667
    %v1990 = vunpack.c.h.b16 %v1667
    %v1991 = vunpack.c.l.b16 %v1668
    %v1992 = vunpack.c.h.b16 %v1668
    %v1993 = vunpack.c.l.b16 %v1669
    %v1994 = vunpack.c.h.b16 %v1669
    %v1995 = vunpack.c.l.b16 %v1670
    %v1996 = vunpack.c.h.b16 %v1670
    %v1997 = vunpack.c.l.b16 %v1671
    %v1998 = vunpack.c.h.b16 %v1671
    %v1999 = vunpack.c.l.b16 %v1672
    %v2000 = vunpack.c.h.b16 %v1672
    %v2001 = vunpack.c.l.b16 %v1673
    %v2002 = vunpack.c.h.b16 %v1673
    %v2003 = vunpack.c.l.b16 %v1674
    %v2004 = vunpack.c.h.b16 %v1674
    %v2005 = vunpack.c.l.b16 %v1675
    %v2006 = vunpack.c.h.b16 %v1675
    %v2007 = vunpack.c.l.b16 %v1676
    %v2008 = vunpack.c.h.b16 %v1676
    %v2009 = vunpack.c.l.b16 %v1677
    %v2010 = vunpack.c.h.b16 %v1677
    %v2011 = vunpack.c.l.b16 %v1678
    %v2012 = vunpack.c.h.b16 %v1678
    %v2013 = vunpack.c.l.b16 %v1679
    %v2014 = vunpack.c.h.b16 %v1679
    %v2015 = vunpack.c.l.b16 %v1680
    %v2016 = vunpack.c.h.b16 %v1680
    %v2017 = vunpack.c.l.b16 %v1681
    %v2018 = vunpack.c.h.b16 %v1681
    %v2019 = vunpack.c.l.b16 %v1682
    %v2020 = vunpack.c.h.b16 %v1682
    %v2021 = vunpack.c.l.b16 %v1683
    %v2022 = vunpack.c.h.b16 %v1683
    %v2023 = vunpack.c.l.b16 %v1684
    %v2024 = vunpack.c.h.b16 %v1684
    %v2025 = vunpack.c.l.b16 %v1685
    %v2026 = vunpack.c.h.b16 %v1685
    %v2027 = vunpack.c.l.b16 %v1686
    %v2028 = vunpack.c.h.b16 %v1686
    %v2029 = vunpack.c.l.b16 %v1687
    %v2030 = vunpack.c.h.b16 %v1687
    %v2031 = vunpack.c.l.b16 %v1688
    %v2032 = vunpack.c.h.b16 %v1688
    %v2033 = vunpack.c.l.b16 %v1689
    %v2034 = vunpack.c.h.b16 %v1689
    %v2035 = vunpack.c.l.b16 %v1690
    %v2036 = vunpack.c.h.b16 %v1690
    %v2037 = vunpack.c.l.b16 %v1691
    %v2038 = vunpack.c.h.b16 %v1691
    %v2039 = vunpack.c.l.b16 %v1692
    %v2040 = vunpack.c.h.b16 %v1692
    %v2041 = vunpack.c.l.b16 %v1693
    %v2042 = vunpack.c.h.b16 %v1693
    %v2043 = vunpack.c.l.b16 %v1694
    %v2044 = vunpack.c.h.b16 %v1694
    %v2045 = vunpack.c.l.b16 %v1695
    %v2046 = vunpack.c.h.b16 %v1695
    %v2047 = vunpack.c.l.b16 %v1696
    %v2048 = vunpack.c.h.b16 %v1696
    %v2049 = vunpack.c.l.b16 %v1697
    %v2050 = vunpack.c.h.b16 %v1697
    %v2051 = vunpack.c.l.b16 %v1698
    %v2052 = vunpack.c.h.b16 %v1698
    %v2053 = vunpack.c.l.b16 %v1699
    %v2054 = vunpack.c.h.b16 %v1699
    %v2055 = vunpack.c.l.b16 %v1700
    %v2056 = vunpack.c.h.b16 %v1700
    %v2057 = vunpack.c.l.b16 %v1701
    %v2058 = vunpack.c.h.b16 %v1701
    %v2059 = vpack.c.b16 %v1843, %v1825
    %v2060 = vpack.c.b16 %v1844, %v1826
    %v2061 = vpack.c.b16 %v1845, %v1827
    %v2062 = vpack.c.b16 %v1846, %v1828
    %v2063 = vpack.c.b16 %v1847, %v1829
    %v2064 = vpack.c.b16 %v1848, %v1830
    %v2065 = vpack.c.b16 %v1849, %v1831
    %v2066 = vpack.c.b16 %v1850, %v1832
    %v2067 = vpack.c.b16 %v1851, %v1833
    %v2068 = vpack.c.b16 %v1852, %v1834
    %v2069 = vpack.c.b16 %v1853, %v1835
    %v2070 = vpack.c.b16 %v1854, %v1836
    %v2071 = vpack.c.b16 %v1855, %v1837
    %v2072 = vpack.c.b16 %v1856, %v1838
    %v2073 = vpack.c.b16 %v1857, %v1839
    %v2074 = vpack.c.b16 %v1858, %v1840
    %v2075 = vpack.c.b16 %v1859, %v1841
    %v2076 = vpack.c.b16 %v1860, %v1842
    %v2077 = vpack.c.b16 %v1879, %v1861
    %v2078 = vpack.c.b16 %v1880, %v1862
    %v2079 = vpack.c.b16 %v1881, %v1863
    %v2080 = vpack.c.b16 %v1882, %v1864
    %v2081 = vpack.c.b16 %v1883, %v1865
    %v2082 = vpack.c.b16 %v1884, %v1866
    %v2083 = vpack.c.b16 %v1885, %v1867
    %v2084 = vpack.c.b16 %v1886, %v1868
    %v2085 = vpack.c.b16 %v1887, %v1869
    %v2086 = vpack.c.b16 %v1888, %v1870
    %v2087 = vpack.c.b16 %v1889, %v1871
    %v2088 = vpack.c.b16 %v1890, %v1872
    %v2089 = vpack.c.b16 %v1891, %v1873
    %v2090 = vpack.c.b16 %v1892, %v1874
    %v2091 = vpack.c.b16 %v1893, %v1875
    %v2092 = vpack.c.b16 %v1894, %v1876
    %v2093 = vpack.c.b16 %v1895, %v1877
    %v2094 = vpack.c.b16 %v1896, %v1878
    %v2095 = vpack.c.b16 %v1915, %v1897
    %v2096 = vpack.c.b16 %v1916, %v1898
    %v2097 = vpack.c.b16 %v1917, %v1899
    %v2098 = vpack.c.b16 %v1918, %v1900
    %v2099 = vpack.c.b16 %v1919, %v1901
    %v2100 = vpack.c.b16 %v1920, %v1902
    %v2101 = vpack.c.b16 %v1921, %v1903
    %v2102 = vpack.c.b16 %v1922, %v1904
    %v2103 = vpack.c.b16 %v1923, %v1905
    %v2104 = vpack.c.b16 %v1924, %v1906
    %v2105 = vpack.c.b16 %v1925, %v1907
    %v2106 = vpack.c.b16 %v1926, %v1908
    %v2107 = vpack.c.b16 %v1927, %v1909
    %v2108 = vpack.c.b16 %v1928, %v1910
    %v2109 = vpack.c.b16 %v1929, %v1911
    %v2110 = vpack.c.b16 %v1930, %v1912
    %v2111 = vpack.c.b16 %v1931, %v1913
    %v2112 = vpack.c.b16 %v1932, %v1914
    %v2113 = vpack.c.b16 %v1951, %v1933
    %v2114 = vpack.c.b16 %v1952, %v1934
    %v2115 = vpack.c.b16 %v1953, %v1935
    %v2116 = vpack.c.b16 %v1954, %v1936
    %v2117 = vpack.c.b16 %v1955, %v1937
    %v2118 = vpack.c.b16 %v1956, %v1938
    %v2119 = vpack.c.b16 %v1957, %v1939
    %v2120 = vpack.c.b16 %v1958, %v1940
    %v2121 = vpack.c.b16 %v1959, %v1941
    %v2122 = vpack.c.b16 %v1960, %v1942
    %v2123 = vpack.c.b16 %v1961, %v1943
    %v2124 = vpack.c.b16 %v1962, %v1944
    %v2125 = vpack.c.b16 %v1963, %v1945
    %v2126 = vpack.c.b16 %v1964, %v1946
    %v2127 = vpack.c.b16 %v1965, %v1947
    %v2128 = vpack.c.b16 %v1966, %v1948
    %v2129 = vpack.c.b16 %v1967, %v1949
    %v2130 = vpack.c.b16 %v1968, %v1950
    %v2131 = vpack.c.b16 %v1987, %v1969
    %v2132 = vpack.c.b16 %v1988, %v1970
    %v2133 = vpack.c.b16 %v1989, %v1971
    %v2134 = vpack.c.b16 %v1990, %v1972
    %v2135 = vpack.c.b16 %v1991, %v1973
    %v2136 = vpack.c.b16 %v1992, %v1974
    %v2137 = vpack.c.b16 %v1993, %v1975
    %v2138 = vpack.c.b16 %v1994, %v1976
    %v2139 = vpack.c.b16 %v1995, %v1977
    %v2140 = vpack.c.b16 %v1996, %v1978
    %v2141 = vpack.c.b16 %v1997, %v1979
    %v2142 = vpack.c.b16 %v1998, %v1980
    %v2143 = vpack.c.b16 %v1999, %v1981
    %v2144 = vpack.c.b16 %v2000, %v1982
    %v2145 = vpack.c.b16 %v2001, %v1983
    %v2146 = vpack.c.b16 %v2002, %v1984
    %v2147 = vpack.c.b16 %v2003, %v1985
    %v2148 = vpack.c.b16 %v2004, %v1986
    %v2149 = vpack.c.b16 %v2023, %v2005
    %v2150 = vpack.c.b16 %v2024, %v2006
    %v2151 = vpack.c.b16 %v2025, %v2007
    %v2152 = vpack.c.b16 %v2026, %v2008
    %v2153 = vpack.c.b16 %v2027, %v2009
    %v2154 = vpack.c.b16 %v2028, %v2010
    %v2155 = vpack.c.b16 %v2029, %v2011
    %v2156 = vpack.c.b16 %v2030, %v2012
    %v2157 = vpack.c.b16 %v2031, %v2013
    %v2158 = vpack.c.b16 %v2032, %v2014
    %v2159 = vpack.c.b16 %v2033, %v2015
    %v2160 = vpack.c.b16 %v2034, %v2016
    %v2161 = vpack.c.b16 %v2035, %v2017
    %v2162 = vpack.c.b16 %v2036, %v2018
    %v2163 = vpack.c.b16 %v2037, %v2019
    %v2164 = vpack.c.b16 %v2038, %v2020
    %v2165 = vpack.c.b16 %v2039, %v2021
    %v2166 = vpack.c.b16 %v2040, %v2022
    %v2167 = vpack.c.b16 %v2041, %v2041
    %v2168 = vpack.c.b16 %v2042, %v2042
    %v2169 = vpack.c.b16 %v2043, %v2043
    %v2170 = vpack.c.b16 %v2044, %v2044
    %v2171 = vpack.c.b16 %v2045, %v2045
    %v2172 = vpack.c.b16 %v2046, %v2046
    %v2173 = vpack.c.b16 %v2047, %v2047
    %v2174 = vpack.c.b16 %v2048, %v2048
    %v2175 = vpack.c.b16 %v2049, %v2049
    %v2176 = vpack.c.b16 %v2050, %v2050
    %v2177 = vpack.c.b16 %v2051, %v2051
    %v2178 = vpack.c.b16 %v2052, %v2052
    %v2179 = vpack.c.b16 %v2053, %v2053
    %v2180 = vpack.c.b16 %v2054, %v2054
    %v2181 = vpack.c.b16 %v2055, %v2055
    %v2182 = vpack.c.b16 %v2056, %v2056
    %v2183 = vpack.c.b16 %v2057, %v2057
    %v2184 = vpack.c.b16 %v2058, %v2058
    %vm2293 = vcmask 818176
    %v2295 = vsel %vm2293, %v1584, 0
    %vm2297 = vcmask 1041408
    %v2299 = vsel %vm2297, %v2167, 0
    %v2302 = vsel %vm2297, %v2168, 0
    %v2305 = vsel %vm2297, %v2169, 0
    %v2308 = vsel %vm2297, %v2170, 0
    %v2311 = vsel %vm2297, %v2171, 0
    %v2314 = vsel %vm2297, %v2172, 0
    %v2317 = vsel %vm2297, %v2173, 0
    %v2320 = vsel %vm2297, %v2174, 0
    %v2323 = vsel %vm2297, %v2175, 0
    %v2326 = vsel %vm2297, %v2176, 0
    %v2329 = vsel %vm2297, %v2177, 0
    %v2332 = vsel %vm2297, %v2178, 0
    %v2335 = vsel %vm2297, %v2179, 0
    %v2338 = vsel %vm2297, %v2180, 0
    %v2341 = vsel %vm2297, %v2181, 0
    %v2344 = vsel %vm2297, %v2182, 0
    %v2347 = vsel %vm2297, %v2183, 0
    %v2350 = vsel %vm2297, %v2184, 0
    %2352 = vmatprep.subr.bf16.mxu0 0
    %2353 = vmatpush1.bf16.msra.mxu0 0
    %2354 = vmatprep.subr.bf16.mxu0 %v2302
    %2355 = vmatpush1.bf16.msra.mxu0 %v2299
    %2356 = vmatprep.subr.bf16.mxu0 %v2150
    %2357 = vmatpush1.bf16.msra.mxu0 %v2149
    %2358 = vmatprep.subr.bf16.mxu0 %v2132
    %2359 = vmatpush1.bf16.msra.mxu0 %v2131
    %2360 = vmatprep.subr.bf16.mxu0 %v2114
    %2361 = vmatpush1.bf16.msra.mxu0 %v2113
    %2362 = vmatprep.subr.bf16.mxu0 %v2096
    %2363 = vmatpush1.bf16.msra.mxu0 %v2095
    %2364 = vmatprep.subr.bf16.mxu0 %v2078
    %2365 = vmatpush1.bf16.msra.mxu0 %v2077
    %2366 = vmatprep.subr.bf16.mxu0 %v2060
    %2367 = vmatpush1.bf16.msra.mxu0 %v2059
    %2368 = vmatprep.subr.bf16.mxu0 0
    %2369 = vmatpush2.bf16.msra.mxu0 0
    %2370 = vmatprep.subr.bf16.mxu0 0
    %2371 = vmatpush2.bf16.msra.mxu0 0
    %2372 = vmatprep.subr.bf16.mxu0 0
    %2373 = vmatpush2.bf16.msra.mxu0 0
    %2374 = vmatprep.subr.bf16.mxu0 0
    %2375 = vmatpush2.bf16.msra.mxu0 0
    %2376 = vmatprep.subr.bf16.mxu0 0
    %2377 = vmatpush2.bf16.msra.mxu0 0
    %2378 = vmatprep.subr.bf16.mxu0 0
    %2379 = vmatpush2.bf16.msra.mxu0 0
    %2380 = vmatprep.subr.bf16.mxu0 0
    %2381 = vmatpush2.bf16.msra.mxu0 0
    %2382 = vmatprep.subr.bf16.mxu0 0
    %2383 = vmatpush2.bf16.msra.mxu0 0
    %2384 = vmatprep.mubr.bf16.mxu0 0
    %2385 = vmatmul.mubr.bf16.gmra.mxu0 %v2295
    %v2386 = vpop.f32.mrf.mxu0
    %v2387 = vadd.f32 %v1706, %v2386
    %v2388 = vpop.f32.mrf.mxu0
    %v2389 = vadd.f32 %v1706, %v2388
    %v2390 = vpop.f32.mrf.mxu0
    %v2391 = vpop.f32.mrf.mxu0
    %2392 = vdwg.mxu0
    %2393 = vmatprep.subr.bf16.mxu0 0
    %2394 = vmatpush1.bf16.msra.mxu0 0
    %2395 = vmatprep.subr.bf16.mxu0 %v2308
    %2396 = vmatpush1.bf16.msra.mxu0 %v2305
    %2397 = vmatprep.subr.bf16.mxu0 %v2152
    %2398 = vmatpush1.bf16.msra.mxu0 %v2151
    %2399 = vmatprep.subr.bf16.mxu0 %v2134
    %2400 = vmatpush1.bf16.msra.mxu0 %v2133
    %2401 = vmatprep.subr.bf16.mxu0 %v2116
    %2402 = vmatpush1.bf16.msra.mxu0 %v2115
    %2403 = vmatprep.subr.bf16.mxu0 %v2098
    %2404 = vmatpush1.bf16.msra.mxu0 %v2097
    %2405 = vmatprep.subr.bf16.mxu0 %v2080
    %2406 = vmatpush1.bf16.msra.mxu0 %v2079
    %2407 = vmatprep.subr.bf16.mxu0 %v2062
    %2408 = vmatpush1.bf16.msra.mxu0 %v2061
    %2409 = vmatprep.subr.bf16.mxu0 0
    %2410 = vmatpush2.bf16.msra.mxu0 0
    %2411 = vmatprep.subr.bf16.mxu0 0
    %2412 = vmatpush2.bf16.msra.mxu0 0
    %2413 = vmatprep.subr.bf16.mxu0 0
    %2414 = vmatpush2.bf16.msra.mxu0 0
    %2415 = vmatprep.subr.bf16.mxu0 0
    %2416 = vmatpush2.bf16.msra.mxu0 0
    %2417 = vmatprep.subr.bf16.mxu0 0
    %2418 = vmatpush2.bf16.msra.mxu0 0
    %2419 = vmatprep.subr.bf16.mxu0 0
    %2420 = vmatpush2.bf16.msra.mxu0 0
    %2421 = vmatprep.subr.bf16.mxu0 0
    %2422 = vmatpush2.bf16.msra.mxu0 0
    %2423 = vmatprep.subr.bf16.mxu0 0
    %2424 = vmatpush2.bf16.msra.mxu0 0
    %2425 = vmatprep.mubr.bf16.mxu0 0
    %2426 = vmatmul.mubr.bf16.gmra.mxu0 %v2295
    %v2427 = vpop.f32.mrf.mxu0
    %v2428 = vadd.f32 %v1706, %v2427
    %v2429 = vpop.f32.mrf.mxu0
    %v2430 = vadd.f32 %v1706, %v2429
    %v2431 = vpop.f32.mrf.mxu0
    %v2432 = vpop.f32.mrf.mxu0
    %2433 = vdwg.mxu0
    %2434 = vmatprep.subr.bf16.mxu0 0
    %2435 = vmatpush1.bf16.msra.mxu0 0
    %2436 = vmatprep.subr.bf16.mxu0 %v2314
    %2437 = vmatpush1.bf16.msra.mxu0 %v2311
    %2438 = vmatprep.subr.bf16.mxu0 %v2154
    %2439 = vmatpush1.bf16.msra.mxu0 %v2153
    %2440 = vmatprep.subr.bf16.mxu0 %v2136
    %2441 = vmatpush1.bf16.msra.mxu0 %v2135
    %2442 = vmatprep.subr.bf16.mxu0 %v2118
    %2443 = vmatpush1.bf16.msra.mxu0 %v2117
    %2444 = vmatprep.subr.bf16.mxu0 %v2100
    %2445 = vmatpush1.bf16.msra.mxu0 %v2099
    %2446 = vmatprep.subr.bf16.mxu0 %v2082
    %2447 = vmatpush1.bf16.msra.mxu0 %v2081
    %2448 = vmatprep.subr.bf16.mxu0 %v2064
    %2449 = vmatpush1.bf16.msra.mxu0 %v2063
    %2450 = vmatprep.subr.bf16.mxu0 0
    %2451 = vmatpush2.bf16.msra.mxu0 0
    %2452 = vmatprep.subr.bf16.mxu0 0
    %2453 = vmatpush2.bf16.msra.mxu0 0
    %2454 = vmatprep.subr.bf16.mxu0 0
    %2455 = vmatpush2.bf16.msra.mxu0 0
    %2456 = vmatprep.subr.bf16.mxu0 0
    %2457 = vmatpush2.bf16.msra.mxu0 0
    %2458 = vmatprep.subr.bf16.mxu0 0
    %2459 = vmatpush2.bf16.msra.mxu0 0
    %2460 = vmatprep.subr.bf16.mxu0 0
    %2461 = vmatpush2.bf16.msra.mxu0 0
    %2462 = vmatprep.subr.bf16.mxu0 0
    %2463 = vmatpush2.bf16.msra.mxu0 0
    %2464 = vmatprep.subr.bf16.mxu0 0
    %2465 = vmatpush2.bf16.msra.mxu0 0
    %2466 = vmatprep.mubr.bf16.mxu0 0
    %2467 = vmatmul.mubr.bf16.gmra.mxu0 %v2295
    %v2468 = vpop.f32.mrf.mxu0
    %v2469 = vadd.f32 %v1706, %v2468
    %v2470 = vpop.f32.mrf.mxu0
    %v2471 = vadd.f32 %v1706, %v2470
    %v2472 = vpop.f32.mrf.mxu0
    %v2473 = vpop.f32.mrf.mxu0
    %2474 = vdwg.mxu0
    %2475 = vmatprep.subr.bf16.mxu0 0
    %2476 = vmatpush1.bf16.msra.mxu0 0
    %2477 = vmatprep.subr.bf16.mxu0 %v2320
    %2478 = vmatpush1.bf16.msra.mxu0 %v2317
    %2479 = vmatprep.subr.bf16.mxu0 %v2156
    %2480 = vmatpush1.bf16.msra.mxu0 %v2155
    %2481 = vmatprep.subr.bf16.mxu0 %v2138
    %2482 = vmatpush1.bf16.msra.mxu0 %v2137
    %2483 = vmatprep.subr.bf16.mxu0 %v2120
    %2484 = vmatpush1.bf16.msra.mxu0 %v2119
    %2485 = vmatprep.subr.bf16.mxu0 %v2102
    %2486 = vmatpush1.bf16.msra.mxu0 %v2101
    %2487 = vmatprep.subr.bf16.mxu0 %v2084
    %2488 = vmatpush1.bf16.msra.mxu0 %v2083
    %2489 = vmatprep.subr.bf16.mxu0 %v2066
    %2490 = vmatpush1.bf16.msra.mxu0 %v2065
    %2491 = vmatprep.subr.bf16.mxu0 0
    %2492 = vmatpush2.bf16.msra.mxu0 0
    %2493 = vmatprep.subr.bf16.mxu0 0
    %2494 = vmatpush2.bf16.msra.mxu0 0
    %2495 = vmatprep.subr.bf16.mxu0 0
    %2496 = vmatpush2.bf16.msra.mxu0 0
    %2497 = vmatprep.subr.bf16.mxu0 0
    %2498 = vmatpush2.bf16.msra.mxu0 0
    %2499 = vmatprep.subr.bf16.mxu0 0
    %2500 = vmatpush2.bf16.msra.mxu0 0
    %2501 = vmatprep.subr.bf16.mxu0 0
    %2502 = vmatpush2.bf16.msra.mxu0 0
    %2503 = vmatprep.subr.bf16.mxu0 0
    %2504 = vmatpush2.bf16.msra.mxu0 0
    %2505 = vmatprep.subr.bf16.mxu0 0
    %2506 = vmatpush2.bf16.msra.mxu0 0
    %2507 = vmatprep.mubr.bf16.mxu0 0
    %2508 = vmatmul.mubr.bf16.gmra.mxu0 %v2295
    %v2509 = vpop.f32.mrf.mxu0
    %v2510 = vadd.f32 %v1706, %v2509
    %v2511 = vpop.f32.mrf.mxu0
    %v2512 = vadd.f32 %v1706, %v2511
    %v2513 = vpop.f32.mrf.mxu0
    %v2514 = vpop.f32.mrf.mxu0
    %2515 = vdwg.mxu0
    %2516 = vmatprep.subr.bf16.mxu0 0
    %2517 = vmatpush1.bf16.msra.mxu0 0
    %2518 = vmatprep.subr.bf16.mxu0 %v2326
    %2519 = vmatpush1.bf16.msra.mxu0 %v2323
    %2520 = vmatprep.subr.bf16.mxu0 %v2158
    %2521 = vmatpush1.bf16.msra.mxu0 %v2157
    %2522 = vmatprep.subr.bf16.mxu0 %v2140
    %2523 = vmatpush1.bf16.msra.mxu0 %v2139
    %2524 = vmatprep.subr.bf16.mxu0 %v2122
    %2525 = vmatpush1.bf16.msra.mxu0 %v2121
    %2526 = vmatprep.subr.bf16.mxu0 %v2104
    %2527 = vmatpush1.bf16.msra.mxu0 %v2103
    %2528 = vmatprep.subr.bf16.mxu0 %v2086
    %2529 = vmatpush1.bf16.msra.mxu0 %v2085
    %2530 = vmatprep.subr.bf16.mxu0 %v2068
    %2531 = vmatpush1.bf16.msra.mxu0 %v2067
    %2532 = vmatprep.subr.bf16.mxu0 0
    %2533 = vmatpush2.bf16.msra.mxu0 0
    %2534 = vmatprep.subr.bf16.mxu0 0
    %2535 = vmatpush2.bf16.msra.mxu0 0
    %2536 = vmatprep.subr.bf16.mxu0 0
    %2537 = vmatpush2.bf16.msra.mxu0 0
    %2538 = vmatprep.subr.bf16.mxu0 0
    %2539 = vmatpush2.bf16.msra.mxu0 0
    %2540 = vmatprep.subr.bf16.mxu0 0
    %2541 = vmatpush2.bf16.msra.mxu0 0
    %2542 = vmatprep.subr.bf16.mxu0 0
    %2543 = vmatpush2.bf16.msra.mxu0 0
    %2544 = vmatprep.subr.bf16.mxu0 0
    %2545 = vmatpush2.bf16.msra.mxu0 0
    %2546 = vmatprep.subr.bf16.mxu0 0
    %2547 = vmatpush2.bf16.msra.mxu0 0
    %2548 = vmatprep.mubr.bf16.mxu0 0
    %2549 = vmatmul.mubr.bf16.gmra.mxu0 %v2295
    %v2550 = vpop.f32.mrf.mxu0
    %v2551 = vadd.f32 %v1706, %v2550
    %v2552 = vpop.f32.mrf.mxu0
    %v2553 = vadd.f32 %v1706, %v2552
    %v2554 = vpop.f32.mrf.mxu0
    %v2555 = vpop.f32.mrf.mxu0
    %2556 = vdwg.mxu0
    %2557 = vmatprep.subr.bf16.mxu0 0
    %2558 = vmatpush1.bf16.msra.mxu0 0
    %2559 = vmatprep.subr.bf16.mxu0 %v2332
    %2560 = vmatpush1.bf16.msra.mxu0 %v2329
    %2561 = vmatprep.subr.bf16.mxu0 %v2160
    %2562 = vmatpush1.bf16.msra.mxu0 %v2159
    %2563 = vmatprep.subr.bf16.mxu0 %v2142
    %2564 = vmatpush1.bf16.msra.mxu0 %v2141
    %2565 = vmatprep.subr.bf16.mxu0 %v2124
    %2566 = vmatpush1.bf16.msra.mxu0 %v2123
    %2567 = vmatprep.subr.bf16.mxu0 %v2106
    %2568 = vmatpush1.bf16.msra.mxu0 %v2105
    %2569 = vmatprep.subr.bf16.mxu0 %v2088
    %2570 = vmatpush1.bf16.msra.mxu0 %v2087
    %2571 = vmatprep.subr.bf16.mxu0 %v2070
    %2572 = vmatpush1.bf16.msra.mxu0 %v2069
    %2573 = vmatprep.subr.bf16.mxu0 0
    %2574 = vmatpush2.bf16.msra.mxu0 0
    %2575 = vmatprep.subr.bf16.mxu0 0
    %2576 = vmatpush2.bf16.msra.mxu0 0
    %2577 = vmatprep.subr.bf16.mxu0 0
    %2578 = vmatpush2.bf16.msra.mxu0 0
    %2579 = vmatprep.subr.bf16.mxu0 0
    %2580 = vmatpush2.bf16.msra.mxu0 0
    %2581 = vmatprep.subr.bf16.mxu0 0
    %2582 = vmatpush2.bf16.msra.mxu0 0
    %2583 = vmatprep.subr.bf16.mxu0 0
    %2584 = vmatpush2.bf16.msra.mxu0 0
    %2585 = vmatprep.subr.bf16.mxu0 0
    %2586 = vmatpush2.bf16.msra.mxu0 0
    %2587 = vmatprep.subr.bf16.mxu0 0
    %2588 = vmatpush2.bf16.msra.mxu0 0
    %2589 = vmatprep.mubr.bf16.mxu0 0
    %2590 = vmatmul.mubr.bf16.gmra.mxu0 %v2295
    %v2591 = vpop.f32.mrf.mxu0
    %v2592 = vadd.f32 %v1706, %v2591
    %v2593 = vpop.f32.mrf.mxu0
    %v2594 = vadd.f32 %v1706, %v2593
    %v2595 = vpop.f32.mrf.mxu0
    %v2596 = vpop.f32.mrf.mxu0
    %2597 = vdwg.mxu0
    %2598 = vmatprep.subr.bf16.mxu0 0
    %2599 = vmatpush1.bf16.msra.mxu0 0
    %2600 = vmatprep.subr.bf16.mxu0 %v2338
    %2601 = vmatpush1.bf16.msra.mxu0 %v2335
    %2602 = vmatprep.subr.bf16.mxu0 %v2162
    %2603 = vmatpush1.bf16.msra.mxu0 %v2161
    %2604 = vmatprep.subr.bf16.mxu0 %v2144
    %2605 = vmatpush1.bf16.msra.mxu0 %v2143
    %2606 = vmatprep.subr.bf16.mxu0 %v2126
    %2607 = vmatpush1.bf16.msra.mxu0 %v2125
    %2608 = vmatprep.subr.bf16.mxu0 %v2108
    %2609 = vmatpush1.bf16.msra.mxu0 %v2107
    %2610 = vmatprep.subr.bf16.mxu0 %v2090
    %2611 = vmatpush1.bf16.msra.mxu0 %v2089
    %2612 = vmatprep.subr.bf16.mxu0 %v2072
    %2613 = vmatpush1.bf16.msra.mxu0 %v2071
    %2614 = vmatprep.subr.bf16.mxu0 0
    %2615 = vmatpush2.bf16.msra.mxu0 0
    %2616 = vmatprep.subr.bf16.mxu0 0
    %2617 = vmatpush2.bf16.msra.mxu0 0
    %2618 = vmatprep.subr.bf16.mxu0 0
    %2619 = vmatpush2.bf16.msra.mxu0 0
    %2620 = vmatprep.subr.bf16.mxu0 0
    %2621 = vmatpush2.bf16.msra.mxu0 0
    %2622 = vmatprep.subr.bf16.mxu0 0
    %2623 = vmatpush2.bf16.msra.mxu0 0
    %2624 = vmatprep.subr.bf16.mxu0 0
    %2625 = vmatpush2.bf16.msra.mxu0 0
    %2626 = vmatprep.subr.bf16.mxu0 0
    %2627 = vmatpush2.bf16.msra.mxu0 0
    %2628 = vmatprep.subr.bf16.mxu0 0
    %2629 = vmatpush2.bf16.msra.mxu0 0
    %2630 = vmatprep.mubr.bf16.mxu0 0
    %2631 = vmatmul.mubr.bf16.gmra.mxu0 %v2295
    %v2632 = vpop.f32.mrf.mxu0
    %v2633 = vadd.f32 %v1706, %v2632
    %v2634 = vpop.f32.mrf.mxu0
    %v2635 = vadd.f32 %v1706, %v2634
    %v2636 = vpop.f32.mrf.mxu0
    %v2637 = vpop.f32.mrf.mxu0
    %2638 = vdwg.mxu0
    %2639 = vmatprep.subr.bf16.mxu0 0
    %2640 = vmatpush1.bf16.msra.mxu0 0
    %2641 = vmatprep.subr.bf16.mxu0 %v2344
    %2642 = vmatpush1.bf16.msra.mxu0 %v2341
    %2643 = vmatprep.subr.bf16.mxu0 %v2164
    %2644 = vmatpush1.bf16.msra.mxu0 %v2163
    %2645 = vmatprep.subr.bf16.mxu0 %v2146
    %2646 = vmatpush1.bf16.msra.mxu0 %v2145
    %2647 = vmatprep.subr.bf16.mxu0 %v2128
    %2648 = vmatpush1.bf16.msra.mxu0 %v2127
    %2649 = vmatprep.subr.bf16.mxu0 %v2110
    %2650 = vmatpush1.bf16.msra.mxu0 %v2109
    %2651 = vmatprep.subr.bf16.mxu0 %v2092
    %2652 = vmatpush1.bf16.msra.mxu0 %v2091
    %2653 = vmatprep.subr.bf16.mxu0 %v2074
    %2654 = vmatpush1.bf16.msra.mxu0 %v2073
    %2655 = vmatprep.subr.bf16.mxu0 0
    %2656 = vmatpush2.bf16.msra.mxu0 0
    %2657 = vmatprep.subr.bf16.mxu0 0
    %2658 = vmatpush2.bf16.msra.mxu0 0
    %2659 = vmatprep.subr.bf16.mxu0 0
    %2660 = vmatpush2.bf16.msra.mxu0 0
    %2661 = vmatprep.subr.bf16.mxu0 0
    %2662 = vmatpush2.bf16.msra.mxu0 0
    %2663 = vmatprep.subr.bf16.mxu0 0
    %2664 = vmatpush2.bf16.msra.mxu0 0
    %2665 = vmatprep.subr.bf16.mxu0 0
    %2666 = vmatpush2.bf16.msra.mxu0 0
    %2667 = vmatprep.subr.bf16.mxu0 0
    %2668 = vmatpush2.bf16.msra.mxu0 0
    %2669 = vmatprep.subr.bf16.mxu0 0
    %2670 = vmatpush2.bf16.msra.mxu0 0
    %2671 = vmatprep.mubr.bf16.mxu0 0
    %2672 = vmatmul.mubr.bf16.gmra.mxu0 %v2295
    %v2673 = vpop.f32.mrf.mxu0
    %v2674 = vadd.f32 %v1706, %v2673
    %v2675 = vpop.f32.mrf.mxu0
    %v2676 = vadd.f32 %v1706, %v2675
    %v2677 = vpop.f32.mrf.mxu0
    %v2678 = vpop.f32.mrf.mxu0
    %2679 = vdwg.mxu0
    %2680 = vmatprep.subr.bf16.mxu0 0
    %2681 = vmatpush1.bf16.msra.mxu0 0
    %2682 = vmatprep.subr.bf16.mxu0 %v2350
    %2683 = vmatpush1.bf16.msra.mxu0 %v2347
    %2684 = vmatprep.subr.bf16.mxu0 %v2166
    %2685 = vmatpush1.bf16.msra.mxu0 %v2165
    %2686 = vmatprep.subr.bf16.mxu0 %v2148
    %2687 = vmatpush1.bf16.msra.mxu0 %v2147
    %2688 = vmatprep.subr.bf16.mxu0 %v2130
    %2689 = vmatpush1.bf16.msra.mxu0 %v2129
    %2690 = vmatprep.subr.bf16.mxu0 %v2112
    %2691 = vmatpush1.bf16.msra.mxu0 %v2111
    %2692 = vmatprep.subr.bf16.mxu0 %v2094
    %2693 = vmatpush1.bf16.msra.mxu0 %v2093
    %2694 = vmatprep.subr.bf16.mxu0 %v2076
    %2695 = vmatpush1.bf16.msra.mxu0 %v2075
    %2696 = vmatprep.subr.bf16.mxu0 0
    %2697 = vmatpush2.bf16.msra.mxu0 0
    %2698 = vmatprep.subr.bf16.mxu0 0
    %2699 = vmatpush2.bf16.msra.mxu0 0
    %2700 = vmatprep.subr.bf16.mxu0 0
    %2701 = vmatpush2.bf16.msra.mxu0 0
    %2702 = vmatprep.subr.bf16.mxu0 0
    %2703 = vmatpush2.bf16.msra.mxu0 0
    %2704 = vmatprep.subr.bf16.mxu0 0
    %2705 = vmatpush2.bf16.msra.mxu0 0
    %2706 = vmatprep.subr.bf16.mxu0 0
    %2707 = vmatpush2.bf16.msra.mxu0 0
    %2708 = vmatprep.subr.bf16.mxu0 0
    %2709 = vmatpush2.bf16.msra.mxu0 0
    %2710 = vmatprep.subr.bf16.mxu0 0
    %2711 = vmatpush2.bf16.msra.mxu0 0
    %2712 = vmatprep.mubr.bf16.mxu0 0
    %2713 = vmatmul.mubr.bf16.gmra.mxu0 %v2295
    %v2714 = vpop.f32.mrf.mxu0
    %v2715 = vadd.f32 %v1706, %v2714
    %v2716 = vpop.f32.mrf.mxu0
    %v2717 = vadd.f32 %v1706, %v2716
    %v2718 = vpop.f32.mrf.mxu0
    %v2719 = vpop.f32.mrf.mxu0
    %2720 = vdwg.mxu0
    %v2721 = vmax.f32 %v2387, 0.0
    %v2722 = vmax.f32 %v2389, 0.0
    %v2723 = vmax.f32 %v2428, 0.0
    %v2724 = vmax.f32 %v2430, 0.0
    %v2725 = vmax.f32 %v2469, 0.0
    %v2726 = vmax.f32 %v2471, 0.0
    %v2727 = vmax.f32 %v2510, 0.0
    %v2728 = vmax.f32 %v2512, 0.0
    %v2729 = vmax.f32 %v2551, 0.0
    %v2730 = vmax.f32 %v2553, 0.0
    %v2731 = vmax.f32 %v2592, 0.0
    %v2732 = vmax.f32 %v2594, 0.0
    %v2733 = vmax.f32 %v2633, 0.0
    %v2734 = vmax.f32 %v2635, 0.0
    %v2735 = vmax.f32 %v2674, 0.0
    %v2736 = vmax.f32 %v2676, 0.0
    %v2737 = vmax.f32 %v2715, 0.0
    %v2738 = vmax.f32 %v2717, 0.0
    %2757 = vrot.lane.b32.xlu0 %v2721, 127
    %v2758 = vpop.permute.xlu0 %2757
    %2759 = vrot.lane.b32.xlu0 %v2722, 127
    %v2760 = vpop.permute.xlu0 %2759
    %2761 = vrot.lane.b32.xlu0 %v2723, 127
    %v2762 = vpop.permute.xlu0 %2761
    %2763 = vrot.lane.b32.xlu0 %v2724, 127
    %v2764 = vpop.permute.xlu0 %2763
    %2765 = vrot.lane.b32.xlu0 %v2725, 127
    %v2766 = vpop.permute.xlu0 %2765
    %2767 = vrot.lane.b32.xlu0 %v2726, 127
    %v2768 = vpop.permute.xlu0 %2767
    %2769 = vrot.lane.b32.xlu0 %v2727, 127
    %v2770 = vpop.permute.xlu0 %2769
    %2771 = vrot.lane.b32.xlu0 %v2728, 127
    %v2772 = vpop.permute.xlu0 %2771
    %2773 = vrot.lane.b32.xlu0 %v2729, 127
    %v2774 = vpop.permute.xlu0 %2773
    %2775 = vrot.lane.b32.xlu0 %v2730, 127
    %v2776 = vpop.permute.xlu0 %2775
    %2777 = vrot.lane.b32.xlu0 %v2731, 127
    %v2778 = vpop.permute.xlu0 %2777
    %2779 = vrot.lane.b32.xlu0 %v2732, 127
    %v2780 = vpop.permute.xlu0 %2779
    %2781 = vrot.lane.b32.xlu0 %v2733, 127
    %v2782 = vpop.permute.xlu0 %2781
    %2783 = vrot.lane.b32.xlu0 %v2734, 127
    %v2784 = vpop.permute.xlu0 %2783
    %2785 = vrot.lane.b32.xlu0 %v2735, 127
    %v2786 = vpop.permute.xlu0 %2785
    %2787 = vrot.lane.b32.xlu0 %v2736, 127
    %v2788 = vpop.permute.xlu0 %2787
    %2789 = vrot.lane.b32.xlu0 %v2737, 127
    %v2790 = vpop.permute.xlu0 %2789
    %2791 = vrot.lane.b32.xlu0 %v2738, 127
    %v2792 = vpop.permute.xlu0 %2791
    %vm2793 = vcmask 1039360
    %v2794 = vsel %vm2793, %v2758, %v2760
    %v2795 = vsel %vm2793, %v2760, %v2762
    %v2796 = vsel %vm2793, %v2762, %v2764
    %v2797 = vsel %vm2793, %v2764, %v2766
    %v2798 = vsel %vm2793, %v2766, %v2768
    %v2799 = vsel %vm2793, %v2768, %v2770
    %v2800 = vsel %vm2793, %v2770, %v2772
    %v2801 = vsel %vm2793, %v2772, %v2774
    %v2802 = vsel %vm2793, %v2774, %v2776
    %v2803 = vsel %vm2793, %v2776, %v2778
    %v2804 = vsel %vm2793, %v2778, %v2780
    %v2805 = vsel %vm2793, %v2780, %v2782
    %v2806 = vsel %vm2793, %v2782, %v2784
    %v2807 = vsel %vm2793, %v2784, %v2786
    %v2808 = vsel %vm2793, %v2786, %v2788
    %v2809 = vsel %vm2793, %v2788, %v2790
    %v2810 = vsel %vm2793, %v2790, %v2792
    %v2828 = vmax.f32 %v2721, %v2794
    %v2829 = vmax.f32 %v2722, %v2795
    %v2830 = vmax.f32 %v2723, %v2796
    %v2831 = vmax.f32 %v2724, %v2797
    %v2832 = vmax.f32 %v2725, %v2798
    %v2833 = vmax.f32 %v2726, %v2799
    %v2834 = vmax.f32 %v2727, %v2800
    %v2835 = vmax.f32 %v2728, %v2801
    %v2836 = vmax.f32 %v2729, %v2802
    %v2837 = vmax.f32 %v2730, %v2803
    %v2838 = vmax.f32 %v2731, %v2804
    %v2839 = vmax.f32 %v2732, %v2805
    %v2840 = vmax.f32 %v2733, %v2806
    %v2841 = vmax.f32 %v2734, %v2807
    %v2842 = vmax.f32 %v2735, %v2808
    %v2843 = vmax.f32 %v2736, %v2809
    %v2844 = vmax.f32 %v2737, %v2810
    %2862 = vrot.lane.b32.xlu0 %v2828, 96
    %v2863 = vpop.permute.xlu0 %2862
    %2864 = vrot.lane.b32.xlu0 %v2829, 96
    %v2865 = vpop.permute.xlu0 %2864
    %2866 = vrot.lane.b32.xlu0 %v2830, 96
    %v2867 = vpop.permute.xlu0 %2866
    %2868 = vrot.lane.b32.xlu0 %v2831, 96
    %v2869 = vpop.permute.xlu0 %2868
    %2870 = vrot.lane.b32.xlu0 %v2832, 96
    %v2871 = vpop.permute.xlu0 %2870
    %2872 = vrot.lane.b32.xlu0 %v2833, 96
    %v2873 = vpop.permute.xlu0 %2872
    %2874 = vrot.lane.b32.xlu0 %v2834, 96
    %v2875 = vpop.permute.xlu0 %2874
    %2876 = vrot.lane.b32.xlu0 %v2835, 96
    %v2877 = vpop.permute.xlu0 %2876
    %2878 = vrot.lane.b32.xlu0 %v2836, 96
    %v2879 = vpop.permute.xlu0 %2878
    %2880 = vrot.lane.b32.xlu0 %v2837, 96
    %v2881 = vpop.permute.xlu0 %2880
    %2882 = vrot.lane.b32.xlu0 %v2838, 96
    %v2883 = vpop.permute.xlu0 %2882
    %2884 = vrot.lane.b32.xlu0 %v2839, 96
    %v2885 = vpop.permute.xlu0 %2884
    %2886 = vrot.lane.b32.xlu0 %v2840, 96
    %v2887 = vpop.permute.xlu0 %2886
    %2888 = vrot.lane.b32.xlu0 %v2841, 96
    %v2889 = vpop.permute.xlu0 %2888
    %2890 = vrot.lane.b32.xlu0 %v2842, 96
    %v2891 = vpop.permute.xlu0 %2890
    %2892 = vrot.lane.b32.xlu0 %v2843, 96
    %v2893 = vpop.permute.xlu0 %2892
    %2894 = vrot.lane.b32.xlu0 %v2844, 96
    %v2895 = vpop.permute.xlu0 %2894
    %vm2896 = vcmask 785408
    %v2897 = vsel %vm2896, %v2863, %v2865
    %v2898 = vsel %vm2896, %v2865, %v2867
    %v2899 = vsel %vm2896, %v2867, %v2869
    %v2900 = vsel %vm2896, %v2869, %v2871
    %v2901 = vsel %vm2896, %v2871, %v2873
    %v2902 = vsel %vm2896, %v2873, %v2875
    %v2903 = vsel %vm2896, %v2875, %v2877
    %v2904 = vsel %vm2896, %v2877, %v2879
    %v2905 = vsel %vm2896, %v2879, %v2881
    %v2906 = vsel %vm2896, %v2881, %v2883
    %v2907 = vsel %vm2896, %v2883, %v2885
    %v2908 = vsel %vm2896, %v2885, %v2887
    %v2909 = vsel %vm2896, %v2887, %v2889
    %v2910 = vsel %vm2896, %v2889, %v2891
    %v2911 = vsel %vm2896, %v2891, %v2893
    %v2912 = vsel %vm2896, %v2893, %v2895
    %v2929 = vmax.f32 %v2828, %v2897
    %v2930 = vmax.f32 %v2829, %v2898
    %v2931 = vmax.f32 %v2830, %v2899
    %v2932 = vmax.f32 %v2831, %v2900
    %v2933 = vmax.f32 %v2832, %v2901
    %v2934 = vmax.f32 %v2833, %v2902
    %v2935 = vmax.f32 %v2834, %v2903
    %v2936 = vmax.f32 %v2835, %v2904
    %v2937 = vmax.f32 %v2836, %v2905
    %v2938 = vmax.f32 %v2837, %v2906
    %v2939 = vmax.f32 %v2838, %v2907
    %v2940 = vmax.f32 %v2839, %v2908
    %v2941 = vmax.f32 %v2840, %v2909
    %v2942 = vmax.f32 %v2841, %v2910
    %v2943 = vmax.f32 %v2842, %v2911
    %v2944 = vmax.f32 %v2843, %v2912
    %v2945 = vpack.c.bf16 %v2929, %v2929
    %v2946 = vpack.c.bf16 %v2930, %v2930
    %v2947 = vpack.c.bf16 %v2931, %v2931
    %v2948 = vpack.c.bf16 %v2932, %v2932
    %v2949 = vpack.c.bf16 %v2933, %v2933
    %v2950 = vpack.c.bf16 %v2934, %v2934
    %v2951 = vpack.c.bf16 %v2935, %v2935
    %v2952 = vpack.c.bf16 %v2936, %v2936
    %v2953 = vpack.c.bf16 %v2937, %v2937
    %v2954 = vpack.c.bf16 %v2938, %v2938
    %v2955 = vpack.c.bf16 %v2939, %v2939
    %v2956 = vpack.c.bf16 %v2940, %v2940
    %v2957 = vpack.c.bf16 %v2941, %v2941
    %v2958 = vpack.c.bf16 %v2942, %v2942
    %v2959 = vpack.c.bf16 %v2943, %v2943
    %v2960 = vpack.c.bf16 %v2944, %v2944
    %v2962 = vshll.u32 %v2953, 16
    %v2965 = vshll.u32 %v2954, 16
    %v2968 = vshll.u32 %v2955, 16
    %v2971 = vshll.u32 %v2956, 16
    %v2974 = vshll.u32 %v2957, 16
    %v2977 = vshll.u32 %v2958, 16
    %v2980 = vshll.u32 %v2959, 16
    %v2983 = vshll.u32 %v2960, 16
    %vm2993 = vcmask 1040384
    %vm2994 = vsmask.f32 256
    %vm2995 = vmand %vm2993, %vm2994
    %v2996 = vsel %vm2995, %v2945, %v2962
    %v2997 = vsel %vm2995, %v2946, %v2965
    %v2998 = vsel %vm2995, %v2947, %v2968
    %v2999 = vsel %vm2995, %v2948, %v2971
    %v3000 = vsel %vm2995, %v2949, %v2974
    %v3001 = vsel %vm2995, %v2950, %v2977
    %v3002 = vsel %vm2995, %v2951, %v2980
    %v3003 = vsel %vm2995, %v2952, %v2983
    %v3004 = vld [vmem:[%s3] sm:$0xf]
    %v3005 = vld [vmem:[%s3 + $0x4] sm:$0xf]
    %v3006 = vld [vmem:[%s3 + $0x8] sm:$0xf]
    %v3007 = vld [vmem:[%s3 + $0xc] sm:$0xf]
    %v3008 = vld [vmem:[%s3 + $0x10] sm:$0xf]
    %v3009 = vld [vmem:[%s3 + $0x14] sm:$0xf]
    %v3010 = vld [vmem:[%s3 + $0x18] sm:$0xf]
    %v3011 = vld [vmem:[%s3 + $0x1c] sm:$0xf]
    %v3012 = vld [vmem:[%s3 + $0x20] sm:$0xf]
    %v3013 = vld [vmem:[%s3 + $0x24] sm:$0xf]
    %v3014 = vld [vmem:[%s3 + $0x28] sm:$0xf]
    %v3015 = vld [vmem:[%s3 + $0x2c] sm:$0xf]
    %v3016 = vld [vmem:[%s3 + $0x30] sm:$0xf]
    %v3017 = vld [vmem:[%s3 + $0x34] sm:$0xf]
    %v3018 = vld [vmem:[%s3 + $0x38] sm:$0xf]
    %v3019 = vld [vmem:[%s3 + $0x3c] sm:$0xf]
    %v3020 = vld [vmem:[%s3 + $0x40] sm:$0xf]
    %v3021 = vld [vmem:[%s3 + $0x44] sm:$0xf]
    %v3022 = vld [vmem:[%s3 + $0x48] sm:$0xf]
    %v3023 = vld [vmem:[%s3 + $0x4c] sm:$0xf]
    %v3024 = vld [vmem:[%s3 + $0x50] sm:$0xf]
    %v3025 = vld [vmem:[%s3 + $0x54] sm:$0xf]
    %v3026 = vld [vmem:[%s3 + $0x58] sm:$0xf]
    %v3027 = vld [vmem:[%s3 + $0x5c] sm:$0xf]
    %v3028 = vld [vmem:[%s3 + $0x60] sm:$0xf]
    %v3029 = vld [vmem:[%s3 + $0x64] sm:$0xf]
    %v3030 = vld [vmem:[%s3 + $0x68] sm:$0xf]
    %v3031 = vld [vmem:[%s3 + $0x6c] sm:$0xf]
    %v3032 = vld [vmem:[%s3 + $0x70] sm:$0xf]
    %v3033 = vld [vmem:[%s3 + $0x74] sm:$0xf]
    %v3034 = vld [vmem:[%s3 + $0x78] sm:$0xf]
    %v3035 = vld [vmem:[%s3 + $0x7c] sm:$0xf]
    %v3036 = vld [vmem:[%s3 + $0x80] sm:$0xf]
    %v3037 = vld [vmem:[%s3 + $0x84] sm:$0xf]
    %v3038 = vld [vmem:[%s3 + $0x88] sm:$0xf]
    %v3039 = vld [vmem:[%s3 + $0x8c] sm:$0xf]
    %v3040 = vld [vmem:[%s3 + $0x90] sm:$0xf]
    %v3041 = vld [vmem:[%s3 + $0x94] sm:$0xf]
    %v3042 = vld [vmem:[%s3 + $0x98] sm:$0xf]
    %v3043 = vld [vmem:[%s3 + $0x9c] sm:$0xf]
    %v3044 = vld [vmem:[%s3 + $0xa0] sm:$0xf]
    %v3045 = vld [vmem:[%s3 + $0xa4] sm:$0xf]
    %v3046 = vld [vmem:[%s3 + $0xa8] sm:$0xf]
    %v3047 = vld [vmem:[%s3 + $0xac] sm:$0xf]
    %v3048 = vld [vmem:[%s3 + $0xb0] sm:$0xf]
    %v3049 = vld [vmem:[%s3 + $0xb4] sm:$0xf]
    %v3050 = vld [vmem:[%s3 + $0xb8] sm:$0xf]
    %v3051 = vld [vmem:[%s3 + $0xbc] sm:$0xf]
    %v3052 = vld [vmem:[%s3 + $0xc0] sm:$0xf]
    %v3053 = vld [vmem:[%s3 + $0xc4] sm:$0xf]
    %v3054 = vld [vmem:[%s3 + $0xc8] sm:$0xf]
    %v3055 = vld [vmem:[%s3 + $0xcc] sm:$0xf]
    %v3056 = vld [vmem:[%s3 + $0xd0] sm:$0xf]
    %v3057 = vld [vmem:[%s3 + $0xd4] sm:$0xf]
    %v3058 = vld [vmem:[%s3 + $0xd8] sm:$0xf]
    %v3059 = vld [vmem:[%s3 + $0xdc] sm:$0xf]
    %v3060 = vld [vmem:[%s3 + $0xe0] sm:$0xf]
    %v3061 = vld [vmem:[%s3 + $0xe4] sm:$0xf]
    %v3062 = vld [vmem:[%s3 + $0xe8] sm:$0xf]
    %v3063 = vld [vmem:[%s3 + $0xec] sm:$0xf]
    %v3064 = vld [vmem:[%s3 + $0xf0] sm:$0xf]
    %v3065 = vld [vmem:[%s3 + $0xf4] sm:$0xf]
    %v3066 = vld [vmem:[%s3 + $0xf8] sm:$0xf]
    %v3067 = vld [vmem:[%s3 + $0xfc] sm:$0xf]
    %v3068 = vld [vmem:[%s3 + $0x100] sm:$0xf]
    %v3069 = vld [vmem:[%s3 + $0x104] sm:$0xf]
    %v3070 = vld [vmem:[%s3 + $0x108] sm:$0xf]
    %v3071 = vld [vmem:[%s3 + $0x10c] sm:$0xf]
    %v3072 = vld [vmem:[%s3 + $0x110] sm:$0xf]
    %v3073 = vld [vmem:[%s3 + $0x114] sm:$0xf]
    %v3074 = vld [vmem:[%s3 + $0x118] sm:$0xf]
    %v3075 = vld [vmem:[%s3 + $0x11c] sm:$0xf]
    %v3076 = vld [vmem:[%s3 + $0x120] sm:$0xf]
    %v3077 = vld [vmem:[%s3 + $0x124] sm:$0xf]
    %v3078 = vld [vmem:[%s3 + $0x128] sm:$0xf]
    %v3079 = vld [vmem:[%s3 + $0x12c] sm:$0xf]
    %v3080 = vld [vmem:[%s3 + $0x130] sm:$0xf]
    %v3081 = vld [vmem:[%s3 + $0x134] sm:$0xf]
    %v3082 = vld [vmem:[%s3 + $0x138] sm:$0xf]
    %v3083 = vld [vmem:[%s3 + $0x13c] sm:$0xf]
    %v3084 = vld [vmem:[%s3 + $0x140] sm:$0xf]
    %v3085 = vld [vmem:[%s3 + $0x144] sm:$0xf]
    %v3086 = vld [vmem:[%s3 + $0x148] sm:$0xf]
    %v3087 = vld [vmem:[%s3 + $0x14c] sm:$0xf]
    %v3088 = vld [vmem:[%s3 + $0x150] sm:$0xf]
    %v3089 = vld [vmem:[%s3 + $0x154] sm:$0xf]
    %v3090 = vld [vmem:[%s3 + $0x158] sm:$0xf]
    %v3091 = vld [vmem:[%s3 + $0x15c] sm:$0xf]
    %v3092 = vld [vmem:[%s3 + $0x160] sm:$0xf]
    %v3093 = vld [vmem:[%s3 + $0x164] sm:$0xf]
    %v3094 = vld [vmem:[%s3 + $0x168] sm:$0xf]
    %v3095 = vld [vmem:[%s3 + $0x16c] sm:$0xf]
    %v3096 = vld [vmem:[%s3 + $0x170] sm:$0xf]
    %v3097 = vld [vmem:[%s3 + $0x174] sm:$0xf]
    %v3098 = vld [vmem:[%s3 + $0x178] sm:$0xf]
    %v3099 = vld [vmem:[%s3 + $0x17c] sm:$0xf]
    %v3100 = vld [vmem:[%s3 + $0x180] sm:$0xf]
    %v3101 = vld [vmem:[%s3 + $0x184] sm:$0xf]
    %v3102 = vld [vmem:[%s3 + $0x188] sm:$0xf]
    %v3103 = vld [vmem:[%s3 + $0x18c] sm:$0xf]
    %v3104 = vld [vmem:[%s3 + $0x190] sm:$0xf]
    %v3105 = vld [vmem:[%s3 + $0x194] sm:$0xf]
    %v3106 = vld [vmem:[%s3 + $0x198] sm:$0xf]
    %v3107 = vld [vmem:[%s3 + $0x19c] sm:$0xf]
    %v3108 = vld [vmem:[%s3 + $0x1a0] sm:$0xf]
    %v3109 = vld [vmem:[%s3 + $0x1a4] sm:$0xf]
    %v3110 = vld [vmem:[%s3 + $0x1a8] sm:$0xf]
    %v3111 = vld [vmem:[%s3 + $0x1ac] sm:$0xf]
    %v3112 = vld [vmem:[%s3 + $0x1b0] sm:$0xf]
    %v3113 = vld [vmem:[%s3 + $0x1b4] sm:$0xf]
    %v3114 = vld [vmem:[%s3 + $0x1b8] sm:$0xf]
    %v3115 = vld [vmem:[%s3 + $0x1bc] sm:$0xf]
    %v3116 = vld [vmem:[%s3 + $0x1c0] sm:$0xf]
    %v3117 = vld [vmem:[%s3 + $0x1c4] sm:$0xf]
    %v3118 = vld [vmem:[%s3 + $0x1c8] sm:$0xf]
    %v3119 = vld [vmem:[%s3 + $0x1cc] sm:$0xf]
    %v3120 = vld [vmem:[%s3 + $0x1d0] sm:$0xf]
    %v3121 = vld [vmem:[%s3 + $0x1d4] sm:$0xf]
    %v3122 = vld [vmem:[%s3 + $0x1d8] sm:$0xf]
    %v3123 = vld [vmem:[%s3 + $0x1dc] sm:$0xf]
    %v3124 = vld [vmem:[%s3 + $0x1e0] sm:$0xf]
    %v3125 = vld [vmem:[%s3 + $0x1e4] sm:$0xf]
    %v3126 = vld [vmem:[%s3 + $0x1e8] sm:$0xf]
    %v3127 = vld [vmem:[%s3 + $0x1ec] sm:$0xf]
    %v3128 = vld [vmem:[%s3 + $0x1f0] sm:$0xf]
    %v3129 = vld [vmem:[%s3 + $0x1f4] sm:$0xf]
    %v3130 = vld [vmem:[%s3 + $0x1f8] sm:$0xf]
    %v3131 = vld [vmem:[%s3 + $0x1fc] sm:$0xf]
    %v3133 = vshrl.u32 %v2945, 16
    %v3136 = vshrl.u32 %v2946, 16
    %v3139 = vshrl.u32 %v2947, 16
    %v3142 = vshrl.u32 %v2948, 16
    %v3145 = vshrl.u32 %v2949, 16
    %v3148 = vshrl.u32 %v2950, 16
    %v3151 = vshrl.u32 %v2951, 16
    %v3154 = vshrl.u32 %v2952, 16
    %v3164 = vsel %vm2995, %v3133, %v2953
    %v3165 = vsel %vm2995, %v3136, %v2954
    %v3166 = vsel %vm2995, %v3139, %v2955
    %v3167 = vsel %vm2995, %v3142, %v2956
    %v3168 = vsel %vm2995, %v3145, %v2957
    %v3169 = vsel %vm2995, %v3148, %v2958
    %v3170 = vsel %vm2995, %v3151, %v2959
    %v3171 = vsel %vm2995, %v3154, %v2960
    %s3172 = scalar_lea.vmem %s3, 512
    %v3173 = vld [vmem:[%s3172] sm:$0xf]
    %v3174 = vld [vmem:[%s3172 + $0x4] sm:$0xf]
    %v3175 = vld [vmem:[%s3172 + $0x8] sm:$0xf]
    %v3176 = vld [vmem:[%s3172 + $0xc] sm:$0xf]
    %v3177 = vld [vmem:[%s3172 + $0x10] sm:$0xf]
    %v3178 = vld [vmem:[%s3172 + $0x14] sm:$0xf]
    %v3179 = vld [vmem:[%s3172 + $0x18] sm:$0xf]
    %v3180 = vld [vmem:[%s3172 + $0x1c] sm:$0xf]
    %v3181 = vld [vmem:[%s3172 + $0x20] sm:$0xf]
    %v3182 = vld [vmem:[%s3172 + $0x24] sm:$0xf]
    %v3183 = vld [vmem:[%s3172 + $0x28] sm:$0xf]
    %v3184 = vld [vmem:[%s3172 + $0x2c] sm:$0xf]
    %v3185 = vld [vmem:[%s3172 + $0x30] sm:$0xf]
    %v3186 = vld [vmem:[%s3172 + $0x34] sm:$0xf]
    %v3187 = vld [vmem:[%s3172 + $0x38] sm:$0xf]
    %v3188 = vld [vmem:[%s3172 + $0x3c] sm:$0xf]
    %v3189 = vld [vmem:[%s3172 + $0x40] sm:$0xf]
    %v3190 = vld [vmem:[%s3172 + $0x44] sm:$0xf]
    %v3191 = vld [vmem:[%s3172 + $0x48] sm:$0xf]
    %v3192 = vld [vmem:[%s3172 + $0x4c] sm:$0xf]
    %v3193 = vld [vmem:[%s3172 + $0x50] sm:$0xf]
    %v3194 = vld [vmem:[%s3172 + $0x54] sm:$0xf]
    %v3195 = vld [vmem:[%s3172 + $0x58] sm:$0xf]
    %v3196 = vld [vmem:[%s3172 + $0x5c] sm:$0xf]
    %v3197 = vld [vmem:[%s3172 + $0x60] sm:$0xf]
    %v3198 = vld [vmem:[%s3172 + $0x64] sm:$0xf]
    %v3199 = vld [vmem:[%s3172 + $0x68] sm:$0xf]
    %v3200 = vld [vmem:[%s3172 + $0x6c] sm:$0xf]
    %v3201 = vld [vmem:[%s3172 + $0x70] sm:$0xf]
    %v3202 = vld [vmem:[%s3172 + $0x74] sm:$0xf]
    %v3203 = vld [vmem:[%s3172 + $0x78] sm:$0xf]
    %v3204 = vld [vmem:[%s3172 + $0x7c] sm:$0xf]
    %v3205 = vld [vmem:[%s3172 + $0x80] sm:$0xf]
    %v3206 = vld [vmem:[%s3172 + $0x84] sm:$0xf]
    %v3207 = vld [vmem:[%s3172 + $0x88] sm:$0xf]
    %v3208 = vld [vmem:[%s3172 + $0x8c] sm:$0xf]
    %v3209 = vld [vmem:[%s3172 + $0x90] sm:$0xf]
    %v3210 = vld [vmem:[%s3172 + $0x94] sm:$0xf]
    %v3211 = vld [vmem:[%s3172 + $0x98] sm:$0xf]
    %v3212 = vld [vmem:[%s3172 + $0x9c] sm:$0xf]
    %v3213 = vld [vmem:[%s3172 + $0xa0] sm:$0xf]
    %v3214 = vld [vmem:[%s3172 + $0xa4] sm:$0xf]
    %v3215 = vld [vmem:[%s3172 + $0xa8] sm:$0xf]
    %v3216 = vld [vmem:[%s3172 + $0xac] sm:$0xf]
    %v3217 = vld [vmem:[%s3172 + $0xb0] sm:$0xf]
    %v3218 = vld [vmem:[%s3172 + $0xb4] sm:$0xf]
    %v3219 = vld [vmem:[%s3172 + $0xb8] sm:$0xf]
    %v3220 = vld [vmem:[%s3172 + $0xbc] sm:$0xf]
    %v3221 = vld [vmem:[%s3172 + $0xc0] sm:$0xf]
    %v3222 = vld [vmem:[%s3172 + $0xc4] sm:$0xf]
    %v3223 = vld [vmem:[%s3172 + $0xc8] sm:$0xf]
    %v3224 = vld [vmem:[%s3172 + $0xcc] sm:$0xf]
    %v3225 = vld [vmem:[%s3172 + $0xd0] sm:$0xf]
    %v3226 = vld [vmem:[%s3172 + $0xd4] sm:$0xf]
    %v3227 = vld [vmem:[%s3172 + $0xd8] sm:$0xf]
    %v3228 = vld [vmem:[%s3172 + $0xdc] sm:$0xf]
    %v3229 = vld [vmem:[%s3172 + $0xe0] sm:$0xf]
    %v3230 = vld [vmem:[%s3172 + $0xe4] sm:$0xf]
    %v3231 = vld [vmem:[%s3172 + $0xe8] sm:$0xf]
    %v3232 = vld [vmem:[%s3172 + $0xec] sm:$0xf]
    %v3233 = vld [vmem:[%s3172 + $0xf0] sm:$0xf]
    %v3234 = vld [vmem:[%s3172 + $0xf4] sm:$0xf]
    %v3235 = vld [vmem:[%s3172 + $0xf8] sm:$0xf]
    %v3236 = vld [vmem:[%s3172 + $0xfc] sm:$0xf]
    %v3237 = vld [vmem:[%s3172 + $0x100] sm:$0xf]
    %v3238 = vld [vmem:[%s3172 + $0x104] sm:$0xf]
    %v3239 = vld [vmem:[%s3172 + $0x108] sm:$0xf]
    %v3240 = vld [vmem:[%s3172 + $0x10c] sm:$0xf]
    %v3241 = vld [vmem:[%s3172 + $0x110] sm:$0xf]
    %v3242 = vld [vmem:[%s3172 + $0x114] sm:$0xf]
    %v3243 = vld [vmem:[%s3172 + $0x118] sm:$0xf]
    %v3244 = vld [vmem:[%s3172 + $0x11c] sm:$0xf]
    %v3245 = vld [vmem:[%s3172 + $0x120] sm:$0xf]
    %v3246 = vld [vmem:[%s3172 + $0x124] sm:$0xf]
    %v3247 = vld [vmem:[%s3172 + $0x128] sm:$0xf]
    %v3248 = vld [vmem:[%s3172 + $0x12c] sm:$0xf]
    %v3249 = vld [vmem:[%s3172 + $0x130] sm:$0xf]
    %v3250 = vld [vmem:[%s3172 + $0x134] sm:$0xf]
    %v3251 = vld [vmem:[%s3172 + $0x138] sm:$0xf]
    %v3252 = vld [vmem:[%s3172 + $0x13c] sm:$0xf]
    %v3253 = vld [vmem:[%s3172 + $0x140] sm:$0xf]
    %v3254 = vld [vmem:[%s3172 + $0x144] sm:$0xf]
    %v3255 = vld [vmem:[%s3172 + $0x148] sm:$0xf]
    %v3256 = vld [vmem:[%s3172 + $0x14c] sm:$0xf]
    %v3257 = vld [vmem:[%s3172 + $0x150] sm:$0xf]
    %v3258 = vld [vmem:[%s3172 + $0x154] sm:$0xf]
    %v3259 = vld [vmem:[%s3172 + $0x158] sm:$0xf]
    %v3260 = vld [vmem:[%s3172 + $0x15c] sm:$0xf]
    %v3261 = vld [vmem:[%s3172 + $0x160] sm:$0xf]
    %v3262 = vld [vmem:[%s3172 + $0x164] sm:$0xf]
    %v3263 = vld [vmem:[%s3172 + $0x168] sm:$0xf]
    %v3264 = vld [vmem:[%s3172 + $0x16c] sm:$0xf]
    %v3265 = vld [vmem:[%s3172 + $0x170] sm:$0xf]
    %v3266 = vld [vmem:[%s3172 + $0x174] sm:$0xf]
    %v3267 = vld [vmem:[%s3172 + $0x178] sm:$0xf]
    %v3268 = vld [vmem:[%s3172 + $0x17c] sm:$0xf]
    %v3269 = vld [vmem:[%s3172 + $0x180] sm:$0xf]
    %v3270 = vld [vmem:[%s3172 + $0x184] sm:$0xf]
    %v3271 = vld [vmem:[%s3172 + $0x188] sm:$0xf]
    %v3272 = vld [vmem:[%s3172 + $0x18c] sm:$0xf]
    %v3273 = vld [vmem:[%s3172 + $0x190] sm:$0xf]
    %v3274 = vld [vmem:[%s3172 + $0x194] sm:$0xf]
    %v3275 = vld [vmem:[%s3172 + $0x198] sm:$0xf]
    %v3276 = vld [vmem:[%s3172 + $0x19c] sm:$0xf]
    %v3277 = vld [vmem:[%s3172 + $0x1a0] sm:$0xf]
    %v3278 = vld [vmem:[%s3172 + $0x1a4] sm:$0xf]
    %v3279 = vld [vmem:[%s3172 + $0x1a8] sm:$0xf]
    %v3280 = vld [vmem:[%s3172 + $0x1ac] sm:$0xf]
    %v3281 = vld [vmem:[%s3172 + $0x1b0] sm:$0xf]
    %v3282 = vld [vmem:[%s3172 + $0x1b4] sm:$0xf]
    %v3283 = vld [vmem:[%s3172 + $0x1b8] sm:$0xf]
    %v3284 = vld [vmem:[%s3172 + $0x1bc] sm:$0xf]
    %v3285 = vld [vmem:[%s3172 + $0x1c0] sm:$0xf]
    %v3286 = vld [vmem:[%s3172 + $0x1c4] sm:$0xf]
    %v3287 = vld [vmem:[%s3172 + $0x1c8] sm:$0xf]
    %v3288 = vld [vmem:[%s3172 + $0x1cc] sm:$0xf]
    %v3289 = vld [vmem:[%s3172 + $0x1d0] sm:$0xf]
    %v3290 = vld [vmem:[%s3172 + $0x1d4] sm:$0xf]
    %v3291 = vld [vmem:[%s3172 + $0x1d8] sm:$0xf]
    %v3292 = vld [vmem:[%s3172 + $0x1dc] sm:$0xf]
    %v3293 = vld [vmem:[%s3172 + $0x1e0] sm:$0xf]
    %v3294 = vld [vmem:[%s3172 + $0x1e4] sm:$0xf]
    %v3295 = vld [vmem:[%s3172 + $0x1e8] sm:$0xf]
    %v3296 = vld [vmem:[%s3172 + $0x1ec] sm:$0xf]
    %v3297 = vld [vmem:[%s3172 + $0x1f0] sm:$0xf]
    %v3298 = vld [vmem:[%s3172 + $0x1f4] sm:$0xf]
    %v3299 = vld [vmem:[%s3172 + $0x1f8] sm:$0xf]
    %v3300 = vld [vmem:[%s3172 + $0x1fc] sm:$0xf]
    %v3429 = vunpack.c.l.b16 %v3173
    %v3430 = vunpack.c.l.b16 %v3174
    %v3431 = vunpack.c.l.b16 %v3175
    %v3432 = vunpack.c.l.b16 %v3176
    %v3433 = vunpack.c.l.b16 %v3177
    %v3434 = vunpack.c.l.b16 %v3178
    %v3435 = vunpack.c.l.b16 %v3179
    %v3436 = vunpack.c.l.b16 %v3180
    %v3437 = vunpack.c.l.b16 %v3181
    %v3438 = vunpack.c.l.b16 %v3182
    %v3439 = vunpack.c.l.b16 %v3183
    %v3440 = vunpack.c.l.b16 %v3184
    %v3441 = vunpack.c.l.b16 %v3185
    %v3442 = vunpack.c.l.b16 %v3186
    %v3443 = vunpack.c.l.b16 %v3187
    %v3444 = vunpack.c.l.b16 %v3188
    %v3445 = vunpack.c.l.b16 %v3189
    %v3446 = vunpack.c.l.b16 %v3190
    %v3447 = vunpack.c.l.b16 %v3191
    %v3448 = vunpack.c.l.b16 %v3192
    %v3449 = vunpack.c.l.b16 %v3193
    %v3450 = vunpack.c.l.b16 %v3194
    %v3451 = vunpack.c.l.b16 %v3195
    %v3452 = vunpack.c.l.b16 %v3196
    %v3453 = vunpack.c.l.b16 %v3197
    %v3454 = vunpack.c.l.b16 %v3198
    %v3455 = vunpack.c.l.b16 %v3199
    %v3456 = vunpack.c.l.b16 %v3200
    %v3457 = vunpack.c.l.b16 %v3201
    %v3458 = vunpack.c.l.b16 %v3202
    %v3459 = vunpack.c.l.b16 %v3203
    %v3460 = vunpack.c.l.b16 %v3204
    %v3461 = vunpack.c.l.b16 %v3205
    %v3462 = vunpack.c.l.b16 %v3206
    %v3463 = vunpack.c.l.b16 %v3207
    %v3464 = vunpack.c.l.b16 %v3208
    %v3465 = vunpack.c.l.b16 %v3209
    %v3466 = vunpack.c.l.b16 %v3210
    %v3467 = vunpack.c.l.b16 %v3211
    %v3468 = vunpack.c.l.b16 %v3212
    %v3469 = vunpack.c.l.b16 %v3213
    %v3470 = vunpack.c.l.b16 %v3214
    %v3471 = vunpack.c.l.b16 %v3215
    %v3472 = vunpack.c.l.b16 %v3216
    %v3473 = vunpack.c.l.b16 %v3217
    %v3474 = vunpack.c.l.b16 %v3218
    %v3475 = vunpack.c.l.b16 %v3219
    %v3476 = vunpack.c.l.b16 %v3220
    %v3477 = vunpack.c.l.b16 %v3221
    %v3478 = vunpack.c.l.b16 %v3222
    %v3479 = vunpack.c.l.b16 %v3223
    %v3480 = vunpack.c.l.b16 %v3224
    %v3481 = vunpack.c.l.b16 %v3225
    %v3482 = vunpack.c.l.b16 %v3226
    %v3483 = vunpack.c.l.b16 %v3227
    %v3484 = vunpack.c.l.b16 %v3228
    %v3485 = vunpack.c.l.b16 %v3229
    %v3486 = vunpack.c.l.b16 %v3230
    %v3487 = vunpack.c.l.b16 %v3231
    %v3488 = vunpack.c.l.b16 %v3232
    %v3489 = vunpack.c.l.b16 %v3233
    %v3490 = vunpack.c.l.b16 %v3234
    %v3491 = vunpack.c.l.b16 %v3235
    %v3492 = vunpack.c.l.b16 %v3236
    %v3493 = vunpack.c.l.b16 %v3237
    %v3494 = vunpack.c.l.b16 %v3238
    %v3495 = vunpack.c.l.b16 %v3239
    %v3496 = vunpack.c.l.b16 %v3240
    %v3497 = vunpack.c.l.b16 %v3241
    %v3498 = vunpack.c.l.b16 %v3242
    %v3499 = vunpack.c.l.b16 %v3243
    %v3500 = vunpack.c.l.b16 %v3244
    %v3501 = vunpack.c.l.b16 %v3245
    %v3502 = vunpack.c.l.b16 %v3246
    %v3503 = vunpack.c.l.b16 %v3247
    %v3504 = vunpack.c.l.b16 %v3248
    %v3505 = vunpack.c.l.b16 %v3249
    %v3506 = vunpack.c.l.b16 %v3250
    %v3507 = vunpack.c.l.b16 %v3251
    %v3508 = vunpack.c.l.b16 %v3252
    %v3509 = vunpack.c.l.b16 %v3253
    %v3510 = vunpack.c.l.b16 %v3254
    %v3511 = vunpack.c.l.b16 %v3255
    %v3512 = vunpack.c.l.b16 %v3256
    %v3513 = vunpack.c.l.b16 %v3257
    %v3514 = vunpack.c.l.b16 %v3258
    %v3515 = vunpack.c.l.b16 %v3259
    %v3516 = vunpack.c.l.b16 %v3260
    %v3517 = vunpack.c.l.b16 %v3261
    %v3518 = vunpack.c.l.b16 %v3262
    %v3519 = vunpack.c.l.b16 %v3263
    %v3520 = vunpack.c.l.b16 %v3264
    %v3521 = vunpack.c.l.b16 %v3265
    %v3522 = vunpack.c.l.b16 %v3266
    %v3523 = vunpack.c.l.b16 %v3267
    %v3524 = vunpack.c.l.b16 %v3268
    %v3525 = vunpack.c.l.b16 %v3269
    %v3526 = vunpack.c.l.b16 %v3270
    %v3527 = vunpack.c.l.b16 %v3271
    %v3528 = vunpack.c.l.b16 %v3272
    %v3529 = vunpack.c.l.b16 %v3273
    %v3530 = vunpack.c.l.b16 %v3274
    %v3531 = vunpack.c.l.b16 %v3275
    %v3532 = vunpack.c.l.b16 %v3276
    %v3533 = vunpack.c.l.b16 %v3277
    %v3534 = vunpack.c.l.b16 %v3278
    %v3535 = vunpack.c.l.b16 %v3279
    %v3536 = vunpack.c.l.b16 %v3280
    %v3537 = vunpack.c.l.b16 %v3281
    %v3538 = vunpack.c.l.b16 %v3282
    %v3539 = vunpack.c.l.b16 %v3283
    %v3540 = vunpack.c.l.b16 %v3284
    %v3541 = vunpack.c.l.b16 %v3285
    %v3542 = vunpack.c.l.b16 %v3286
    %v3543 = vunpack.c.l.b16 %v3287
    %v3544 = vunpack.c.l.b16 %v3288
    %v3545 = vunpack.c.l.b16 %v3289
    %v3546 = vunpack.c.l.b16 %v3290
    %v3547 = vunpack.c.l.b16 %v3291
    %v3548 = vunpack.c.l.b16 %v3292
    %v3549 = vunpack.c.l.b16 %v3293
    %v3550 = vunpack.c.l.b16 %v3294
    %v3551 = vunpack.c.l.b16 %v3295
    %v3552 = vunpack.c.l.b16 %v3296
    %v3553 = vunpack.c.l.b16 %v3297
    %v3554 = vunpack.c.l.b16 %v3298
    %v3555 = vunpack.c.l.b16 %v3299
    %v3556 = vunpack.c.l.b16 %v3300
    %v3557 = vpack.c.b16 %v3430, %v3429
    %v3558 = vpack.c.b16 %v3432, %v3431
    %v3559 = vpack.c.b16 %v3434, %v3433
    %v3560 = vpack.c.b16 %v3436, %v3435
    %v3561 = vpack.c.b16 %v3438, %v3437
    %v3562 = vpack.c.b16 %v3440, %v3439
    %v3563 = vpack.c.b16 %v3442, %v3441
    %v3564 = vpack.c.b16 %v3444, %v3443
    %v3565 = vpack.c.b16 %v3446, %v3445
    %v3566 = vpack.c.b16 %v3448, %v3447
    %v3567 = vpack.c.b16 %v3450, %v3449
    %v3568 = vpack.c.b16 %v3452, %v3451
    %v3569 = vpack.c.b16 %v3454, %v3453
    %v3570 = vpack.c.b16 %v3456, %v3455
    %v3571 = vpack.c.b16 %v3458, %v3457
    %v3572 = vpack.c.b16 %v3460, %v3459
    %v3573 = vpack.c.b16 %v3462, %v3461
    %v3574 = vpack.c.b16 %v3464, %v3463
    %v3575 = vpack.c.b16 %v3466, %v3465
    %v3576 = vpack.c.b16 %v3468, %v3467
    %v3577 = vpack.c.b16 %v3470, %v3469
    %v3578 = vpack.c.b16 %v3472, %v3471
    %v3579 = vpack.c.b16 %v3474, %v3473
    %v3580 = vpack.c.b16 %v3476, %v3475
    %v3581 = vpack.c.b16 %v3478, %v3477
    %v3582 = vpack.c.b16 %v3480, %v3479
    %v3583 = vpack.c.b16 %v3482, %v3481
    %v3584 = vpack.c.b16 %v3484, %v3483
    %v3585 = vpack.c.b16 %v3486, %v3485
    %v3586 = vpack.c.b16 %v3488, %v3487
    %v3587 = vpack.c.b16 %v3490, %v3489
    %v3588 = vpack.c.b16 %v3492, %v3491
    %v3589 = vpack.c.b16 %v3494, %v3493
    %v3590 = vpack.c.b16 %v3496, %v3495
    %v3591 = vpack.c.b16 %v3498, %v3497
    %v3592 = vpack.c.b16 %v3500, %v3499
    %v3593 = vpack.c.b16 %v3502, %v3501
    %v3594 = vpack.c.b16 %v3504, %v3503
    %v3595 = vpack.c.b16 %v3506, %v3505
    %v3596 = vpack.c.b16 %v3508, %v3507
    %v3597 = vpack.c.b16 %v3510, %v3509
    %v3598 = vpack.c.b16 %v3512, %v3511
    %v3599 = vpack.c.b16 %v3514, %v3513
    %v3600 = vpack.c.b16 %v3516, %v3515
    %v3601 = vpack.c.b16 %v3518, %v3517
    %v3602 = vpack.c.b16 %v3520, %v3519
    %v3603 = vpack.c.b16 %v3522, %v3521
    %v3604 = vpack.c.b16 %v3524, %v3523
    %v3605 = vpack.c.b16 %v3526, %v3525
    %v3606 = vpack.c.b16 %v3528, %v3527
    %v3607 = vpack.c.b16 %v3530, %v3529
    %v3608 = vpack.c.b16 %v3532, %v3531
    %v3609 = vpack.c.b16 %v3534, %v3533
    %v3610 = vpack.c.b16 %v3536, %v3535
    %v3611 = vpack.c.b16 %v3538, %v3537
    %v3612 = vpack.c.b16 %v3540, %v3539
    %v3613 = vpack.c.b16 %v3542, %v3541
    %v3614 = vpack.c.b16 %v3544, %v3543
    %v3615 = vpack.c.b16 %v3546, %v3545
    %v3616 = vpack.c.b16 %v3548, %v3547
    %v3617 = vpack.c.b16 %v3550, %v3549
    %v3618 = vpack.c.b16 %v3552, %v3551
    %v3619 = vpack.c.b16 %v3554, %v3553
    %v3620 = vpack.c.b16 %v3556, %v3555
    %3685 = vmatprep.subr.bf16.mxu0 0
    %3686 = vmatpush1.bf16.msra.mxu0 %v3564
    %3687 = vmatprep.subr.bf16.mxu0 0
    %3688 = vmatpush1.bf16.msra.mxu0 %v3563
    %3689 = vmatprep.subr.bf16.mxu0 0
    %3690 = vmatpush1.bf16.msra.mxu0 %v3562
    %3691 = vmatprep.subr.bf16.mxu0 0
    %3692 = vmatpush1.bf16.msra.mxu0 %v3561
    %3693 = vmatprep.subr.bf16.mxu0 0
    %3694 = vmatpush1.bf16.msra.mxu0 %v3560
    %3695 = vmatprep.subr.bf16.mxu0 0
    %3696 = vmatpush1.bf16.msra.mxu0 %v3559
    %3697 = vmatprep.subr.bf16.mxu0 0
    %3698 = vmatpush1.bf16.msra.mxu0 %v3558
    %3699 = vmatprep.subr.bf16.mxu0 0
    %3700 = vmatpush1.bf16.msra.mxu0 %v3557
    %3701 = vmatprep.subr.bf16.mxu0 0
    %3702 = vmatpush2.bf16.msra.mxu0 %v3572
    %3703 = vmatprep.subr.bf16.mxu0 0
    %3704 = vmatpush2.bf16.msra.mxu0 %v3571
    %3705 = vmatprep.subr.bf16.mxu0 0
    %3706 = vmatpush2.bf16.msra.mxu0 %v3570
    %3707 = vmatprep.subr.bf16.mxu0 0
    %3708 = vmatpush2.bf16.msra.mxu0 %v3569
    %3709 = vmatprep.subr.bf16.mxu0 0
    %3710 = vmatpush2.bf16.msra.mxu0 %v3568
    %3711 = vmatprep.subr.bf16.mxu0 0
    %3712 = vmatpush2.bf16.msra.mxu0 %v3567
    %3713 = vmatprep.subr.bf16.mxu0 0
    %3714 = vmatpush2.bf16.msra.mxu0 %v3566
    %3715 = vmatprep.subr.bf16.mxu0 0
    %3716 = vmatpush2.bf16.msra.mxu0 %v3565
    %3717 = vmatprep.mubr.bf16.mxu0 %v3165
    %3718 = vmatmul.mubr.bf16.gmra.mxu0 %v3164
    %v3719 = vpop.f32.mrf.mxu0
    %v3720 = vadd.f32 0.0, %v3719
    %v3721 = vpop.f32.mrf.mxu0
    %v3722 = vpop.f32.mrf.mxu0
    %v3723 = vpop.f32.mrf.mxu0
    %3724 = vdwg.mxu0
    %3725 = vmatprep.subr.bf16.mxu0 0
    %3726 = vmatpush1.bf16.msra.mxu0 %v3580
    %3727 = vmatprep.subr.bf16.mxu0 0
    %3728 = vmatpush1.bf16.msra.mxu0 %v3579
    %3729 = vmatprep.subr.bf16.mxu0 0
    %3730 = vmatpush1.bf16.msra.mxu0 %v3578
    %3731 = vmatprep.subr.bf16.mxu0 0
    %3732 = vmatpush1.bf16.msra.mxu0 %v3577
    %3733 = vmatprep.subr.bf16.mxu0 0
    %3734 = vmatpush1.bf16.msra.mxu0 %v3576
    %3735 = vmatprep.subr.bf16.mxu0 0
    %3736 = vmatpush1.bf16.msra.mxu0 %v3575
    %3737 = vmatprep.subr.bf16.mxu0 0
    %3738 = vmatpush1.bf16.msra.mxu0 %v3574
    %3739 = vmatprep.subr.bf16.mxu0 0
    %3740 = vmatpush1.bf16.msra.mxu0 %v3573
    %3741 = vmatprep.subr.bf16.mxu0 0
    %3742 = vmatpush2.bf16.msra.mxu0 %v3588
    %3743 = vmatprep.subr.bf16.mxu0 0
    %3744 = vmatpush2.bf16.msra.mxu0 %v3587
    %3745 = vmatprep.subr.bf16.mxu0 0
    %3746 = vmatpush2.bf16.msra.mxu0 %v3586
    %3747 = vmatprep.subr.bf16.mxu0 0
    %3748 = vmatpush2.bf16.msra.mxu0 %v3585
    %3749 = vmatprep.subr.bf16.mxu0 0
    %3750 = vmatpush2.bf16.msra.mxu0 %v3584
    %3751 = vmatprep.subr.bf16.mxu0 0
    %3752 = vmatpush2.bf16.msra.mxu0 %v3583
    %3753 = vmatprep.subr.bf16.mxu0 0
    %3754 = vmatpush2.bf16.msra.mxu0 %v3582
    %3755 = vmatprep.subr.bf16.mxu0 0
    %3756 = vmatpush2.bf16.msra.mxu0 %v3581
    %3757 = vmatprep.mubr.bf16.mxu0 %v3167
    %3758 = vmatmul.mubr.bf16.gmra.mxu0 %v3166
    %v3759 = vpop.f32.mrf.mxu0
    %v3760 = vadd.f32 %v3720, %v3759
    %v3761 = vpop.f32.mrf.mxu0
    %v3762 = vpop.f32.mrf.mxu0
    %v3763 = vpop.f32.mrf.mxu0
    %3764 = vdwg.mxu0
    %3765 = vmatprep.subr.bf16.mxu0 0
    %3766 = vmatpush1.bf16.msra.mxu0 %v3596
    %3767 = vmatprep.subr.bf16.mxu0 0
    %3768 = vmatpush1.bf16.msra.mxu0 %v3595
    %3769 = vmatprep.subr.bf16.mxu0 0
    %3770 = vmatpush1.bf16.msra.mxu0 %v3594
    %3771 = vmatprep.subr.bf16.mxu0 0
    %3772 = vmatpush1.bf16.msra.mxu0 %v3593
    %3773 = vmatprep.subr.bf16.mxu0 0
    %3774 = vmatpush1.bf16.msra.mxu0 %v3592
    %3775 = vmatprep.subr.bf16.mxu0 0
    %3776 = vmatpush1.bf16.msra.mxu0 %v3591
    %3777 = vmatprep.subr.bf16.mxu0 0
    %3778 = vmatpush1.bf16.msra.mxu0 %v3590
    %3779 = vmatprep.subr.bf16.mxu0 0
    %3780 = vmatpush1.bf16.msra.mxu0 %v3589
    %3781 = vmatprep.subr.bf16.mxu0 0
    %3782 = vmatpush2.bf16.msra.mxu0 %v3604
    %3783 = vmatprep.subr.bf16.mxu0 0
    %3784 = vmatpush2.bf16.msra.mxu0 %v3603
    %3785 = vmatprep.subr.bf16.mxu0 0
    %3786 = vmatpush2.bf16.msra.mxu0 %v3602
    %3787 = vmatprep.subr.bf16.mxu0 0
    %3788 = vmatpush2.bf16.msra.mxu0 %v3601
    %3789 = vmatprep.subr.bf16.mxu0 0
    %3790 = vmatpush2.bf16.msra.mxu0 %v3600
    %3791 = vmatprep.subr.bf16.mxu0 0
    %3792 = vmatpush2.bf16.msra.mxu0 %v3599
    %3793 = vmatprep.subr.bf16.mxu0 0
    %3794 = vmatpush2.bf16.msra.mxu0 %v3598
    %3795 = vmatprep.subr.bf16.mxu0 0
    %3796 = vmatpush2.bf16.msra.mxu0 %v3597
    %3797 = vmatprep.mubr.bf16.mxu0 %v3169
    %3798 = vmatmul.mubr.bf16.gmra.mxu0 %v3168
    %v3799 = vpop.f32.mrf.mxu0
    %v3800 = vadd.f32 %v3760, %v3799
    %v3801 = vpop.f32.mrf.mxu0
    %v3802 = vpop.f32.mrf.mxu0
    %v3803 = vpop.f32.mrf.mxu0
    %3804 = vdwg.mxu0
    %3805 = vmatprep.subr.bf16.mxu0 0
    %3806 = vmatpush1.bf16.msra.mxu0 %v3612
    %3807 = vmatprep.subr.bf16.mxu0 0
    %3808 = vmatpush1.bf16.msra.mxu0 %v3611
    %3809 = vmatprep.subr.bf16.mxu0 0
    %3810 = vmatpush1.bf16.msra.mxu0 %v3610
    %3811 = vmatprep.subr.bf16.mxu0 0
    %3812 = vmatpush1.bf16.msra.mxu0 %v3609
    %3813 = vmatprep.subr.bf16.mxu0 0
    %3814 = vmatpush1.bf16.msra.mxu0 %v3608
    %3815 = vmatprep.subr.bf16.mxu0 0
    %3816 = vmatpush1.bf16.msra.mxu0 %v3607
    %3817 = vmatprep.subr.bf16.mxu0 0
    %3818 = vmatpush1.bf16.msra.mxu0 %v3606
    %3819 = vmatprep.subr.bf16.mxu0 0
    %3820 = vmatpush1.bf16.msra.mxu0 %v3605
    %3821 = vmatprep.subr.bf16.mxu0 0
    %3822 = vmatpush2.bf16.msra.mxu0 %v3620
    %3823 = vmatprep.subr.bf16.mxu0 0
    %3824 = vmatpush2.bf16.msra.mxu0 %v3619
    %3825 = vmatprep.subr.bf16.mxu0 0
    %3826 = vmatpush2.bf16.msra.mxu0 %v3618
    %3827 = vmatprep.subr.bf16.mxu0 0
    %3828 = vmatpush2.bf16.msra.mxu0 %v3617
    %3829 = vmatprep.subr.bf16.mxu0 0
    %3830 = vmatpush2.bf16.msra.mxu0 %v3616
    %3831 = vmatprep.subr.bf16.mxu0 0
    %3832 = vmatpush2.bf16.msra.mxu0 %v3615
    %3833 = vmatprep.subr.bf16.mxu0 0
    %3834 = vmatpush2.bf16.msra.mxu0 %v3614
    %3835 = vmatprep.subr.bf16.mxu0 0
    %3836 = vmatpush2.bf16.msra.mxu0 %v3613
    %3837 = vmatprep.mubr.bf16.mxu0 %v3171
    %3838 = vmatmul.mubr.bf16.gmra.mxu0 %v3170
    %v3839 = vpop.f32.mrf.mxu0
    %v3840 = vadd.f32 %v3800, %v3839
    %v3841 = vpop.f32.mrf.mxu0
    %v3842 = vpop.f32.mrf.mxu0
    %v3843 = vpop.f32.mrf.mxu0
    %3844 = vdwg.mxu0
    %v3973 = vunpack.c.l.b16 %v3004
    %v3974 = vunpack.c.l.b16 %v3005
    %v3975 = vunpack.c.l.b16 %v3006
    %v3976 = vunpack.c.l.b16 %v3007
    %v3977 = vunpack.c.l.b16 %v3008
    %v3978 = vunpack.c.l.b16 %v3009
    %v3979 = vunpack.c.l.b16 %v3010
    %v3980 = vunpack.c.l.b16 %v3011
    %v3981 = vunpack.c.l.b16 %v3012
    %v3982 = vunpack.c.l.b16 %v3013
    %v3983 = vunpack.c.l.b16 %v3014
    %v3984 = vunpack.c.l.b16 %v3015
    %v3985 = vunpack.c.l.b16 %v3016
    %v3986 = vunpack.c.l.b16 %v3017
    %v3987 = vunpack.c.l.b16 %v3018
    %v3988 = vunpack.c.l.b16 %v3019
    %v3989 = vunpack.c.l.b16 %v3020
    %v3990 = vunpack.c.l.b16 %v3021
    %v3991 = vunpack.c.l.b16 %v3022
    %v3992 = vunpack.c.l.b16 %v3023
    %v3993 = vunpack.c.l.b16 %v3024
    %v3994 = vunpack.c.l.b16 %v3025
    %v3995 = vunpack.c.l.b16 %v3026
    %v3996 = vunpack.c.l.b16 %v3027
    %v3997 = vunpack.c.l.b16 %v3028
    %v3998 = vunpack.c.l.b16 %v3029
    %v3999 = vunpack.c.l.b16 %v3030
    %v4000 = vunpack.c.l.b16 %v3031
    %v4001 = vunpack.c.l.b16 %v3032
    %v4002 = vunpack.c.l.b16 %v3033
    %v4003 = vunpack.c.l.b16 %v3034
    %v4004 = vunpack.c.l.b16 %v3035
    %v4005 = vunpack.c.l.b16 %v3036
    %v4006 = vunpack.c.l.b16 %v3037
    %v4007 = vunpack.c.l.b16 %v3038
    %v4008 = vunpack.c.l.b16 %v3039
    %v4009 = vunpack.c.l.b16 %v3040
    %v4010 = vunpack.c.l.b16 %v3041
    %v4011 = vunpack.c.l.b16 %v3042
    %v4012 = vunpack.c.l.b16 %v3043
    %v4013 = vunpack.c.l.b16 %v3044
    %v4014 = vunpack.c.l.b16 %v3045
    %v4015 = vunpack.c.l.b16 %v3046
    %v4016 = vunpack.c.l.b16 %v3047
    %v4017 = vunpack.c.l.b16 %v3048
    %v4018 = vunpack.c.l.b16 %v3049
    %v4019 = vunpack.c.l.b16 %v3050
    %v4020 = vunpack.c.l.b16 %v3051
    %v4021 = vunpack.c.l.b16 %v3052
    %v4022 = vunpack.c.l.b16 %v3053
    %v4023 = vunpack.c.l.b16 %v3054
    %v4024 = vunpack.c.l.b16 %v3055
    %v4025 = vunpack.c.l.b16 %v3056
    %v4026 = vunpack.c.l.b16 %v3057
    %v4027 = vunpack.c.l.b16 %v3058
    %v4028 = vunpack.c.l.b16 %v3059
    %v4029 = vunpack.c.l.b16 %v3060
    %v4030 = vunpack.c.l.b16 %v3061
    %v4031 = vunpack.c.l.b16 %v3062
    %v4032 = vunpack.c.l.b16 %v3063
    %v4033 = vunpack.c.l.b16 %v3064
    %v4034 = vunpack.c.l.b16 %v3065
    %v4035 = vunpack.c.l.b16 %v3066
    %v4036 = vunpack.c.l.b16 %v3067
    %v4037 = vunpack.c.l.b16 %v3068
    %v4038 = vunpack.c.l.b16 %v3069
    %v4039 = vunpack.c.l.b16 %v3070
    %v4040 = vunpack.c.l.b16 %v3071
    %v4041 = vunpack.c.l.b16 %v3072
    %v4042 = vunpack.c.l.b16 %v3073
    %v4043 = vunpack.c.l.b16 %v3074
    %v4044 = vunpack.c.l.b16 %v3075
    %v4045 = vunpack.c.l.b16 %v3076
    %v4046 = vunpack.c.l.b16 %v3077
    %v4047 = vunpack.c.l.b16 %v3078
    %v4048 = vunpack.c.l.b16 %v3079
    %v4049 = vunpack.c.l.b16 %v3080
    %v4050 = vunpack.c.l.b16 %v3081
    %v4051 = vunpack.c.l.b16 %v3082
    %v4052 = vunpack.c.l.b16 %v3083
    %v4053 = vunpack.c.l.b16 %v3084
    %v4054 = vunpack.c.l.b16 %v3085
    %v4055 = vunpack.c.l.b16 %v3086
    %v4056 = vunpack.c.l.b16 %v3087
    %v4057 = vunpack.c.l.b16 %v3088
    %v4058 = vunpack.c.l.b16 %v3089
    %v4059 = vunpack.c.l.b16 %v3090
    %v4060 = vunpack.c.l.b16 %v3091
    %v4061 = vunpack.c.l.b16 %v3092
    %v4062 = vunpack.c.l.b16 %v3093
    %v4063 = vunpack.c.l.b16 %v3094
    %v4064 = vunpack.c.l.b16 %v3095
    %v4065 = vunpack.c.l.b16 %v3096
    %v4066 = vunpack.c.l.b16 %v3097
    %v4067 = vunpack.c.l.b16 %v3098
    %v4068 = vunpack.c.l.b16 %v3099
    %v4069 = vunpack.c.l.b16 %v3100
    %v4070 = vunpack.c.l.b16 %v3101
    %v4071 = vunpack.c.l.b16 %v3102
    %v4072 = vunpack.c.l.b16 %v3103
    %v4073 = vunpack.c.l.b16 %v3104
    %v4074 = vunpack.c.l.b16 %v3105
    %v4075 = vunpack.c.l.b16 %v3106
    %v4076 = vunpack.c.l.b16 %v3107
    %v4077 = vunpack.c.l.b16 %v3108
    %v4078 = vunpack.c.l.b16 %v3109
    %v4079 = vunpack.c.l.b16 %v3110
    %v4080 = vunpack.c.l.b16 %v3111
    %v4081 = vunpack.c.l.b16 %v3112
    %v4082 = vunpack.c.l.b16 %v3113
    %v4083 = vunpack.c.l.b16 %v3114
    %v4084 = vunpack.c.l.b16 %v3115
    %v4085 = vunpack.c.l.b16 %v3116
    %v4086 = vunpack.c.l.b16 %v3117
    %v4087 = vunpack.c.l.b16 %v3118
    %v4088 = vunpack.c.l.b16 %v3119
    %v4089 = vunpack.c.l.b16 %v3120
    %v4090 = vunpack.c.l.b16 %v3121
    %v4091 = vunpack.c.l.b16 %v3122
    %v4092 = vunpack.c.l.b16 %v3123
    %v4093 = vunpack.c.l.b16 %v3124
    %v4094 = vunpack.c.l.b16 %v3125
    %v4095 = vunpack.c.l.b16 %v3126
    %v4096 = vunpack.c.l.b16 %v3127
    %v4097 = vunpack.c.l.b16 %v3128
    %v4098 = vunpack.c.l.b16 %v3129
    %v4099 = vunpack.c.l.b16 %v3130
    %v4100 = vunpack.c.l.b16 %v3131
    %v4101 = vpack.c.b16 %v3974, %v3973
    %v4102 = vpack.c.b16 %v3976, %v3975
    %v4103 = vpack.c.b16 %v3978, %v3977
    %v4104 = vpack.c.b16 %v3980, %v3979
    %v4105 = vpack.c.b16 %v3982, %v3981
    %v4106 = vpack.c.b16 %v3984, %v3983
    %v4107 = vpack.c.b16 %v3986, %v3985
    %v4108 = vpack.c.b16 %v3988, %v3987
    %v4109 = vpack.c.b16 %v3990, %v3989
    %v4110 = vpack.c.b16 %v3992, %v3991
    %v4111 = vpack.c.b16 %v3994, %v3993
    %v4112 = vpack.c.b16 %v3996, %v3995
    %v4113 = vpack.c.b16 %v3998, %v3997
    %v4114 = vpack.c.b16 %v4000, %v3999
    %v4115 = vpack.c.b16 %v4002, %v4001
    %v4116 = vpack.c.b16 %v4004, %v4003
    %v4117 = vpack.c.b16 %v4006, %v4005
    %v4118 = vpack.c.b16 %v4008, %v4007
    %v4119 = vpack.c.b16 %v4010, %v4009
    %v4120 = vpack.c.b16 %v4012, %v4011
    %v4121 = vpack.c.b16 %v4014, %v4013
    %v4122 = vpack.c.b16 %v4016, %v4015
    %v4123 = vpack.c.b16 %v4018, %v4017
    %v4124 = vpack.c.b16 %v4020, %v4019
    %v4125 = vpack.c.b16 %v4022, %v4021
    %v4126 = vpack.c.b16 %v4024, %v4023
    %v4127 = vpack.c.b16 %v4026, %v4025
    %v4128 = vpack.c.b16 %v4028, %v4027
    %v4129 = vpack.c.b16 %v4030, %v4029
    %v4130 = vpack.c.b16 %v4032, %v4031
    %v4131 = vpack.c.b16 %v4034, %v4033
    %v4132 = vpack.c.b16 %v4036, %v4035
    %v4133 = vpack.c.b16 %v4038, %v4037
    %v4134 = vpack.c.b16 %v4040, %v4039
    %v4135 = vpack.c.b16 %v4042, %v4041
    %v4136 = vpack.c.b16 %v4044, %v4043
    %v4137 = vpack.c.b16 %v4046, %v4045
    %v4138 = vpack.c.b16 %v4048, %v4047
    %v4139 = vpack.c.b16 %v4050, %v4049
    %v4140 = vpack.c.b16 %v4052, %v4051
    %v4141 = vpack.c.b16 %v4054, %v4053
    %v4142 = vpack.c.b16 %v4056, %v4055
    %v4143 = vpack.c.b16 %v4058, %v4057
    %v4144 = vpack.c.b16 %v4060, %v4059
    %v4145 = vpack.c.b16 %v4062, %v4061
    %v4146 = vpack.c.b16 %v4064, %v4063
    %v4147 = vpack.c.b16 %v4066, %v4065
    %v4148 = vpack.c.b16 %v4068, %v4067
    %v4149 = vpack.c.b16 %v4070, %v4069
    %v4150 = vpack.c.b16 %v4072, %v4071
    %v4151 = vpack.c.b16 %v4074, %v4073
    %v4152 = vpack.c.b16 %v4076, %v4075
    %v4153 = vpack.c.b16 %v4078, %v4077
    %v4154 = vpack.c.b16 %v4080, %v4079
    %v4155 = vpack.c.b16 %v4082, %v4081
    %v4156 = vpack.c.b16 %v4084, %v4083
    %v4157 = vpack.c.b16 %v4086, %v4085
    %v4158 = vpack.c.b16 %v4088, %v4087
    %v4159 = vpack.c.b16 %v4090, %v4089
    %v4160 = vpack.c.b16 %v4092, %v4091
    %v4161 = vpack.c.b16 %v4094, %v4093
    %v4162 = vpack.c.b16 %v4096, %v4095
    %v4163 = vpack.c.b16 %v4098, %v4097
    %v4164 = vpack.c.b16 %v4100, %v4099
    %4229 = vmatprep.subr.bf16.mxu0 0
    %4230 = vmatpush1.bf16.msra.mxu0 %v4108
    %4231 = vmatprep.subr.bf16.mxu0 0
    %4232 = vmatpush1.bf16.msra.mxu0 %v4107
    %4233 = vmatprep.subr.bf16.mxu0 0
    %4234 = vmatpush1.bf16.msra.mxu0 %v4106
    %4235 = vmatprep.subr.bf16.mxu0 0
    %4236 = vmatpush1.bf16.msra.mxu0 %v4105
    %4237 = vmatprep.subr.bf16.mxu0 0
    %4238 = vmatpush1.bf16.msra.mxu0 %v4104
    %4239 = vmatprep.subr.bf16.mxu0 0
    %4240 = vmatpush1.bf16.msra.mxu0 %v4103
    %4241 = vmatprep.subr.bf16.mxu0 0
    %4242 = vmatpush1.bf16.msra.mxu0 %v4102
    %4243 = vmatprep.subr.bf16.mxu0 0
    %4244 = vmatpush1.bf16.msra.mxu0 %v4101
    %4245 = vmatprep.subr.bf16.mxu0 0
    %4246 = vmatpush2.bf16.msra.mxu0 %v4116
    %4247 = vmatprep.subr.bf16.mxu0 0
    %4248 = vmatpush2.bf16.msra.mxu0 %v4115
    %4249 = vmatprep.subr.bf16.mxu0 0
    %4250 = vmatpush2.bf16.msra.mxu0 %v4114
    %4251 = vmatprep.subr.bf16.mxu0 0
    %4252 = vmatpush2.bf16.msra.mxu0 %v4113
    %4253 = vmatprep.subr.bf16.mxu0 0
    %4254 = vmatpush2.bf16.msra.mxu0 %v4112
    %4255 = vmatprep.subr.bf16.mxu0 0
    %4256 = vmatpush2.bf16.msra.mxu0 %v4111
    %4257 = vmatprep.subr.bf16.mxu0 0
    %4258 = vmatpush2.bf16.msra.mxu0 %v4110
    %4259 = vmatprep.subr.bf16.mxu0 0
    %4260 = vmatpush2.bf16.msra.mxu0 %v4109
    %4261 = vmatprep.mubr.bf16.mxu0 %v2997
    %4262 = vmatmul.mubr.bf16.gmra.mxu0 %v2996
    %v4263 = vpop.f32.mrf.mxu0
    %v4264 = vadd.f32 %v3840, %v4263
    %v4265 = vpop.f32.mrf.mxu0
    %v4266 = vpop.f32.mrf.mxu0
    %v4267 = vpop.f32.mrf.mxu0
    %4268 = vdwg.mxu0
    %4269 = vmatprep.subr.bf16.mxu0 0
    %4270 = vmatpush1.bf16.msra.mxu0 %v4124
    %4271 = vmatprep.subr.bf16.mxu0 0
    %4272 = vmatpush1.bf16.msra.mxu0 %v4123
    %4273 = vmatprep.subr.bf16.mxu0 0
    %4274 = vmatpush1.bf16.msra.mxu0 %v4122
    %4275 = vmatprep.subr.bf16.mxu0 0
    %4276 = vmatpush1.bf16.msra.mxu0 %v4121
    %4277 = vmatprep.subr.bf16.mxu0 0
    %4278 = vmatpush1.bf16.msra.mxu0 %v4120
    %4279 = vmatprep.subr.bf16.mxu0 0
    %4280 = vmatpush1.bf16.msra.mxu0 %v4119
    %4281 = vmatprep.subr.bf16.mxu0 0
    %4282 = vmatpush1.bf16.msra.mxu0 %v4118
    %4283 = vmatprep.subr.bf16.mxu0 0
    %4284 = vmatpush1.bf16.msra.mxu0 %v4117
    %4285 = vmatprep.subr.bf16.mxu0 0
    %4286 = vmatpush2.bf16.msra.mxu0 %v4132
    %4287 = vmatprep.subr.bf16.mxu0 0
    %4288 = vmatpush2.bf16.msra.mxu0 %v4131
    %4289 = vmatprep.subr.bf16.mxu0 0
    %4290 = vmatpush2.bf16.msra.mxu0 %v4130
    %4291 = vmatprep.subr.bf16.mxu0 0
    %4292 = vmatpush2.bf16.msra.mxu0 %v4129
    %4293 = vmatprep.subr.bf16.mxu0 0
    %4294 = vmatpush2.bf16.msra.mxu0 %v4128
    %4295 = vmatprep.subr.bf16.mxu0 0
    %4296 = vmatpush2.bf16.msra.mxu0 %v4127
    %4297 = vmatprep.subr.bf16.mxu0 0
    %4298 = vmatpush2.bf16.msra.mxu0 %v4126
    %4299 = vmatprep.subr.bf16.mxu0 0
    %4300 = vmatpush2.bf16.msra.mxu0 %v4125
    %4301 = vmatprep.mubr.bf16.mxu0 %v2999
    %4302 = vmatmul.mubr.bf16.gmra.mxu0 %v2998
    %v4303 = vpop.f32.mrf.mxu0
    %v4304 = vadd.f32 %v4264, %v4303
    %v4305 = vpop.f32.mrf.mxu0
    %v4306 = vpop.f32.mrf.mxu0
    %v4307 = vpop.f32.mrf.mxu0
    %4308 = vdwg.mxu0
    %4309 = vmatprep.subr.bf16.mxu0 0
    %4310 = vmatpush1.bf16.msra.mxu0 %v4140
    %4311 = vmatprep.subr.bf16.mxu0 0
    %4312 = vmatpush1.bf16.msra.mxu0 %v4139
    %4313 = vmatprep.subr.bf16.mxu0 0
    %4314 = vmatpush1.bf16.msra.mxu0 %v4138
    %4315 = vmatprep.subr.bf16.mxu0 0
    %4316 = vmatpush1.bf16.msra.mxu0 %v4137
    %4317 = vmatprep.subr.bf16.mxu0 0
    %4318 = vmatpush1.bf16.msra.mxu0 %v4136
    %4319 = vmatprep.subr.bf16.mxu0 0
    %4320 = vmatpush1.bf16.msra.mxu0 %v4135
    %4321 = vmatprep.subr.bf16.mxu0 0
    %4322 = vmatpush1.bf16.msra.mxu0 %v4134
    %4323 = vmatprep.subr.bf16.mxu0 0
    %4324 = vmatpush1.bf16.msra.mxu0 %v4133
    %4325 = vmatprep.subr.bf16.mxu0 0
    %4326 = vmatpush2.bf16.msra.mxu0 %v4148
    %4327 = vmatprep.subr.bf16.mxu0 0
    %4328 = vmatpush2.bf16.msra.mxu0 %v4147
    %4329 = vmatprep.subr.bf16.mxu0 0
    %4330 = vmatpush2.bf16.msra.mxu0 %v4146
    %4331 = vmatprep.subr.bf16.mxu0 0
    %4332 = vmatpush2.bf16.msra.mxu0 %v4145
    %4333 = vmatprep.subr.bf16.mxu0 0
    %4334 = vmatpush2.bf16.msra.mxu0 %v4144
    %4335 = vmatprep.subr.bf16.mxu0 0
    %4336 = vmatpush2.bf16.msra.mxu0 %v4143
    %4337 = vmatprep.subr.bf16.mxu0 0
    %4338 = vmatpush2.bf16.msra.mxu0 %v4142
    %4339 = vmatprep.subr.bf16.mxu0 0
    %4340 = vmatpush2.bf16.msra.mxu0 %v4141
    %4341 = vmatprep.mubr.bf16.mxu0 %v3001
    %4342 = vmatmul.mubr.bf16.gmra.mxu0 %v3000
    %v4343 = vpop.f32.mrf.mxu0
    %v4344 = vadd.f32 %v4304, %v4343
    %v4345 = vpop.f32.mrf.mxu0
    %v4346 = vpop.f32.mrf.mxu0
    %v4347 = vpop.f32.mrf.mxu0
    %4348 = vdwg.mxu0
    %4349 = vmatprep.subr.bf16.mxu0 0
    %4350 = vmatpush1.bf16.msra.mxu0 %v4156
    %4351 = vmatprep.subr.bf16.mxu0 0
    %4352 = vmatpush1.bf16.msra.mxu0 %v4155
    %4353 = vmatprep.subr.bf16.mxu0 0
    %4354 = vmatpush1.bf16.msra.mxu0 %v4154
    %4355 = vmatprep.subr.bf16.mxu0 0
    %4356 = vmatpush1.bf16.msra.mxu0 %v4153
    %4357 = vmatprep.subr.bf16.mxu0 0
    %4358 = vmatpush1.bf16.msra.mxu0 %v4152
    %4359 = vmatprep.subr.bf16.mxu0 0
    %4360 = vmatpush1.bf16.msra.mxu0 %v4151
    %4361 = vmatprep.subr.bf16.mxu0 0
    %4362 = vmatpush1.bf16.msra.mxu0 %v4150
    %4363 = vmatprep.subr.bf16.mxu0 0
    %4364 = vmatpush1.bf16.msra.mxu0 %v4149
    %4365 = vmatprep.subr.bf16.mxu0 0
    %4366 = vmatpush2.bf16.msra.mxu0 %v4164
    %4367 = vmatprep.subr.bf16.mxu0 0
    %4368 = vmatpush2.bf16.msra.mxu0 %v4163
    %4369 = vmatprep.subr.bf16.mxu0 0
    %4370 = vmatpush2.bf16.msra.mxu0 %v4162
    %4371 = vmatprep.subr.bf16.mxu0 0
    %4372 = vmatpush2.bf16.msra.mxu0 %v4161
    %4373 = vmatprep.subr.bf16.mxu0 0
    %4374 = vmatpush2.bf16.msra.mxu0 %v4160
    %4375 = vmatprep.subr.bf16.mxu0 0
    %4376 = vmatpush2.bf16.msra.mxu0 %v4159
    %4377 = vmatprep.subr.bf16.mxu0 0
    %4378 = vmatpush2.bf16.msra.mxu0 %v4158
    %4379 = vmatprep.subr.bf16.mxu0 0
    %4380 = vmatpush2.bf16.msra.mxu0 %v4157
    %4381 = vmatprep.mubr.bf16.mxu0 %v3003
    %4382 = vmatmul.mubr.bf16.gmra.mxu0 %v3002
    %v4383 = vpop.f32.mrf.mxu0
    %v4384 = vadd.f32 %v4344, %v4383
    %v4385 = vpop.f32.mrf.mxu0
    %v4386 = vpop.f32.mrf.mxu0
    %v4387 = vpop.f32.mrf.mxu0
    %4388 = vdwg.mxu0
    %v4397 = vrot.slane %v2945, 1
    %v4398 = vrot.slane %v2946, 1
    %v4399 = vrot.slane %v2947, 1
    %v4400 = vrot.slane %v2948, 1
    %v4401 = vrot.slane %v2949, 1
    %v4402 = vrot.slane %v2950, 1
    %v4403 = vrot.slane %v2951, 1
    %v4404 = vrot.slane %v2952, 1
    %v4413 = vrot.slane %v2962, 1
    %v4414 = vrot.slane %v2965, 1
    %v4415 = vrot.slane %v2968, 1
    %v4416 = vrot.slane %v2971, 1
    %v4417 = vrot.slane %v2974, 1
    %v4418 = vrot.slane %v2977, 1
    %v4419 = vrot.slane %v2980, 1
    %v4420 = vrot.slane %v2983, 1
    %v4429 = vsel %vm2995, %v4397, %v4413
    %v4430 = vsel %vm2995, %v4398, %v4414
    %v4431 = vsel %vm2995, %v4399, %v4415
    %v4432 = vsel %vm2995, %v4400, %v4416
    %v4433 = vsel %vm2995, %v4401, %v4417
    %v4434 = vsel %vm2995, %v4402, %v4418
    %v4435 = vsel %vm2995, %v4403, %v4419
    %v4436 = vsel %vm2995, %v4404, %v4420
    %s4437 = scalar_lea.vmem %s3, 1024
    %v4438 = vld [vmem:[%s4437] sm:$0xf]
    %v4439 = vld [vmem:[%s4437 + $0x4] sm:$0xf]
    %v4440 = vld [vmem:[%s4437 + $0x8] sm:$0xf]
    %v4441 = vld [vmem:[%s4437 + $0xc] sm:$0xf]
    %v4442 = vld [vmem:[%s4437 + $0x10] sm:$0xf]
    %v4443 = vld [vmem:[%s4437 + $0x14] sm:$0xf]
    %v4444 = vld [vmem:[%s4437 + $0x18] sm:$0xf]
    %v4445 = vld [vmem:[%s4437 + $0x1c] sm:$0xf]
    %v4446 = vld [vmem:[%s4437 + $0x20] sm:$0xf]
    %v4447 = vld [vmem:[%s4437 + $0x24] sm:$0xf]
    %v4448 = vld [vmem:[%s4437 + $0x28] sm:$0xf]
    %v4449 = vld [vmem:[%s4437 + $0x2c] sm:$0xf]
    %v4450 = vld [vmem:[%s4437 + $0x30] sm:$0xf]
    %v4451 = vld [vmem:[%s4437 + $0x34] sm:$0xf]
    %v4452 = vld [vmem:[%s4437 + $0x38] sm:$0xf]
    %v4453 = vld [vmem:[%s4437 + $0x3c] sm:$0xf]
    %v4454 = vld [vmem:[%s4437 + $0x40] sm:$0xf]
    %v4455 = vld [vmem:[%s4437 + $0x44] sm:$0xf]
    %v4456 = vld [vmem:[%s4437 + $0x48] sm:$0xf]
    %v4457 = vld [vmem:[%s4437 + $0x4c] sm:$0xf]
    %v4458 = vld [vmem:[%s4437 + $0x50] sm:$0xf]
    %v4459 = vld [vmem:[%s4437 + $0x54] sm:$0xf]
    %v4460 = vld [vmem:[%s4437 + $0x58] sm:$0xf]
    %v4461 = vld [vmem:[%s4437 + $0x5c] sm:$0xf]
    %v4462 = vld [vmem:[%s4437 + $0x60] sm:$0xf]
    %v4463 = vld [vmem:[%s4437 + $0x64] sm:$0xf]
    %v4464 = vld [vmem:[%s4437 + $0x68] sm:$0xf]
    %v4465 = vld [vmem:[%s4437 + $0x6c] sm:$0xf]
    %v4466 = vld [vmem:[%s4437 + $0x70] sm:$0xf]
    %v4467 = vld [vmem:[%s4437 + $0x74] sm:$0xf]
    %v4468 = vld [vmem:[%s4437 + $0x78] sm:$0xf]
    %v4469 = vld [vmem:[%s4437 + $0x7c] sm:$0xf]
    %v4470 = vld [vmem:[%s4437 + $0x80] sm:$0xf]
    %v4471 = vld [vmem:[%s4437 + $0x84] sm:$0xf]
    %v4472 = vld [vmem:[%s4437 + $0x88] sm:$0xf]
    %v4473 = vld [vmem:[%s4437 + $0x8c] sm:$0xf]
    %v4474 = vld [vmem:[%s4437 + $0x90] sm:$0xf]
    %v4475 = vld [vmem:[%s4437 + $0x94] sm:$0xf]
    %v4476 = vld [vmem:[%s4437 + $0x98] sm:$0xf]
    %v4477 = vld [vmem:[%s4437 + $0x9c] sm:$0xf]
    %v4478 = vld [vmem:[%s4437 + $0xa0] sm:$0xf]
    %v4479 = vld [vmem:[%s4437 + $0xa4] sm:$0xf]
    %v4480 = vld [vmem:[%s4437 + $0xa8] sm:$0xf]
    %v4481 = vld [vmem:[%s4437 + $0xac] sm:$0xf]
    %v4482 = vld [vmem:[%s4437 + $0xb0] sm:$0xf]
    %v4483 = vld [vmem:[%s4437 + $0xb4] sm:$0xf]
    %v4484 = vld [vmem:[%s4437 + $0xb8] sm:$0xf]
    %v4485 = vld [vmem:[%s4437 + $0xbc] sm:$0xf]
    %v4486 = vld [vmem:[%s4437 + $0xc0] sm:$0xf]
    %v4487 = vld [vmem:[%s4437 + $0xc4] sm:$0xf]
    %v4488 = vld [vmem:[%s4437 + $0xc8] sm:$0xf]
    %v4489 = vld [vmem:[%s4437 + $0xcc] sm:$0xf]
    %v4490 = vld [vmem:[%s4437 + $0xd0] sm:$0xf]
    %v4491 = vld [vmem:[%s4437 + $0xd4] sm:$0xf]
    %v4492 = vld [vmem:[%s4437 + $0xd8] sm:$0xf]
    %v4493 = vld [vmem:[%s4437 + $0xdc] sm:$0xf]
    %v4494 = vld [vmem:[%s4437 + $0xe0] sm:$0xf]
    %v4495 = vld [vmem:[%s4437 + $0xe4] sm:$0xf]
    %v4496 = vld [vmem:[%s4437 + $0xe8] sm:$0xf]
    %v4497 = vld [vmem:[%s4437 + $0xec] sm:$0xf]
    %v4498 = vld [vmem:[%s4437 + $0xf0] sm:$0xf]
    %v4499 = vld [vmem:[%s4437 + $0xf4] sm:$0xf]
    %v4500 = vld [vmem:[%s4437 + $0xf8] sm:$0xf]
    %v4501 = vld [vmem:[%s4437 + $0xfc] sm:$0xf]
    %v4502 = vld [vmem:[%s4437 + $0x100] sm:$0xf]
    %v4503 = vld [vmem:[%s4437 + $0x104] sm:$0xf]
    %v4504 = vld [vmem:[%s4437 + $0x108] sm:$0xf]
    %v4505 = vld [vmem:[%s4437 + $0x10c] sm:$0xf]
    %v4506 = vld [vmem:[%s4437 + $0x110] sm:$0xf]
    %v4507 = vld [vmem:[%s4437 + $0x114] sm:$0xf]
    %v4508 = vld [vmem:[%s4437 + $0x118] sm:$0xf]
    %v4509 = vld [vmem:[%s4437 + $0x11c] sm:$0xf]
    %v4510 = vld [vmem:[%s4437 + $0x120] sm:$0xf]
    %v4511 = vld [vmem:[%s4437 + $0x124] sm:$0xf]
    %v4512 = vld [vmem:[%s4437 + $0x128] sm:$0xf]
    %v4513 = vld [vmem:[%s4437 + $0x12c] sm:$0xf]
    %v4514 = vld [vmem:[%s4437 + $0x130] sm:$0xf]
    %v4515 = vld [vmem:[%s4437 + $0x134] sm:$0xf]
    %v4516 = vld [vmem:[%s4437 + $0x138] sm:$0xf]
    %v4517 = vld [vmem:[%s4437 + $0x13c] sm:$0xf]
    %v4518 = vld [vmem:[%s4437 + $0x140] sm:$0xf]
    %v4519 = vld [vmem:[%s4437 + $0x144] sm:$0xf]
    %v4520 = vld [vmem:[%s4437 + $0x148] sm:$0xf]
    %v4521 = vld [vmem:[%s4437 + $0x14c] sm:$0xf]
    %v4522 = vld [vmem:[%s4437 + $0x150] sm:$0xf]
    %v4523 = vld [vmem:[%s4437 + $0x154] sm:$0xf]
    %v4524 = vld [vmem:[%s4437 + $0x158] sm:$0xf]
    %v4525 = vld [vmem:[%s4437 + $0x15c] sm:$0xf]
    %v4526 = vld [vmem:[%s4437 + $0x160] sm:$0xf]
    %v4527 = vld [vmem:[%s4437 + $0x164] sm:$0xf]
    %v4528 = vld [vmem:[%s4437 + $0x168] sm:$0xf]
    %v4529 = vld [vmem:[%s4437 + $0x16c] sm:$0xf]
    %v4530 = vld [vmem:[%s4437 + $0x170] sm:$0xf]
    %v4531 = vld [vmem:[%s4437 + $0x174] sm:$0xf]
    %v4532 = vld [vmem:[%s4437 + $0x178] sm:$0xf]
    %v4533 = vld [vmem:[%s4437 + $0x17c] sm:$0xf]
    %v4534 = vld [vmem:[%s4437 + $0x180] sm:$0xf]
    %v4535 = vld [vmem:[%s4437 + $0x184] sm:$0xf]
    %v4536 = vld [vmem:[%s4437 + $0x188] sm:$0xf]
    %v4537 = vld [vmem:[%s4437 + $0x18c] sm:$0xf]
    %v4538 = vld [vmem:[%s4437 + $0x190] sm:$0xf]
    %v4539 = vld [vmem:[%s4437 + $0x194] sm:$0xf]
    %v4540 = vld [vmem:[%s4437 + $0x198] sm:$0xf]
    %v4541 = vld [vmem:[%s4437 + $0x19c] sm:$0xf]
    %v4542 = vld [vmem:[%s4437 + $0x1a0] sm:$0xf]
    %v4543 = vld [vmem:[%s4437 + $0x1a4] sm:$0xf]
    %v4544 = vld [vmem:[%s4437 + $0x1a8] sm:$0xf]
    %v4545 = vld [vmem:[%s4437 + $0x1ac] sm:$0xf]
    %v4546 = vld [vmem:[%s4437 + $0x1b0] sm:$0xf]
    %v4547 = vld [vmem:[%s4437 + $0x1b4] sm:$0xf]
    %v4548 = vld [vmem:[%s4437 + $0x1b8] sm:$0xf]
    %v4549 = vld [vmem:[%s4437 + $0x1bc] sm:$0xf]
    %v4550 = vld [vmem:[%s4437 + $0x1c0] sm:$0xf]
    %v4551 = vld [vmem:[%s4437 + $0x1c4] sm:$0xf]
    %v4552 = vld [vmem:[%s4437 + $0x1c8] sm:$0xf]
    %v4553 = vld [vmem:[%s4437 + $0x1cc] sm:$0xf]
    %v4554 = vld [vmem:[%s4437 + $0x1d0] sm:$0xf]
    %v4555 = vld [vmem:[%s4437 + $0x1d4] sm:$0xf]
    %v4556 = vld [vmem:[%s4437 + $0x1d8] sm:$0xf]
    %v4557 = vld [vmem:[%s4437 + $0x1dc] sm:$0xf]
    %v4558 = vld [vmem:[%s4437 + $0x1e0] sm:$0xf]
    %v4559 = vld [vmem:[%s4437 + $0x1e4] sm:$0xf]
    %v4560 = vld [vmem:[%s4437 + $0x1e8] sm:$0xf]
    %v4561 = vld [vmem:[%s4437 + $0x1ec] sm:$0xf]
    %v4562 = vld [vmem:[%s4437 + $0x1f0] sm:$0xf]
    %v4563 = vld [vmem:[%s4437 + $0x1f4] sm:$0xf]
    %v4564 = vld [vmem:[%s4437 + $0x1f8] sm:$0xf]
    %v4565 = vld [vmem:[%s4437 + $0x1fc] sm:$0xf]
    %v4694 = vunpack.c.l.b16 %v4438
    %v4695 = vunpack.c.l.b16 %v4439
    %v4696 = vunpack.c.l.b16 %v4440
    %v4697 = vunpack.c.l.b16 %v4441
    %v4698 = vunpack.c.l.b16 %v4442
    %v4699 = vunpack.c.l.b16 %v4443
    %v4700 = vunpack.c.l.b16 %v4444
    %v4701 = vunpack.c.l.b16 %v4445
    %v4702 = vunpack.c.l.b16 %v4446
    %v4703 = vunpack.c.l.b16 %v4447
    %v4704 = vunpack.c.l.b16 %v4448
    %v4705 = vunpack.c.l.b16 %v4449
    %v4706 = vunpack.c.l.b16 %v4450
    %v4707 = vunpack.c.l.b16 %v4451
    %v4708 = vunpack.c.l.b16 %v4452
    %v4709 = vunpack.c.l.b16 %v4453
    %v4710 = vunpack.c.l.b16 %v4454
    %v4711 = vunpack.c.l.b16 %v4455
    %v4712 = vunpack.c.l.b16 %v4456
    %v4713 = vunpack.c.l.b16 %v4457
    %v4714 = vunpack.c.l.b16 %v4458
    %v4715 = vunpack.c.l.b16 %v4459
    %v4716 = vunpack.c.l.b16 %v4460
    %v4717 = vunpack.c.l.b16 %v4461
    %v4718 = vunpack.c.l.b16 %v4462
    %v4719 = vunpack.c.l.b16 %v4463
    %v4720 = vunpack.c.l.b16 %v4464
    %v4721 = vunpack.c.l.b16 %v4465
    %v4722 = vunpack.c.l.b16 %v4466
    %v4723 = vunpack.c.l.b16 %v4467
    %v4724 = vunpack.c.l.b16 %v4468
    %v4725 = vunpack.c.l.b16 %v4469
    %v4726 = vunpack.c.l.b16 %v4470
    %v4727 = vunpack.c.l.b16 %v4471
    %v4728 = vunpack.c.l.b16 %v4472
    %v4729 = vunpack.c.l.b16 %v4473
    %v4730 = vunpack.c.l.b16 %v4474
    %v4731 = vunpack.c.l.b16 %v4475
    %v4732 = vunpack.c.l.b16 %v4476
    %v4733 = vunpack.c.l.b16 %v4477
    %v4734 = vunpack.c.l.b16 %v4478
    %v4735 = vunpack.c.l.b16 %v4479
    %v4736 = vunpack.c.l.b16 %v4480
    %v4737 = vunpack.c.l.b16 %v4481
    %v4738 = vunpack.c.l.b16 %v4482
    %v4739 = vunpack.c.l.b16 %v4483
    %v4740 = vunpack.c.l.b16 %v4484
    %v4741 = vunpack.c.l.b16 %v4485
    %v4742 = vunpack.c.l.b16 %v4486
    %v4743 = vunpack.c.l.b16 %v4487
    %v4744 = vunpack.c.l.b16 %v4488
    %v4745 = vunpack.c.l.b16 %v4489
    %v4746 = vunpack.c.l.b16 %v4490
    %v4747 = vunpack.c.l.b16 %v4491
    %v4748 = vunpack.c.l.b16 %v4492
    %v4749 = vunpack.c.l.b16 %v4493
    %v4750 = vunpack.c.l.b16 %v4494
    %v4751 = vunpack.c.l.b16 %v4495
    %v4752 = vunpack.c.l.b16 %v4496
    %v4753 = vunpack.c.l.b16 %v4497
    %v4754 = vunpack.c.l.b16 %v4498
    %v4755 = vunpack.c.l.b16 %v4499
    %v4756 = vunpack.c.l.b16 %v4500
    %v4757 = vunpack.c.l.b16 %v4501
    %v4758 = vunpack.c.l.b16 %v4502
    %v4759 = vunpack.c.l.b16 %v4503
    %v4760 = vunpack.c.l.b16 %v4504
    %v4761 = vunpack.c.l.b16 %v4505
    %v4762 = vunpack.c.l.b16 %v4506
    %v4763 = vunpack.c.l.b16 %v4507
    %v4764 = vunpack.c.l.b16 %v4508
    %v4765 = vunpack.c.l.b16 %v4509
    %v4766 = vunpack.c.l.b16 %v4510
    %v4767 = vunpack.c.l.b16 %v4511
    %v4768 = vunpack.c.l.b16 %v4512
    %v4769 = vunpack.c.l.b16 %v4513
    %v4770 = vunpack.c.l.b16 %v4514
    %v4771 = vunpack.c.l.b16 %v4515
    %v4772 = vunpack.c.l.b16 %v4516
    %v4773 = vunpack.c.l.b16 %v4517
    %v4774 = vunpack.c.l.b16 %v4518
    %v4775 = vunpack.c.l.b16 %v4519
    %v4776 = vunpack.c.l.b16 %v4520
    %v4777 = vunpack.c.l.b16 %v4521
    %v4778 = vunpack.c.l.b16 %v4522
    %v4779 = vunpack.c.l.b16 %v4523
    %v4780 = vunpack.c.l.b16 %v4524
    %v4781 = vunpack.c.l.b16 %v4525
    %v4782 = vunpack.c.l.b16 %v4526
    %v4783 = vunpack.c.l.b16 %v4527
    %v4784 = vunpack.c.l.b16 %v4528
    %v4785 = vunpack.c.l.b16 %v4529
    %v4786 = vunpack.c.l.b16 %v4530
    %v4787 = vunpack.c.l.b16 %v4531
    %v4788 = vunpack.c.l.b16 %v4532
    %v4789 = vunpack.c.l.b16 %v4533
    %v4790 = vunpack.c.l.b16 %v4534
    %v4791 = vunpack.c.l.b16 %v4535
    %v4792 = vunpack.c.l.b16 %v4536
    %v4793 = vunpack.c.l.b16 %v4537
    %v4794 = vunpack.c.l.b16 %v4538
    %v4795 = vunpack.c.l.b16 %v4539
    %v4796 = vunpack.c.l.b16 %v4540
    %v4797 = vunpack.c.l.b16 %v4541
    %v4798 = vunpack.c.l.b16 %v4542
    %v4799 = vunpack.c.l.b16 %v4543
    %v4800 = vunpack.c.l.b16 %v4544
    %v4801 = vunpack.c.l.b16 %v4545
    %v4802 = vunpack.c.l.b16 %v4546
    %v4803 = vunpack.c.l.b16 %v4547
    %v4804 = vunpack.c.l.b16 %v4548
    %v4805 = vunpack.c.l.b16 %v4549
    %v4806 = vunpack.c.l.b16 %v4550
    %v4807 = vunpack.c.l.b16 %v4551
    %v4808 = vunpack.c.l.b16 %v4552
    %v4809 = vunpack.c.l.b16 %v4553
    %v4810 = vunpack.c.l.b16 %v4554
    %v4811 = vunpack.c.l.b16 %v4555
    %v4812 = vunpack.c.l.b16 %v4556
    %v4813 = vunpack.c.l.b16 %v4557
    %v4814 = vunpack.c.l.b16 %v4558
    %v4815 = vunpack.c.l.b16 %v4559
    %v4816 = vunpack.c.l.b16 %v4560
    %v4817 = vunpack.c.l.b16 %v4561
    %v4818 = vunpack.c.l.b16 %v4562
    %v4819 = vunpack.c.l.b16 %v4563
    %v4820 = vunpack.c.l.b16 %v4564
    %v4821 = vunpack.c.l.b16 %v4565
    %v4822 = vpack.c.b16 %v4695, %v4694
    %v4823 = vpack.c.b16 %v4697, %v4696
    %v4824 = vpack.c.b16 %v4699, %v4698
    %v4825 = vpack.c.b16 %v4701, %v4700
    %v4826 = vpack.c.b16 %v4703, %v4702
    %v4827 = vpack.c.b16 %v4705, %v4704
    %v4828 = vpack.c.b16 %v4707, %v4706
    %v4829 = vpack.c.b16 %v4709, %v4708
    %v4830 = vpack.c.b16 %v4711, %v4710
    %v4831 = vpack.c.b16 %v4713, %v4712
    %v4832 = vpack.c.b16 %v4715, %v4714
    %v4833 = vpack.c.b16 %v4717, %v4716
    %v4834 = vpack.c.b16 %v4719, %v4718
    %v4835 = vpack.c.b16 %v4721, %v4720
    %v4836 = vpack.c.b16 %v4723, %v4722
    %v4837 = vpack.c.b16 %v4725, %v4724
    %v4838 = vpack.c.b16 %v4727, %v4726
    %v4839 = vpack.c.b16 %v4729, %v4728
    %v4840 = vpack.c.b16 %v4731, %v4730
    %v4841 = vpack.c.b16 %v4733, %v4732
    %v4842 = vpack.c.b16 %v4735, %v4734
    %v4843 = vpack.c.b16 %v4737, %v4736
    %v4844 = vpack.c.b16 %v4739, %v4738
    %v4845 = vpack.c.b16 %v4741, %v4740
    %v4846 = vpack.c.b16 %v4743, %v4742
    %v4847 = vpack.c.b16 %v4745, %v4744
    %v4848 = vpack.c.b16 %v4747, %v4746
    %v4849 = vpack.c.b16 %v4749, %v4748
    %v4850 = vpack.c.b16 %v4751, %v4750
    %v4851 = vpack.c.b16 %v4753, %v4752
    %v4852 = vpack.c.b16 %v4755, %v4754
    %v4853 = vpack.c.b16 %v4757, %v4756
    %v4854 = vpack.c.b16 %v4759, %v4758
    %v4855 = vpack.c.b16 %v4761, %v4760
    %v4856 = vpack.c.b16 %v4763, %v4762
    %v4857 = vpack.c.b16 %v4765, %v4764
    %v4858 = vpack.c.b16 %v4767, %v4766
    %v4859 = vpack.c.b16 %v4769, %v4768
    %v4860 = vpack.c.b16 %v4771, %v4770
    %v4861 = vpack.c.b16 %v4773, %v4772
    %v4862 = vpack.c.b16 %v4775, %v4774
    %v4863 = vpack.c.b16 %v4777, %v4776
    %v4864 = vpack.c.b16 %v4779, %v4778
    %v4865 = vpack.c.b16 %v4781, %v4780
    %v4866 = vpack.c.b16 %v4783, %v4782
    %v4867 = vpack.c.b16 %v4785, %v4784
    %v4868 = vpack.c.b16 %v4787, %v4786
    %v4869 = vpack.c.b16 %v4789, %v4788
    %v4870 = vpack.c.b16 %v4791, %v4790
    %v4871 = vpack.c.b16 %v4793, %v4792
    %v4872 = vpack.c.b16 %v4795, %v4794
    %v4873 = vpack.c.b16 %v4797, %v4796
    %v4874 = vpack.c.b16 %v4799, %v4798
    %v4875 = vpack.c.b16 %v4801, %v4800
    %v4876 = vpack.c.b16 %v4803, %v4802
    %v4877 = vpack.c.b16 %v4805, %v4804
    %v4878 = vpack.c.b16 %v4807, %v4806
    %v4879 = vpack.c.b16 %v4809, %v4808
    %v4880 = vpack.c.b16 %v4811, %v4810
    %v4881 = vpack.c.b16 %v4813, %v4812
    %v4882 = vpack.c.b16 %v4815, %v4814
    %v4883 = vpack.c.b16 %v4817, %v4816
    %v4884 = vpack.c.b16 %v4819, %v4818
    %v4885 = vpack.c.b16 %v4821, %v4820
    %4950 = vmatprep.subr.bf16.mxu0 0
    %4951 = vmatpush1.bf16.msra.mxu0 %v4829
    %4952 = vmatprep.subr.bf16.mxu0 0
    %4953 = vmatpush1.bf16.msra.mxu0 %v4828
    %4954 = vmatprep.subr.bf16.mxu0 0
    %4955 = vmatpush1.bf16.msra.mxu0 %v4827
    %4956 = vmatprep.subr.bf16.mxu0 0
    %4957 = vmatpush1.bf16.msra.mxu0 %v4826
    %4958 = vmatprep.subr.bf16.mxu0 0
    %4959 = vmatpush1.bf16.msra.mxu0 %v4825
    %4960 = vmatprep.subr.bf16.mxu0 0
    %4961 = vmatpush1.bf16.msra.mxu0 %v4824
    %4962 = vmatprep.subr.bf16.mxu0 0
    %4963 = vmatpush1.bf16.msra.mxu0 %v4823
    %4964 = vmatprep.subr.bf16.mxu0 0
    %4965 = vmatpush1.bf16.msra.mxu0 %v4822
    %4966 = vmatprep.subr.bf16.mxu0 0
    %4967 = vmatpush2.bf16.msra.mxu0 %v4837
    %4968 = vmatprep.subr.bf16.mxu0 0
    %4969 = vmatpush2.bf16.msra.mxu0 %v4836
    %4970 = vmatprep.subr.bf16.mxu0 0
    %4971 = vmatpush2.bf16.msra.mxu0 %v4835
    %4972 = vmatprep.subr.bf16.mxu0 0
    %4973 = vmatpush2.bf16.msra.mxu0 %v4834
    %4974 = vmatprep.subr.bf16.mxu0 0
    %4975 = vmatpush2.bf16.msra.mxu0 %v4833
    %4976 = vmatprep.subr.bf16.mxu0 0
    %4977 = vmatpush2.bf16.msra.mxu0 %v4832
    %4978 = vmatprep.subr.bf16.mxu0 0
    %4979 = vmatpush2.bf16.msra.mxu0 %v4831
    %4980 = vmatprep.subr.bf16.mxu0 0
    %4981 = vmatpush2.bf16.msra.mxu0 %v4830
    %4982 = vmatprep.mubr.bf16.mxu0 %v4430
    %4983 = vmatmul.mubr.bf16.gmra.mxu0 %v4429
    %v4984 = vpop.f32.mrf.mxu0
    %v4985 = vadd.f32 0.0, %v4984
    %v4986 = vpop.f32.mrf.mxu0
    %v4987 = vpop.f32.mrf.mxu0
    %v4988 = vpop.f32.mrf.mxu0
    %4989 = vdwg.mxu0
    %4990 = vmatprep.subr.bf16.mxu0 0
    %4991 = vmatpush1.bf16.msra.mxu0 %v4845
    %4992 = vmatprep.subr.bf16.mxu0 0
    %4993 = vmatpush1.bf16.msra.mxu0 %v4844
    %4994 = vmatprep.subr.bf16.mxu0 0
    %4995 = vmatpush1.bf16.msra.mxu0 %v4843
    %4996 = vmatprep.subr.bf16.mxu0 0
    %4997 = vmatpush1.bf16.msra.mxu0 %v4842
    %4998 = vmatprep.subr.bf16.mxu0 0
    %4999 = vmatpush1.bf16.msra.mxu0 %v4841
    %5000 = vmatprep.subr.bf16.mxu0 0
    %5001 = vmatpush1.bf16.msra.mxu0 %v4840
    %5002 = vmatprep.subr.bf16.mxu0 0
    %5003 = vmatpush1.bf16.msra.mxu0 %v4839
    %5004 = vmatprep.subr.bf16.mxu0 0
    %5005 = vmatpush1.bf16.msra.mxu0 %v4838
    %5006 = vmatprep.subr.bf16.mxu0 0
    %5007 = vmatpush2.bf16.msra.mxu0 %v4853
    %5008 = vmatprep.subr.bf16.mxu0 0
    %5009 = vmatpush2.bf16.msra.mxu0 %v4852
    %5010 = vmatprep.subr.bf16.mxu0 0
    %5011 = vmatpush2.bf16.msra.mxu0 %v4851
    %5012 = vmatprep.subr.bf16.mxu0 0
    %5013 = vmatpush2.bf16.msra.mxu0 %v4850
    %5014 = vmatprep.subr.bf16.mxu0 0
    %5015 = vmatpush2.bf16.msra.mxu0 %v4849
    %5016 = vmatprep.subr.bf16.mxu0 0
    %5017 = vmatpush2.bf16.msra.mxu0 %v4848
    %5018 = vmatprep.subr.bf16.mxu0 0
    %5019 = vmatpush2.bf16.msra.mxu0 %v4847
    %5020 = vmatprep.subr.bf16.mxu0 0
    %5021 = vmatpush2.bf16.msra.mxu0 %v4846
    %5022 = vmatprep.mubr.bf16.mxu0 %v4432
    %5023 = vmatmul.mubr.bf16.gmra.mxu0 %v4431
    %v5024 = vpop.f32.mrf.mxu0
    %v5025 = vadd.f32 %v4985, %v5024
    %v5026 = vpop.f32.mrf.mxu0
    %v5027 = vpop.f32.mrf.mxu0
    %v5028 = vpop.f32.mrf.mxu0
    %5029 = vdwg.mxu0
    %5030 = vmatprep.subr.bf16.mxu0 0
    %5031 = vmatpush1.bf16.msra.mxu0 %v4861
    %5032 = vmatprep.subr.bf16.mxu0 0
    %5033 = vmatpush1.bf16.msra.mxu0 %v4860
    %5034 = vmatprep.subr.bf16.mxu0 0
    %5035 = vmatpush1.bf16.msra.mxu0 %v4859
    %5036 = vmatprep.subr.bf16.mxu0 0
    %5037 = vmatpush1.bf16.msra.mxu0 %v4858
    %5038 = vmatprep.subr.bf16.mxu0 0
    %5039 = vmatpush1.bf16.msra.mxu0 %v4857
    %5040 = vmatprep.subr.bf16.mxu0 0
    %5041 = vmatpush1.bf16.msra.mxu0 %v4856
    %5042 = vmatprep.subr.bf16.mxu0 0
    %5043 = vmatpush1.bf16.msra.mxu0 %v4855
    %5044 = vmatprep.subr.bf16.mxu0 0
    %5045 = vmatpush1.bf16.msra.mxu0 %v4854
    %5046 = vmatprep.subr.bf16.mxu0 0
    %5047 = vmatpush2.bf16.msra.mxu0 %v4869
    %5048 = vmatprep.subr.bf16.mxu0 0
    %5049 = vmatpush2.bf16.msra.mxu0 %v4868
    %5050 = vmatprep.subr.bf16.mxu0 0
    %5051 = vmatpush2.bf16.msra.mxu0 %v4867
    %5052 = vmatprep.subr.bf16.mxu0 0
    %5053 = vmatpush2.bf16.msra.mxu0 %v4866
    %5054 = vmatprep.subr.bf16.mxu0 0
    %5055 = vmatpush2.bf16.msra.mxu0 %v4865
    %5056 = vmatprep.subr.bf16.mxu0 0
    %5057 = vmatpush2.bf16.msra.mxu0 %v4864
    %5058 = vmatprep.subr.bf16.mxu0 0
    %5059 = vmatpush2.bf16.msra.mxu0 %v4863
    %5060 = vmatprep.subr.bf16.mxu0 0
    %5061 = vmatpush2.bf16.msra.mxu0 %v4862
    %5062 = vmatprep.mubr.bf16.mxu0 %v4434
    %5063 = vmatmul.mubr.bf16.gmra.mxu0 %v4433
    %v5064 = vpop.f32.mrf.mxu0
    %v5065 = vadd.f32 %v5025, %v5064
    %v5066 = vpop.f32.mrf.mxu0
    %v5067 = vpop.f32.mrf.mxu0
    %v5068 = vpop.f32.mrf.mxu0
    %5069 = vdwg.mxu0
    %5070 = vmatprep.subr.bf16.mxu0 0
    %5071 = vmatpush1.bf16.msra.mxu0 %v4877
    %5072 = vmatprep.subr.bf16.mxu0 0
    %5073 = vmatpush1.bf16.msra.mxu0 %v4876
    %5074 = vmatprep.subr.bf16.mxu0 0
    %5075 = vmatpush1.bf16.msra.mxu0 %v4875
    %5076 = vmatprep.subr.bf16.mxu0 0
    %5077 = vmatpush1.bf16.msra.mxu0 %v4874
    %5078 = vmatprep.subr.bf16.mxu0 0
    %5079 = vmatpush1.bf16.msra.mxu0 %v4873
    %5080 = vmatprep.subr.bf16.mxu0 0
    %5081 = vmatpush1.bf16.msra.mxu0 %v4872
    %5082 = vmatprep.subr.bf16.mxu0 0
    %5083 = vmatpush1.bf16.msra.mxu0 %v4871
    %5084 = vmatprep.subr.bf16.mxu0 0
    %5085 = vmatpush1.bf16.msra.mxu0 %v4870
    %5086 = vmatprep.subr.bf16.mxu0 0
    %5087 = vmatpush2.bf16.msra.mxu0 %v4885
    %5088 = vmatprep.subr.bf16.mxu0 0
    %5089 = vmatpush2.bf16.msra.mxu0 %v4884
    %5090 = vmatprep.subr.bf16.mxu0 0
    %5091 = vmatpush2.bf16.msra.mxu0 %v4883
    %5092 = vmatprep.subr.bf16.mxu0 0
    %5093 = vmatpush2.bf16.msra.mxu0 %v4882
    %5094 = vmatprep.subr.bf16.mxu0 0
    %5095 = vmatpush2.bf16.msra.mxu0 %v4881
    %5096 = vmatprep.subr.bf16.mxu0 0
    %5097 = vmatpush2.bf16.msra.mxu0 %v4880
    %5098 = vmatprep.subr.bf16.mxu0 0
    %5099 = vmatpush2.bf16.msra.mxu0 %v4879
    %5100 = vmatprep.subr.bf16.mxu0 0
    %5101 = vmatpush2.bf16.msra.mxu0 %v4878
    %5102 = vmatprep.mubr.bf16.mxu0 %v4436
    %5103 = vmatmul.mubr.bf16.gmra.mxu0 %v4435
    %v5104 = vpop.f32.mrf.mxu0
    %v5105 = vadd.f32 %v5065, %v5104
    %v5106 = vpop.f32.mrf.mxu0
    %v5107 = vpop.f32.mrf.mxu0
    %v5108 = vpop.f32.mrf.mxu0
    %5109 = vdwg.mxu0
    %v5110 = vadd.f32 %v4384, %v5105
    %v5111 = vrot.slane %v3133, 1
    %v5112 = vrot.slane %v3136, 1
    %v5113 = vrot.slane %v3139, 1
    %v5114 = vrot.slane %v3142, 1
    %v5115 = vrot.slane %v3145, 1
    %v5116 = vrot.slane %v3148, 1
    %v5117 = vrot.slane %v3151, 1
    %v5118 = vrot.slane %v3154, 1
    %v5135 = vrot.slane %v2953, 1
    %v5136 = vrot.slane %v2954, 1
    %v5137 = vrot.slane %v2955, 1
    %v5138 = vrot.slane %v2956, 1
    %v5139 = vrot.slane %v2957, 1
    %v5140 = vrot.slane %v2958, 1
    %v5141 = vrot.slane %v2959, 1
    %v5142 = vrot.slane %v2960, 1
    %v5151 = vsel %vm2995, %v5111, %v5135
    %v5152 = vsel %vm2995, %v5112, %v5136
    %v5153 = vsel %vm2995, %v5113, %v5137
    %v5154 = vsel %vm2995, %v5114, %v5138
    %v5155 = vsel %vm2995, %v5115, %v5139
    %v5156 = vsel %vm2995, %v5116, %v5140
    %v5157 = vsel %vm2995, %v5117, %v5141
    %v5158 = vsel %vm2995, %v5118, %v5142
    %s5159 = scalar_lea.vmem %s3, 1536
    %v5160 = vld [vmem:[%s5159] sm:$0xf]
    %v5161 = vld [vmem:[%s5159 + $0x4] sm:$0xf]
    %v5162 = vld [vmem:[%s5159 + $0x8] sm:$0xf]
    %v5163 = vld [vmem:[%s5159 + $0xc] sm:$0xf]
    %v5164 = vld [vmem:[%s5159 + $0x10] sm:$0xf]
    %v5165 = vld [vmem:[%s5159 + $0x14] sm:$0xf]
    %v5166 = vld [vmem:[%s5159 + $0x18] sm:$0xf]
    %v5167 = vld [vmem:[%s5159 + $0x1c] sm:$0xf]
    %v5168 = vld [vmem:[%s5159 + $0x20] sm:$0xf]
    %v5169 = vld [vmem:[%s5159 + $0x24] sm:$0xf]
    %v5170 = vld [vmem:[%s5159 + $0x28] sm:$0xf]
    %v5171 = vld [vmem:[%s5159 + $0x2c] sm:$0xf]
    %v5172 = vld [vmem:[%s5159 + $0x30] sm:$0xf]
    %v5173 = vld [vmem:[%s5159 + $0x34] sm:$0xf]
    %v5174 = vld [vmem:[%s5159 + $0x38] sm:$0xf]
    %v5175 = vld [vmem:[%s5159 + $0x3c] sm:$0xf]
    %v5176 = vld [vmem:[%s5159 + $0x40] sm:$0xf]
    %v5177 = vld [vmem:[%s5159 + $0x44] sm:$0xf]
    %v5178 = vld [vmem:[%s5159 + $0x48] sm:$0xf]
    %v5179 = vld [vmem:[%s5159 + $0x4c] sm:$0xf]
    %v5180 = vld [vmem:[%s5159 + $0x50] sm:$0xf]
    %v5181 = vld [vmem:[%s5159 + $0x54] sm:$0xf]
    %v5182 = vld [vmem:[%s5159 + $0x58] sm:$0xf]
    %v5183 = vld [vmem:[%s5159 + $0x5c] sm:$0xf]
    %v5184 = vld [vmem:[%s5159 + $0x60] sm:$0xf]
    %v5185 = vld [vmem:[%s5159 + $0x64] sm:$0xf]
    %v5186 = vld [vmem:[%s5159 + $0x68] sm:$0xf]
    %v5187 = vld [vmem:[%s5159 + $0x6c] sm:$0xf]
    %v5188 = vld [vmem:[%s5159 + $0x70] sm:$0xf]
    %v5189 = vld [vmem:[%s5159 + $0x74] sm:$0xf]
    %v5190 = vld [vmem:[%s5159 + $0x78] sm:$0xf]
    %v5191 = vld [vmem:[%s5159 + $0x7c] sm:$0xf]
    %v5192 = vld [vmem:[%s5159 + $0x80] sm:$0xf]
    %v5193 = vld [vmem:[%s5159 + $0x84] sm:$0xf]
    %v5194 = vld [vmem:[%s5159 + $0x88] sm:$0xf]
    %v5195 = vld [vmem:[%s5159 + $0x8c] sm:$0xf]
    %v5196 = vld [vmem:[%s5159 + $0x90] sm:$0xf]
    %v5197 = vld [vmem:[%s5159 + $0x94] sm:$0xf]
    %v5198 = vld [vmem:[%s5159 + $0x98] sm:$0xf]
    %v5199 = vld [vmem:[%s5159 + $0x9c] sm:$0xf]
    %v5200 = vld [vmem:[%s5159 + $0xa0] sm:$0xf]
    %v5201 = vld [vmem:[%s5159 + $0xa4] sm:$0xf]
    %v5202 = vld [vmem:[%s5159 + $0xa8] sm:$0xf]
    %v5203 = vld [vmem:[%s5159 + $0xac] sm:$0xf]
    %v5204 = vld [vmem:[%s5159 + $0xb0] sm:$0xf]
    %v5205 = vld [vmem:[%s5159 + $0xb4] sm:$0xf]
    %v5206 = vld [vmem:[%s5159 + $0xb8] sm:$0xf]
    %v5207 = vld [vmem:[%s5159 + $0xbc] sm:$0xf]
    %v5208 = vld [vmem:[%s5159 + $0xc0] sm:$0xf]
    %v5209 = vld [vmem:[%s5159 + $0xc4] sm:$0xf]
    %v5210 = vld [vmem:[%s5159 + $0xc8] sm:$0xf]
    %v5211 = vld [vmem:[%s5159 + $0xcc] sm:$0xf]
    %v5212 = vld [vmem:[%s5159 + $0xd0] sm:$0xf]
    %v5213 = vld [vmem:[%s5159 + $0xd4] sm:$0xf]
    %v5214 = vld [vmem:[%s5159 + $0xd8] sm:$0xf]
    %v5215 = vld [vmem:[%s5159 + $0xdc] sm:$0xf]
    %v5216 = vld [vmem:[%s5159 + $0xe0] sm:$0xf]
    %v5217 = vld [vmem:[%s5159 + $0xe4] sm:$0xf]
    %v5218 = vld [vmem:[%s5159 + $0xe8] sm:$0xf]
    %v5219 = vld [vmem:[%s5159 + $0xec] sm:$0xf]
    %v5220 = vld [vmem:[%s5159 + $0xf0] sm:$0xf]
    %v5221 = vld [vmem:[%s5159 + $0xf4] sm:$0xf]
    %v5222 = vld [vmem:[%s5159 + $0xf8] sm:$0xf]
    %v5223 = vld [vmem:[%s5159 + $0xfc] sm:$0xf]
    %v5224 = vld [vmem:[%s5159 + $0x100] sm:$0xf]
    %v5225 = vld [vmem:[%s5159 + $0x104] sm:$0xf]
    %v5226 = vld [vmem:[%s5159 + $0x108] sm:$0xf]
    %v5227 = vld [vmem:[%s5159 + $0x10c] sm:$0xf]
    %v5228 = vld [vmem:[%s5159 + $0x110] sm:$0xf]
    %v5229 = vld [vmem:[%s5159 + $0x114] sm:$0xf]
    %v5230 = vld [vmem:[%s5159 + $0x118] sm:$0xf]
    %v5231 = vld [vmem:[%s5159 + $0x11c] sm:$0xf]
    %v5232 = vld [vmem:[%s5159 + $0x120] sm:$0xf]
    %v5233 = vld [vmem:[%s5159 + $0x124] sm:$0xf]
    %v5234 = vld [vmem:[%s5159 + $0x128] sm:$0xf]
    %v5235 = vld [vmem:[%s5159 + $0x12c] sm:$0xf]
    %v5236 = vld [vmem:[%s5159 + $0x130] sm:$0xf]
    %v5237 = vld [vmem:[%s5159 + $0x134] sm:$0xf]
    %v5238 = vld [vmem:[%s5159 + $0x138] sm:$0xf]
    %v5239 = vld [vmem:[%s5159 + $0x13c] sm:$0xf]
    %v5240 = vld [vmem:[%s5159 + $0x140] sm:$0xf]
    %v5241 = vld [vmem:[%s5159 + $0x144] sm:$0xf]
    %v5242 = vld [vmem:[%s5159 + $0x148] sm:$0xf]
    %v5243 = vld [vmem:[%s5159 + $0x14c] sm:$0xf]
    %v5244 = vld [vmem:[%s5159 + $0x150] sm:$0xf]
    %v5245 = vld [vmem:[%s5159 + $0x154] sm:$0xf]
    %v5246 = vld [vmem:[%s5159 + $0x158] sm:$0xf]
    %v5247 = vld [vmem:[%s5159 + $0x15c] sm:$0xf]
    %v5248 = vld [vmem:[%s5159 + $0x160] sm:$0xf]
    %v5249 = vld [vmem:[%s5159 + $0x164] sm:$0xf]
    %v5250 = vld [vmem:[%s5159 + $0x168] sm:$0xf]
    %v5251 = vld [vmem:[%s5159 + $0x16c] sm:$0xf]
    %v5252 = vld [vmem:[%s5159 + $0x170] sm:$0xf]
    %v5253 = vld [vmem:[%s5159 + $0x174] sm:$0xf]
    %v5254 = vld [vmem:[%s5159 + $0x178] sm:$0xf]
    %v5255 = vld [vmem:[%s5159 + $0x17c] sm:$0xf]
    %v5256 = vld [vmem:[%s5159 + $0x180] sm:$0xf]
    %v5257 = vld [vmem:[%s5159 + $0x184] sm:$0xf]
    %v5258 = vld [vmem:[%s5159 + $0x188] sm:$0xf]
    %v5259 = vld [vmem:[%s5159 + $0x18c] sm:$0xf]
    %v5260 = vld [vmem:[%s5159 + $0x190] sm:$0xf]
    %v5261 = vld [vmem:[%s5159 + $0x194] sm:$0xf]
    %v5262 = vld [vmem:[%s5159 + $0x198] sm:$0xf]
    %v5263 = vld [vmem:[%s5159 + $0x19c] sm:$0xf]
    %v5264 = vld [vmem:[%s5159 + $0x1a0] sm:$0xf]
    %v5265 = vld [vmem:[%s5159 + $0x1a4] sm:$0xf]
    %v5266 = vld [vmem:[%s5159 + $0x1a8] sm:$0xf]
    %v5267 = vld [vmem:[%s5159 + $0x1ac] sm:$0xf]
    %v5268 = vld [vmem:[%s5159 + $0x1b0] sm:$0xf]
    %v5269 = vld [vmem:[%s5159 + $0x1b4] sm:$0xf]
    %v5270 = vld [vmem:[%s5159 + $0x1b8] sm:$0xf]
    %v5271 = vld [vmem:[%s5159 + $0x1bc] sm:$0xf]
    %v5272 = vld [vmem:[%s5159 + $0x1c0] sm:$0xf]
    %v5273 = vld [vmem:[%s5159 + $0x1c4] sm:$0xf]
    %v5274 = vld [vmem:[%s5159 + $0x1c8] sm:$0xf]
    %v5275 = vld [vmem:[%s5159 + $0x1cc] sm:$0xf]
    %v5276 = vld [vmem:[%s5159 + $0x1d0] sm:$0xf]
    %v5277 = vld [vmem:[%s5159 + $0x1d4] sm:$0xf]
    %v5278 = vld [vmem:[%s5159 + $0x1d8] sm:$0xf]
    %v5279 = vld [vmem:[%s5159 + $0x1dc] sm:$0xf]
    %v5280 = vld [vmem:[%s5159 + $0x1e0] sm:$0xf]
    %v5281 = vld [vmem:[%s5159 + $0x1e4] sm:$0xf]
    %v5282 = vld [vmem:[%s5159 + $0x1e8] sm:$0xf]
    %v5283 = vld [vmem:[%s5159 + $0x1ec] sm:$0xf]
    %v5284 = vld [vmem:[%s5159 + $0x1f0] sm:$0xf]
    %v5285 = vld [vmem:[%s5159 + $0x1f4] sm:$0xf]
    %v5286 = vld [vmem:[%s5159 + $0x1f8] sm:$0xf]
    %v5287 = vld [vmem:[%s5159 + $0x1fc] sm:$0xf]
    %v5416 = vunpack.c.l.b16 %v5160
    %v5417 = vunpack.c.l.b16 %v5161
    %v5418 = vunpack.c.l.b16 %v5162
    %v5419 = vunpack.c.l.b16 %v5163
    %v5420 = vunpack.c.l.b16 %v5164
    %v5421 = vunpack.c.l.b16 %v5165
    %v5422 = vunpack.c.l.b16 %v5166
    %v5423 = vunpack.c.l.b16 %v5167
    %v5424 = vunpack.c.l.b16 %v5168
    %v5425 = vunpack.c.l.b16 %v5169
    %v5426 = vunpack.c.l.b16 %v5170
    %v5427 = vunpack.c.l.b16 %v5171
    %v5428 = vunpack.c.l.b16 %v5172
    %v5429 = vunpack.c.l.b16 %v5173
    %v5430 = vunpack.c.l.b16 %v5174
    %v5431 = vunpack.c.l.b16 %v5175
    %v5432 = vunpack.c.l.b16 %v5176
    %v5433 = vunpack.c.l.b16 %v5177
    %v5434 = vunpack.c.l.b16 %v5178
    %v5435 = vunpack.c.l.b16 %v5179
    %v5436 = vunpack.c.l.b16 %v5180
    %v5437 = vunpack.c.l.b16 %v5181
    %v5438 = vunpack.c.l.b16 %v5182
    %v5439 = vunpack.c.l.b16 %v5183
    %v5440 = vunpack.c.l.b16 %v5184
    %v5441 = vunpack.c.l.b16 %v5185
    %v5442 = vunpack.c.l.b16 %v5186
    %v5443 = vunpack.c.l.b16 %v5187
    %v5444 = vunpack.c.l.b16 %v5188
    %v5445 = vunpack.c.l.b16 %v5189
    %v5446 = vunpack.c.l.b16 %v5190
    %v5447 = vunpack.c.l.b16 %v5191
    %v5448 = vunpack.c.l.b16 %v5192
    %v5449 = vunpack.c.l.b16 %v5193
    %v5450 = vunpack.c.l.b16 %v5194
    %v5451 = vunpack.c.l.b16 %v5195
    %v5452 = vunpack.c.l.b16 %v5196
    %v5453 = vunpack.c.l.b16 %v5197
    %v5454 = vunpack.c.l.b16 %v5198
    %v5455 = vunpack.c.l.b16 %v5199
    %v5456 = vunpack.c.l.b16 %v5200
    %v5457 = vunpack.c.l.b16 %v5201
    %v5458 = vunpack.c.l.b16 %v5202
    %v5459 = vunpack.c.l.b16 %v5203
    %v5460 = vunpack.c.l.b16 %v5204
    %v5461 = vunpack.c.l.b16 %v5205
    %v5462 = vunpack.c.l.b16 %v5206
    %v5463 = vunpack.c.l.b16 %v5207
    %v5464 = vunpack.c.l.b16 %v5208
    %v5465 = vunpack.c.l.b16 %v5209
    %v5466 = vunpack.c.l.b16 %v5210
    %v5467 = vunpack.c.l.b16 %v5211
    %v5468 = vunpack.c.l.b16 %v5212
    %v5469 = vunpack.c.l.b16 %v5213
    %v5470 = vunpack.c.l.b16 %v5214
    %v5471 = vunpack.c.l.b16 %v5215
    %v5472 = vunpack.c.l.b16 %v5216
    %v5473 = vunpack.c.l.b16 %v5217
    %v5474 = vunpack.c.l.b16 %v5218
    %v5475 = vunpack.c.l.b16 %v5219
    %v5476 = vunpack.c.l.b16 %v5220
    %v5477 = vunpack.c.l.b16 %v5221
    %v5478 = vunpack.c.l.b16 %v5222
    %v5479 = vunpack.c.l.b16 %v5223
    %v5480 = vunpack.c.l.b16 %v5224
    %v5481 = vunpack.c.l.b16 %v5225
    %v5482 = vunpack.c.l.b16 %v5226
    %v5483 = vunpack.c.l.b16 %v5227
    %v5484 = vunpack.c.l.b16 %v5228
    %v5485 = vunpack.c.l.b16 %v5229
    %v5486 = vunpack.c.l.b16 %v5230
    %v5487 = vunpack.c.l.b16 %v5231
    %v5488 = vunpack.c.l.b16 %v5232
    %v5489 = vunpack.c.l.b16 %v5233
    %v5490 = vunpack.c.l.b16 %v5234
    %v5491 = vunpack.c.l.b16 %v5235
    %v5492 = vunpack.c.l.b16 %v5236
    %v5493 = vunpack.c.l.b16 %v5237
    %v5494 = vunpack.c.l.b16 %v5238
    %v5495 = vunpack.c.l.b16 %v5239
    %v5496 = vunpack.c.l.b16 %v5240
    %v5497 = vunpack.c.l.b16 %v5241
    %v5498 = vunpack.c.l.b16 %v5242
    %v5499 = vunpack.c.l.b16 %v5243
    %v5500 = vunpack.c.l.b16 %v5244
    %v5501 = vunpack.c.l.b16 %v5245
    %v5502 = vunpack.c.l.b16 %v5246
    %v5503 = vunpack.c.l.b16 %v5247
    %v5504 = vunpack.c.l.b16 %v5248
    %v5505 = vunpack.c.l.b16 %v5249
    %v5506 = vunpack.c.l.b16 %v5250
    %v5507 = vunpack.c.l.b16 %v5251
    %v5508 = vunpack.c.l.b16 %v5252
    %v5509 = vunpack.c.l.b16 %v5253
    %v5510 = vunpack.c.l.b16 %v5254
    %v5511 = vunpack.c.l.b16 %v5255
    %v5512 = vunpack.c.l.b16 %v5256
    %v5513 = vunpack.c.l.b16 %v5257
    %v5514 = vunpack.c.l.b16 %v5258
    %v5515 = vunpack.c.l.b16 %v5259
    %v5516 = vunpack.c.l.b16 %v5260
    %v5517 = vunpack.c.l.b16 %v5261
    %v5518 = vunpack.c.l.b16 %v5262
    %v5519 = vunpack.c.l.b16 %v5263
    %v5520 = vunpack.c.l.b16 %v5264
    %v5521 = vunpack.c.l.b16 %v5265
    %v5522 = vunpack.c.l.b16 %v5266
    %v5523 = vunpack.c.l.b16 %v5267
    %v5524 = vunpack.c.l.b16 %v5268
    %v5525 = vunpack.c.l.b16 %v5269
    %v5526 = vunpack.c.l.b16 %v5270
    %v5527 = vunpack.c.l.b16 %v5271
    %v5528 = vunpack.c.l.b16 %v5272
    %v5529 = vunpack.c.l.b16 %v5273
    %v5530 = vunpack.c.l.b16 %v5274
    %v5531 = vunpack.c.l.b16 %v5275
    %v5532 = vunpack.c.l.b16 %v5276
    %v5533 = vunpack.c.l.b16 %v5277
    %v5534 = vunpack.c.l.b16 %v5278
    %v5535 = vunpack.c.l.b16 %v5279
    %v5536 = vunpack.c.l.b16 %v5280
    %v5537 = vunpack.c.l.b16 %v5281
    %v5538 = vunpack.c.l.b16 %v5282
    %v5539 = vunpack.c.l.b16 %v5283
    %v5540 = vunpack.c.l.b16 %v5284
    %v5541 = vunpack.c.l.b16 %v5285
    %v5542 = vunpack.c.l.b16 %v5286
    %v5543 = vunpack.c.l.b16 %v5287
    %v5544 = vpack.c.b16 %v5417, %v5416
    %v5545 = vpack.c.b16 %v5419, %v5418
    %v5546 = vpack.c.b16 %v5421, %v5420
    %v5547 = vpack.c.b16 %v5423, %v5422
    %v5548 = vpack.c.b16 %v5425, %v5424
    %v5549 = vpack.c.b16 %v5427, %v5426
    %v5550 = vpack.c.b16 %v5429, %v5428
    %v5551 = vpack.c.b16 %v5431, %v5430
    %v5552 = vpack.c.b16 %v5433, %v5432
    %v5553 = vpack.c.b16 %v5435, %v5434
    %v5554 = vpack.c.b16 %v5437, %v5436
    %v5555 = vpack.c.b16 %v5439, %v5438
    %v5556 = vpack.c.b16 %v5441, %v5440
    %v5557 = vpack.c.b16 %v5443, %v5442
    %v5558 = vpack.c.b16 %v5445, %v5444
    %v5559 = vpack.c.b16 %v5447, %v5446
    %v5560 = vpack.c.b16 %v5449, %v5448
    %v5561 = vpack.c.b16 %v5451, %v5450
    %v5562 = vpack.c.b16 %v5453, %v5452
    %v5563 = vpack.c.b16 %v5455, %v5454
    %v5564 = vpack.c.b16 %v5457, %v5456
    %v5565 = vpack.c.b16 %v5459, %v5458
    %v5566 = vpack.c.b16 %v5461, %v5460
    %v5567 = vpack.c.b16 %v5463, %v5462
    %v5568 = vpack.c.b16 %v5465, %v5464
    %v5569 = vpack.c.b16 %v5467, %v5466
    %v5570 = vpack.c.b16 %v5469, %v5468
    %v5571 = vpack.c.b16 %v5471, %v5470
    %v5572 = vpack.c.b16 %v5473, %v5472
    %v5573 = vpack.c.b16 %v5475, %v5474
    %v5574 = vpack.c.b16 %v5477, %v5476
    %v5575 = vpack.c.b16 %v5479, %v5478
    %v5576 = vpack.c.b16 %v5481, %v5480
    %v5577 = vpack.c.b16 %v5483, %v5482
    %v5578 = vpack.c.b16 %v5485, %v5484
    %v5579 = vpack.c.b16 %v5487, %v5486
    %v5580 = vpack.c.b16 %v5489, %v5488
    %v5581 = vpack.c.b16 %v5491, %v5490
    %v5582 = vpack.c.b16 %v5493, %v5492
    %v5583 = vpack.c.b16 %v5495, %v5494
    %v5584 = vpack.c.b16 %v5497, %v5496
    %v5585 = vpack.c.b16 %v5499, %v5498
    %v5586 = vpack.c.b16 %v5501, %v5500
    %v5587 = vpack.c.b16 %v5503, %v5502
    %v5588 = vpack.c.b16 %v5505, %v5504
    %v5589 = vpack.c.b16 %v5507, %v5506
    %v5590 = vpack.c.b16 %v5509, %v5508
    %v5591 = vpack.c.b16 %v5511, %v5510
    %v5592 = vpack.c.b16 %v5513, %v5512
    %v5593 = vpack.c.b16 %v5515, %v5514
    %v5594 = vpack.c.b16 %v5517, %v5516
    %v5595 = vpack.c.b16 %v5519, %v5518
    %v5596 = vpack.c.b16 %v5521, %v5520
    %v5597 = vpack.c.b16 %v5523, %v5522
    %v5598 = vpack.c.b16 %v5525, %v5524
    %v5599 = vpack.c.b16 %v5527, %v5526
    %v5600 = vpack.c.b16 %v5529, %v5528
    %v5601 = vpack.c.b16 %v5531, %v5530
    %v5602 = vpack.c.b16 %v5533, %v5532
    %v5603 = vpack.c.b16 %v5535, %v5534
    %v5604 = vpack.c.b16 %v5537, %v5536
    %v5605 = vpack.c.b16 %v5539, %v5538
    %v5606 = vpack.c.b16 %v5541, %v5540
    %v5607 = vpack.c.b16 %v5543, %v5542
    %5672 = vmatprep.subr.bf16.mxu0 0
    %5673 = vmatpush1.bf16.msra.mxu0 %v5551
    %5674 = vmatprep.subr.bf16.mxu0 0
    %5675 = vmatpush1.bf16.msra.mxu0 %v5550
    %5676 = vmatprep.subr.bf16.mxu0 0
    %5677 = vmatpush1.bf16.msra.mxu0 %v5549
    %5678 = vmatprep.subr.bf16.mxu0 0
    %5679 = vmatpush1.bf16.msra.mxu0 %v5548
    %5680 = vmatprep.subr.bf16.mxu0 0
    %5681 = vmatpush1.bf16.msra.mxu0 %v5547
    %5682 = vmatprep.subr.bf16.mxu0 0
    %5683 = vmatpush1.bf16.msra.mxu0 %v5546
    %5684 = vmatprep.subr.bf16.mxu0 0
    %5685 = vmatpush1.bf16.msra.mxu0 %v5545
    %5686 = vmatprep.subr.bf16.mxu0 0
    %5687 = vmatpush1.bf16.msra.mxu0 %v5544
    %5688 = vmatprep.subr.bf16.mxu0 0
    %5689 = vmatpush2.bf16.msra.mxu0 %v5559
    %5690 = vmatprep.subr.bf16.mxu0 0
    %5691 = vmatpush2.bf16.msra.mxu0 %v5558
    %5692 = vmatprep.subr.bf16.mxu0 0
    %5693 = vmatpush2.bf16.msra.mxu0 %v5557
    %5694 = vmatprep.subr.bf16.mxu0 0
    %5695 = vmatpush2.bf16.msra.mxu0 %v5556
    %5696 = vmatprep.subr.bf16.mxu0 0
    %5697 = vmatpush2.bf16.msra.mxu0 %v5555
    %5698 = vmatprep.subr.bf16.mxu0 0
    %5699 = vmatpush2.bf16.msra.mxu0 %v5554
    %5700 = vmatprep.subr.bf16.mxu0 0
    %5701 = vmatpush2.bf16.msra.mxu0 %v5553
    %5702 = vmatprep.subr.bf16.mxu0 0
    %5703 = vmatpush2.bf16.msra.mxu0 %v5552
    %5704 = vmatprep.mubr.bf16.mxu0 %v5152
    %5705 = vmatmul.mubr.bf16.gmra.mxu0 %v5151
    %v5706 = vpop.f32.mrf.mxu0
    %v5707 = vadd.f32 0.0, %v5706
    %v5708 = vpop.f32.mrf.mxu0
    %v5709 = vpop.f32.mrf.mxu0
    %v5710 = vpop.f32.mrf.mxu0
    %5711 = vdwg.mxu0
    %5712 = vmatprep.subr.bf16.mxu0 0
    %5713 = vmatpush1.bf16.msra.mxu0 %v5567
    %5714 = vmatprep.subr.bf16.mxu0 0
    %5715 = vmatpush1.bf16.msra.mxu0 %v5566
    %5716 = vmatprep.subr.bf16.mxu0 0
    %5717 = vmatpush1.bf16.msra.mxu0 %v5565
    %5718 = vmatprep.subr.bf16.mxu0 0
    %5719 = vmatpush1.bf16.msra.mxu0 %v5564
    %5720 = vmatprep.subr.bf16.mxu0 0
    %5721 = vmatpush1.bf16.msra.mxu0 %v5563
    %5722 = vmatprep.subr.bf16.mxu0 0
    %5723 = vmatpush1.bf16.msra.mxu0 %v5562
    %5724 = vmatprep.subr.bf16.mxu0 0
    %5725 = vmatpush1.bf16.msra.mxu0 %v5561
    %5726 = vmatprep.subr.bf16.mxu0 0
    %5727 = vmatpush1.bf16.msra.mxu0 %v5560
    %5728 = vmatprep.subr.bf16.mxu0 0
    %5729 = vmatpush2.bf16.msra.mxu0 %v5575
    %5730 = vmatprep.subr.bf16.mxu0 0
    %5731 = vmatpush2.bf16.msra.mxu0 %v5574
    %5732 = vmatprep.subr.bf16.mxu0 0
    %5733 = vmatpush2.bf16.msra.mxu0 %v5573
    %5734 = vmatprep.subr.bf16.mxu0 0
    %5735 = vmatpush2.bf16.msra.mxu0 %v5572
    %5736 = vmatprep.subr.bf16.mxu0 0
    %5737 = vmatpush2.bf16.msra.mxu0 %v5571
    %5738 = vmatprep.subr.bf16.mxu0 0
    %5739 = vmatpush2.bf16.msra.mxu0 %v5570
    %5740 = vmatprep.subr.bf16.mxu0 0
    %5741 = vmatpush2.bf16.msra.mxu0 %v5569
    %5742 = vmatprep.subr.bf16.mxu0 0
    %5743 = vmatpush2.bf16.msra.mxu0 %v5568
    %5744 = vmatprep.mubr.bf16.mxu0 %v5154
    %5745 = vmatmul.mubr.bf16.gmra.mxu0 %v5153
    %v5746 = vpop.f32.mrf.mxu0
    %v5747 = vadd.f32 %v5707, %v5746
    %v5748 = vpop.f32.mrf.mxu0
    %v5749 = vpop.f32.mrf.mxu0
    %v5750 = vpop.f32.mrf.mxu0
    %5751 = vdwg.mxu0
    %5752 = vmatprep.subr.bf16.mxu0 0
    %5753 = vmatpush1.bf16.msra.mxu0 %v5583
    %5754 = vmatprep.subr.bf16.mxu0 0
    %5755 = vmatpush1.bf16.msra.mxu0 %v5582
    %5756 = vmatprep.subr.bf16.mxu0 0
    %5757 = vmatpush1.bf16.msra.mxu0 %v5581
    %5758 = vmatprep.subr.bf16.mxu0 0
    %5759 = vmatpush1.bf16.msra.mxu0 %v5580
    %5760 = vmatprep.subr.bf16.mxu0 0
    %5761 = vmatpush1.bf16.msra.mxu0 %v5579
    %5762 = vmatprep.subr.bf16.mxu0 0
    %5763 = vmatpush1.bf16.msra.mxu0 %v5578
    %5764 = vmatprep.subr.bf16.mxu0 0
    %5765 = vmatpush1.bf16.msra.mxu0 %v5577
    %5766 = vmatprep.subr.bf16.mxu0 0
    %5767 = vmatpush1.bf16.msra.mxu0 %v5576
    %5768 = vmatprep.subr.bf16.mxu0 0
    %5769 = vmatpush2.bf16.msra.mxu0 %v5591
    %5770 = vmatprep.subr.bf16.mxu0 0
    %5771 = vmatpush2.bf16.msra.mxu0 %v5590
    %5772 = vmatprep.subr.bf16.mxu0 0
    %5773 = vmatpush2.bf16.msra.mxu0 %v5589
    %5774 = vmatprep.subr.bf16.mxu0 0
    %5775 = vmatpush2.bf16.msra.mxu0 %v5588
    %5776 = vmatprep.subr.bf16.mxu0 0
    %5777 = vmatpush2.bf16.msra.mxu0 %v5587
    %5778 = vmatprep.subr.bf16.mxu0 0
    %5779 = vmatpush2.bf16.msra.mxu0 %v5586
    %5780 = vmatprep.subr.bf16.mxu0 0
    %5781 = vmatpush2.bf16.msra.mxu0 %v5585
    %5782 = vmatprep.subr.bf16.mxu0 0
    %5783 = vmatpush2.bf16.msra.mxu0 %v5584
    %5784 = vmatprep.mubr.bf16.mxu0 %v5156
    %5785 = vmatmul.mubr.bf16.gmra.mxu0 %v5155
    %v5786 = vpop.f32.mrf.mxu0
    %v5787 = vadd.f32 %v5747, %v5786
    %v5788 = vpop.f32.mrf.mxu0
    %v5789 = vpop.f32.mrf.mxu0
    %v5790 = vpop.f32.mrf.mxu0
    %5791 = vdwg.mxu0
    %5792 = vmatprep.subr.bf16.mxu0 0
    %5793 = vmatpush1.bf16.msra.mxu0 %v5599
    %5794 = vmatprep.subr.bf16.mxu0 0
    %5795 = vmatpush1.bf16.msra.mxu0 %v5598
    %5796 = vmatprep.subr.bf16.mxu0 0
    %5797 = vmatpush1.bf16.msra.mxu0 %v5597
    %5798 = vmatprep.subr.bf16.mxu0 0
    %5799 = vmatpush1.bf16.msra.mxu0 %v5596
    %5800 = vmatprep.subr.bf16.mxu0 0
    %5801 = vmatpush1.bf16.msra.mxu0 %v5595
    %5802 = vmatprep.subr.bf16.mxu0 0
    %5803 = vmatpush1.bf16.msra.mxu0 %v5594
    %5804 = vmatprep.subr.bf16.mxu0 0
    %5805 = vmatpush1.bf16.msra.mxu0 %v5593
    %5806 = vmatprep.subr.bf16.mxu0 0
    %5807 = vmatpush1.bf16.msra.mxu0 %v5592
    %5808 = vmatprep.subr.bf16.mxu0 0
    %5809 = vmatpush2.bf16.msra.mxu0 %v5607
    %5810 = vmatprep.subr.bf16.mxu0 0
    %5811 = vmatpush2.bf16.msra.mxu0 %v5606
    %5812 = vmatprep.subr.bf16.mxu0 0
    %5813 = vmatpush2.bf16.msra.mxu0 %v5605
    %5814 = vmatprep.subr.bf16.mxu0 0
    %5815 = vmatpush2.bf16.msra.mxu0 %v5604
    %5816 = vmatprep.subr.bf16.mxu0 0
    %5817 = vmatpush2.bf16.msra.mxu0 %v5603
    %5818 = vmatprep.subr.bf16.mxu0 0
    %5819 = vmatpush2.bf16.msra.mxu0 %v5602
    %5820 = vmatprep.subr.bf16.mxu0 0
    %5821 = vmatpush2.bf16.msra.mxu0 %v5601
    %5822 = vmatprep.subr.bf16.mxu0 0
    %5823 = vmatpush2.bf16.msra.mxu0 %v5600
    %5824 = vmatprep.mubr.bf16.mxu0 %v5158
    %5825 = vmatmul.mubr.bf16.gmra.mxu0 %v5157
    %v5826 = vpop.f32.mrf.mxu0
    %v5827 = vadd.f32 %v5787, %v5826
    %v5828 = vpop.f32.mrf.mxu0
    %v5829 = vpop.f32.mrf.mxu0
    %v5830 = vpop.f32.mrf.mxu0
    %5831 = vdwg.mxu0
    %v5832 = vadd.f32 %v5110, %v5827
    %v5833 = vrot.slane %v2945, 2
    %v5834 = vrot.slane %v2946, 2
    %v5835 = vrot.slane %v2947, 2
    %v5836 = vrot.slane %v2948, 2
    %v5837 = vrot.slane %v2949, 2
    %v5838 = vrot.slane %v2950, 2
    %v5839 = vrot.slane %v2951, 2
    %v5840 = vrot.slane %v2952, 2
    %v5849 = vrot.slane %v2962, 2
    %v5850 = vrot.slane %v2965, 2
    %v5851 = vrot.slane %v2968, 2
    %v5852 = vrot.slane %v2971, 2
    %v5853 = vrot.slane %v2974, 2
    %v5854 = vrot.slane %v2977, 2
    %v5855 = vrot.slane %v2980, 2
    %v5856 = vrot.slane %v2983, 2
    %v5865 = vsel %vm2995, %v5833, %v5849
    %v5866 = vsel %vm2995, %v5834, %v5850
    %v5867 = vsel %vm2995, %v5835, %v5851
    %v5868 = vsel %vm2995, %v5836, %v5852
    %v5869 = vsel %vm2995, %v5837, %v5853
    %v5870 = vsel %vm2995, %v5838, %v5854
    %v5871 = vsel %vm2995, %v5839, %v5855
    %v5872 = vsel %vm2995, %v5840, %v5856
    %s5873 = scalar_lea.vmem %s3, 2048
    %v5874 = vld [vmem:[%s5873] sm:$0xf]
    %v5875 = vld [vmem:[%s5873 + $0x4] sm:$0xf]
    %v5876 = vld [vmem:[%s5873 + $0x8] sm:$0xf]
    %v5877 = vld [vmem:[%s5873 + $0xc] sm:$0xf]
    %v5878 = vld [vmem:[%s5873 + $0x10] sm:$0xf]
    %v5879 = vld [vmem:[%s5873 + $0x14] sm:$0xf]
    %v5880 = vld [vmem:[%s5873 + $0x18] sm:$0xf]
    %v5881 = vld [vmem:[%s5873 + $0x1c] sm:$0xf]
    %v5882 = vld [vmem:[%s5873 + $0x20] sm:$0xf]
    %v5883 = vld [vmem:[%s5873 + $0x24] sm:$0xf]
    %v5884 = vld [vmem:[%s5873 + $0x28] sm:$0xf]
    %v5885 = vld [vmem:[%s5873 + $0x2c] sm:$0xf]
    %v5886 = vld [vmem:[%s5873 + $0x30] sm:$0xf]
    %v5887 = vld [vmem:[%s5873 + $0x34] sm:$0xf]
    %v5888 = vld [vmem:[%s5873 + $0x38] sm:$0xf]
    %v5889 = vld [vmem:[%s5873 + $0x3c] sm:$0xf]
    %v5890 = vld [vmem:[%s5873 + $0x40] sm:$0xf]
    %v5891 = vld [vmem:[%s5873 + $0x44] sm:$0xf]
    %v5892 = vld [vmem:[%s5873 + $0x48] sm:$0xf]
    %v5893 = vld [vmem:[%s5873 + $0x4c] sm:$0xf]
    %v5894 = vld [vmem:[%s5873 + $0x50] sm:$0xf]
    %v5895 = vld [vmem:[%s5873 + $0x54] sm:$0xf]
    %v5896 = vld [vmem:[%s5873 + $0x58] sm:$0xf]
    %v5897 = vld [vmem:[%s5873 + $0x5c] sm:$0xf]
    %v5898 = vld [vmem:[%s5873 + $0x60] sm:$0xf]
    %v5899 = vld [vmem:[%s5873 + $0x64] sm:$0xf]
    %v5900 = vld [vmem:[%s5873 + $0x68] sm:$0xf]
    %v5901 = vld [vmem:[%s5873 + $0x6c] sm:$0xf]
    %v5902 = vld [vmem:[%s5873 + $0x70] sm:$0xf]
    %v5903 = vld [vmem:[%s5873 + $0x74] sm:$0xf]
    %v5904 = vld [vmem:[%s5873 + $0x78] sm:$0xf]
    %v5905 = vld [vmem:[%s5873 + $0x7c] sm:$0xf]
    %v5906 = vld [vmem:[%s5873 + $0x80] sm:$0xf]
    %v5907 = vld [vmem:[%s5873 + $0x84] sm:$0xf]
    %v5908 = vld [vmem:[%s5873 + $0x88] sm:$0xf]
    %v5909 = vld [vmem:[%s5873 + $0x8c] sm:$0xf]
    %v5910 = vld [vmem:[%s5873 + $0x90] sm:$0xf]
    %v5911 = vld [vmem:[%s5873 + $0x94] sm:$0xf]
    %v5912 = vld [vmem:[%s5873 + $0x98] sm:$0xf]
    %v5913 = vld [vmem:[%s5873 + $0x9c] sm:$0xf]
    %v5914 = vld [vmem:[%s5873 + $0xa0] sm:$0xf]
    %v5915 = vld [vmem:[%s5873 + $0xa4] sm:$0xf]
    %v5916 = vld [vmem:[%s5873 + $0xa8] sm:$0xf]
    %v5917 = vld [vmem:[%s5873 + $0xac] sm:$0xf]
    %v5918 = vld [vmem:[%s5873 + $0xb0] sm:$0xf]
    %v5919 = vld [vmem:[%s5873 + $0xb4] sm:$0xf]
    %v5920 = vld [vmem:[%s5873 + $0xb8] sm:$0xf]
    %v5921 = vld [vmem:[%s5873 + $0xbc] sm:$0xf]
    %v5922 = vld [vmem:[%s5873 + $0xc0] sm:$0xf]
    %v5923 = vld [vmem:[%s5873 + $0xc4] sm:$0xf]
    %v5924 = vld [vmem:[%s5873 + $0xc8] sm:$0xf]
    %v5925 = vld [vmem:[%s5873 + $0xcc] sm:$0xf]
    %v5926 = vld [vmem:[%s5873 + $0xd0] sm:$0xf]
    %v5927 = vld [vmem:[%s5873 + $0xd4] sm:$0xf]
    %v5928 = vld [vmem:[%s5873 + $0xd8] sm:$0xf]
    %v5929 = vld [vmem:[%s5873 + $0xdc] sm:$0xf]
    %v5930 = vld [vmem:[%s5873 + $0xe0] sm:$0xf]
    %v5931 = vld [vmem:[%s5873 + $0xe4] sm:$0xf]
    %v5932 = vld [vmem:[%s5873 + $0xe8] sm:$0xf]
    %v5933 = vld [vmem:[%s5873 + $0xec] sm:$0xf]
    %v5934 = vld [vmem:[%s5873 + $0xf0] sm:$0xf]
    %v5935 = vld [vmem:[%s5873 + $0xf4] sm:$0xf]
    %v5936 = vld [vmem:[%s5873 + $0xf8] sm:$0xf]
    %v5937 = vld [vmem:[%s5873 + $0xfc] sm:$0xf]
    %v5938 = vld [vmem:[%s5873 + $0x100] sm:$0xf]
    %v5939 = vld [vmem:[%s5873 + $0x104] sm:$0xf]
    %v5940 = vld [vmem:[%s5873 + $0x108] sm:$0xf]
    %v5941 = vld [vmem:[%s5873 + $0x10c] sm:$0xf]
    %v5942 = vld [vmem:[%s5873 + $0x110] sm:$0xf]
    %v5943 = vld [vmem:[%s5873 + $0x114] sm:$0xf]
    %v5944 = vld [vmem:[%s5873 + $0x118] sm:$0xf]
    %v5945 = vld [vmem:[%s5873 + $0x11c] sm:$0xf]
    %v5946 = vld [vmem:[%s5873 + $0x120] sm:$0xf]
    %v5947 = vld [vmem:[%s5873 + $0x124] sm:$0xf]
    %v5948 = vld [vmem:[%s5873 + $0x128] sm:$0xf]
    %v5949 = vld [vmem:[%s5873 + $0x12c] sm:$0xf]
    %v5950 = vld [vmem:[%s5873 + $0x130] sm:$0xf]
    %v5951 = vld [vmem:[%s5873 + $0x134] sm:$0xf]
    %v5952 = vld [vmem:[%s5873 + $0x138] sm:$0xf]
    %v5953 = vld [vmem:[%s5873 + $0x13c] sm:$0xf]
    %v5954 = vld [vmem:[%s5873 + $0x140] sm:$0xf]
    %v5955 = vld [vmem:[%s5873 + $0x144] sm:$0xf]
    %v5956 = vld [vmem:[%s5873 + $0x148] sm:$0xf]
    %v5957 = vld [vmem:[%s5873 + $0x14c] sm:$0xf]
    %v5958 = vld [vmem:[%s5873 + $0x150] sm:$0xf]
    %v5959 = vld [vmem:[%s5873 + $0x154] sm:$0xf]
    %v5960 = vld [vmem:[%s5873 + $0x158] sm:$0xf]
    %v5961 = vld [vmem:[%s5873 + $0x15c] sm:$0xf]
    %v5962 = vld [vmem:[%s5873 + $0x160] sm:$0xf]
    %v5963 = vld [vmem:[%s5873 + $0x164] sm:$0xf]
    %v5964 = vld [vmem:[%s5873 + $0x168] sm:$0xf]
    %v5965 = vld [vmem:[%s5873 + $0x16c] sm:$0xf]
    %v5966 = vld [vmem:[%s5873 + $0x170] sm:$0xf]
    %v5967 = vld [vmem:[%s5873 + $0x174] sm:$0xf]
    %v5968 = vld [vmem:[%s5873 + $0x178] sm:$0xf]
    %v5969 = vld [vmem:[%s5873 + $0x17c] sm:$0xf]
    %v5970 = vld [vmem:[%s5873 + $0x180] sm:$0xf]
    %v5971 = vld [vmem:[%s5873 + $0x184] sm:$0xf]
    %v5972 = vld [vmem:[%s5873 + $0x188] sm:$0xf]
    %v5973 = vld [vmem:[%s5873 + $0x18c] sm:$0xf]
    %v5974 = vld [vmem:[%s5873 + $0x190] sm:$0xf]
    %v5975 = vld [vmem:[%s5873 + $0x194] sm:$0xf]
    %v5976 = vld [vmem:[%s5873 + $0x198] sm:$0xf]
    %v5977 = vld [vmem:[%s5873 + $0x19c] sm:$0xf]
    %v5978 = vld [vmem:[%s5873 + $0x1a0] sm:$0xf]
    %v5979 = vld [vmem:[%s5873 + $0x1a4] sm:$0xf]
    %v5980 = vld [vmem:[%s5873 + $0x1a8] sm:$0xf]
    %v5981 = vld [vmem:[%s5873 + $0x1ac] sm:$0xf]
    %v5982 = vld [vmem:[%s5873 + $0x1b0] sm:$0xf]
    %v5983 = vld [vmem:[%s5873 + $0x1b4] sm:$0xf]
    %v5984 = vld [vmem:[%s5873 + $0x1b8] sm:$0xf]
    %v5985 = vld [vmem:[%s5873 + $0x1bc] sm:$0xf]
    %v5986 = vld [vmem:[%s5873 + $0x1c0] sm:$0xf]
    %v5987 = vld [vmem:[%s5873 + $0x1c4] sm:$0xf]
    %v5988 = vld [vmem:[%s5873 + $0x1c8] sm:$0xf]
    %v5989 = vld [vmem:[%s5873 + $0x1cc] sm:$0xf]
    %v5990 = vld [vmem:[%s5873 + $0x1d0] sm:$0xf]
    %v5991 = vld [vmem:[%s5873 + $0x1d4] sm:$0xf]
    %v5992 = vld [vmem:[%s5873 + $0x1d8] sm:$0xf]
    %v5993 = vld [vmem:[%s5873 + $0x1dc] sm:$0xf]
    %v5994 = vld [vmem:[%s5873 + $0x1e0] sm:$0xf]
    %v5995 = vld [vmem:[%s5873 + $0x1e4] sm:$0xf]
    %v5996 = vld [vmem:[%s5873 + $0x1e8] sm:$0xf]
    %v5997 = vld [vmem:[%s5873 + $0x1ec] sm:$0xf]
    %v5998 = vld [vmem:[%s5873 + $0x1f0] sm:$0xf]
    %v5999 = vld [vmem:[%s5873 + $0x1f4] sm:$0xf]
    %v6000 = vld [vmem:[%s5873 + $0x1f8] sm:$0xf]
    %v6001 = vld [vmem:[%s5873 + $0x1fc] sm:$0xf]
    %v6130 = vunpack.c.l.b16 %v5874
    %v6131 = vunpack.c.l.b16 %v5875
    %v6132 = vunpack.c.l.b16 %v5876
    %v6133 = vunpack.c.l.b16 %v5877
    %v6134 = vunpack.c.l.b16 %v5878
    %v6135 = vunpack.c.l.b16 %v5879
    %v6136 = vunpack.c.l.b16 %v5880
    %v6137 = vunpack.c.l.b16 %v5881
    %v6138 = vunpack.c.l.b16 %v5882
    %v6139 = vunpack.c.l.b16 %v5883
    %v6140 = vunpack.c.l.b16 %v5884
    %v6141 = vunpack.c.l.b16 %v5885
    %v6142 = vunpack.c.l.b16 %v5886
    %v6143 = vunpack.c.l.b16 %v5887
    %v6144 = vunpack.c.l.b16 %v5888
    %v6145 = vunpack.c.l.b16 %v5889
    %v6146 = vunpack.c.l.b16 %v5890
    %v6147 = vunpack.c.l.b16 %v5891
    %v6148 = vunpack.c.l.b16 %v5892
    %v6149 = vunpack.c.l.b16 %v5893
    %v6150 = vunpack.c.l.b16 %v5894
    %v6151 = vunpack.c.l.b16 %v5895
    %v6152 = vunpack.c.l.b16 %v5896
    %v6153 = vunpack.c.l.b16 %v5897
    %v6154 = vunpack.c.l.b16 %v5898
    %v6155 = vunpack.c.l.b16 %v5899
    %v6156 = vunpack.c.l.b16 %v5900
    %v6157 = vunpack.c.l.b16 %v5901
    %v6158 = vunpack.c.l.b16 %v5902
    %v6159 = vunpack.c.l.b16 %v5903
    %v6160 = vunpack.c.l.b16 %v5904
    %v6161 = vunpack.c.l.b16 %v5905
    %v6162 = vunpack.c.l.b16 %v5906
    %v6163 = vunpack.c.l.b16 %v5907
    %v6164 = vunpack.c.l.b16 %v5908
    %v6165 = vunpack.c.l.b16 %v5909
    %v6166 = vunpack.c.l.b16 %v5910
    %v6167 = vunpack.c.l.b16 %v5911
    %v6168 = vunpack.c.l.b16 %v5912
    %v6169 = vunpack.c.l.b16 %v5913
    %v6170 = vunpack.c.l.b16 %v5914
    %v6171 = vunpack.c.l.b16 %v5915
    %v6172 = vunpack.c.l.b16 %v5916
    %v6173 = vunpack.c.l.b16 %v5917
    %v6174 = vunpack.c.l.b16 %v5918
    %v6175 = vunpack.c.l.b16 %v5919
    %v6176 = vunpack.c.l.b16 %v5920
    %v6177 = vunpack.c.l.b16 %v5921
    %v6178 = vunpack.c.l.b16 %v5922
    %v6179 = vunpack.c.l.b16 %v5923
    %v6180 = vunpack.c.l.b16 %v5924
    %v6181 = vunpack.c.l.b16 %v5925
    %v6182 = vunpack.c.l.b16 %v5926
    %v6183 = vunpack.c.l.b16 %v5927
    %v6184 = vunpack.c.l.b16 %v5928
    %v6185 = vunpack.c.l.b16 %v5929
    %v6186 = vunpack.c.l.b16 %v5930
    %v6187 = vunpack.c.l.b16 %v5931
    %v6188 = vunpack.c.l.b16 %v5932
    %v6189 = vunpack.c.l.b16 %v5933
    %v6190 = vunpack.c.l.b16 %v5934
    %v6191 = vunpack.c.l.b16 %v5935
    %v6192 = vunpack.c.l.b16 %v5936
    %v6193 = vunpack.c.l.b16 %v5937
    %v6194 = vunpack.c.l.b16 %v5938
    %v6195 = vunpack.c.l.b16 %v5939
    %v6196 = vunpack.c.l.b16 %v5940
    %v6197 = vunpack.c.l.b16 %v5941
    %v6198 = vunpack.c.l.b16 %v5942
    %v6199 = vunpack.c.l.b16 %v5943
    %v6200 = vunpack.c.l.b16 %v5944
    %v6201 = vunpack.c.l.b16 %v5945
    %v6202 = vunpack.c.l.b16 %v5946
    %v6203 = vunpack.c.l.b16 %v5947
    %v6204 = vunpack.c.l.b16 %v5948
    %v6205 = vunpack.c.l.b16 %v5949
    %v6206 = vunpack.c.l.b16 %v5950
    %v6207 = vunpack.c.l.b16 %v5951
    %v6208 = vunpack.c.l.b16 %v5952
    %v6209 = vunpack.c.l.b16 %v5953
    %v6210 = vunpack.c.l.b16 %v5954
    %v6211 = vunpack.c.l.b16 %v5955
    %v6212 = vunpack.c.l.b16 %v5956
    %v6213 = vunpack.c.l.b16 %v5957
    %v6214 = vunpack.c.l.b16 %v5958
    %v6215 = vunpack.c.l.b16 %v5959
    %v6216 = vunpack.c.l.b16 %v5960
    %v6217 = vunpack.c.l.b16 %v5961
    %v6218 = vunpack.c.l.b16 %v5962
    %v6219 = vunpack.c.l.b16 %v5963
    %v6220 = vunpack.c.l.b16 %v5964
    %v6221 = vunpack.c.l.b16 %v5965
    %v6222 = vunpack.c.l.b16 %v5966
    %v6223 = vunpack.c.l.b16 %v5967
    %v6224 = vunpack.c.l.b16 %v5968
    %v6225 = vunpack.c.l.b16 %v5969
    %v6226 = vunpack.c.l.b16 %v5970
    %v6227 = vunpack.c.l.b16 %v5971
    %v6228 = vunpack.c.l.b16 %v5972
    %v6229 = vunpack.c.l.b16 %v5973
    %v6230 = vunpack.c.l.b16 %v5974
    %v6231 = vunpack.c.l.b16 %v5975
    %v6232 = vunpack.c.l.b16 %v5976
    %v6233 = vunpack.c.l.b16 %v5977
    %v6234 = vunpack.c.l.b16 %v5978
    %v6235 = vunpack.c.l.b16 %v5979
    %v6236 = vunpack.c.l.b16 %v5980
    %v6237 = vunpack.c.l.b16 %v5981
    %v6238 = vunpack.c.l.b16 %v5982
    %v6239 = vunpack.c.l.b16 %v5983
    %v6240 = vunpack.c.l.b16 %v5984
    %v6241 = vunpack.c.l.b16 %v5985
    %v6242 = vunpack.c.l.b16 %v5986
    %v6243 = vunpack.c.l.b16 %v5987
    %v6244 = vunpack.c.l.b16 %v5988
    %v6245 = vunpack.c.l.b16 %v5989
    %v6246 = vunpack.c.l.b16 %v5990
    %v6247 = vunpack.c.l.b16 %v5991
    %v6248 = vunpack.c.l.b16 %v5992
    %v6249 = vunpack.c.l.b16 %v5993
    %v6250 = vunpack.c.l.b16 %v5994
    %v6251 = vunpack.c.l.b16 %v5995
    %v6252 = vunpack.c.l.b16 %v5996
    %v6253 = vunpack.c.l.b16 %v5997
    %v6254 = vunpack.c.l.b16 %v5998
    %v6255 = vunpack.c.l.b16 %v5999
    %v6256 = vunpack.c.l.b16 %v6000
    %v6257 = vunpack.c.l.b16 %v6001
    %v6258 = vpack.c.b16 %v6131, %v6130
    %v6259 = vpack.c.b16 %v6133, %v6132
    %v6260 = vpack.c.b16 %v6135, %v6134
    %v6261 = vpack.c.b16 %v6137, %v6136
    %v6262 = vpack.c.b16 %v6139, %v6138
    %v6263 = vpack.c.b16 %v6141, %v6140
    %v6264 = vpack.c.b16 %v6143, %v6142
    %v6265 = vpack.c.b16 %v6145, %v6144
    %v6266 = vpack.c.b16 %v6147, %v6146
    %v6267 = vpack.c.b16 %v6149, %v6148
    %v6268 = vpack.c.b16 %v6151, %v6150
    %v6269 = vpack.c.b16 %v6153, %v6152
    %v6270 = vpack.c.b16 %v6155, %v6154
    %v6271 = vpack.c.b16 %v6157, %v6156
    %v6272 = vpack.c.b16 %v6159, %v6158
    %v6273 = vpack.c.b16 %v6161, %v6160
    %v6274 = vpack.c.b16 %v6163, %v6162
    %v6275 = vpack.c.b16 %v6165, %v6164
    %v6276 = vpack.c.b16 %v6167, %v6166
    %v6277 = vpack.c.b16 %v6169, %v6168
    %v6278 = vpack.c.b16 %v6171, %v6170
    %v6279 = vpack.c.b16 %v6173, %v6172
    %v6280 = vpack.c.b16 %v6175, %v6174
    %v6281 = vpack.c.b16 %v6177, %v6176
    %v6282 = vpack.c.b16 %v6179, %v6178
    %v6283 = vpack.c.b16 %v6181, %v6180
    %v6284 = vpack.c.b16 %v6183, %v6182
    %v6285 = vpack.c.b16 %v6185, %v6184
    %v6286 = vpack.c.b16 %v6187, %v6186
    %v6287 = vpack.c.b16 %v6189, %v6188
    %v6288 = vpack.c.b16 %v6191, %v6190
    %v6289 = vpack.c.b16 %v6193, %v6192
    %v6290 = vpack.c.b16 %v6195, %v6194
    %v6291 = vpack.c.b16 %v6197, %v6196
    %v6292 = vpack.c.b16 %v6199, %v6198
    %v6293 = vpack.c.b16 %v6201, %v6200
    %v6294 = vpack.c.b16 %v6203, %v6202
    %v6295 = vpack.c.b16 %v6205, %v6204
    %v6296 = vpack.c.b16 %v6207, %v6206
    %v6297 = vpack.c.b16 %v6209, %v6208
    %v6298 = vpack.c.b16 %v6211, %v6210
    %v6299 = vpack.c.b16 %v6213, %v6212
    %v6300 = vpack.c.b16 %v6215, %v6214
    %v6301 = vpack.c.b16 %v6217, %v6216
    %v6302 = vpack.c.b16 %v6219, %v6218
    %v6303 = vpack.c.b16 %v6221, %v6220
    %v6304 = vpack.c.b16 %v6223, %v6222
    %v6305 = vpack.c.b16 %v6225, %v6224
    %v6306 = vpack.c.b16 %v6227, %v6226
    %v6307 = vpack.c.b16 %v6229, %v6228
    %v6308 = vpack.c.b16 %v6231, %v6230
    %v6309 = vpack.c.b16 %v6233, %v6232
    %v6310 = vpack.c.b16 %v6235, %v6234
    %v6311 = vpack.c.b16 %v6237, %v6236
    %v6312 = vpack.c.b16 %v6239, %v6238
    %v6313 = vpack.c.b16 %v6241, %v6240
    %v6314 = vpack.c.b16 %v6243, %v6242
    %v6315 = vpack.c.b16 %v6245, %v6244
    %v6316 = vpack.c.b16 %v6247, %v6246
    %v6317 = vpack.c.b16 %v6249, %v6248
    %v6318 = vpack.c.b16 %v6251, %v6250
    %v6319 = vpack.c.b16 %v6253, %v6252
    %v6320 = vpack.c.b16 %v6255, %v6254
    %v6321 = vpack.c.b16 %v6257, %v6256
    %6386 = vmatprep.subr.bf16.mxu0 0
    %6387 = vmatpush1.bf16.msra.mxu0 %v6265
    %6388 = vmatprep.subr.bf16.mxu0 0
    %6389 = vmatpush1.bf16.msra.mxu0 %v6264
    %6390 = vmatprep.subr.bf16.mxu0 0
    %6391 = vmatpush1.bf16.msra.mxu0 %v6263
    %6392 = vmatprep.subr.bf16.mxu0 0
    %6393 = vmatpush1.bf16.msra.mxu0 %v6262
    %6394 = vmatprep.subr.bf16.mxu0 0
    %6395 = vmatpush1.bf16.msra.mxu0 %v6261
    %6396 = vmatprep.subr.bf16.mxu0 0
    %6397 = vmatpush1.bf16.msra.mxu0 %v6260
    %6398 = vmatprep.subr.bf16.mxu0 0
    %6399 = vmatpush1.bf16.msra.mxu0 %v6259
    %6400 = vmatprep.subr.bf16.mxu0 0
    %6401 = vmatpush1.bf16.msra.mxu0 %v6258
    %6402 = vmatprep.subr.bf16.mxu0 0
    %6403 = vmatpush2.bf16.msra.mxu0 %v6273
    %6404 = vmatprep.subr.bf16.mxu0 0
    %6405 = vmatpush2.bf16.msra.mxu0 %v6272
    %6406 = vmatprep.subr.bf16.mxu0 0
    %6407 = vmatpush2.bf16.msra.mxu0 %v6271
    %6408 = vmatprep.subr.bf16.mxu0 0
    %6409 = vmatpush2.bf16.msra.mxu0 %v6270
    %6410 = vmatprep.subr.bf16.mxu0 0
    %6411 = vmatpush2.bf16.msra.mxu0 %v6269
    %6412 = vmatprep.subr.bf16.mxu0 0
    %6413 = vmatpush2.bf16.msra.mxu0 %v6268
    %6414 = vmatprep.subr.bf16.mxu0 0
    %6415 = vmatpush2.bf16.msra.mxu0 %v6267
    %6416 = vmatprep.subr.bf16.mxu0 0
    %6417 = vmatpush2.bf16.msra.mxu0 %v6266
    %6418 = vmatprep.mubr.bf16.mxu0 %v5866
    %6419 = vmatmul.mubr.bf16.gmra.mxu0 %v5865
    %v6420 = vpop.f32.mrf.mxu0
    %v6421 = vadd.f32 0.0, %v6420
    %v6422 = vpop.f32.mrf.mxu0
    %v6423 = vpop.f32.mrf.mxu0
    %v6424 = vpop.f32.mrf.mxu0
    %6425 = vdwg.mxu0
    %6426 = vmatprep.subr.bf16.mxu0 0
    %6427 = vmatpush1.bf16.msra.mxu0 %v6281
    %6428 = vmatprep.subr.bf16.mxu0 0
    %6429 = vmatpush1.bf16.msra.mxu0 %v6280
    %6430 = vmatprep.subr.bf16.mxu0 0
    %6431 = vmatpush1.bf16.msra.mxu0 %v6279
    %6432 = vmatprep.subr.bf16.mxu0 0
    %6433 = vmatpush1.bf16.msra.mxu0 %v6278
    %6434 = vmatprep.subr.bf16.mxu0 0
    %6435 = vmatpush1.bf16.msra.mxu0 %v6277
    %6436 = vmatprep.subr.bf16.mxu0 0
    %6437 = vmatpush1.bf16.msra.mxu0 %v6276
    %6438 = vmatprep.subr.bf16.mxu0 0
    %6439 = vmatpush1.bf16.msra.mxu0 %v6275
    %6440 = vmatprep.subr.bf16.mxu0 0
    %6441 = vmatpush1.bf16.msra.mxu0 %v6274
    %6442 = vmatprep.subr.bf16.mxu0 0
    %6443 = vmatpush2.bf16.msra.mxu0 %v6289
    %6444 = vmatprep.subr.bf16.mxu0 0
    %6445 = vmatpush2.bf16.msra.mxu0 %v6288
    %6446 = vmatprep.subr.bf16.mxu0 0
    %6447 = vmatpush2.bf16.msra.mxu0 %v6287
    %6448 = vmatprep.subr.bf16.mxu0 0
    %6449 = vmatpush2.bf16.msra.mxu0 %v6286
    %6450 = vmatprep.subr.bf16.mxu0 0
    %6451 = vmatpush2.bf16.msra.mxu0 %v6285
    %6452 = vmatprep.subr.bf16.mxu0 0
    %6453 = vmatpush2.bf16.msra.mxu0 %v6284
    %6454 = vmatprep.subr.bf16.mxu0 0
    %6455 = vmatpush2.bf16.msra.mxu0 %v6283
    %6456 = vmatprep.subr.bf16.mxu0 0
    %6457 = vmatpush2.bf16.msra.mxu0 %v6282
    %6458 = vmatprep.mubr.bf16.mxu0 %v5868
    %6459 = vmatmul.mubr.bf16.gmra.mxu0 %v5867
    %v6460 = vpop.f32.mrf.mxu0
    %v6461 = vadd.f32 %v6421, %v6460
    %v6462 = vpop.f32.mrf.mxu0
    %v6463 = vpop.f32.mrf.mxu0
    %v6464 = vpop.f32.mrf.mxu0
    %6465 = vdwg.mxu0
    %6466 = vmatprep.subr.bf16.mxu0 0
    %6467 = vmatpush1.bf16.msra.mxu0 %v6297
    %6468 = vmatprep.subr.bf16.mxu0 0
    %6469 = vmatpush1.bf16.msra.mxu0 %v6296
    %6470 = vmatprep.subr.bf16.mxu0 0
    %6471 = vmatpush1.bf16.msra.mxu0 %v6295
    %6472 = vmatprep.subr.bf16.mxu0 0
    %6473 = vmatpush1.bf16.msra.mxu0 %v6294
    %6474 = vmatprep.subr.bf16.mxu0 0
    %6475 = vmatpush1.bf16.msra.mxu0 %v6293
    %6476 = vmatprep.subr.bf16.mxu0 0
    %6477 = vmatpush1.bf16.msra.mxu0 %v6292
    %6478 = vmatprep.subr.bf16.mxu0 0
    %6479 = vmatpush1.bf16.msra.mxu0 %v6291
    %6480 = vmatprep.subr.bf16.mxu0 0
    %6481 = vmatpush1.bf16.msra.mxu0 %v6290
    %6482 = vmatprep.subr.bf16.mxu0 0
    %6483 = vmatpush2.bf16.msra.mxu0 %v6305
    %6484 = vmatprep.subr.bf16.mxu0 0
    %6485 = vmatpush2.bf16.msra.mxu0 %v6304
    %6486 = vmatprep.subr.bf16.mxu0 0
    %6487 = vmatpush2.bf16.msra.mxu0 %v6303
    %6488 = vmatprep.subr.bf16.mxu0 0
    %6489 = vmatpush2.bf16.msra.mxu0 %v6302
    %6490 = vmatprep.subr.bf16.mxu0 0
    %6491 = vmatpush2.bf16.msra.mxu0 %v6301
    %6492 = vmatprep.subr.bf16.mxu0 0
    %6493 = vmatpush2.bf16.msra.mxu0 %v6300
    %6494 = vmatprep.subr.bf16.mxu0 0
    %6495 = vmatpush2.bf16.msra.mxu0 %v6299
    %6496 = vmatprep.subr.bf16.mxu0 0
    %6497 = vmatpush2.bf16.msra.mxu0 %v6298
    %6498 = vmatprep.mubr.bf16.mxu0 %v5870
    %6499 = vmatmul.mubr.bf16.gmra.mxu0 %v5869
    %v6500 = vpop.f32.mrf.mxu0
    %v6501 = vadd.f32 %v6461, %v6500
    %v6502 = vpop.f32.mrf.mxu0
    %v6503 = vpop.f32.mrf.mxu0
    %v6504 = vpop.f32.mrf.mxu0
    %6505 = vdwg.mxu0
    %6506 = vmatprep.subr.bf16.mxu0 0
    %6507 = vmatpush1.bf16.msra.mxu0 %v6313
    %6508 = vmatprep.subr.bf16.mxu0 0
    %6509 = vmatpush1.bf16.msra.mxu0 %v6312
    %6510 = vmatprep.subr.bf16.mxu0 0
    %6511 = vmatpush1.bf16.msra.mxu0 %v6311
    %6512 = vmatprep.subr.bf16.mxu0 0
    %6513 = vmatpush1.bf16.msra.mxu0 %v6310
    %6514 = vmatprep.subr.bf16.mxu0 0
    %6515 = vmatpush1.bf16.msra.mxu0 %v6309
    %6516 = vmatprep.subr.bf16.mxu0 0
    %6517 = vmatpush1.bf16.msra.mxu0 %v6308
    %6518 = vmatprep.subr.bf16.mxu0 0
    %6519 = vmatpush1.bf16.msra.mxu0 %v6307
    %6520 = vmatprep.subr.bf16.mxu0 0
    %6521 = vmatpush1.bf16.msra.mxu0 %v6306
    %6522 = vmatprep.subr.bf16.mxu0 0
    %6523 = vmatpush2.bf16.msra.mxu0 %v6321
    %6524 = vmatprep.subr.bf16.mxu0 0
    %6525 = vmatpush2.bf16.msra.mxu0 %v6320
    %6526 = vmatprep.subr.bf16.mxu0 0
    %6527 = vmatpush2.bf16.msra.mxu0 %v6319
    %6528 = vmatprep.subr.bf16.mxu0 0
    %6529 = vmatpush2.bf16.msra.mxu0 %v6318
    %6530 = vmatprep.subr.bf16.mxu0 0
    %6531 = vmatpush2.bf16.msra.mxu0 %v6317
    %6532 = vmatprep.subr.bf16.mxu0 0
    %6533 = vmatpush2.bf16.msra.mxu0 %v6316
    %6534 = vmatprep.subr.bf16.mxu0 0
    %6535 = vmatpush2.bf16.msra.mxu0 %v6315
    %6536 = vmatprep.subr.bf16.mxu0 0
    %6537 = vmatpush2.bf16.msra.mxu0 %v6314
    %6538 = vmatprep.mubr.bf16.mxu0 %v5872
    %6539 = vmatmul.mubr.bf16.gmra.mxu0 %v5871
    %v6540 = vpop.f32.mrf.mxu0
    %v6541 = vadd.f32 %v6501, %v6540
    %v6542 = vpop.f32.mrf.mxu0
    %v6543 = vpop.f32.mrf.mxu0
    %v6544 = vpop.f32.mrf.mxu0
    %6545 = vdwg.mxu0
    %v6546 = vadd.f32 %v5832, %v6541
    %v6547 = vrot.slane %v3133, 2
    %v6548 = vrot.slane %v3136, 2
    %v6549 = vrot.slane %v3139, 2
    %v6550 = vrot.slane %v3142, 2
    %v6551 = vrot.slane %v3145, 2
    %v6552 = vrot.slane %v3148, 2
    %v6553 = vrot.slane %v3151, 2
    %v6554 = vrot.slane %v3154, 2
    %v6563 = vrot.slane %v2953, 2
    %v6564 = vrot.slane %v2954, 2
    %v6565 = vrot.slane %v2955, 2
    %v6566 = vrot.slane %v2956, 2
    %v6567 = vrot.slane %v2957, 2
    %v6568 = vrot.slane %v2958, 2
    %v6569 = vrot.slane %v2959, 2
    %v6570 = vrot.slane %v2960, 2
    %v6579 = vsel %vm2995, %v6547, %v6563
    %v6580 = vsel %vm2995, %v6548, %v6564
    %v6581 = vsel %vm2995, %v6549, %v6565
    %v6582 = vsel %vm2995, %v6550, %v6566
    %v6583 = vsel %vm2995, %v6551, %v6567
    %v6584 = vsel %vm2995, %v6552, %v6568
    %v6585 = vsel %vm2995, %v6553, %v6569
    %v6586 = vsel %vm2995, %v6554, %v6570
    %s6587 = scalar_lea.vmem %s3, 2560
    %v6588 = vld [vmem:[%s6587] sm:$0xf]
    %v6589 = vld [vmem:[%s6587 + $0x4] sm:$0xf]
    %v6590 = vld [vmem:[%s6587 + $0x8] sm:$0xf]
    %v6591 = vld [vmem:[%s6587 + $0xc] sm:$0xf]
    %v6592 = vld [vmem:[%s6587 + $0x10] sm:$0xf]
    %v6593 = vld [vmem:[%s6587 + $0x14] sm:$0xf]
    %v6594 = vld [vmem:[%s6587 + $0x18] sm:$0xf]
    %v6595 = vld [vmem:[%s6587 + $0x1c] sm:$0xf]
    %v6596 = vld [vmem:[%s6587 + $0x20] sm:$0xf]
    %v6597 = vld [vmem:[%s6587 + $0x24] sm:$0xf]
    %v6598 = vld [vmem:[%s6587 + $0x28] sm:$0xf]
    %v6599 = vld [vmem:[%s6587 + $0x2c] sm:$0xf]
    %v6600 = vld [vmem:[%s6587 + $0x30] sm:$0xf]
    %v6601 = vld [vmem:[%s6587 + $0x34] sm:$0xf]
    %v6602 = vld [vmem:[%s6587 + $0x38] sm:$0xf]
    %v6603 = vld [vmem:[%s6587 + $0x3c] sm:$0xf]
    %v6604 = vld [vmem:[%s6587 + $0x40] sm:$0xf]
    %v6605 = vld [vmem:[%s6587 + $0x44] sm:$0xf]
    %v6606 = vld [vmem:[%s6587 + $0x48] sm:$0xf]
    %v6607 = vld [vmem:[%s6587 + $0x4c] sm:$0xf]
    %v6608 = vld [vmem:[%s6587 + $0x50] sm:$0xf]
    %v6609 = vld [vmem:[%s6587 + $0x54] sm:$0xf]
    %v6610 = vld [vmem:[%s6587 + $0x58] sm:$0xf]
    %v6611 = vld [vmem:[%s6587 + $0x5c] sm:$0xf]
    %v6612 = vld [vmem:[%s6587 + $0x60] sm:$0xf]
    %v6613 = vld [vmem:[%s6587 + $0x64] sm:$0xf]
    %v6614 = vld [vmem:[%s6587 + $0x68] sm:$0xf]
    %v6615 = vld [vmem:[%s6587 + $0x6c] sm:$0xf]
    %v6616 = vld [vmem:[%s6587 + $0x70] sm:$0xf]
    %v6617 = vld [vmem:[%s6587 + $0x74] sm:$0xf]
    %v6618 = vld [vmem:[%s6587 + $0x78] sm:$0xf]
    %v6619 = vld [vmem:[%s6587 + $0x7c] sm:$0xf]
    %v6620 = vld [vmem:[%s6587 + $0x80] sm:$0xf]
    %v6621 = vld [vmem:[%s6587 + $0x84] sm:$0xf]
    %v6622 = vld [vmem:[%s6587 + $0x88] sm:$0xf]
    %v6623 = vld [vmem:[%s6587 + $0x8c] sm:$0xf]
    %v6624 = vld [vmem:[%s6587 + $0x90] sm:$0xf]
    %v6625 = vld [vmem:[%s6587 + $0x94] sm:$0xf]
    %v6626 = vld [vmem:[%s6587 + $0x98] sm:$0xf]
    %v6627 = vld [vmem:[%s6587 + $0x9c] sm:$0xf]
    %v6628 = vld [vmem:[%s6587 + $0xa0] sm:$0xf]
    %v6629 = vld [vmem:[%s6587 + $0xa4] sm:$0xf]
    %v6630 = vld [vmem:[%s6587 + $0xa8] sm:$0xf]
    %v6631 = vld [vmem:[%s6587 + $0xac] sm:$0xf]
    %v6632 = vld [vmem:[%s6587 + $0xb0] sm:$0xf]
    %v6633 = vld [vmem:[%s6587 + $0xb4] sm:$0xf]
    %v6634 = vld [vmem:[%s6587 + $0xb8] sm:$0xf]
    %v6635 = vld [vmem:[%s6587 + $0xbc] sm:$0xf]
    %v6636 = vld [vmem:[%s6587 + $0xc0] sm:$0xf]
    %v6637 = vld [vmem:[%s6587 + $0xc4] sm:$0xf]
    %v6638 = vld [vmem:[%s6587 + $0xc8] sm:$0xf]
    %v6639 = vld [vmem:[%s6587 + $0xcc] sm:$0xf]
    %v6640 = vld [vmem:[%s6587 + $0xd0] sm:$0xf]
    %v6641 = vld [vmem:[%s6587 + $0xd4] sm:$0xf]
    %v6642 = vld [vmem:[%s6587 + $0xd8] sm:$0xf]
    %v6643 = vld [vmem:[%s6587 + $0xdc] sm:$0xf]
    %v6644 = vld [vmem:[%s6587 + $0xe0] sm:$0xf]
    %v6645 = vld [vmem:[%s6587 + $0xe4] sm:$0xf]
    %v6646 = vld [vmem:[%s6587 + $0xe8] sm:$0xf]
    %v6647 = vld [vmem:[%s6587 + $0xec] sm:$0xf]
    %v6648 = vld [vmem:[%s6587 + $0xf0] sm:$0xf]
    %v6649 = vld [vmem:[%s6587 + $0xf4] sm:$0xf]
    %v6650 = vld [vmem:[%s6587 + $0xf8] sm:$0xf]
    %v6651 = vld [vmem:[%s6587 + $0xfc] sm:$0xf]
    %v6652 = vld [vmem:[%s6587 + $0x100] sm:$0xf]
    %v6653 = vld [vmem:[%s6587 + $0x104] sm:$0xf]
    %v6654 = vld [vmem:[%s6587 + $0x108] sm:$0xf]
    %v6655 = vld [vmem:[%s6587 + $0x10c] sm:$0xf]
    %v6656 = vld [vmem:[%s6587 + $0x110] sm:$0xf]
    %v6657 = vld [vmem:[%s6587 + $0x114] sm:$0xf]
    %v6658 = vld [vmem:[%s6587 + $0x118] sm:$0xf]
    %v6659 = vld [vmem:[%s6587 + $0x11c] sm:$0xf]
    %v6660 = vld [vmem:[%s6587 + $0x120] sm:$0xf]
    %v6661 = vld [vmem:[%s6587 + $0x124] sm:$0xf]
    %v6662 = vld [vmem:[%s6587 + $0x128] sm:$0xf]
    %v6663 = vld [vmem:[%s6587 + $0x12c] sm:$0xf]
    %v6664 = vld [vmem:[%s6587 + $0x130] sm:$0xf]
    %v6665 = vld [vmem:[%s6587 + $0x134] sm:$0xf]
    %v6666 = vld [vmem:[%s6587 + $0x138] sm:$0xf]
    %v6667 = vld [vmem:[%s6587 + $0x13c] sm:$0xf]
    %v6668 = vld [vmem:[%s6587 + $0x140] sm:$0xf]
    %v6669 = vld [vmem:[%s6587 + $0x144] sm:$0xf]
    %v6670 = vld [vmem:[%s6587 + $0x148] sm:$0xf]
    %v6671 = vld [vmem:[%s6587 + $0x14c] sm:$0xf]
    %v6672 = vld [vmem:[%s6587 + $0x150] sm:$0xf]
    %v6673 = vld [vmem:[%s6587 + $0x154] sm:$0xf]
    %v6674 = vld [vmem:[%s6587 + $0x158] sm:$0xf]
    %v6675 = vld [vmem:[%s6587 + $0x15c] sm:$0xf]
    %v6676 = vld [vmem:[%s6587 + $0x160] sm:$0xf]
    %v6677 = vld [vmem:[%s6587 + $0x164] sm:$0xf]
    %v6678 = vld [vmem:[%s6587 + $0x168] sm:$0xf]
    %v6679 = vld [vmem:[%s6587 + $0x16c] sm:$0xf]
    %v6680 = vld [vmem:[%s6587 + $0x170] sm:$0xf]
    %v6681 = vld [vmem:[%s6587 + $0x174] sm:$0xf]
    %v6682 = vld [vmem:[%s6587 + $0x178] sm:$0xf]
    %v6683 = vld [vmem:[%s6587 + $0x17c] sm:$0xf]
    %v6684 = vld [vmem:[%s6587 + $0x180] sm:$0xf]
    %v6685 = vld [vmem:[%s6587 + $0x184] sm:$0xf]
    %v6686 = vld [vmem:[%s6587 + $0x188] sm:$0xf]
    %v6687 = vld [vmem:[%s6587 + $0x18c] sm:$0xf]
    %v6688 = vld [vmem:[%s6587 + $0x190] sm:$0xf]
    %v6689 = vld [vmem:[%s6587 + $0x194] sm:$0xf]
    %v6690 = vld [vmem:[%s6587 + $0x198] sm:$0xf]
    %v6691 = vld [vmem:[%s6587 + $0x19c] sm:$0xf]
    %v6692 = vld [vmem:[%s6587 + $0x1a0] sm:$0xf]
    %v6693 = vld [vmem:[%s6587 + $0x1a4] sm:$0xf]
    %v6694 = vld [vmem:[%s6587 + $0x1a8] sm:$0xf]
    %v6695 = vld [vmem:[%s6587 + $0x1ac] sm:$0xf]
    %v6696 = vld [vmem:[%s6587 + $0x1b0] sm:$0xf]
    %v6697 = vld [vmem:[%s6587 + $0x1b4] sm:$0xf]
    %v6698 = vld [vmem:[%s6587 + $0x1b8] sm:$0xf]
    %v6699 = vld [vmem:[%s6587 + $0x1bc] sm:$0xf]
    %v6700 = vld [vmem:[%s6587 + $0x1c0] sm:$0xf]
    %v6701 = vld [vmem:[%s6587 + $0x1c4] sm:$0xf]
    %v6702 = vld [vmem:[%s6587 + $0x1c8] sm:$0xf]
    %v6703 = vld [vmem:[%s6587 + $0x1cc] sm:$0xf]
    %v6704 = vld [vmem:[%s6587 + $0x1d0] sm:$0xf]
    %v6705 = vld [vmem:[%s6587 + $0x1d4] sm:$0xf]
    %v6706 = vld [vmem:[%s6587 + $0x1d8] sm:$0xf]
    %v6707 = vld [vmem:[%s6587 + $0x1dc] sm:$0xf]
    %v6708 = vld [vmem:[%s6587 + $0x1e0] sm:$0xf]
    %v6709 = vld [vmem:[%s6587 + $0x1e4] sm:$0xf]
    %v6710 = vld [vmem:[%s6587 + $0x1e8] sm:$0xf]
    %v6711 = vld [vmem:[%s6587 + $0x1ec] sm:$0xf]
    %v6712 = vld [vmem:[%s6587 + $0x1f0] sm:$0xf]
    %v6713 = vld [vmem:[%s6587 + $0x1f4] sm:$0xf]
    %v6714 = vld [vmem:[%s6587 + $0x1f8] sm:$0xf]
    %v6715 = vld [vmem:[%s6587 + $0x1fc] sm:$0xf]
    %v6844 = vunpack.c.l.b16 %v6588
    %v6845 = vunpack.c.l.b16 %v6589
    %v6846 = vunpack.c.l.b16 %v6590
    %v6847 = vunpack.c.l.b16 %v6591
    %v6848 = vunpack.c.l.b16 %v6592
    %v6849 = vunpack.c.l.b16 %v6593
    %v6850 = vunpack.c.l.b16 %v6594
    %v6851 = vunpack.c.l.b16 %v6595
    %v6852 = vunpack.c.l.b16 %v6596
    %v6853 = vunpack.c.l.b16 %v6597
    %v6854 = vunpack.c.l.b16 %v6598
    %v6855 = vunpack.c.l.b16 %v6599
    %v6856 = vunpack.c.l.b16 %v6600
    %v6857 = vunpack.c.l.b16 %v6601
    %v6858 = vunpack.c.l.b16 %v6602
    %v6859 = vunpack.c.l.b16 %v6603
    %v6860 = vunpack.c.l.b16 %v6604
    %v6861 = vunpack.c.l.b16 %v6605
    %v6862 = vunpack.c.l.b16 %v6606
    %v6863 = vunpack.c.l.b16 %v6607
    %v6864 = vunpack.c.l.b16 %v6608
    %v6865 = vunpack.c.l.b16 %v6609
    %v6866 = vunpack.c.l.b16 %v6610
    %v6867 = vunpack.c.l.b16 %v6611
    %v6868 = vunpack.c.l.b16 %v6612
    %v6869 = vunpack.c.l.b16 %v6613
    %v6870 = vunpack.c.l.b16 %v6614
    %v6871 = vunpack.c.l.b16 %v6615
    %v6872 = vunpack.c.l.b16 %v6616
    %v6873 = vunpack.c.l.b16 %v6617
    %v6874 = vunpack.c.l.b16 %v6618
    %v6875 = vunpack.c.l.b16 %v6619
    %v6876 = vunpack.c.l.b16 %v6620
    %v6877 = vunpack.c.l.b16 %v6621
    %v6878 = vunpack.c.l.b16 %v6622
    %v6879 = vunpack.c.l.b16 %v6623
    %v6880 = vunpack.c.l.b16 %v6624
    %v6881 = vunpack.c.l.b16 %v6625
    %v6882 = vunpack.c.l.b16 %v6626
    %v6883 = vunpack.c.l.b16 %v6627
    %v6884 = vunpack.c.l.b16 %v6628
    %v6885 = vunpack.c.l.b16 %v6629
    %v6886 = vunpack.c.l.b16 %v6630
    %v6887 = vunpack.c.l.b16 %v6631
    %v6888 = vunpack.c.l.b16 %v6632
    %v6889 = vunpack.c.l.b16 %v6633
    %v6890 = vunpack.c.l.b16 %v6634
    %v6891 = vunpack.c.l.b16 %v6635
    %v6892 = vunpack.c.l.b16 %v6636
    %v6893 = vunpack.c.l.b16 %v6637
    %v6894 = vunpack.c.l.b16 %v6638
    %v6895 = vunpack.c.l.b16 %v6639
    %v6896 = vunpack.c.l.b16 %v6640
    %v6897 = vunpack.c.l.b16 %v6641
    %v6898 = vunpack.c.l.b16 %v6642
    %v6899 = vunpack.c.l.b16 %v6643
    %v6900 = vunpack.c.l.b16 %v6644
    %v6901 = vunpack.c.l.b16 %v6645
    %v6902 = vunpack.c.l.b16 %v6646
    %v6903 = vunpack.c.l.b16 %v6647
    %v6904 = vunpack.c.l.b16 %v6648
    %v6905 = vunpack.c.l.b16 %v6649
    %v6906 = vunpack.c.l.b16 %v6650
    %v6907 = vunpack.c.l.b16 %v6651
    %v6908 = vunpack.c.l.b16 %v6652
    %v6909 = vunpack.c.l.b16 %v6653
    %v6910 = vunpack.c.l.b16 %v6654
    %v6911 = vunpack.c.l.b16 %v6655
    %v6912 = vunpack.c.l.b16 %v6656
    %v6913 = vunpack.c.l.b16 %v6657
    %v6914 = vunpack.c.l.b16 %v6658
    %v6915 = vunpack.c.l.b16 %v6659
    %v6916 = vunpack.c.l.b16 %v6660
    %v6917 = vunpack.c.l.b16 %v6661
    %v6918 = vunpack.c.l.b16 %v6662
    %v6919 = vunpack.c.l.b16 %v6663
    %v6920 = vunpack.c.l.b16 %v6664
    %v6921 = vunpack.c.l.b16 %v6665
    %v6922 = vunpack.c.l.b16 %v6666
    %v6923 = vunpack.c.l.b16 %v6667
    %v6924 = vunpack.c.l.b16 %v6668
    %v6925 = vunpack.c.l.b16 %v6669
    %v6926 = vunpack.c.l.b16 %v6670
    %v6927 = vunpack.c.l.b16 %v6671
    %v6928 = vunpack.c.l.b16 %v6672
    %v6929 = vunpack.c.l.b16 %v6673
    %v6930 = vunpack.c.l.b16 %v6674
    %v6931 = vunpack.c.l.b16 %v6675
    %v6932 = vunpack.c.l.b16 %v6676
    %v6933 = vunpack.c.l.b16 %v6677
    %v6934 = vunpack.c.l.b16 %v6678
    %v6935 = vunpack.c.l.b16 %v6679
    %v6936 = vunpack.c.l.b16 %v6680
    %v6937 = vunpack.c.l.b16 %v6681
    %v6938 = vunpack.c.l.b16 %v6682
    %v6939 = vunpack.c.l.b16 %v6683
    %v6940 = vunpack.c.l.b16 %v6684
    %v6941 = vunpack.c.l.b16 %v6685
    %v6942 = vunpack.c.l.b16 %v6686
    %v6943 = vunpack.c.l.b16 %v6687
    %v6944 = vunpack.c.l.b16 %v6688
    %v6945 = vunpack.c.l.b16 %v6689
    %v6946 = vunpack.c.l.b16 %v6690
    %v6947 = vunpack.c.l.b16 %v6691
    %v6948 = vunpack.c.l.b16 %v6692
    %v6949 = vunpack.c.l.b16 %v6693
    %v6950 = vunpack.c.l.b16 %v6694
    %v6951 = vunpack.c.l.b16 %v6695
    %v6952 = vunpack.c.l.b16 %v6696
    %v6953 = vunpack.c.l.b16 %v6697
    %v6954 = vunpack.c.l.b16 %v6698
    %v6955 = vunpack.c.l.b16 %v6699
    %v6956 = vunpack.c.l.b16 %v6700
    %v6957 = vunpack.c.l.b16 %v6701
    %v6958 = vunpack.c.l.b16 %v6702
    %v6959 = vunpack.c.l.b16 %v6703
    %v6960 = vunpack.c.l.b16 %v6704
    %v6961 = vunpack.c.l.b16 %v6705
    %v6962 = vunpack.c.l.b16 %v6706
    %v6963 = vunpack.c.l.b16 %v6707
    %v6964 = vunpack.c.l.b16 %v6708
    %v6965 = vunpack.c.l.b16 %v6709
    %v6966 = vunpack.c.l.b16 %v6710
    %v6967 = vunpack.c.l.b16 %v6711
    %v6968 = vunpack.c.l.b16 %v6712
    %v6969 = vunpack.c.l.b16 %v6713
    %v6970 = vunpack.c.l.b16 %v6714
    %v6971 = vunpack.c.l.b16 %v6715
    %v6972 = vpack.c.b16 %v6845, %v6844
    %v6973 = vpack.c.b16 %v6847, %v6846
    %v6974 = vpack.c.b16 %v6849, %v6848
    %v6975 = vpack.c.b16 %v6851, %v6850
    %v6976 = vpack.c.b16 %v6853, %v6852
    %v6977 = vpack.c.b16 %v6855, %v6854
    %v6978 = vpack.c.b16 %v6857, %v6856
    %v6979 = vpack.c.b16 %v6859, %v6858
    %v6980 = vpack.c.b16 %v6861, %v6860
    %v6981 = vpack.c.b16 %v6863, %v6862
    %v6982 = vpack.c.b16 %v6865, %v6864
    %v6983 = vpack.c.b16 %v6867, %v6866
    %v6984 = vpack.c.b16 %v6869, %v6868
    %v6985 = vpack.c.b16 %v6871, %v6870
    %v6986 = vpack.c.b16 %v6873, %v6872
    %v6987 = vpack.c.b16 %v6875, %v6874
    %v6988 = vpack.c.b16 %v6877, %v6876
    %v6989 = vpack.c.b16 %v6879, %v6878
    %v6990 = vpack.c.b16 %v6881, %v6880
    %v6991 = vpack.c.b16 %v6883, %v6882
    %v6992 = vpack.c.b16 %v6885, %v6884
    %v6993 = vpack.c.b16 %v6887, %v6886
    %v6994 = vpack.c.b16 %v6889, %v6888
    %v6995 = vpack.c.b16 %v6891, %v6890
    %v6996 = vpack.c.b16 %v6893, %v6892
    %v6997 = vpack.c.b16 %v6895, %v6894
    %v6998 = vpack.c.b16 %v6897, %v6896
    %v6999 = vpack.c.b16 %v6899, %v6898
    %v7000 = vpack.c.b16 %v6901, %v6900
    %v7001 = vpack.c.b16 %v6903, %v6902
    %v7002 = vpack.c.b16 %v6905, %v6904
    %v7003 = vpack.c.b16 %v6907, %v6906
    %v7004 = vpack.c.b16 %v6909, %v6908
    %v7005 = vpack.c.b16 %v6911, %v6910
    %v7006 = vpack.c.b16 %v6913, %v6912
    %v7007 = vpack.c.b16 %v6915, %v6914
    %v7008 = vpack.c.b16 %v6917, %v6916
    %v7009 = vpack.c.b16 %v6919, %v6918
    %v7010 = vpack.c.b16 %v6921, %v6920
    %v7011 = vpack.c.b16 %v6923, %v6922
    %v7012 = vpack.c.b16 %v6925, %v6924
    %v7013 = vpack.c.b16 %v6927, %v6926
    %v7014 = vpack.c.b16 %v6929, %v6928
    %v7015 = vpack.c.b16 %v6931, %v6930
    %v7016 = vpack.c.b16 %v6933, %v6932
    %v7017 = vpack.c.b16 %v6935, %v6934
    %v7018 = vpack.c.b16 %v6937, %v6936
    %v7019 = vpack.c.b16 %v6939, %v6938
    %v7020 = vpack.c.b16 %v6941, %v6940
    %v7021 = vpack.c.b16 %v6943, %v6942
    %v7022 = vpack.c.b16 %v6945, %v6944
    %v7023 = vpack.c.b16 %v6947, %v6946
    %v7024 = vpack.c.b16 %v6949, %v6948
    %v7025 = vpack.c.b16 %v6951, %v6950
    %v7026 = vpack.c.b16 %v6953, %v6952
    %v7027 = vpack.c.b16 %v6955, %v6954
    %v7028 = vpack.c.b16 %v6957, %v6956
    %v7029 = vpack.c.b16 %v6959, %v6958
    %v7030 = vpack.c.b16 %v6961, %v6960
    %v7031 = vpack.c.b16 %v6963, %v6962
    %v7032 = vpack.c.b16 %v6965, %v6964
    %v7033 = vpack.c.b16 %v6967, %v6966
    %v7034 = vpack.c.b16 %v6969, %v6968
    %v7035 = vpack.c.b16 %v6971, %v6970
    %7100 = vmatprep.subr.bf16.mxu0 0
    %7101 = vmatpush1.bf16.msra.mxu0 %v6979
    %7102 = vmatprep.subr.bf16.mxu0 0
    %7103 = vmatpush1.bf16.msra.mxu0 %v6978
    %7104 = vmatprep.subr.bf16.mxu0 0
    %7105 = vmatpush1.bf16.msra.mxu0 %v6977
    %7106 = vmatprep.subr.bf16.mxu0 0
    %7107 = vmatpush1.bf16.msra.mxu0 %v6976
    %7108 = vmatprep.subr.bf16.mxu0 0
    %7109 = vmatpush1.bf16.msra.mxu0 %v6975
    %7110 = vmatprep.subr.bf16.mxu0 0
    %7111 = vmatpush1.bf16.msra.mxu0 %v6974
    %7112 = vmatprep.subr.bf16.mxu0 0
    %7113 = vmatpush1.bf16.msra.mxu0 %v6973
    %7114 = vmatprep.subr.bf16.mxu0 0
    %7115 = vmatpush1.bf16.msra.mxu0 %v6972
    %7116 = vmatprep.subr.bf16.mxu0 0
    %7117 = vmatpush2.bf16.msra.mxu0 %v6987
    %7118 = vmatprep.subr.bf16.mxu0 0
    %7119 = vmatpush2.bf16.msra.mxu0 %v6986
    %7120 = vmatprep.subr.bf16.mxu0 0
    %7121 = vmatpush2.bf16.msra.mxu0 %v6985
    %7122 = vmatprep.subr.bf16.mxu0 0
    %7123 = vmatpush2.bf16.msra.mxu0 %v6984
    %7124 = vmatprep.subr.bf16.mxu0 0
    %7125 = vmatpush2.bf16.msra.mxu0 %v6983
    %7126 = vmatprep.subr.bf16.mxu0 0
    %7127 = vmatpush2.bf16.msra.mxu0 %v6982
    %7128 = vmatprep.subr.bf16.mxu0 0
    %7129 = vmatpush2.bf16.msra.mxu0 %v6981
    %7130 = vmatprep.subr.bf16.mxu0 0
    %7131 = vmatpush2.bf16.msra.mxu0 %v6980
    %7132 = vmatprep.mubr.bf16.mxu0 %v6580
    %7133 = vmatmul.mubr.bf16.gmra.mxu0 %v6579
    %v7134 = vpop.f32.mrf.mxu0
    %v7135 = vadd.f32 0.0, %v7134
    %v7136 = vpop.f32.mrf.mxu0
    %v7137 = vpop.f32.mrf.mxu0
    %v7138 = vpop.f32.mrf.mxu0
    %7139 = vdwg.mxu0
    %7140 = vmatprep.subr.bf16.mxu0 0
    %7141 = vmatpush1.bf16.msra.mxu0 %v6995
    %7142 = vmatprep.subr.bf16.mxu0 0
    %7143 = vmatpush1.bf16.msra.mxu0 %v6994
    %7144 = vmatprep.subr.bf16.mxu0 0
    %7145 = vmatpush1.bf16.msra.mxu0 %v6993
    %7146 = vmatprep.subr.bf16.mxu0 0
    %7147 = vmatpush1.bf16.msra.mxu0 %v6992
    %7148 = vmatprep.subr.bf16.mxu0 0
    %7149 = vmatpush1.bf16.msra.mxu0 %v6991
    %7150 = vmatprep.subr.bf16.mxu0 0
    %7151 = vmatpush1.bf16.msra.mxu0 %v6990
    %7152 = vmatprep.subr.bf16.mxu0 0
    %7153 = vmatpush1.bf16.msra.mxu0 %v6989
    %7154 = vmatprep.subr.bf16.mxu0 0
    %7155 = vmatpush1.bf16.msra.mxu0 %v6988
    %7156 = vmatprep.subr.bf16.mxu0 0
    %7157 = vmatpush2.bf16.msra.mxu0 %v7003
    %7158 = vmatprep.subr.bf16.mxu0 0
    %7159 = vmatpush2.bf16.msra.mxu0 %v7002
    %7160 = vmatprep.subr.bf16.mxu0 0
    %7161 = vmatpush2.bf16.msra.mxu0 %v7001
    %7162 = vmatprep.subr.bf16.mxu0 0
    %7163 = vmatpush2.bf16.msra.mxu0 %v7000
    %7164 = vmatprep.subr.bf16.mxu0 0
    %7165 = vmatpush2.bf16.msra.mxu0 %v6999
    %7166 = vmatprep.subr.bf16.mxu0 0
    %7167 = vmatpush2.bf16.msra.mxu0 %v6998
    %7168 = vmatprep.subr.bf16.mxu0 0
    %7169 = vmatpush2.bf16.msra.mxu0 %v6997
    %7170 = vmatprep.subr.bf16.mxu0 0
    %7171 = vmatpush2.bf16.msra.mxu0 %v6996
    %7172 = vmatprep.mubr.bf16.mxu0 %v6582
    %7173 = vmatmul.mubr.bf16.gmra.mxu0 %v6581
    %v7174 = vpop.f32.mrf.mxu0
    %v7175 = vadd.f32 %v7135, %v7174
    %v7176 = vpop.f32.mrf.mxu0
    %v7177 = vpop.f32.mrf.mxu0
    %v7178 = vpop.f32.mrf.mxu0
    %7179 = vdwg.mxu0
    %7180 = vmatprep.subr.bf16.mxu0 0
    %7181 = vmatpush1.bf16.msra.mxu0 %v7011
    %7182 = vmatprep.subr.bf16.mxu0 0
    %7183 = vmatpush1.bf16.msra.mxu0 %v7010
    %7184 = vmatprep.subr.bf16.mxu0 0
    %7185 = vmatpush1.bf16.msra.mxu0 %v7009
    %7186 = vmatprep.subr.bf16.mxu0 0
    %7187 = vmatpush1.bf16.msra.mxu0 %v7008
    %7188 = vmatprep.subr.bf16.mxu0 0
    %7189 = vmatpush1.bf16.msra.mxu0 %v7007
    %7190 = vmatprep.subr.bf16.mxu0 0
    %7191 = vmatpush1.bf16.msra.mxu0 %v7006
    %7192 = vmatprep.subr.bf16.mxu0 0
    %7193 = vmatpush1.bf16.msra.mxu0 %v7005
    %7194 = vmatprep.subr.bf16.mxu0 0
    %7195 = vmatpush1.bf16.msra.mxu0 %v7004
    %7196 = vmatprep.subr.bf16.mxu0 0
    %7197 = vmatpush2.bf16.msra.mxu0 %v7019
    %7198 = vmatprep.subr.bf16.mxu0 0
    %7199 = vmatpush2.bf16.msra.mxu0 %v7018
    %7200 = vmatprep.subr.bf16.mxu0 0
    %7201 = vmatpush2.bf16.msra.mxu0 %v7017
    %7202 = vmatprep.subr.bf16.mxu0 0
    %7203 = vmatpush2.bf16.msra.mxu0 %v7016
    %7204 = vmatprep.subr.bf16.mxu0 0
    %7205 = vmatpush2.bf16.msra.mxu0 %v7015
    %7206 = vmatprep.subr.bf16.mxu0 0
    %7207 = vmatpush2.bf16.msra.mxu0 %v7014
    %7208 = vmatprep.subr.bf16.mxu0 0
    %7209 = vmatpush2.bf16.msra.mxu0 %v7013
    %7210 = vmatprep.subr.bf16.mxu0 0
    %7211 = vmatpush2.bf16.msra.mxu0 %v7012
    %7212 = vmatprep.mubr.bf16.mxu0 %v6584
    %7213 = vmatmul.mubr.bf16.gmra.mxu0 %v6583
    %v7214 = vpop.f32.mrf.mxu0
    %v7215 = vadd.f32 %v7175, %v7214
    %v7216 = vpop.f32.mrf.mxu0
    %v7217 = vpop.f32.mrf.mxu0
    %v7218 = vpop.f32.mrf.mxu0
    %7219 = vdwg.mxu0
    %7220 = vmatprep.subr.bf16.mxu0 0
    %7221 = vmatpush1.bf16.msra.mxu0 %v7027
    %7222 = vmatprep.subr.bf16.mxu0 0
    %7223 = vmatpush1.bf16.msra.mxu0 %v7026
    %7224 = vmatprep.subr.bf16.mxu0 0
    %7225 = vmatpush1.bf16.msra.mxu0 %v7025
    %7226 = vmatprep.subr.bf16.mxu0 0
    %7227 = vmatpush1.bf16.msra.mxu0 %v7024
    %7228 = vmatprep.subr.bf16.mxu0 0
    %7229 = vmatpush1.bf16.msra.mxu0 %v7023
    %7230 = vmatprep.subr.bf16.mxu0 0
    %7231 = vmatpush1.bf16.msra.mxu0 %v7022
    %7232 = vmatprep.subr.bf16.mxu0 0
    %7233 = vmatpush1.bf16.msra.mxu0 %v7021
    %7234 = vmatprep.subr.bf16.mxu0 0
    %7235 = vmatpush1.bf16.msra.mxu0 %v7020
    %7236 = vmatprep.subr.bf16.mxu0 0
    %7237 = vmatpush2.bf16.msra.mxu0 %v7035
    %7238 = vmatprep.subr.bf16.mxu0 0
    %7239 = vmatpush2.bf16.msra.mxu0 %v7034
    %7240 = vmatprep.subr.bf16.mxu0 0
    %7241 = vmatpush2.bf16.msra.mxu0 %v7033
    %7242 = vmatprep.subr.bf16.mxu0 0
    %7243 = vmatpush2.bf16.msra.mxu0 %v7032
    %7244 = vmatprep.subr.bf16.mxu0 0
    %7245 = vmatpush2.bf16.msra.mxu0 %v7031
    %7246 = vmatprep.subr.bf16.mxu0 0
    %7247 = vmatpush2.bf16.msra.mxu0 %v7030
    %7248 = vmatprep.subr.bf16.mxu0 0
    %7249 = vmatpush2.bf16.msra.mxu0 %v7029
    %7250 = vmatprep.subr.bf16.mxu0 0
    %7251 = vmatpush2.bf16.msra.mxu0 %v7028
    %7252 = vmatprep.mubr.bf16.mxu0 %v6586
    %7253 = vmatmul.mubr.bf16.gmra.mxu0 %v6585
    %v7254 = vpop.f32.mrf.mxu0
    %v7255 = vadd.f32 %v7215, %v7254
    %v7256 = vpop.f32.mrf.mxu0
    %v7257 = vpop.f32.mrf.mxu0
    %v7258 = vpop.f32.mrf.mxu0
    %7259 = vdwg.mxu0
    %v7260 = vadd.f32 %v6546, %v7255
    %v7261 = vrot.slane %v2945, 3
    %v7262 = vrot.slane %v2946, 3
    %v7263 = vrot.slane %v2947, 3
    %v7264 = vrot.slane %v2948, 3
    %v7265 = vrot.slane %v2949, 3
    %v7266 = vrot.slane %v2950, 3
    %v7267 = vrot.slane %v2951, 3
    %v7268 = vrot.slane %v2952, 3
    %v7277 = vrot.slane %v2962, 3
    %v7278 = vrot.slane %v2965, 3
    %v7279 = vrot.slane %v2968, 3
    %v7280 = vrot.slane %v2971, 3
    %v7281 = vrot.slane %v2974, 3
    %v7282 = vrot.slane %v2977, 3
    %v7283 = vrot.slane %v2980, 3
    %v7284 = vrot.slane %v2983, 3
    %v7293 = vsel %vm2995, %v7261, %v7277
    %v7294 = vsel %vm2995, %v7262, %v7278
    %v7295 = vsel %vm2995, %v7263, %v7279
    %v7296 = vsel %vm2995, %v7264, %v7280
    %v7297 = vsel %vm2995, %v7265, %v7281
    %v7298 = vsel %vm2995, %v7266, %v7282
    %v7299 = vsel %vm2995, %v7267, %v7283
    %v7300 = vsel %vm2995, %v7268, %v7284
    %s7301 = scalar_lea.vmem %s3, 3072
    %v7302 = vld [vmem:[%s7301] sm:$0xf]
    %v7303 = vld [vmem:[%s7301 + $0x4] sm:$0xf]
    %v7304 = vld [vmem:[%s7301 + $0x8] sm:$0xf]
    %v7305 = vld [vmem:[%s7301 + $0xc] sm:$0xf]
    %v7306 = vld [vmem:[%s7301 + $0x10] sm:$0xf]
    %v7307 = vld [vmem:[%s7301 + $0x14] sm:$0xf]
    %v7308 = vld [vmem:[%s7301 + $0x18] sm:$0xf]
    %v7309 = vld [vmem:[%s7301 + $0x1c] sm:$0xf]
    %v7310 = vld [vmem:[%s7301 + $0x20] sm:$0xf]
    %v7311 = vld [vmem:[%s7301 + $0x24] sm:$0xf]
    %v7312 = vld [vmem:[%s7301 + $0x28] sm:$0xf]
    %v7313 = vld [vmem:[%s7301 + $0x2c] sm:$0xf]
    %v7314 = vld [vmem:[%s7301 + $0x30] sm:$0xf]
    %v7315 = vld [vmem:[%s7301 + $0x34] sm:$0xf]
    %v7316 = vld [vmem:[%s7301 + $0x38] sm:$0xf]
    %v7317 = vld [vmem:[%s7301 + $0x3c] sm:$0xf]
    %v7318 = vld [vmem:[%s7301 + $0x40] sm:$0xf]
    %v7319 = vld [vmem:[%s7301 + $0x44] sm:$0xf]
    %v7320 = vld [vmem:[%s7301 + $0x48] sm:$0xf]
    %v7321 = vld [vmem:[%s7301 + $0x4c] sm:$0xf]
    %v7322 = vld [vmem:[%s7301 + $0x50] sm:$0xf]
    %v7323 = vld [vmem:[%s7301 + $0x54] sm:$0xf]
    %v7324 = vld [vmem:[%s7301 + $0x58] sm:$0xf]
    %v7325 = vld [vmem:[%s7301 + $0x5c] sm:$0xf]
    %v7326 = vld [vmem:[%s7301 + $0x60] sm:$0xf]
    %v7327 = vld [vmem:[%s7301 + $0x64] sm:$0xf]
    %v7328 = vld [vmem:[%s7301 + $0x68] sm:$0xf]
    %v7329 = vld [vmem:[%s7301 + $0x6c] sm:$0xf]
    %v7330 = vld [vmem:[%s7301 + $0x70] sm:$0xf]
    %v7331 = vld [vmem:[%s7301 + $0x74] sm:$0xf]
    %v7332 = vld [vmem:[%s7301 + $0x78] sm:$0xf]
    %v7333 = vld [vmem:[%s7301 + $0x7c] sm:$0xf]
    %v7334 = vld [vmem:[%s7301 + $0x80] sm:$0xf]
    %v7335 = vld [vmem:[%s7301 + $0x84] sm:$0xf]
    %v7336 = vld [vmem:[%s7301 + $0x88] sm:$0xf]
    %v7337 = vld [vmem:[%s7301 + $0x8c] sm:$0xf]
    %v7338 = vld [vmem:[%s7301 + $0x90] sm:$0xf]
    %v7339 = vld [vmem:[%s7301 + $0x94] sm:$0xf]
    %v7340 = vld [vmem:[%s7301 + $0x98] sm:$0xf]
    %v7341 = vld [vmem:[%s7301 + $0x9c] sm:$0xf]
    %v7342 = vld [vmem:[%s7301 + $0xa0] sm:$0xf]
    %v7343 = vld [vmem:[%s7301 + $0xa4] sm:$0xf]
    %v7344 = vld [vmem:[%s7301 + $0xa8] sm:$0xf]
    %v7345 = vld [vmem:[%s7301 + $0xac] sm:$0xf]
    %v7346 = vld [vmem:[%s7301 + $0xb0] sm:$0xf]
    %v7347 = vld [vmem:[%s7301 + $0xb4] sm:$0xf]
    %v7348 = vld [vmem:[%s7301 + $0xb8] sm:$0xf]
    %v7349 = vld [vmem:[%s7301 + $0xbc] sm:$0xf]
    %v7350 = vld [vmem:[%s7301 + $0xc0] sm:$0xf]
    %v7351 = vld [vmem:[%s7301 + $0xc4] sm:$0xf]
    %v7352 = vld [vmem:[%s7301 + $0xc8] sm:$0xf]
    %v7353 = vld [vmem:[%s7301 + $0xcc] sm:$0xf]
    %v7354 = vld [vmem:[%s7301 + $0xd0] sm:$0xf]
    %v7355 = vld [vmem:[%s7301 + $0xd4] sm:$0xf]
    %v7356 = vld [vmem:[%s7301 + $0xd8] sm:$0xf]
    %v7357 = vld [vmem:[%s7301 + $0xdc] sm:$0xf]
    %v7358 = vld [vmem:[%s7301 + $0xe0] sm:$0xf]
    %v7359 = vld [vmem:[%s7301 + $0xe4] sm:$0xf]
    %v7360 = vld [vmem:[%s7301 + $0xe8] sm:$0xf]
    %v7361 = vld [vmem:[%s7301 + $0xec] sm:$0xf]
    %v7362 = vld [vmem:[%s7301 + $0xf0] sm:$0xf]
    %v7363 = vld [vmem:[%s7301 + $0xf4] sm:$0xf]
    %v7364 = vld [vmem:[%s7301 + $0xf8] sm:$0xf]
    %v7365 = vld [vmem:[%s7301 + $0xfc] sm:$0xf]
    %v7366 = vld [vmem:[%s7301 + $0x100] sm:$0xf]
    %v7367 = vld [vmem:[%s7301 + $0x104] sm:$0xf]
    %v7368 = vld [vmem:[%s7301 + $0x108] sm:$0xf]
    %v7369 = vld [vmem:[%s7301 + $0x10c] sm:$0xf]
    %v7370 = vld [vmem:[%s7301 + $0x110] sm:$0xf]
    %v7371 = vld [vmem:[%s7301 + $0x114] sm:$0xf]
    %v7372 = vld [vmem:[%s7301 + $0x118] sm:$0xf]
    %v7373 = vld [vmem:[%s7301 + $0x11c] sm:$0xf]
    %v7374 = vld [vmem:[%s7301 + $0x120] sm:$0xf]
    %v7375 = vld [vmem:[%s7301 + $0x124] sm:$0xf]
    %v7376 = vld [vmem:[%s7301 + $0x128] sm:$0xf]
    %v7377 = vld [vmem:[%s7301 + $0x12c] sm:$0xf]
    %v7378 = vld [vmem:[%s7301 + $0x130] sm:$0xf]
    %v7379 = vld [vmem:[%s7301 + $0x134] sm:$0xf]
    %v7380 = vld [vmem:[%s7301 + $0x138] sm:$0xf]
    %v7381 = vld [vmem:[%s7301 + $0x13c] sm:$0xf]
    %v7382 = vld [vmem:[%s7301 + $0x140] sm:$0xf]
    %v7383 = vld [vmem:[%s7301 + $0x144] sm:$0xf]
    %v7384 = vld [vmem:[%s7301 + $0x148] sm:$0xf]
    %v7385 = vld [vmem:[%s7301 + $0x14c] sm:$0xf]
    %v7386 = vld [vmem:[%s7301 + $0x150] sm:$0xf]
    %v7387 = vld [vmem:[%s7301 + $0x154] sm:$0xf]
    %v7388 = vld [vmem:[%s7301 + $0x158] sm:$0xf]
    %v7389 = vld [vmem:[%s7301 + $0x15c] sm:$0xf]
    %v7390 = vld [vmem:[%s7301 + $0x160] sm:$0xf]
    %v7391 = vld [vmem:[%s7301 + $0x164] sm:$0xf]
    %v7392 = vld [vmem:[%s7301 + $0x168] sm:$0xf]
    %v7393 = vld [vmem:[%s7301 + $0x16c] sm:$0xf]
    %v7394 = vld [vmem:[%s7301 + $0x170] sm:$0xf]
    %v7395 = vld [vmem:[%s7301 + $0x174] sm:$0xf]
    %v7396 = vld [vmem:[%s7301 + $0x178] sm:$0xf]
    %v7397 = vld [vmem:[%s7301 + $0x17c] sm:$0xf]
    %v7398 = vld [vmem:[%s7301 + $0x180] sm:$0xf]
    %v7399 = vld [vmem:[%s7301 + $0x184] sm:$0xf]
    %v7400 = vld [vmem:[%s7301 + $0x188] sm:$0xf]
    %v7401 = vld [vmem:[%s7301 + $0x18c] sm:$0xf]
    %v7402 = vld [vmem:[%s7301 + $0x190] sm:$0xf]
    %v7403 = vld [vmem:[%s7301 + $0x194] sm:$0xf]
    %v7404 = vld [vmem:[%s7301 + $0x198] sm:$0xf]
    %v7405 = vld [vmem:[%s7301 + $0x19c] sm:$0xf]
    %v7406 = vld [vmem:[%s7301 + $0x1a0] sm:$0xf]
    %v7407 = vld [vmem:[%s7301 + $0x1a4] sm:$0xf]
    %v7408 = vld [vmem:[%s7301 + $0x1a8] sm:$0xf]
    %v7409 = vld [vmem:[%s7301 + $0x1ac] sm:$0xf]
    %v7410 = vld [vmem:[%s7301 + $0x1b0] sm:$0xf]
    %v7411 = vld [vmem:[%s7301 + $0x1b4] sm:$0xf]
    %v7412 = vld [vmem:[%s7301 + $0x1b8] sm:$0xf]
    %v7413 = vld [vmem:[%s7301 + $0x1bc] sm:$0xf]
    %v7414 = vld [vmem:[%s7301 + $0x1c0] sm:$0xf]
    %v7415 = vld [vmem:[%s7301 + $0x1c4] sm:$0xf]
    %v7416 = vld [vmem:[%s7301 + $0x1c8] sm:$0xf]
    %v7417 = vld [vmem:[%s7301 + $0x1cc] sm:$0xf]
    %v7418 = vld [vmem:[%s7301 + $0x1d0] sm:$0xf]
    %v7419 = vld [vmem:[%s7301 + $0x1d4] sm:$0xf]
    %v7420 = vld [vmem:[%s7301 + $0x1d8] sm:$0xf]
    %v7421 = vld [vmem:[%s7301 + $0x1dc] sm:$0xf]
    %v7422 = vld [vmem:[%s7301 + $0x1e0] sm:$0xf]
    %v7423 = vld [vmem:[%s7301 + $0x1e4] sm:$0xf]
    %v7424 = vld [vmem:[%s7301 + $0x1e8] sm:$0xf]
    %v7425 = vld [vmem:[%s7301 + $0x1ec] sm:$0xf]
    %v7426 = vld [vmem:[%s7301 + $0x1f0] sm:$0xf]
    %v7427 = vld [vmem:[%s7301 + $0x1f4] sm:$0xf]
    %v7428 = vld [vmem:[%s7301 + $0x1f8] sm:$0xf]
    %v7429 = vld [vmem:[%s7301 + $0x1fc] sm:$0xf]
    %v7558 = vunpack.c.l.b16 %v7302
    %v7559 = vunpack.c.l.b16 %v7303
    %v7560 = vunpack.c.l.b16 %v7304
    %v7561 = vunpack.c.l.b16 %v7305
    %v7562 = vunpack.c.l.b16 %v7306
    %v7563 = vunpack.c.l.b16 %v7307
    %v7564 = vunpack.c.l.b16 %v7308
    %v7565 = vunpack.c.l.b16 %v7309
    %v7566 = vunpack.c.l.b16 %v7310
    %v7567 = vunpack.c.l.b16 %v7311
    %v7568 = vunpack.c.l.b16 %v7312
    %v7569 = vunpack.c.l.b16 %v7313
    %v7570 = vunpack.c.l.b16 %v7314
    %v7571 = vunpack.c.l.b16 %v7315
    %v7572 = vunpack.c.l.b16 %v7316
    %v7573 = vunpack.c.l.b16 %v7317
    %v7574 = vunpack.c.l.b16 %v7318
    %v7575 = vunpack.c.l.b16 %v7319
    %v7576 = vunpack.c.l.b16 %v7320
    %v7577 = vunpack.c.l.b16 %v7321
    %v7578 = vunpack.c.l.b16 %v7322
    %v7579 = vunpack.c.l.b16 %v7323
    %v7580 = vunpack.c.l.b16 %v7324
    %v7581 = vunpack.c.l.b16 %v7325
    %v7582 = vunpack.c.l.b16 %v7326
    %v7583 = vunpack.c.l.b16 %v7327
    %v7584 = vunpack.c.l.b16 %v7328
    %v7585 = vunpack.c.l.b16 %v7329
    %v7586 = vunpack.c.l.b16 %v7330
    %v7587 = vunpack.c.l.b16 %v7331
    %v7588 = vunpack.c.l.b16 %v7332
    %v7589 = vunpack.c.l.b16 %v7333
    %v7590 = vunpack.c.l.b16 %v7334
    %v7591 = vunpack.c.l.b16 %v7335
    %v7592 = vunpack.c.l.b16 %v7336
    %v7593 = vunpack.c.l.b16 %v7337
    %v7594 = vunpack.c.l.b16 %v7338
    %v7595 = vunpack.c.l.b16 %v7339
    %v7596 = vunpack.c.l.b16 %v7340
    %v7597 = vunpack.c.l.b16 %v7341
    %v7598 = vunpack.c.l.b16 %v7342
    %v7599 = vunpack.c.l.b16 %v7343
    %v7600 = vunpack.c.l.b16 %v7344
    %v7601 = vunpack.c.l.b16 %v7345
    %v7602 = vunpack.c.l.b16 %v7346
    %v7603 = vunpack.c.l.b16 %v7347
    %v7604 = vunpack.c.l.b16 %v7348
    %v7605 = vunpack.c.l.b16 %v7349
    %v7606 = vunpack.c.l.b16 %v7350
    %v7607 = vunpack.c.l.b16 %v7351
    %v7608 = vunpack.c.l.b16 %v7352
    %v7609 = vunpack.c.l.b16 %v7353
    %v7610 = vunpack.c.l.b16 %v7354
    %v7611 = vunpack.c.l.b16 %v7355
    %v7612 = vunpack.c.l.b16 %v7356
    %v7613 = vunpack.c.l.b16 %v7357
    %v7614 = vunpack.c.l.b16 %v7358
    %v7615 = vunpack.c.l.b16 %v7359
    %v7616 = vunpack.c.l.b16 %v7360
    %v7617 = vunpack.c.l.b16 %v7361
    %v7618 = vunpack.c.l.b16 %v7362
    %v7619 = vunpack.c.l.b16 %v7363
    %v7620 = vunpack.c.l.b16 %v7364
    %v7621 = vunpack.c.l.b16 %v7365
    %v7622 = vunpack.c.l.b16 %v7366
    %v7623 = vunpack.c.l.b16 %v7367
    %v7624 = vunpack.c.l.b16 %v7368
    %v7625 = vunpack.c.l.b16 %v7369
    %v7626 = vunpack.c.l.b16 %v7370
    %v7627 = vunpack.c.l.b16 %v7371
    %v7628 = vunpack.c.l.b16 %v7372
    %v7629 = vunpack.c.l.b16 %v7373
    %v7630 = vunpack.c.l.b16 %v7374
    %v7631 = vunpack.c.l.b16 %v7375
    %v7632 = vunpack.c.l.b16 %v7376
    %v7633 = vunpack.c.l.b16 %v7377
    %v7634 = vunpack.c.l.b16 %v7378
    %v7635 = vunpack.c.l.b16 %v7379
    %v7636 = vunpack.c.l.b16 %v7380
    %v7637 = vunpack.c.l.b16 %v7381
    %v7638 = vunpack.c.l.b16 %v7382
    %v7639 = vunpack.c.l.b16 %v7383
    %v7640 = vunpack.c.l.b16 %v7384
    %v7641 = vunpack.c.l.b16 %v7385
    %v7642 = vunpack.c.l.b16 %v7386
    %v7643 = vunpack.c.l.b16 %v7387
    %v7644 = vunpack.c.l.b16 %v7388
    %v7645 = vunpack.c.l.b16 %v7389
    %v7646 = vunpack.c.l.b16 %v7390
    %v7647 = vunpack.c.l.b16 %v7391
    %v7648 = vunpack.c.l.b16 %v7392
    %v7649 = vunpack.c.l.b16 %v7393
    %v7650 = vunpack.c.l.b16 %v7394
    %v7651 = vunpack.c.l.b16 %v7395
    %v7652 = vunpack.c.l.b16 %v7396
    %v7653 = vunpack.c.l.b16 %v7397
    %v7654 = vunpack.c.l.b16 %v7398
    %v7655 = vunpack.c.l.b16 %v7399
    %v7656 = vunpack.c.l.b16 %v7400
    %v7657 = vunpack.c.l.b16 %v7401
    %v7658 = vunpack.c.l.b16 %v7402
    %v7659 = vunpack.c.l.b16 %v7403
    %v7660 = vunpack.c.l.b16 %v7404
    %v7661 = vunpack.c.l.b16 %v7405
    %v7662 = vunpack.c.l.b16 %v7406
    %v7663 = vunpack.c.l.b16 %v7407
    %v7664 = vunpack.c.l.b16 %v7408
    %v7665 = vunpack.c.l.b16 %v7409
    %v7666 = vunpack.c.l.b16 %v7410
    %v7667 = vunpack.c.l.b16 %v7411
    %v7668 = vunpack.c.l.b16 %v7412
    %v7669 = vunpack.c.l.b16 %v7413
    %v7670 = vunpack.c.l.b16 %v7414
    %v7671 = vunpack.c.l.b16 %v7415
    %v7672 = vunpack.c.l.b16 %v7416
    %v7673 = vunpack.c.l.b16 %v7417
    %v7674 = vunpack.c.l.b16 %v7418
    %v7675 = vunpack.c.l.b16 %v7419
    %v7676 = vunpack.c.l.b16 %v7420
    %v7677 = vunpack.c.l.b16 %v7421
    %v7678 = vunpack.c.l.b16 %v7422
    %v7679 = vunpack.c.l.b16 %v7423
    %v7680 = vunpack.c.l.b16 %v7424
    %v7681 = vunpack.c.l.b16 %v7425
    %v7682 = vunpack.c.l.b16 %v7426
    %v7683 = vunpack.c.l.b16 %v7427
    %v7684 = vunpack.c.l.b16 %v7428
    %v7685 = vunpack.c.l.b16 %v7429
    %v7686 = vpack.c.b16 %v7559, %v7558
    %v7687 = vpack.c.b16 %v7561, %v7560
    %v7688 = vpack.c.b16 %v7563, %v7562
    %v7689 = vpack.c.b16 %v7565, %v7564
    %v7690 = vpack.c.b16 %v7567, %v7566
    %v7691 = vpack.c.b16 %v7569, %v7568
    %v7692 = vpack.c.b16 %v7571, %v7570
    %v7693 = vpack.c.b16 %v7573, %v7572
    %v7694 = vpack.c.b16 %v7575, %v7574
    %v7695 = vpack.c.b16 %v7577, %v7576
    %v7696 = vpack.c.b16 %v7579, %v7578
    %v7697 = vpack.c.b16 %v7581, %v7580
    %v7698 = vpack.c.b16 %v7583, %v7582
    %v7699 = vpack.c.b16 %v7585, %v7584
    %v7700 = vpack.c.b16 %v7587, %v7586
    %v7701 = vpack.c.b16 %v7589, %v7588
    %v7702 = vpack.c.b16 %v7591, %v7590
    %v7703 = vpack.c.b16 %v7593, %v7592
    %v7704 = vpack.c.b16 %v7595, %v7594
    %v7705 = vpack.c.b16 %v7597, %v7596
    %v7706 = vpack.c.b16 %v7599, %v7598
    %v7707 = vpack.c.b16 %v7601, %v7600
    %v7708 = vpack.c.b16 %v7603, %v7602
    %v7709 = vpack.c.b16 %v7605, %v7604
    %v7710 = vpack.c.b16 %v7607, %v7606
    %v7711 = vpack.c.b16 %v7609, %v7608
    %v7712 = vpack.c.b16 %v7611, %v7610
    %v7713 = vpack.c.b16 %v7613, %v7612
    %v7714 = vpack.c.b16 %v7615, %v7614
    %v7715 = vpack.c.b16 %v7617, %v7616
    %v7716 = vpack.c.b16 %v7619, %v7618
    %v7717 = vpack.c.b16 %v7621, %v7620
    %v7718 = vpack.c.b16 %v7623, %v7622
    %v7719 = vpack.c.b16 %v7625, %v7624
    %v7720 = vpack.c.b16 %v7627, %v7626
    %v7721 = vpack.c.b16 %v7629, %v7628
    %v7722 = vpack.c.b16 %v7631, %v7630
    %v7723 = vpack.c.b16 %v7633, %v7632
    %v7724 = vpack.c.b16 %v7635, %v7634
    %v7725 = vpack.c.b16 %v7637, %v7636
    %v7726 = vpack.c.b16 %v7639, %v7638
    %v7727 = vpack.c.b16 %v7641, %v7640
    %v7728 = vpack.c.b16 %v7643, %v7642
    %v7729 = vpack.c.b16 %v7645, %v7644
    %v7730 = vpack.c.b16 %v7647, %v7646
    %v7731 = vpack.c.b16 %v7649, %v7648
    %v7732 = vpack.c.b16 %v7651, %v7650
    %v7733 = vpack.c.b16 %v7653, %v7652
    %v7734 = vpack.c.b16 %v7655, %v7654
    %v7735 = vpack.c.b16 %v7657, %v7656
    %v7736 = vpack.c.b16 %v7659, %v7658
    %v7737 = vpack.c.b16 %v7661, %v7660
    %v7738 = vpack.c.b16 %v7663, %v7662
    %v7739 = vpack.c.b16 %v7665, %v7664
    %v7740 = vpack.c.b16 %v7667, %v7666
    %v7741 = vpack.c.b16 %v7669, %v7668
    %v7742 = vpack.c.b16 %v7671, %v7670
    %v7743 = vpack.c.b16 %v7673, %v7672
    %v7744 = vpack.c.b16 %v7675, %v7674
    %v7745 = vpack.c.b16 %v7677, %v7676
    %v7746 = vpack.c.b16 %v7679, %v7678
    %v7747 = vpack.c.b16 %v7681, %v7680
    %v7748 = vpack.c.b16 %v7683, %v7682
    %v7749 = vpack.c.b16 %v7685, %v7684
    %7814 = vmatprep.subr.bf16.mxu0 0
    %7815 = vmatpush1.bf16.msra.mxu0 %v7693
    %7816 = vmatprep.subr.bf16.mxu0 0
    %7817 = vmatpush1.bf16.msra.mxu0 %v7692
    %7818 = vmatprep.subr.bf16.mxu0 0
    %7819 = vmatpush1.bf16.msra.mxu0 %v7691
    %7820 = vmatprep.subr.bf16.mxu0 0
    %7821 = vmatpush1.bf16.msra.mxu0 %v7690
    %7822 = vmatprep.subr.bf16.mxu0 0
    %7823 = vmatpush1.bf16.msra.mxu0 %v7689
    %7824 = vmatprep.subr.bf16.mxu0 0
    %7825 = vmatpush1.bf16.msra.mxu0 %v7688
    %7826 = vmatprep.subr.bf16.mxu0 0
    %7827 = vmatpush1.bf16.msra.mxu0 %v7687
    %7828 = vmatprep.subr.bf16.mxu0 0
    %7829 = vmatpush1.bf16.msra.mxu0 %v7686
    %7830 = vmatprep.subr.bf16.mxu0 0
    %7831 = vmatpush2.bf16.msra.mxu0 %v7701
    %7832 = vmatprep.subr.bf16.mxu0 0
    %7833 = vmatpush2.bf16.msra.mxu0 %v7700
    %7834 = vmatprep.subr.bf16.mxu0 0
    %7835 = vmatpush2.bf16.msra.mxu0 %v7699
    %7836 = vmatprep.subr.bf16.mxu0 0
    %7837 = vmatpush2.bf16.msra.mxu0 %v7698
    %7838 = vmatprep.subr.bf16.mxu0 0
    %7839 = vmatpush2.bf16.msra.mxu0 %v7697
    %7840 = vmatprep.subr.bf16.mxu0 0
    %7841 = vmatpush2.bf16.msra.mxu0 %v7696
    %7842 = vmatprep.subr.bf16.mxu0 0
    %7843 = vmatpush2.bf16.msra.mxu0 %v7695
    %7844 = vmatprep.subr.bf16.mxu0 0
    %7845 = vmatpush2.bf16.msra.mxu0 %v7694
    %7846 = vmatprep.mubr.bf16.mxu0 %v7294
    %7847 = vmatmul.mubr.bf16.gmra.mxu0 %v7293
    %v7848 = vpop.f32.mrf.mxu0
    %v7849 = vadd.f32 0.0, %v7848
    %v7850 = vpop.f32.mrf.mxu0
    %v7851 = vpop.f32.mrf.mxu0
    %v7852 = vpop.f32.mrf.mxu0
    %7853 = vdwg.mxu0
    %7854 = vmatprep.subr.bf16.mxu0 0
    %7855 = vmatpush1.bf16.msra.mxu0 %v7709
    %7856 = vmatprep.subr.bf16.mxu0 0
    %7857 = vmatpush1.bf16.msra.mxu0 %v7708
    %7858 = vmatprep.subr.bf16.mxu0 0
    %7859 = vmatpush1.bf16.msra.mxu0 %v7707
    %7860 = vmatprep.subr.bf16.mxu0 0
    %7861 = vmatpush1.bf16.msra.mxu0 %v7706
    %7862 = vmatprep.subr.bf16.mxu0 0
    %7863 = vmatpush1.bf16.msra.mxu0 %v7705
    %7864 = vmatprep.subr.bf16.mxu0 0
    %7865 = vmatpush1.bf16.msra.mxu0 %v7704
    %7866 = vmatprep.subr.bf16.mxu0 0
    %7867 = vmatpush1.bf16.msra.mxu0 %v7703
    %7868 = vmatprep.subr.bf16.mxu0 0
    %7869 = vmatpush1.bf16.msra.mxu0 %v7702
    %7870 = vmatprep.subr.bf16.mxu0 0
    %7871 = vmatpush2.bf16.msra.mxu0 %v7717
    %7872 = vmatprep.subr.bf16.mxu0 0
    %7873 = vmatpush2.bf16.msra.mxu0 %v7716
    %7874 = vmatprep.subr.bf16.mxu0 0
    %7875 = vmatpush2.bf16.msra.mxu0 %v7715
    %7876 = vmatprep.subr.bf16.mxu0 0
    %7877 = vmatpush2.bf16.msra.mxu0 %v7714
    %7878 = vmatprep.subr.bf16.mxu0 0
    %7879 = vmatpush2.bf16.msra.mxu0 %v7713
    %7880 = vmatprep.subr.bf16.mxu0 0
    %7881 = vmatpush2.bf16.msra.mxu0 %v7712
    %7882 = vmatprep.subr.bf16.mxu0 0
    %7883 = vmatpush2.bf16.msra.mxu0 %v7711
    %7884 = vmatprep.subr.bf16.mxu0 0
    %7885 = vmatpush2.bf16.msra.mxu0 %v7710
    %7886 = vmatprep.mubr.bf16.mxu0 %v7296
    %7887 = vmatmul.mubr.bf16.gmra.mxu0 %v7295
    %v7888 = vpop.f32.mrf.mxu0
    %v7889 = vadd.f32 %v7849, %v7888
    %v7890 = vpop.f32.mrf.mxu0
    %v7891 = vpop.f32.mrf.mxu0
    %v7892 = vpop.f32.mrf.mxu0
    %7893 = vdwg.mxu0
    %7894 = vmatprep.subr.bf16.mxu0 0
    %7895 = vmatpush1.bf16.msra.mxu0 %v7725
    %7896 = vmatprep.subr.bf16.mxu0 0
    %7897 = vmatpush1.bf16.msra.mxu0 %v7724
    %7898 = vmatprep.subr.bf16.mxu0 0
    %7899 = vmatpush1.bf16.msra.mxu0 %v7723
    %7900 = vmatprep.subr.bf16.mxu0 0
    %7901 = vmatpush1.bf16.msra.mxu0 %v7722
    %7902 = vmatprep.subr.bf16.mxu0 0
    %7903 = vmatpush1.bf16.msra.mxu0 %v7721
    %7904 = vmatprep.subr.bf16.mxu0 0
    %7905 = vmatpush1.bf16.msra.mxu0 %v7720
    %7906 = vmatprep.subr.bf16.mxu0 0
    %7907 = vmatpush1.bf16.msra.mxu0 %v7719
    %7908 = vmatprep.subr.bf16.mxu0 0
    %7909 = vmatpush1.bf16.msra.mxu0 %v7718
    %7910 = vmatprep.subr.bf16.mxu0 0
    %7911 = vmatpush2.bf16.msra.mxu0 %v7733
    %7912 = vmatprep.subr.bf16.mxu0 0
    %7913 = vmatpush2.bf16.msra.mxu0 %v7732
    %7914 = vmatprep.subr.bf16.mxu0 0
    %7915 = vmatpush2.bf16.msra.mxu0 %v7731
    %7916 = vmatprep.subr.bf16.mxu0 0
    %7917 = vmatpush2.bf16.msra.mxu0 %v7730
    %7918 = vmatprep.subr.bf16.mxu0 0
    %7919 = vmatpush2.bf16.msra.mxu0 %v7729
    %7920 = vmatprep.subr.bf16.mxu0 0
    %7921 = vmatpush2.bf16.msra.mxu0 %v7728
    %7922 = vmatprep.subr.bf16.mxu0 0
    %7923 = vmatpush2.bf16.msra.mxu0 %v7727
    %7924 = vmatprep.subr.bf16.mxu0 0
    %7925 = vmatpush2.bf16.msra.mxu0 %v7726
    %7926 = vmatprep.mubr.bf16.mxu0 %v7298
    %7927 = vmatmul.mubr.bf16.gmra.mxu0 %v7297
    %v7928 = vpop.f32.mrf.mxu0
    %v7929 = vadd.f32 %v7889, %v7928
    %v7930 = vpop.f32.mrf.mxu0
    %v7931 = vpop.f32.mrf.mxu0
    %v7932 = vpop.f32.mrf.mxu0
    %7933 = vdwg.mxu0
    %7934 = vmatprep.subr.bf16.mxu0 0
    %7935 = vmatpush1.bf16.msra.mxu0 %v7741
    %7936 = vmatprep.subr.bf16.mxu0 0
    %7937 = vmatpush1.bf16.msra.mxu0 %v7740
    %7938 = vmatprep.subr.bf16.mxu0 0
    %7939 = vmatpush1.bf16.msra.mxu0 %v7739
    %7940 = vmatprep.subr.bf16.mxu0 0
    %7941 = vmatpush1.bf16.msra.mxu0 %v7738
    %7942 = vmatprep.subr.bf16.mxu0 0
    %7943 = vmatpush1.bf16.msra.mxu0 %v7737
    %7944 = vmatprep.subr.bf16.mxu0 0
    %7945 = vmatpush1.bf16.msra.mxu0 %v7736
    %7946 = vmatprep.subr.bf16.mxu0 0
    %7947 = vmatpush1.bf16.msra.mxu0 %v7735
    %7948 = vmatprep.subr.bf16.mxu0 0
    %7949 = vmatpush1.bf16.msra.mxu0 %v7734
    %7950 = vmatprep.subr.bf16.mxu0 0
    %7951 = vmatpush2.bf16.msra.mxu0 %v7749
    %7952 = vmatprep.subr.bf16.mxu0 0
    %7953 = vmatpush2.bf16.msra.mxu0 %v7748
    %7954 = vmatprep.subr.bf16.mxu0 0
    %7955 = vmatpush2.bf16.msra.mxu0 %v7747
    %7956 = vmatprep.subr.bf16.mxu0 0
    %7957 = vmatpush2.bf16.msra.mxu0 %v7746
    %7958 = vmatprep.subr.bf16.mxu0 0
    %7959 = vmatpush2.bf16.msra.mxu0 %v7745
    %7960 = vmatprep.subr.bf16.mxu0 0
    %7961 = vmatpush2.bf16.msra.mxu0 %v7744
    %7962 = vmatprep.subr.bf16.mxu0 0
    %7963 = vmatpush2.bf16.msra.mxu0 %v7743
    %7964 = vmatprep.subr.bf16.mxu0 0
    %7965 = vmatpush2.bf16.msra.mxu0 %v7742
    %7966 = vmatprep.mubr.bf16.mxu0 %v7300
    %7967 = vmatmul.mubr.bf16.gmra.mxu0 %v7299
    %v7968 = vpop.f32.mrf.mxu0
    %v7969 = vadd.f32 %v7929, %v7968
    %v7970 = vpop.f32.mrf.mxu0
    %v7971 = vpop.f32.mrf.mxu0
    %v7972 = vpop.f32.mrf.mxu0
    %7973 = vdwg.mxu0
    %v7974 = vadd.f32 %v7260, %v7969
    %v7975 = vrot.slane %v3133, 3
    %v7976 = vrot.slane %v3136, 3
    %v7977 = vrot.slane %v3139, 3
    %v7978 = vrot.slane %v3142, 3
    %v7979 = vrot.slane %v3145, 3
    %v7980 = vrot.slane %v3148, 3
    %v7981 = vrot.slane %v3151, 3
    %v7982 = vrot.slane %v3154, 3
    %v7991 = vrot.slane %v2953, 3
    %v7992 = vrot.slane %v2954, 3
    %v7993 = vrot.slane %v2955, 3
    %v7994 = vrot.slane %v2956, 3
    %v7995 = vrot.slane %v2957, 3
    %v7996 = vrot.slane %v2958, 3
    %v7997 = vrot.slane %v2959, 3
    %v7998 = vrot.slane %v2960, 3
    %v8007 = vsel %vm2995, %v7975, %v7991
    %v8008 = vsel %vm2995, %v7976, %v7992
    %v8009 = vsel %vm2995, %v7977, %v7993
    %v8010 = vsel %vm2995, %v7978, %v7994
    %v8011 = vsel %vm2995, %v7979, %v7995
    %v8012 = vsel %vm2995, %v7980, %v7996
    %v8013 = vsel %vm2995, %v7981, %v7997
    %v8014 = vsel %vm2995, %v7982, %v7998
    %s8015 = scalar_lea.vmem %s3, 3584
    %v8016 = vld [vmem:[%s8015] sm:$0xf]
    %v8017 = vld [vmem:[%s8015 + $0x4] sm:$0xf]
    %v8018 = vld [vmem:[%s8015 + $0x8] sm:$0xf]
    %v8019 = vld [vmem:[%s8015 + $0xc] sm:$0xf]
    %v8020 = vld [vmem:[%s8015 + $0x10] sm:$0xf]
    %v8021 = vld [vmem:[%s8015 + $0x14] sm:$0xf]
    %v8022 = vld [vmem:[%s8015 + $0x18] sm:$0xf]
    %v8023 = vld [vmem:[%s8015 + $0x1c] sm:$0xf]
    %v8024 = vld [vmem:[%s8015 + $0x20] sm:$0xf]
    %v8025 = vld [vmem:[%s8015 + $0x24] sm:$0xf]
    %v8026 = vld [vmem:[%s8015 + $0x28] sm:$0xf]
    %v8027 = vld [vmem:[%s8015 + $0x2c] sm:$0xf]
    %v8028 = vld [vmem:[%s8015 + $0x30] sm:$0xf]
    %v8029 = vld [vmem:[%s8015 + $0x34] sm:$0xf]
    %v8030 = vld [vmem:[%s8015 + $0x38] sm:$0xf]
    %v8031 = vld [vmem:[%s8015 + $0x3c] sm:$0xf]
    %v8032 = vld [vmem:[%s8015 + $0x40] sm:$0xf]
    %v8033 = vld [vmem:[%s8015 + $0x44] sm:$0xf]
    %v8034 = vld [vmem:[%s8015 + $0x48] sm:$0xf]
    %v8035 = vld [vmem:[%s8015 + $0x4c] sm:$0xf]
    %v8036 = vld [vmem:[%s8015 + $0x50] sm:$0xf]
    %v8037 = vld [vmem:[%s8015 + $0x54] sm:$0xf]
    %v8038 = vld [vmem:[%s8015 + $0x58] sm:$0xf]
    %v8039 = vld [vmem:[%s8015 + $0x5c] sm:$0xf]
    %v8040 = vld [vmem:[%s8015 + $0x60] sm:$0xf]
    %v8041 = vld [vmem:[%s8015 + $0x64] sm:$0xf]
    %v8042 = vld [vmem:[%s8015 + $0x68] sm:$0xf]
    %v8043 = vld [vmem:[%s8015 + $0x6c] sm:$0xf]
    %v8044 = vld [vmem:[%s8015 + $0x70] sm:$0xf]
    %v8045 = vld [vmem:[%s8015 + $0x74] sm:$0xf]
    %v8046 = vld [vmem:[%s8015 + $0x78] sm:$0xf]
    %v8047 = vld [vmem:[%s8015 + $0x7c] sm:$0xf]
    %v8048 = vld [vmem:[%s8015 + $0x80] sm:$0xf]
    %v8049 = vld [vmem:[%s8015 + $0x84] sm:$0xf]
    %v8050 = vld [vmem:[%s8015 + $0x88] sm:$0xf]
    %v8051 = vld [vmem:[%s8015 + $0x8c] sm:$0xf]
    %v8052 = vld [vmem:[%s8015 + $0x90] sm:$0xf]
    %v8053 = vld [vmem:[%s8015 + $0x94] sm:$0xf]
    %v8054 = vld [vmem:[%s8015 + $0x98] sm:$0xf]
    %v8055 = vld [vmem:[%s8015 + $0x9c] sm:$0xf]
    %v8056 = vld [vmem:[%s8015 + $0xa0] sm:$0xf]
    %v8057 = vld [vmem:[%s8015 + $0xa4] sm:$0xf]
    %v8058 = vld [vmem:[%s8015 + $0xa8] sm:$0xf]
    %v8059 = vld [vmem:[%s8015 + $0xac] sm:$0xf]
    %v8060 = vld [vmem:[%s8015 + $0xb0] sm:$0xf]
    %v8061 = vld [vmem:[%s8015 + $0xb4] sm:$0xf]
    %v8062 = vld [vmem:[%s8015 + $0xb8] sm:$0xf]
    %v8063 = vld [vmem:[%s8015 + $0xbc] sm:$0xf]
    %v8064 = vld [vmem:[%s8015 + $0xc0] sm:$0xf]
    %v8065 = vld [vmem:[%s8015 + $0xc4] sm:$0xf]
    %v8066 = vld [vmem:[%s8015 + $0xc8] sm:$0xf]
    %v8067 = vld [vmem:[%s8015 + $0xcc] sm:$0xf]
    %v8068 = vld [vmem:[%s8015 + $0xd0] sm:$0xf]
    %v8069 = vld [vmem:[%s8015 + $0xd4] sm:$0xf]
    %v8070 = vld [vmem:[%s8015 + $0xd8] sm:$0xf]
    %v8071 = vld [vmem:[%s8015 + $0xdc] sm:$0xf]
    %v8072 = vld [vmem:[%s8015 + $0xe0] sm:$0xf]
    %v8073 = vld [vmem:[%s8015 + $0xe4] sm:$0xf]
    %v8074 = vld [vmem:[%s8015 + $0xe8] sm:$0xf]
    %v8075 = vld [vmem:[%s8015 + $0xec] sm:$0xf]
    %v8076 = vld [vmem:[%s8015 + $0xf0] sm:$0xf]
    %v8077 = vld [vmem:[%s8015 + $0xf4] sm:$0xf]
    %v8078 = vld [vmem:[%s8015 + $0xf8] sm:$0xf]
    %v8079 = vld [vmem:[%s8015 + $0xfc] sm:$0xf]
    %v8080 = vld [vmem:[%s8015 + $0x100] sm:$0xf]
    %v8081 = vld [vmem:[%s8015 + $0x104] sm:$0xf]
    %v8082 = vld [vmem:[%s8015 + $0x108] sm:$0xf]
    %v8083 = vld [vmem:[%s8015 + $0x10c] sm:$0xf]
    %v8084 = vld [vmem:[%s8015 + $0x110] sm:$0xf]
    %v8085 = vld [vmem:[%s8015 + $0x114] sm:$0xf]
    %v8086 = vld [vmem:[%s8015 + $0x118] sm:$0xf]
    %v8087 = vld [vmem:[%s8015 + $0x11c] sm:$0xf]
    %v8088 = vld [vmem:[%s8015 + $0x120] sm:$0xf]
    %v8089 = vld [vmem:[%s8015 + $0x124] sm:$0xf]
    %v8090 = vld [vmem:[%s8015 + $0x128] sm:$0xf]
    %v8091 = vld [vmem:[%s8015 + $0x12c] sm:$0xf]
    %v8092 = vld [vmem:[%s8015 + $0x130] sm:$0xf]
    %v8093 = vld [vmem:[%s8015 + $0x134] sm:$0xf]
    %v8094 = vld [vmem:[%s8015 + $0x138] sm:$0xf]
    %v8095 = vld [vmem:[%s8015 + $0x13c] sm:$0xf]
    %v8096 = vld [vmem:[%s8015 + $0x140] sm:$0xf]
    %v8097 = vld [vmem:[%s8015 + $0x144] sm:$0xf]
    %v8098 = vld [vmem:[%s8015 + $0x148] sm:$0xf]
    %v8099 = vld [vmem:[%s8015 + $0x14c] sm:$0xf]
    %v8100 = vld [vmem:[%s8015 + $0x150] sm:$0xf]
    %v8101 = vld [vmem:[%s8015 + $0x154] sm:$0xf]
    %v8102 = vld [vmem:[%s8015 + $0x158] sm:$0xf]
    %v8103 = vld [vmem:[%s8015 + $0x15c] sm:$0xf]
    %v8104 = vld [vmem:[%s8015 + $0x160] sm:$0xf]
    %v8105 = vld [vmem:[%s8015 + $0x164] sm:$0xf]
    %v8106 = vld [vmem:[%s8015 + $0x168] sm:$0xf]
    %v8107 = vld [vmem:[%s8015 + $0x16c] sm:$0xf]
    %v8108 = vld [vmem:[%s8015 + $0x170] sm:$0xf]
    %v8109 = vld [vmem:[%s8015 + $0x174] sm:$0xf]
    %v8110 = vld [vmem:[%s8015 + $0x178] sm:$0xf]
    %v8111 = vld [vmem:[%s8015 + $0x17c] sm:$0xf]
    %v8112 = vld [vmem:[%s8015 + $0x180] sm:$0xf]
    %v8113 = vld [vmem:[%s8015 + $0x184] sm:$0xf]
    %v8114 = vld [vmem:[%s8015 + $0x188] sm:$0xf]
    %v8115 = vld [vmem:[%s8015 + $0x18c] sm:$0xf]
    %v8116 = vld [vmem:[%s8015 + $0x190] sm:$0xf]
    %v8117 = vld [vmem:[%s8015 + $0x194] sm:$0xf]
    %v8118 = vld [vmem:[%s8015 + $0x198] sm:$0xf]
    %v8119 = vld [vmem:[%s8015 + $0x19c] sm:$0xf]
    %v8120 = vld [vmem:[%s8015 + $0x1a0] sm:$0xf]
    %v8121 = vld [vmem:[%s8015 + $0x1a4] sm:$0xf]
    %v8122 = vld [vmem:[%s8015 + $0x1a8] sm:$0xf]
    %v8123 = vld [vmem:[%s8015 + $0x1ac] sm:$0xf]
    %v8124 = vld [vmem:[%s8015 + $0x1b0] sm:$0xf]
    %v8125 = vld [vmem:[%s8015 + $0x1b4] sm:$0xf]
    %v8126 = vld [vmem:[%s8015 + $0x1b8] sm:$0xf]
    %v8127 = vld [vmem:[%s8015 + $0x1bc] sm:$0xf]
    %v8128 = vld [vmem:[%s8015 + $0x1c0] sm:$0xf]
    %v8129 = vld [vmem:[%s8015 + $0x1c4] sm:$0xf]
    %v8130 = vld [vmem:[%s8015 + $0x1c8] sm:$0xf]
    %v8131 = vld [vmem:[%s8015 + $0x1cc] sm:$0xf]
    %v8132 = vld [vmem:[%s8015 + $0x1d0] sm:$0xf]
    %v8133 = vld [vmem:[%s8015 + $0x1d4] sm:$0xf]
    %v8134 = vld [vmem:[%s8015 + $0x1d8] sm:$0xf]
    %v8135 = vld [vmem:[%s8015 + $0x1dc] sm:$0xf]
    %v8136 = vld [vmem:[%s8015 + $0x1e0] sm:$0xf]
    %v8137 = vld [vmem:[%s8015 + $0x1e4] sm:$0xf]
    %v8138 = vld [vmem:[%s8015 + $0x1e8] sm:$0xf]
    %v8139 = vld [vmem:[%s8015 + $0x1ec] sm:$0xf]
    %v8140 = vld [vmem:[%s8015 + $0x1f0] sm:$0xf]
    %v8141 = vld [vmem:[%s8015 + $0x1f4] sm:$0xf]
    %v8142 = vld [vmem:[%s8015 + $0x1f8] sm:$0xf]
    %v8143 = vld [vmem:[%s8015 + $0x1fc] sm:$0xf]
    %v8272 = vunpack.c.l.b16 %v8016
    %v8273 = vunpack.c.l.b16 %v8017
    %v8274 = vunpack.c.l.b16 %v8018
    %v8275 = vunpack.c.l.b16 %v8019
    %v8276 = vunpack.c.l.b16 %v8020
    %v8277 = vunpack.c.l.b16 %v8021
    %v8278 = vunpack.c.l.b16 %v8022
    %v8279 = vunpack.c.l.b16 %v8023
    %v8280 = vunpack.c.l.b16 %v8024
    %v8281 = vunpack.c.l.b16 %v8025
    %v8282 = vunpack.c.l.b16 %v8026
    %v8283 = vunpack.c.l.b16 %v8027
    %v8284 = vunpack.c.l.b16 %v8028
    %v8285 = vunpack.c.l.b16 %v8029
    %v8286 = vunpack.c.l.b16 %v8030
    %v8287 = vunpack.c.l.b16 %v8031
    %v8288 = vunpack.c.l.b16 %v8032
    %v8289 = vunpack.c.l.b16 %v8033
    %v8290 = vunpack.c.l.b16 %v8034
    %v8291 = vunpack.c.l.b16 %v8035
    %v8292 = vunpack.c.l.b16 %v8036
    %v8293 = vunpack.c.l.b16 %v8037
    %v8294 = vunpack.c.l.b16 %v8038
    %v8295 = vunpack.c.l.b16 %v8039
    %v8296 = vunpack.c.l.b16 %v8040
    %v8297 = vunpack.c.l.b16 %v8041
    %v8298 = vunpack.c.l.b16 %v8042
    %v8299 = vunpack.c.l.b16 %v8043
    %v8300 = vunpack.c.l.b16 %v8044
    %v8301 = vunpack.c.l.b16 %v8045
    %v8302 = vunpack.c.l.b16 %v8046
    %v8303 = vunpack.c.l.b16 %v8047
    %v8304 = vunpack.c.l.b16 %v8048
    %v8305 = vunpack.c.l.b16 %v8049
    %v8306 = vunpack.c.l.b16 %v8050
    %v8307 = vunpack.c.l.b16 %v8051
    %v8308 = vunpack.c.l.b16 %v8052
    %v8309 = vunpack.c.l.b16 %v8053
    %v8310 = vunpack.c.l.b16 %v8054
    %v8311 = vunpack.c.l.b16 %v8055
    %v8312 = vunpack.c.l.b16 %v8056
    %v8313 = vunpack.c.l.b16 %v8057
    %v8314 = vunpack.c.l.b16 %v8058
    %v8315 = vunpack.c.l.b16 %v8059
    %v8316 = vunpack.c.l.b16 %v8060
    %v8317 = vunpack.c.l.b16 %v8061
    %v8318 = vunpack.c.l.b16 %v8062
    %v8319 = vunpack.c.l.b16 %v8063
    %v8320 = vunpack.c.l.b16 %v8064
    %v8321 = vunpack.c.l.b16 %v8065
    %v8322 = vunpack.c.l.b16 %v8066
    %v8323 = vunpack.c.l.b16 %v8067
    %v8324 = vunpack.c.l.b16 %v8068
    %v8325 = vunpack.c.l.b16 %v8069
    %v8326 = vunpack.c.l.b16 %v8070
    %v8327 = vunpack.c.l.b16 %v8071
    %v8328 = vunpack.c.l.b16 %v8072
    %v8329 = vunpack.c.l.b16 %v8073
    %v8330 = vunpack.c.l.b16 %v8074
    %v8331 = vunpack.c.l.b16 %v8075
    %v8332 = vunpack.c.l.b16 %v8076
    %v8333 = vunpack.c.l.b16 %v8077
    %v8334 = vunpack.c.l.b16 %v8078
    %v8335 = vunpack.c.l.b16 %v8079
    %v8336 = vunpack.c.l.b16 %v8080
    %v8337 = vunpack.c.l.b16 %v8081
    %v8338 = vunpack.c.l.b16 %v8082
    %v8339 = vunpack.c.l.b16 %v8083
    %v8340 = vunpack.c.l.b16 %v8084
    %v8341 = vunpack.c.l.b16 %v8085
    %v8342 = vunpack.c.l.b16 %v8086
    %v8343 = vunpack.c.l.b16 %v8087
    %v8344 = vunpack.c.l.b16 %v8088
    %v8345 = vunpack.c.l.b16 %v8089
    %v8346 = vunpack.c.l.b16 %v8090
    %v8347 = vunpack.c.l.b16 %v8091
    %v8348 = vunpack.c.l.b16 %v8092
    %v8349 = vunpack.c.l.b16 %v8093
    %v8350 = vunpack.c.l.b16 %v8094
    %v8351 = vunpack.c.l.b16 %v8095
    %v8352 = vunpack.c.l.b16 %v8096
    %v8353 = vunpack.c.l.b16 %v8097
    %v8354 = vunpack.c.l.b16 %v8098
    %v8355 = vunpack.c.l.b16 %v8099
    %v8356 = vunpack.c.l.b16 %v8100
    %v8357 = vunpack.c.l.b16 %v8101
    %v8358 = vunpack.c.l.b16 %v8102
    %v8359 = vunpack.c.l.b16 %v8103
    %v8360 = vunpack.c.l.b16 %v8104
    %v8361 = vunpack.c.l.b16 %v8105
    %v8362 = vunpack.c.l.b16 %v8106
    %v8363 = vunpack.c.l.b16 %v8107
    %v8364 = vunpack.c.l.b16 %v8108
    %v8365 = vunpack.c.l.b16 %v8109
    %v8366 = vunpack.c.l.b16 %v8110
    %v8367 = vunpack.c.l.b16 %v8111
    %v8368 = vunpack.c.l.b16 %v8112
    %v8369 = vunpack.c.l.b16 %v8113
    %v8370 = vunpack.c.l.b16 %v8114
    %v8371 = vunpack.c.l.b16 %v8115
    %v8372 = vunpack.c.l.b16 %v8116
    %v8373 = vunpack.c.l.b16 %v8117
    %v8374 = vunpack.c.l.b16 %v8118
    %v8375 = vunpack.c.l.b16 %v8119
    %v8376 = vunpack.c.l.b16 %v8120
    %v8377 = vunpack.c.l.b16 %v8121
    %v8378 = vunpack.c.l.b16 %v8122
    %v8379 = vunpack.c.l.b16 %v8123
    %v8380 = vunpack.c.l.b16 %v8124
    %v8381 = vunpack.c.l.b16 %v8125
    %v8382 = vunpack.c.l.b16 %v8126
    %v8383 = vunpack.c.l.b16 %v8127
    %v8384 = vunpack.c.l.b16 %v8128
    %v8385 = vunpack.c.l.b16 %v8129
    %v8386 = vunpack.c.l.b16 %v8130
    %v8387 = vunpack.c.l.b16 %v8131
    %v8388 = vunpack.c.l.b16 %v8132
    %v8389 = vunpack.c.l.b16 %v8133
    %v8390 = vunpack.c.l.b16 %v8134
    %v8391 = vunpack.c.l.b16 %v8135
    %v8392 = vunpack.c.l.b16 %v8136
    %v8393 = vunpack.c.l.b16 %v8137
    %v8394 = vunpack.c.l.b16 %v8138
    %v8395 = vunpack.c.l.b16 %v8139
    %v8396 = vunpack.c.l.b16 %v8140
    %v8397 = vunpack.c.l.b16 %v8141
    %v8398 = vunpack.c.l.b16 %v8142
    %v8399 = vunpack.c.l.b16 %v8143
    %v8400 = vpack.c.b16 %v8273, %v8272
    %v8401 = vpack.c.b16 %v8275, %v8274
    %v8402 = vpack.c.b16 %v8277, %v8276
    %v8403 = vpack.c.b16 %v8279, %v8278
    %v8404 = vpack.c.b16 %v8281, %v8280
    %v8405 = vpack.c.b16 %v8283, %v8282
    %v8406 = vpack.c.b16 %v8285, %v8284
    %v8407 = vpack.c.b16 %v8287, %v8286
    %v8408 = vpack.c.b16 %v8289, %v8288
    %v8409 = vpack.c.b16 %v8291, %v8290
    %v8410 = vpack.c.b16 %v8293, %v8292
    %v8411 = vpack.c.b16 %v8295, %v8294
    %v8412 = vpack.c.b16 %v8297, %v8296
    %v8413 = vpack.c.b16 %v8299, %v8298
    %v8414 = vpack.c.b16 %v8301, %v8300
    %v8415 = vpack.c.b16 %v8303, %v8302
    %v8416 = vpack.c.b16 %v8305, %v8304
    %v8417 = vpack.c.b16 %v8307, %v8306
    %v8418 = vpack.c.b16 %v8309, %v8308
    %v8419 = vpack.c.b16 %v8311, %v8310
    %v8420 = vpack.c.b16 %v8313, %v8312
    %v8421 = vpack.c.b16 %v8315, %v8314
    %v8422 = vpack.c.b16 %v8317, %v8316
    %v8423 = vpack.c.b16 %v8319, %v8318
    %v8424 = vpack.c.b16 %v8321, %v8320
    %v8425 = vpack.c.b16 %v8323, %v8322
    %v8426 = vpack.c.b16 %v8325, %v8324
    %v8427 = vpack.c.b16 %v8327, %v8326
    %v8428 = vpack.c.b16 %v8329, %v8328
    %v8429 = vpack.c.b16 %v8331, %v8330
    %v8430 = vpack.c.b16 %v8333, %v8332
    %v8431 = vpack.c.b16 %v8335, %v8334
    %v8432 = vpack.c.b16 %v8337, %v8336
    %v8433 = vpack.c.b16 %v8339, %v8338
    %v8434 = vpack.c.b16 %v8341, %v8340
    %v8435 = vpack.c.b16 %v8343, %v8342
    %v8436 = vpack.c.b16 %v8345, %v8344
    %v8437 = vpack.c.b16 %v8347, %v8346
    %v8438 = vpack.c.b16 %v8349, %v8348
    %v8439 = vpack.c.b16 %v8351, %v8350
    %v8440 = vpack.c.b16 %v8353, %v8352
    %v8441 = vpack.c.b16 %v8355, %v8354
    %v8442 = vpack.c.b16 %v8357, %v8356
    %v8443 = vpack.c.b16 %v8359, %v8358
    %v8444 = vpack.c.b16 %v8361, %v8360
    %v8445 = vpack.c.b16 %v8363, %v8362
    %v8446 = vpack.c.b16 %v8365, %v8364
    %v8447 = vpack.c.b16 %v8367, %v8366
    %v8448 = vpack.c.b16 %v8369, %v8368
    %v8449 = vpack.c.b16 %v8371, %v8370
    %v8450 = vpack.c.b16 %v8373, %v8372
    %v8451 = vpack.c.b16 %v8375, %v8374
    %v8452 = vpack.c.b16 %v8377, %v8376
    %v8453 = vpack.c.b16 %v8379, %v8378
    %v8454 = vpack.c.b16 %v8381, %v8380
    %v8455 = vpack.c.b16 %v8383, %v8382
    %v8456 = vpack.c.b16 %v8385, %v8384
    %v8457 = vpack.c.b16 %v8387, %v8386
    %v8458 = vpack.c.b16 %v8389, %v8388
    %v8459 = vpack.c.b16 %v8391, %v8390
    %v8460 = vpack.c.b16 %v8393, %v8392
    %v8461 = vpack.c.b16 %v8395, %v8394
    %v8462 = vpack.c.b16 %v8397, %v8396
    %v8463 = vpack.c.b16 %v8399, %v8398
    %8528 = vmatprep.subr.bf16.mxu0 0
    %8529 = vmatpush1.bf16.msra.mxu0 %v8407
    %8530 = vmatprep.subr.bf16.mxu0 0
    %8531 = vmatpush1.bf16.msra.mxu0 %v8406
    %8532 = vmatprep.subr.bf16.mxu0 0
    %8533 = vmatpush1.bf16.msra.mxu0 %v8405
    %8534 = vmatprep.subr.bf16.mxu0 0
    %8535 = vmatpush1.bf16.msra.mxu0 %v8404
    %8536 = vmatprep.subr.bf16.mxu0 0
    %8537 = vmatpush1.bf16.msra.mxu0 %v8403
    %8538 = vmatprep.subr.bf16.mxu0 0
    %8539 = vmatpush1.bf16.msra.mxu0 %v8402
    %8540 = vmatprep.subr.bf16.mxu0 0
    %8541 = vmatpush1.bf16.msra.mxu0 %v8401
    %8542 = vmatprep.subr.bf16.mxu0 0
    %8543 = vmatpush1.bf16.msra.mxu0 %v8400
    %8544 = vmatprep.subr.bf16.mxu0 0
    %8545 = vmatpush2.bf16.msra.mxu0 %v8415
    %8546 = vmatprep.subr.bf16.mxu0 0
    %8547 = vmatpush2.bf16.msra.mxu0 %v8414
    %8548 = vmatprep.subr.bf16.mxu0 0
    %8549 = vmatpush2.bf16.msra.mxu0 %v8413
    %8550 = vmatprep.subr.bf16.mxu0 0
    %8551 = vmatpush2.bf16.msra.mxu0 %v8412
    %8552 = vmatprep.subr.bf16.mxu0 0
    %8553 = vmatpush2.bf16.msra.mxu0 %v8411
    %8554 = vmatprep.subr.bf16.mxu0 0
    %8555 = vmatpush2.bf16.msra.mxu0 %v8410
    %8556 = vmatprep.subr.bf16.mxu0 0
    %8557 = vmatpush2.bf16.msra.mxu0 %v8409
    %8558 = vmatprep.subr.bf16.mxu0 0
    %8559 = vmatpush2.bf16.msra.mxu0 %v8408
    %8560 = vmatprep.mubr.bf16.mxu0 %v8008
    %8561 = vmatmul.mubr.bf16.gmra.mxu0 %v8007
    %v8562 = vpop.f32.mrf.mxu0
    %v8563 = vadd.f32 0.0, %v8562
    %v8564 = vpop.f32.mrf.mxu0
    %v8565 = vpop.f32.mrf.mxu0
    %v8566 = vpop.f32.mrf.mxu0
    %8567 = vdwg.mxu0
    %8568 = vmatprep.subr.bf16.mxu0 0
    %8569 = vmatpush1.bf16.msra.mxu0 %v8423
    %8570 = vmatprep.subr.bf16.mxu0 0
    %8571 = vmatpush1.bf16.msra.mxu0 %v8422
    %8572 = vmatprep.subr.bf16.mxu0 0
    %8573 = vmatpush1.bf16.msra.mxu0 %v8421
    %8574 = vmatprep.subr.bf16.mxu0 0
    %8575 = vmatpush1.bf16.msra.mxu0 %v8420
    %8576 = vmatprep.subr.bf16.mxu0 0
    %8577 = vmatpush1.bf16.msra.mxu0 %v8419
    %8578 = vmatprep.subr.bf16.mxu0 0
    %8579 = vmatpush1.bf16.msra.mxu0 %v8418
    %8580 = vmatprep.subr.bf16.mxu0 0
    %8581 = vmatpush1.bf16.msra.mxu0 %v8417
    %8582 = vmatprep.subr.bf16.mxu0 0
    %8583 = vmatpush1.bf16.msra.mxu0 %v8416
    %8584 = vmatprep.subr.bf16.mxu0 0
    %8585 = vmatpush2.bf16.msra.mxu0 %v8431
    %8586 = vmatprep.subr.bf16.mxu0 0
    %8587 = vmatpush2.bf16.msra.mxu0 %v8430
    %8588 = vmatprep.subr.bf16.mxu0 0
    %8589 = vmatpush2.bf16.msra.mxu0 %v8429
    %8590 = vmatprep.subr.bf16.mxu0 0
    %8591 = vmatpush2.bf16.msra.mxu0 %v8428
    %8592 = vmatprep.subr.bf16.mxu0 0
    %8593 = vmatpush2.bf16.msra.mxu0 %v8427
    %8594 = vmatprep.subr.bf16.mxu0 0
    %8595 = vmatpush2.bf16.msra.mxu0 %v8426
    %8596 = vmatprep.subr.bf16.mxu0 0
    %8597 = vmatpush2.bf16.msra.mxu0 %v8425
    %8598 = vmatprep.subr.bf16.mxu0 0
    %8599 = vmatpush2.bf16.msra.mxu0 %v8424
    %8600 = vmatprep.mubr.bf16.mxu0 %v8010
    %8601 = vmatmul.mubr.bf16.gmra.mxu0 %v8009
    %v8602 = vpop.f32.mrf.mxu0
    %v8603 = vadd.f32 %v8563, %v8602
    %v8604 = vpop.f32.mrf.mxu0
    %v8605 = vpop.f32.mrf.mxu0
    %v8606 = vpop.f32.mrf.mxu0
    %8607 = vdwg.mxu0
    %8608 = vmatprep.subr.bf16.mxu0 0
    %8609 = vmatpush1.bf16.msra.mxu0 %v8439
    %8610 = vmatprep.subr.bf16.mxu0 0
    %8611 = vmatpush1.bf16.msra.mxu0 %v8438
    %8612 = vmatprep.subr.bf16.mxu0 0
    %8613 = vmatpush1.bf16.msra.mxu0 %v8437
    %8614 = vmatprep.subr.bf16.mxu0 0
    %8615 = vmatpush1.bf16.msra.mxu0 %v8436
    %8616 = vmatprep.subr.bf16.mxu0 0
    %8617 = vmatpush1.bf16.msra.mxu0 %v8435
    %8618 = vmatprep.subr.bf16.mxu0 0
    %8619 = vmatpush1.bf16.msra.mxu0 %v8434
    %8620 = vmatprep.subr.bf16.mxu0 0
    %8621 = vmatpush1.bf16.msra.mxu0 %v8433
    %8622 = vmatprep.subr.bf16.mxu0 0
    %8623 = vmatpush1.bf16.msra.mxu0 %v8432
    %8624 = vmatprep.subr.bf16.mxu0 0
    %8625 = vmatpush2.bf16.msra.mxu0 %v8447
    %8626 = vmatprep.subr.bf16.mxu0 0
    %8627 = vmatpush2.bf16.msra.mxu0 %v8446
    %8628 = vmatprep.subr.bf16.mxu0 0
    %8629 = vmatpush2.bf16.msra.mxu0 %v8445
    %8630 = vmatprep.subr.bf16.mxu0 0
    %8631 = vmatpush2.bf16.msra.mxu0 %v8444
    %8632 = vmatprep.subr.bf16.mxu0 0
    %8633 = vmatpush2.bf16.msra.mxu0 %v8443
    %8634 = vmatprep.subr.bf16.mxu0 0
    %8635 = vmatpush2.bf16.msra.mxu0 %v8442
    %8636 = vmatprep.subr.bf16.mxu0 0
    %8637 = vmatpush2.bf16.msra.mxu0 %v8441
    %8638 = vmatprep.subr.bf16.mxu0 0
    %8639 = vmatpush2.bf16.msra.mxu0 %v8440
    %8640 = vmatprep.mubr.bf16.mxu0 %v8012
    %8641 = vmatmul.mubr.bf16.gmra.mxu0 %v8011
    %v8642 = vpop.f32.mrf.mxu0
    %v8643 = vadd.f32 %v8603, %v8642
    %v8644 = vpop.f32.mrf.mxu0
    %v8645 = vpop.f32.mrf.mxu0
    %v8646 = vpop.f32.mrf.mxu0
    %8647 = vdwg.mxu0
    %8648 = vmatprep.subr.bf16.mxu0 0
    %8649 = vmatpush1.bf16.msra.mxu0 %v8455
    %8650 = vmatprep.subr.bf16.mxu0 0
    %8651 = vmatpush1.bf16.msra.mxu0 %v8454
    %8652 = vmatprep.subr.bf16.mxu0 0
    %8653 = vmatpush1.bf16.msra.mxu0 %v8453
    %8654 = vmatprep.subr.bf16.mxu0 0
    %8655 = vmatpush1.bf16.msra.mxu0 %v8452
    %8656 = vmatprep.subr.bf16.mxu0 0
    %8657 = vmatpush1.bf16.msra.mxu0 %v8451
    %8658 = vmatprep.subr.bf16.mxu0 0
    %8659 = vmatpush1.bf16.msra.mxu0 %v8450
    %8660 = vmatprep.subr.bf16.mxu0 0
    %8661 = vmatpush1.bf16.msra.mxu0 %v8449
    %8662 = vmatprep.subr.bf16.mxu0 0
    %8663 = vmatpush1.bf16.msra.mxu0 %v8448
    %8664 = vmatprep.subr.bf16.mxu0 0
    %8665 = vmatpush2.bf16.msra.mxu0 %v8463
    %8666 = vmatprep.subr.bf16.mxu0 0
    %8667 = vmatpush2.bf16.msra.mxu0 %v8462
    %8668 = vmatprep.subr.bf16.mxu0 0
    %8669 = vmatpush2.bf16.msra.mxu0 %v8461
    %8670 = vmatprep.subr.bf16.mxu0 0
    %8671 = vmatpush2.bf16.msra.mxu0 %v8460
    %8672 = vmatprep.subr.bf16.mxu0 0
    %8673 = vmatpush2.bf16.msra.mxu0 %v8459
    %8674 = vmatprep.subr.bf16.mxu0 0
    %8675 = vmatpush2.bf16.msra.mxu0 %v8458
    %8676 = vmatprep.subr.bf16.mxu0 0
    %8677 = vmatpush2.bf16.msra.mxu0 %v8457
    %8678 = vmatprep.subr.bf16.mxu0 0
    %8679 = vmatpush2.bf16.msra.mxu0 %v8456
    %8680 = vmatprep.mubr.bf16.mxu0 %v8014
    %8681 = vmatmul.mubr.bf16.gmra.mxu0 %v8013
    %v8682 = vpop.f32.mrf.mxu0
    %v8683 = vadd.f32 %v8643, %v8682
    %v8684 = vpop.f32.mrf.mxu0
    %v8685 = vpop.f32.mrf.mxu0
    %v8686 = vpop.f32.mrf.mxu0
    %8687 = vdwg.mxu0
    %v8688 = vadd.f32 %v7974, %v8683
    %v8689 = vld [vmem:[%s4] sm:$0x1]
    %v8691 = vlaneseq
    %v8692 = vshrl.u32 %v8691, 7
    %v8693 = vsub.s32 0, %v8692
    %v8694 = vrot.slane %v8689, %v8693
    %v8696 = vadd.f32 %v8688, %v8694
    %vm8697 = vcmask 123904
    %8698 = vst.msk [vmem:[#allocation3] sm:$0x3] %vm8697, %v8696
    // Predicated region
    $region22: #{forward.1} parent=1 // pred_check
      _
    $region23: #{forward.1} parent=1 // pred_check_branch
      %8700 = sbr.rel (0) target = $region25
    $region24: #{forward.1} parent=1 // pred_region
      %s8702 = ssub.s32 32, 32
      %8703 = vsyncadd [#allocation4], %s8702
      %s8705 = sshll.u32 [#allocation3], 4
      %s8706 = int_to_ptr.vmem [resolvable:$true] %s8705
      %8708 = dma.vmem_to_hbm [thread:$0]  %s8706, 32, %s5, [#allocation4]
    $region25: #{forward.1} parent=1 // pred_fallthru
      _
    // Predicated region
    $region26: #{forward.1} parent=1 // pred_check
      _
    $region27: #{forward.1} parent=1 // pred_check_branch
      %8710 = sbr.rel (0) target = $region29
    $region28: #{forward.1} parent=1 // pred_region
      %8711 = dma.done [#allocation4], 32
    $region29: #{forward.1} parent=1 // pred_fallthru
      _
    %8712 = vsyncpa [#allocation4], 1

</llo_original>
